<compile_context>
chip_gen: v7x
topology: tpu7x:2x2x1
jax: 0.10.0
libtpu: 0.0.40
codegen_flags: <defaults>
</compile_context>

<pallas_src>
import functools

import jax
import jax.numpy as jnp
import numpy as np
from jax.experimental import pallas as pl
from jax.experimental.pallas import tpu as pltpu


def _round_up(x, m):
    return ((x + m - 1) // m) * m


# ------------------------------ Pallas kernel ------------------------------- #

def _widecnn4_kernel(p1_ref, w1_ref, b1_ref, wc_ref, bc_ref,
                     g2_ref, g3_ref, g4_ref,
                     sw1_ref, sb1_ref, sw2_ref, sb2_ref,
                     fcw_ref, fcb_ref, o_ref, z_scr):
    """Whole WideCNN4 forward for one image (one grid step).

    p1_ref : (HW1, K1)  bf16 im2col patches of the 7x7/s2 conv1
    w1_ref : (K1, C)    bf16 folded conv1 weight, b1_ref (1, C) f32 bias
    wc_ref : (3, 9C, C) bf16 folded conv2..4 weights, bc_ref (3, 1, C) biases
    gN_ref : (9, Mn, Mp) bf16 one-hot tap-gather matrices for blocks 2..4
    swX/sbX: stacked SE weights (1/HW folded into sw1), bf16 / f32
    fcw/fcb: head fc (1/HW4 folded), bf16 / f32
    o_ref  : (1, 1, NC) f32 logits,  z_scr: (HW1, C) f32 scratch
    """
    hw1, cp = z_scr.shape
    n_tiles = 4
    tile = hw1 // n_tiles

    def _se(pooled, idx):
        # squeeze (sum with 1/HW folded into sw1) -> fc1 -> relu -> fc2 -> sigmoid
        h = jnp.maximum(
            jnp.dot(pooled.astype(jnp.bfloat16), sw1_ref[idx],
                    preferred_element_type=jnp.float32) + sb1_ref[idx], 0.0)
        t = (jnp.dot(h.astype(jnp.bfloat16), sw2_ref[idx],
                     preferred_element_type=jnp.float32) + sb2_ref[idx])
        # EUP exp + approximate reciprocal keeps the divide off the VALU
        return pl.reciprocal(1.0 + jnp.exp(-t), approx=True)

    # ---- Block 1: 7x7/s2 conv (BN + 1x1 shortcut folded) + ReLU, row-tiled ----
    def conv1_tile(i, psum):
        r0 = pl.multiple_of(i * tile, tile)
        zt = jnp.maximum(
            jnp.dot(p1_ref[pl.ds(r0, tile), :], w1_ref[...],
                    preferred_element_type=jnp.float32) + b1_ref[...], 0.0)
        z_scr[pl.ds(r0, tile), :] = zt                   # stage z in VMEM scratch
        return psum + jnp.sum(zt, axis=0, keepdims=True)

    pooled = jax.lax.fori_loop(0, n_tiles, conv1_tile,
                               jnp.zeros((1, cp), jnp.float32))
    s = _se(pooled, 0)
    y = (z_scr[...] * s).astype(jnp.bfloat16)            # SE excite, (HW1, C)

    # ---- Blocks 2..4: in-kernel patch gather (one-hot MXU) -> folded conv -> SE ----
    for blk, g_ref in enumerate((g2_ref, g3_ref, g4_ref)):
        taps = [jnp.dot(g_ref[t], y, preferred_element_type=jnp.float32)
                .astype(jnp.bfloat16) for t in range(9)]
        patches = jnp.concatenate(taps, axis=1)          # (Mn, 9C) lane-dense
        z = jnp.maximum(
            jnp.dot(patches, wc_ref[blk], preferred_element_type=jnp.float32)
            + bc_ref[blk], 0.0)                          # (Mn, C) f32
        pooled = jnp.sum(z, axis=0, keepdims=True)       # SE squeeze (sum)
        s = _se(pooled, blk + 1)
        y = (z * s).astype(jnp.bfloat16)                 # SE excite

    # ---- Head: avgpool(SE out) == sum(z4)*s4*(1/HW4); 1/HW4 folded into fcw ----
    o_ref[0] = (jnp.dot((pooled * s).astype(jnp.bfloat16), fcw_ref[...],
                        preferred_element_type=jnp.float32) + fcb_ref[...])


# ------------------------------ JAX-side glue ------------------------------- #

def _im2col(x_nhwc, k, stride, pad, k_total):
    """kxk patches -> (B*Ho*Wo, k_total) rows (zero-padded contraction dim)."""
    if pad > 0:
        x_nhwc = jnp.pad(x_nhwc, ((0, 0), (pad, pad), (pad, pad), (0, 0)))
    B, Hp, Wp, C = x_nhwc.shape
    Ho = (Hp - k) // stride + 1
    Wo = (Wp - k) // stride + 1
    slices = []
    for di in range(k):
        for dj in range(k):
            slices.append(x_nhwc[:, di:di + stride * Ho:stride,
                                 dj:dj + stride * Wo:stride, :])
    p = jnp.stack(slices, axis=3)                        # (B, Ho, Wo, k*k, C)
    rows = p.reshape(B * Ho * Wo, k * k * C)
    if k_total > k * k * C:
        rows = jnp.pad(rows, ((0, 0), (0, k_total - k * k * C)))
    return rows, (B, Ho, Wo)


def _tap_gather(hi, wi):
    """One-hot gather matrices for a 3x3/stride-2/pad-1 conv: (9, Ho*Wo, Hi*Wi)."""
    ho, wo = hi // 2, wi // 2
    g = np.zeros((9, ho * wo, hi * wi), np.float32)
    for di in range(3):
        for dj in range(3):
            t = di * 3 + dj
            for i in range(ho):
                r = 2 * i + di - 1
                if not (0 <= r < hi):
                    continue
                for j in range(wo):
                    c = 2 * j + dj - 1
                    if 0 <= c < wi:
                        g[t, i * wo + j, r * wi + c] = 1.0
    return jnp.asarray(g, jnp.bfloat16)


def widecnn4_forward(x_nchw, params, num_classes):
    B = x_nchw.shape[0]
    x = jnp.transpose(x_nchw, (0, 2, 3, 1)).astype(jnp.bfloat16)   # NCHW -> NHWC

    kp1, cp = params["w1"].shape
    ncp = params["fcw"].shape[1]
    p1, (_, h1, w1s) = _im2col(x, 7, 2, 3, kp1)          # block-1 patches (B*HW1, K1)
    hw1 = h1 * w1s
    assert hw1 % 4 == 0

    # trace-time constant one-hot tap-gather matrices for blocks 2-4
    g2 = _tap_gather(h1, w1s)
    g3 = _tap_gather(h1 // 2, w1s // 2)
    g4 = _tap_gather(h1 // 4, w1s // 4)

    def _resident(a):                                    # weights: DMA once, stay in VMEM
        n = a.ndim
        return pl.BlockSpec(a.shape, lambda b: (0,) * n)

    weights = (params["w1"], params["b1"], params["wc"], params["bc"],
               g2, g3, g4,
               params["sw1"], params["sb1"], params["sw2"], params["sb2"],
               params["fcw"], params["fcb"])

    out = pl.pallas_call(
        _widecnn4_kernel,
        out_shape=jax.ShapeDtypeStruct((B, 1, ncp), jnp.float32),
        grid=(B,),
        in_specs=[pl.BlockSpec((hw1, kp1), lambda b: (b, 0))] +
                 [_resident(a) for a in weights],
        out_specs=pl.BlockSpec((1, 1, ncp), lambda b: (b, 0, 0)),
        scratch_shapes=[pltpu.VMEM((hw1, cp), jnp.float32)],
        compiler_params=pltpu.CompilerParams(
            dimension_semantics=("parallel",),
            vmem_limit_bytes=32 * 1024 * 1024),          # leaves headroom on v7x's 64 MiB
    )(p1, *weights)
    return out.reshape(B, ncp)[:, :num_classes]


# ---------------------------- Parameter creation ---------------------------- #

def _bn_affine(c, eps=1e-5):
    # Default-initialized BatchNorm2d in eval mode: gamma=1, beta=0, mean=0, var=1.
    gamma = jnp.ones((c,), jnp.float32)
    beta = jnp.zeros((c,), jnp.float32)
    mean = jnp.zeros((c,), jnp.float32)
    var = jnp.ones((c,), jnp.float32)
    scale = gamma / jnp.sqrt(var + eps)
    bias = beta - mean * scale
    return scale, bias


def _conv_block_params(key, cin, cin_pad, cout, cout_pad, k):
    """Folded ConvBlock weight: BN scales into columns, 1x1 stride-2 shortcut into
    the centre tap (pad = k//2, k odd -> its input pixel is exactly the centre tap)."""
    k1, k2 = jax.random.split(key)
    w_main = (jax.random.normal(k1, (cout, cin, k, k), jnp.float32)
              * jnp.sqrt(2.0 / (cin * k * k)))
    w_sc = jax.random.normal(k2, (cout, cin), jnp.float32) * jnp.sqrt(2.0 / cin)
    s_m, b_m = _bn_affine(cout)
    s_s, b_s = _bn_affine(cout)
    w_main = w_main * s_m[:, None, None, None]
    w_sc = w_sc * s_s[:, None]
    buf = jnp.zeros((k, k, cin_pad, cout_pad), jnp.float32)
    buf = buf.at[:, :, :cin, :cout].set(jnp.transpose(w_main, (2, 3, 1, 0)))
    buf = buf.at[k // 2, k // 2, :cin, :cout].add(w_sc.T)
    wmat = buf.reshape(k * k * cin_pad, cout_pad)
    kdim = k * k * cin_pad
    kp = _round_up(kdim, 128)
    if kp > kdim:
        wmat = jnp.pad(wmat, ((0, kp - kdim), (0, 0)))
    bias = jnp.zeros((1, cout_pad), jnp.float32).at[0, :cout].set(b_m + b_s)
    return dict(w=wmat.astype(jnp.bfloat16), b=bias)


def _se_params(key, c, c_pad, cr, hw):
    k1, k2, k3, k4 = jax.random.split(key, 4)
    w1 = jax.random.normal(k1, (cr, c), jnp.float32) / jnp.sqrt(c)
    b1 = jax.random.normal(k2, (cr,), jnp.float32) * 0.01
    w2 = jax.random.normal(k3, (c, cr), jnp.float32) / jnp.sqrt(cr)
    b2 = jax.random.normal(k4, (c,), jnp.float32) * 0.01
    w1p = jnp.zeros((c_pad, cr), jnp.float32).at[:c, :].set(w1.T / hw)  # fold 1/HW
    w2p = jnp.zeros((cr, c_pad), jnp.float32).at[:, :c].set(w2.T)
    b2p = jnp.zeros((1, c_pad), jnp.float32).at[0, :c].set(b2)
    return dict(w1=w1p.astype(jnp.bfloat16), b1=b1.reshape(1, cr),
                w2=w2p.astype(jnp.bfloat16), b2=b2p)


def _fc_params(key, c, c_pad, nc, nc_pad, hw):
    k1, k2 = jax.random.split(key)
    w = jax.random.normal(k1, (nc, c), jnp.float32) / jnp.sqrt(c)
    b = jax.random.normal(k2, (nc,), jnp.float32) * 0.01
    wp = jnp.zeros((c_pad, nc_pad), jnp.float32).at[:c, :nc].set(w.T / hw)  # fold 1/HW4
    bp = jnp.zeros((1, nc_pad), jnp.float32).at[0, :nc].set(b)
    return dict(w=wp.astype(jnp.bfloat16), b=bp)


def init_params(key, num_classes, width, in_hw=32, reduction=16):
    cp = _round_up(width, 128)               # lane-dense channel padding
    ncp = _round_up(num_classes, 128)
    cr = max(width // reduction, 1)
    hw = [(in_hw // 2) ** 2, (in_hw // 4) ** 2, (in_hw // 8) ** 2, (in_hw // 16) ** 2]
    keys = jax.random.split(key, 9)
    c1 = _conv_block_params(keys[0], 3, 3, width, cp, 7)
    c2 = _conv_block_params(keys[2], width, cp, width, cp, 3)
    c3 = _conv_block_params(keys[4], width, cp, width, cp, 3)
    c4 = _conv_block_params(keys[6], width, cp, width, cp, 3)
    se = [_se_params(keys[i], width, cp, cr, hw[j])
          for j, i in enumerate((1, 3, 5, 7))]
    fc = _fc_params(keys[8], width, cp, num_classes, ncp, hw[3])
    return dict(
        w1=c1["w"], b1=c1["b"],
        wc=jnp.stack([c2["w"], c3["w"], c4["w"]]),
        bc=jnp.stack([c2["b"], c3["b"], c4["b"]]),
        sw1=jnp.stack([p["w1"] for p in se]),
        sb1=jnp.stack([p["b1"] for p in se]),
        sw2=jnp.stack([p["w2"] for p in se]),
        sb2=jnp.stack([p["b2"] for p in se]),
        fcw=fc["w"], fcb=fc["b"],
    )


# ----------------------------------- Main ----------------------------------- #

if __name__ == "__main__":
    num_classes, width = 16, 64              # small-shape instantiation of WideCNN4
    key = jax.random.PRNGKey(0)
    k_params, k_x = jax.random.split(key)

    params = init_params(k_params, num_classes, width, in_hw=32)
    x = jax.random.normal(k_x, (2, 3, 32, 32), jnp.float32)   # NCHW, like PyTorch

    fwd = jax.jit(functools.partial(widecnn4_forward, num_classes=num_classes))
    out = jax.block_until_ready(fwd(x, params))
    assert out.shape == (2, num_classes), out.shape
    assert bool(jnp.all(jnp.isfinite(out)))
    print("KERNEL_OK")
</pallas_src>

<mosaic_0001>
module attributes {stable_mosaic.version = 11 : i64} {
  func.func @_widecnn4_kernel(%arg0: i32, %arg1: memref<256x256xbf16, #tpu.memory_space<vmem>>, %arg2: memref<256x128xbf16, #tpu.memory_space<vmem>>, %arg3: memref<1x128xf32, #tpu.memory_space<vmem>>, %arg4: memref<3x1152x128xbf16, #tpu.memory_space<vmem>>, %arg5: memref<3x1x128xf32, #tpu.memory_space<vmem>>, %arg6: memref<9x64x256xbf16, #tpu.memory_space<vmem>>, %arg7: memref<9x16x64xbf16, #tpu.memory_space<vmem>>, %arg8: memref<9x4x16xbf16, #tpu.memory_space<vmem>>, %arg9: memref<4x128x4xbf16, #tpu.memory_space<vmem>>, %arg10: memref<4x1x4xf32, #tpu.memory_space<vmem>>, %arg11: memref<4x4x128xbf16, #tpu.memory_space<vmem>>, %arg12: memref<4x1x128xf32, #tpu.memory_space<vmem>>, %arg13: memref<128x128xbf16, #tpu.memory_space<vmem>>, %arg14: memref<1x128xf32, #tpu.memory_space<vmem>>, %arg15: memref<1x1x128xf32, #tpu.memory_space<vmem>>, %arg16: memref<256x128xf32, #tpu.memory_space<vmem>>) attributes {dimension_semantics = [#tpu.dimension_semantics<parallel>], iteration_bounds = array<i64: 2>, scalar_prefetch = 0 : i64, scratch_operands = 1 : i64, tpu.core_type = #tpu.core_type<tc>, window_params = [{transform_indices = @transform_0, window_bounds = array<i64: 256, 256>}, {pipeline_mode = #tpu.pipeline_mode<synchronous>, transform_indices = @transform_1, window_bounds = array<i64: 256, 128>}, {pipeline_mode = #tpu.pipeline_mode<synchronous>, transform_indices = @transform_2, window_bounds = array<i64: 1, 128>}, {pipeline_mode = #tpu.pipeline_mode<synchronous>, transform_indices = @transform_3, window_bounds = array<i64: 3, 1152, 128>}, {pipeline_mode = #tpu.pipeline_mode<synchronous>, transform_indices = @transform_4, window_bounds = array<i64: 3, 1, 128>}, {pipeline_mode = #tpu.pipeline_mode<synchronous>, transform_indices = @transform_5, window_bounds = array<i64: 9, 64, 256>}, {pipeline_mode = #tpu.pipeline_mode<synchronous>, transform_indices = @transform_6, window_bounds = array<i64: 9, 16, 64>}, {pipeline_mode = #tpu.pipeline_mode<synchronous>, transform_indices = @transform_7, window_bounds = array<i64: 9, 4, 16>}, {pipeline_mode = #tpu.pipeline_mode<synchronous>, transform_indices = @transform_8, window_bounds = array<i64: 4, 128, 4>}, {pipeline_mode = #tpu.pipeline_mode<synchronous>, transform_indices = @transform_9, window_bounds = array<i64: 4, 1, 4>}, {pipeline_mode = #tpu.pipeline_mode<synchronous>, transform_indices = @transform_10, window_bounds = array<i64: 4, 4, 128>}, {pipeline_mode = #tpu.pipeline_mode<synchronous>, transform_indices = @transform_11, window_bounds = array<i64: 4, 1, 128>}, {pipeline_mode = #tpu.pipeline_mode<synchronous>, transform_indices = @transform_12, window_bounds = array<i64: 128, 128>}, {pipeline_mode = #tpu.pipeline_mode<synchronous>, transform_indices = @transform_13, window_bounds = array<i64: 1, 128>}, {transform_indices = @transform_14, window_bounds = array<i64: 1, 1, 128>}]} {
    %cst = arith.constant 0.000000e+00 : f32
    %0 = vector.broadcast %cst : f32 to vector<1x128xf32>
    %c0_i32 = arith.constant 0 : i32
    %c4_i32 = arith.constant 4 : i32
    %1 = arith.addi %c0_i32, %c4_i32 : i32
    %c1_i32 = arith.constant 1 : i32
    %2 = scf.for %arg17 = %c0_i32 to %1 step %c1_i32 iter_args(%arg18 = %0) -> (vector<1x128xf32>)  : i32 {
      %c64_i32 = arith.constant 64 : i32
      %254 = arith.muli %arg17, %c64_i32 : i32
      %255 = tpu.assume_multiple %254, 64 : i32
      %256 = arith.index_cast %255 : i32 to index
      %c0_205 = arith.constant 0 : index
      %257 = vector.load %arg1[%256, %c0_205] : memref<256x256xbf16, #tpu.memory_space<vmem>>, vector<64x256xbf16>
      %c0_206 = arith.constant 0 : index
      %c0_207 = arith.constant 0 : index
      %258 = vector.load %arg2[%c0_206, %c0_207] : memref<256x128xbf16, #tpu.memory_space<vmem>>, vector<256x128xbf16>
      %cst_208 = arith.constant dense<0.000000e+00> : vector<64x128xf32>
      %259 = tpu.matmul %257, %258, %cst_208 {dimension_numbers = #tpu.dot_dimension_numbers<[1], [0], [0], [1], [0, 0, 1, 1], [], []>} : vector<64x256xbf16>, vector<256x128xbf16>, vector<64x128xf32> -> vector<64x128xf32>
      %c0_209 = arith.constant 0 : index
      %c0_210 = arith.constant 0 : index
      %260 = vector.load %arg3[%c0_209, %c0_210] : memref<1x128xf32, #tpu.memory_space<vmem>>, vector<1x128xf32>
      %261 = vector.broadcast %260 : vector<1x128xf32> to vector<64x128xf32>
      %262 = arith.addf %259, %261 : vector<64x128xf32>
      %cst_211 = arith.constant 0.000000e+00 : f32
      %263 = vector.broadcast %cst_211 : f32 to vector<64x128xf32>
      %264 = arith.maximumf %262, %263 : vector<64x128xf32>
      %265 = arith.index_cast %255 : i32 to index
      %c0_212 = arith.constant 0 : index
      %266 = vector.load %arg16[%265, %c0_212] : memref<256x128xf32, #tpu.memory_space<vmem>>, vector<64x128xf32>
      tpu.vector_store %arg16[%265, %c0_212], %264 {strides = array<i32>} : memref<256x128xf32, #tpu.memory_space<vmem>>, vector<64x128xf32>,
      %cst_213 = arith.constant dense<0.000000e+00> : vector<128xf32>
      %267 = vector.multi_reduction <add>, %264, %cst_213 [0] : vector<64x128xf32> to vector<128xf32>
      %268 = vector.shape_cast %267 : vector<128xf32> to vector<1x128xf32>
      %269 = arith.addf %arg18, %268 : vector<1x128xf32>
      scf.yield %269 : vector<1x128xf32>
    }
    %c4_i32_0 = arith.constant 4 : i32
    %3 = arith.truncf %2 : vector<1x128xf32> to vector<1x128xbf16>
    %c0 = arith.constant 0 : index
    %c0_1 = arith.constant 0 : index
    %c0_2 = arith.constant 0 : index
    %4 = vector.load %arg9[%c0, %c0_1, %c0_2] : memref<4x128x4xbf16, #tpu.memory_space<vmem>>, vector<1x128x4xbf16>
    %5 = vector.shape_cast %4 : vector<1x128x4xbf16> to vector<128x4xbf16>
    %cst_3 = arith.constant dense<0.000000e+00> : vector<1x4xf32>
    %6 = tpu.matmul %3, %5, %cst_3 {dimension_numbers = #tpu.dot_dimension_numbers<[1], [0], [0], [1], [0, 0, 1, 1], [], []>} : vector<1x128xbf16>, vector<128x4xbf16>, vector<1x4xf32> -> vector<1x4xf32>
    %c0_4 = arith.constant 0 : index
    %c0_5 = arith.constant 0 : index
    %c0_6 = arith.constant 0 : index
    %7 = vector.load %arg10[%c0_4, %c0_5, %c0_6] : memref<4x1x4xf32, #tpu.memory_space<vmem>>, vector<1x1x4xf32>
    %8 = vector.shape_cast %7 : vector<1x1x4xf32> to vector<1x4xf32>
    %9 = arith.addf %6, %8 : vector<1x4xf32>
    %cst_7 = arith.constant 0.000000e+00 : f32
    %10 = vector.broadcast %cst_7 : f32 to vector<1x4xf32>
    %11 = arith.maximumf %9, %10 : vector<1x4xf32>
    %12 = arith.truncf %11 : vector<1x4xf32> to vector<1x4xbf16>
    %c0_8 = arith.constant 0 : index
    %c0_9 = arith.constant 0 : index
    %c0_10 = arith.constant 0 : index
    %13 = vector.load %arg11[%c0_8, %c0_9, %c0_10] : memref<4x4x128xbf16, #tpu.memory_space<vmem>>, vector<1x4x128xbf16>
    %14 = vector.shape_cast %13 : vector<1x4x128xbf16> to vector<4x128xbf16>
    %cst_11 = arith.constant dense<0.000000e+00> : vector<1x128xf32>
    %15 = tpu.matmul %12, %14, %cst_11 {dimension_numbers = #tpu.dot_dimension_numbers<[1], [0], [0], [1], [0, 0, 1, 1], [], []>} : vector<1x4xbf16>, vector<4x128xbf16>, vector<1x128xf32> -> vector<1x128xf32>
    %c0_12 = arith.constant 0 : index
    %c0_13 = arith.constant 0 : index
    %c0_14 = arith.constant 0 : index
    %16 = vector.load %arg12[%c0_12, %c0_13, %c0_14] : memref<4x1x128xf32, #tpu.memory_space<vmem>>, vector<1x1x128xf32>
    %17 = vector.shape_cast %16 : vector<1x1x128xf32> to vector<1x128xf32>
    %18 = arith.addf %15, %17 : vector<1x128xf32>
    %cst_15 = arith.constant 0.000000e+00 : f32
    %19 = vector.broadcast %cst_15 : f32 to vector<1x128xf32>
    %20 = arith.subf %19, %18 : vector<1x128xf32>
    %21 = math.exp %20 : vector<1x128xf32>
    %cst_16 = arith.constant 1.000000e+00 : f32
    %22 = vector.broadcast %cst_16 : f32 to vector<1x128xf32>
    %23 = arith.addf %22, %21 : vector<1x128xf32>
    %24 = tpu.reciprocal %23 {approx = true} : vector<1x128xf32> -> vector<1x128xf32>
    %c0_17 = arith.constant 0 : index
    %c0_18 = arith.constant 0 : index
    %25 = vector.load %arg16[%c0_17, %c0_18] : memref<256x128xf32, #tpu.memory_space<vmem>>, vector<256x128xf32>
    %26 = vector.broadcast %24 : vector<1x128xf32> to vector<256x128xf32>
    %27 = arith.mulf %25, %26 : vector<256x128xf32>
    %28 = arith.truncf %27 : vector<256x128xf32> to vector<256x128xbf16>
    %c0_19 = arith.constant 0 : index
    %c0_20 = arith.constant 0 : index
    %c0_21 = arith.constant 0 : index
    %29 = vector.load %arg6[%c0_19, %c0_20, %c0_21] : memref<9x64x256xbf16, #tpu.memory_space<vmem>>, vector<1x64x256xbf16>
    %30 = vector.shape_cast %29 : vector<1x64x256xbf16> to vector<64x256xbf16>
    %cst_22 = arith.constant dense<0.000000e+00> : vector<64x128xf32>
    %31 = tpu.matmul %30, %28, %cst_22 {dimension_numbers = #tpu.dot_dimension_numbers<[1], [0], [0], [1], [0, 0, 1, 1], [], []>} : vector<64x256xbf16>, vector<256x128xbf16>, vector<64x128xf32> -> vector<64x128xf32>
    %32 = arith.truncf %31 : vector<64x128xf32> to vector<64x128xbf16>
    %c1 = arith.constant 1 : index
    %c0_23 = arith.constant 0 : index
    %c0_24 = arith.constant 0 : index
    %33 = vector.load %arg6[%c1, %c0_23, %c0_24] : memref<9x64x256xbf16, #tpu.memory_space<vmem>>, vector<1x64x256xbf16>
    %34 = vector.shape_cast %33 : vector<1x64x256xbf16> to vector<64x256xbf16>
    %cst_25 = arith.constant dense<0.000000e+00> : vector<64x128xf32>
    %35 = tpu.matmul %34, %28, %cst_25 {dimension_numbers = #tpu.dot_dimension_numbers<[1], [0], [0], [1], [0, 0, 1, 1], [], []>} : vector<64x256xbf16>, vector<256x128xbf16>, vector<64x128xf32> -> vector<64x128xf32>
    %36 = arith.truncf %35 : vector<64x128xf32> to vector<64x128xbf16>
    %c2 = arith.constant 2 : index
    %c0_26 = arith.constant 0 : index
    %c0_27 = arith.constant 0 : index
    %37 = vector.load %arg6[%c2, %c0_26, %c0_27] : memref<9x64x256xbf16, #tpu.memory_space<vmem>>, vector<1x64x256xbf16>
    %38 = vector.shape_cast %37 : vector<1x64x256xbf16> to vector<64x256xbf16>
    %cst_28 = arith.constant dense<0.000000e+00> : vector<64x128xf32>
    %39 = tpu.matmul %38, %28, %cst_28 {dimension_numbers = #tpu.dot_dimension_numbers<[1], [0], [0], [1], [0, 0, 1, 1], [], []>} : vector<64x256xbf16>, vector<256x128xbf16>, vector<64x128xf32> -> vector<64x128xf32>
    %40 = arith.truncf %39 : vector<64x128xf32> to vector<64x128xbf16>
    %c3 = arith.constant 3 : index
    %c0_29 = arith.constant 0 : index
    %c0_30 = arith.constant 0 : index
    %41 = vector.load %arg6[%c3, %c0_29, %c0_30] : memref<9x64x256xbf16, #tpu.memory_space<vmem>>, vector<1x64x256xbf16>
    %42 = vector.shape_cast %41 : vector<1x64x256xbf16> to vector<64x256xbf16>
    %cst_31 = arith.constant dense<0.000000e+00> : vector<64x128xf32>
    %43 = tpu.matmul %42, %28, %cst_31 {dimension_numbers = #tpu.dot_dimension_numbers<[1], [0], [0], [1], [0, 0, 1, 1], [], []>} : vector<64x256xbf16>, vector<256x128xbf16>, vector<64x128xf32> -> vector<64x128xf32>
    %44 = arith.truncf %43 : vector<64x128xf32> to vector<64x128xbf16>
    %c4 = arith.constant 4 : index
    %c0_32 = arith.constant 0 : index
    %c0_33 = arith.constant 0 : index
    %45 = vector.load %arg6[%c4, %c0_32, %c0_33] : memref<9x64x256xbf16, #tpu.memory_space<vmem>>, vector<1x64x256xbf16>
    %46 = vector.shape_cast %45 : vector<1x64x256xbf16> to vector<64x256xbf16>
    %cst_34 = arith.constant dense<0.000000e+00> : vector<64x128xf32>
    %47 = tpu.matmul %46, %28, %cst_34 {dimension_numbers = #tpu.dot_dimension_numbers<[1], [0], [0], [1], [0, 0, 1, 1], [], []>} : vector<64x256xbf16>, vector<256x128xbf16>, vector<64x128xf32> -> vector<64x128xf32>
    %48 = arith.truncf %47 : vector<64x128xf32> to vector<64x128xbf16>
    %c5 = arith.constant 5 : index
    %c0_35 = arith.constant 0 : index
    %c0_36 = arith.constant 0 : index
    %49 = vector.load %arg6[%c5, %c0_35, %c0_36] : memref<9x64x256xbf16, #tpu.memory_space<vmem>>, vector<1x64x256xbf16>
    %50 = vector.shape_cast %49 : vector<1x64x256xbf16> to vector<64x256xbf16>
    %cst_37 = arith.constant dense<0.000000e+00> : vector<64x128xf32>
    %51 = tpu.matmul %50, %28, %cst_37 {dimension_numbers = #tpu.dot_dimension_numbers<[1], [0], [0], [1], [0, 0, 1, 1], [], []>} : vector<64x256xbf16>, vector<256x128xbf16>, vector<64x128xf32> -> vector<64x128xf32>
    %52 = arith.truncf %51 : vector<64x128xf32> to vector<64x128xbf16>
    %c6 = arith.constant 6 : index
    %c0_38 = arith.constant 0 : index
    %c0_39 = arith.constant 0 : index
    %53 = vector.load %arg6[%c6, %c0_38, %c0_39] : memref<9x64x256xbf16, #tpu.memory_space<vmem>>, vector<1x64x256xbf16>
    %54 = vector.shape_cast %53 : vector<1x64x256xbf16> to vector<64x256xbf16>
    %cst_40 = arith.constant dense<0.000000e+00> : vector<64x128xf32>
    %55 = tpu.matmul %54, %28, %cst_40 {dimension_numbers = #tpu.dot_dimension_numbers<[1], [0], [0], [1], [0, 0, 1, 1], [], []>} : vector<64x256xbf16>, vector<256x128xbf16>, vector<64x128xf32> -> vector<64x128xf32>
    %56 = arith.truncf %55 : vector<64x128xf32> to vector<64x128xbf16>
    %c7 = arith.constant 7 : index
    %c0_41 = arith.constant 0 : index
    %c0_42 = arith.constant 0 : index
    %57 = vector.load %arg6[%c7, %c0_41, %c0_42] : memref<9x64x256xbf16, #tpu.memory_space<vmem>>, vector<1x64x256xbf16>
    %58 = vector.shape_cast %57 : vector<1x64x256xbf16> to vector<64x256xbf16>
    %cst_43 = arith.constant dense<0.000000e+00> : vector<64x128xf32>
    %59 = tpu.matmul %58, %28, %cst_43 {dimension_numbers = #tpu.dot_dimension_numbers<[1], [0], [0], [1], [0, 0, 1, 1], [], []>} : vector<64x256xbf16>, vector<256x128xbf16>, vector<64x128xf32> -> vector<64x128xf32>
    %60 = arith.truncf %59 : vector<64x128xf32> to vector<64x128xbf16>
    %c8 = arith.constant 8 : index
    %c0_44 = arith.constant 0 : index
    %c0_45 = arith.constant 0 : index
    %61 = vector.load %arg6[%c8, %c0_44, %c0_45] : memref<9x64x256xbf16, #tpu.memory_space<vmem>>, vector<1x64x256xbf16>
    %62 = vector.shape_cast %61 : vector<1x64x256xbf16> to vector<64x256xbf16>
    %cst_46 = arith.constant dense<0.000000e+00> : vector<64x128xf32>
    %63 = tpu.matmul %62, %28, %cst_46 {dimension_numbers = #tpu.dot_dimension_numbers<[1], [0], [0], [1], [0, 0, 1, 1], [], []>} : vector<64x256xbf16>, vector<256x128xbf16>, vector<64x128xf32> -> vector<64x128xf32>
    %64 = arith.truncf %63 : vector<64x128xf32> to vector<64x128xbf16>
    %65 = tpu.concatenate %32, %36, %40, %44, %48, %52, %56, %60, %64 in 1 : vector<64x128xbf16>, vector<64x128xbf16>, vector<64x128xbf16>, vector<64x128xbf16>, vector<64x128xbf16>, vector<64x128xbf16>, vector<64x128xbf16>, vector<64x128xbf16>, vector<64x128xbf16> -> vector<64x1152xbf16>
    %c0_47 = arith.constant 0 : index
    %c0_48 = arith.constant 0 : index
    %c0_49 = arith.constant 0 : index
    %66 = vector.load %arg4[%c0_47, %c0_48, %c0_49] : memref<3x1152x128xbf16, #tpu.memory_space<vmem>>, vector<1x1152x128xbf16>
    %67 = vector.shape_cast %66 : vector<1x1152x128xbf16> to vector<1152x128xbf16>
    %cst_50 = arith.constant dense<0.000000e+00> : vector<64x128xf32>
    %68 = tpu.matmul %65, %67, %cst_50 {dimension_numbers = #tpu.dot_dimension_numbers<[1], [0], [0], [1], [0, 0, 1, 1], [], []>} : vector<64x1152xbf16>, vector<1152x128xbf16>, vector<64x128xf32> -> vector<64x128xf32>
    %c0_51 = arith.constant 0 : index
    %c0_52 = arith.constant 0 : index
    %c0_53 = arith.constant 0 : index
    %69 = vector.load %arg5[%c0_51, %c0_52, %c0_53] : memref<3x1x128xf32, #tpu.memory_space<vmem>>, vector<1x1x128xf32>
    %70 = vector.shape_cast %69 : vector<1x1x128xf32> to vector<1x128xf32>
    %71 = vector.broadcast %70 : vector<1x128xf32> to vector<64x128xf32>
    %72 = arith.addf %68, %71 : vector<64x128xf32>
    %cst_54 = arith.constant 0.000000e+00 : f32
    %73 = vector.broadcast %cst_54 : f32 to vector<64x128xf32>
    %74 = arith.maximumf %72, %73 : vector<64x128xf32>
    %cst_55 = arith.constant dense<0.000000e+00> : vector<128xf32>
    %75 = vector.multi_reduction <add>, %74, %cst_55 [0] : vector<64x128xf32> to vector<128xf32>
    %76 = vector.shape_cast %75 : vector<128xf32> to vector<1x128xf32>
    %77 = arith.truncf %76 : vector<1x128xf32> to vector<1x128xbf16>
    %c1_56 = arith.constant 1 : index
    %c0_57 = arith.constant 0 : index
    %c0_58 = arith.constant 0 : index
    %78 = vector.load %arg9[%c1_56, %c0_57, %c0_58] : memref<4x128x4xbf16, #tpu.memory_space<vmem>>, vector<1x128x4xbf16>
    %79 = vector.shape_cast %78 : vector<1x128x4xbf16> to vector<128x4xbf16>
    %cst_59 = arith.constant dense<0.000000e+00> : vector<1x4xf32>
    %80 = tpu.matmul %77, %79, %cst_59 {dimension_numbers = #tpu.dot_dimension_numbers<[1], [0], [0], [1], [0, 0, 1, 1], [], []>} : vector<1x128xbf16>, vector<128x4xbf16>, vector<1x4xf32> -> vector<1x4xf32>
    %c1_60 = arith.constant 1 : index
    %c0_61 = arith.constant 0 : index
    %c0_62 = arith.constant 0 : index
    %81 = vector.load %arg10[%c1_60, %c0_61, %c0_62] : memref<4x1x4xf32, #tpu.memory_space<vmem>>, vector<1x1x4xf32>
    %82 = vector.shape_cast %81 : vector<1x1x4xf32> to vector<1x4xf32>
    %83 = arith.addf %80, %82 : vector<1x4xf32>
    %cst_63 = arith.constant 0.000000e+00 : f32
    %84 = vector.broadcast %cst_63 : f32 to vector<1x4xf32>
    %85 = arith.maximumf %83, %84 : vector<1x4xf32>
    %86 = arith.truncf %85 : vector<1x4xf32> to vector<1x4xbf16>
    %c1_64 = arith.constant 1 : index
    %c0_65 = arith.constant 0 : index
    %c0_66 = arith.constant 0 : index
    %87 = vector.load %arg11[%c1_64, %c0_65, %c0_66] : memref<4x4x128xbf16, #tpu.memory_space<vmem>>, vector<1x4x128xbf16>
    %88 = vector.shape_cast %87 : vector<1x4x128xbf16> to vector<4x128xbf16>
    %cst_67 = arith.constant dense<0.000000e+00> : vector<1x128xf32>
    %89 = tpu.matmul %86, %88, %cst_67 {dimension_numbers = #tpu.dot_dimension_numbers<[1], [0], [0], [1], [0, 0, 1, 1], [], []>} : vector<1x4xbf16>, vector<4x128xbf16>, vector<1x128xf32> -> vector<1x128xf32>
    %c1_68 = arith.constant 1 : index
    %c0_69 = arith.constant 0 : index
    %c0_70 = arith.constant 0 : index
    %90 = vector.load %arg12[%c1_68, %c0_69, %c0_70] : memref<4x1x128xf32, #tpu.memory_space<vmem>>, vector<1x1x128xf32>
    %91 = vector.shape_cast %90 : vector<1x1x128xf32> to vector<1x128xf32>
    %92 = arith.addf %89, %91 : vector<1x128xf32>
    %cst_71 = arith.constant 0.000000e+00 : f32
    %93 = vector.broadcast %cst_71 : f32 to vector<1x128xf32>
    %94 = arith.subf %93, %92 : vector<1x128xf32>
    %95 = math.exp %94 : vector<1x128xf32>
    %cst_72 = arith.constant 1.000000e+00 : f32
    %96 = vector.broadcast %cst_72 : f32 to vector<1x128xf32>
    %97 = arith.addf %96, %95 : vector<1x128xf32>
    %98 = tpu.reciprocal %97 {approx = true} : vector<1x128xf32> -> vector<1x128xf32>
    %99 = vector.broadcast %98 : vector<1x128xf32> to vector<64x128xf32>
    %100 = arith.mulf %74, %99 : vector<64x128xf32>
    %101 = arith.truncf %100 : vector<64x128xf32> to vector<64x128xbf16>
    %c0_73 = arith.constant 0 : index
    %c0_74 = arith.constant 0 : index
    %c0_75 = arith.constant 0 : index
    %102 = vector.load %arg7[%c0_73, %c0_74, %c0_75] : memref<9x16x64xbf16, #tpu.memory_space<vmem>>, vector<1x16x64xbf16>
    %103 = vector.shape_cast %102 : vector<1x16x64xbf16> to vector<16x64xbf16>
    %cst_76 = arith.constant dense<0.000000e+00> : vector<16x128xf32>
    %104 = tpu.matmul %103, %101, %cst_76 {dimension_numbers = #tpu.dot_dimension_numbers<[1], [0], [0], [1], [0, 0, 1, 1], [], []>} : vector<16x64xbf16>, vector<64x128xbf16>, vector<16x128xf32> -> vector<16x128xf32>
    %105 = arith.truncf %104 : vector<16x128xf32> to vector<16x128xbf16>
    %c1_77 = arith.constant 1 : index
    %c0_78 = arith.constant 0 : index
    %c0_79 = arith.constant 0 : index
    %106 = vector.load %arg7[%c1_77, %c0_78, %c0_79] : memref<9x16x64xbf16, #tpu.memory_space<vmem>>, vector<1x16x64xbf16>
    %107 = vector.shape_cast %106 : vector<1x16x64xbf16> to vector<16x64xbf16>
    %cst_80 = arith.constant dense<0.000000e+00> : vector<16x128xf32>
    %108 = tpu.matmul %107, %101, %cst_80 {dimension_numbers = #tpu.dot_dimension_numbers<[1], [0], [0], [1], [0, 0, 1, 1], [], []>} : vector<16x64xbf16>, vector<64x128xbf16>, vector<16x128xf32> -> vector<16x128xf32>
    %109 = arith.truncf %108 : vector<16x128xf32> to vector<16x128xbf16>
    %c2_81 = arith.constant 2 : index
    %c0_82 = arith.constant 0 : index
    %c0_83 = arith.constant 0 : index
    %110 = vector.load %arg7[%c2_81, %c0_82, %c0_83] : memref<9x16x64xbf16, #tpu.memory_space<vmem>>, vector<1x16x64xbf16>
    %111 = vector.shape_cast %110 : vector<1x16x64xbf16> to vector<16x64xbf16>
    %cst_84 = arith.constant dense<0.000000e+00> : vector<16x128xf32>
    %112 = tpu.matmul %111, %101, %cst_84 {dimension_numbers = #tpu.dot_dimension_numbers<[1], [0], [0], [1], [0, 0, 1, 1], [], []>} : vector<16x64xbf16>, vector<64x128xbf16>, vector<16x128xf32> -> vector<16x128xf32>
    %113 = arith.truncf %112 : vector<16x128xf32> to vector<16x128xbf16>
    %c3_85 = arith.constant 3 : index
    %c0_86 = arith.constant 0 : index
    %c0_87 = arith.constant 0 : index
    %114 = vector.load %arg7[%c3_85, %c0_86, %c0_87] : memref<9x16x64xbf16, #tpu.memory_space<vmem>>, vector<1x16x64xbf16>
    %115 = vector.shape_cast %114 : vector<1x16x64xbf16> to vector<16x64xbf16>
    %cst_88 = arith.constant dense<0.000000e+00> : vector<16x128xf32>
    %116 = tpu.matmul %115, %101, %cst_88 {dimension_numbers = #tpu.dot_dimension_numbers<[1], [0], [0], [1], [0, 0, 1, 1], [], []>} : vector<16x64xbf16>, vector<64x128xbf16>, vector<16x128xf32> -> vector<16x128xf32>
    %117 = arith.truncf %116 : vector<16x128xf32> to vector<16x128xbf16>
    %c4_89 = arith.constant 4 : index
    %c0_90 = arith.constant 0 : index
    %c0_91 = arith.constant 0 : index
    %118 = vector.load %arg7[%c4_89, %c0_90, %c0_91] : memref<9x16x64xbf16, #tpu.memory_space<vmem>>, vector<1x16x64xbf16>
    %119 = vector.shape_cast %118 : vector<1x16x64xbf16> to vector<16x64xbf16>
    %cst_92 = arith.constant dense<0.000000e+00> : vector<16x128xf32>
    %120 = tpu.matmul %119, %101, %cst_92 {dimension_numbers = #tpu.dot_dimension_numbers<[1], [0], [0], [1], [0, 0, 1, 1], [], []>} : vector<16x64xbf16>, vector<64x128xbf16>, vector<16x128xf32> -> vector<16x128xf32>
    %121 = arith.truncf %120 : vector<16x128xf32> to vector<16x128xbf16>
    %c5_93 = arith.constant 5 : index
    %c0_94 = arith.constant 0 : index
    %c0_95 = arith.constant 0 : index
    %122 = vector.load %arg7[%c5_93, %c0_94, %c0_95] : memref<9x16x64xbf16, #tpu.memory_space<vmem>>, vector<1x16x64xbf16>
    %123 = vector.shape_cast %122 : vector<1x16x64xbf16> to vector<16x64xbf16>
    %cst_96 = arith.constant dense<0.000000e+00> : vector<16x128xf32>
    %124 = tpu.matmul %123, %101, %cst_96 {dimension_numbers = #tpu.dot_dimension_numbers<[1], [0], [0], [1], [0, 0, 1, 1], [], []>} : vector<16x64xbf16>, vector<64x128xbf16>, vector<16x128xf32> -> vector<16x128xf32>
    %125 = arith.truncf %124 : vector<16x128xf32> to vector<16x128xbf16>
    %c6_97 = arith.constant 6 : index
    %c0_98 = arith.constant 0 : index
    %c0_99 = arith.constant 0 : index
    %126 = vector.load %arg7[%c6_97, %c0_98, %c0_99] : memref<9x16x64xbf16, #tpu.memory_space<vmem>>, vector<1x16x64xbf16>
    %127 = vector.shape_cast %126 : vector<1x16x64xbf16> to vector<16x64xbf16>
    %cst_100 = arith.constant dense<0.000000e+00> : vector<16x128xf32>
    %128 = tpu.matmul %127, %101, %cst_100 {dimension_numbers = #tpu.dot_dimension_numbers<[1], [0], [0], [1], [0, 0, 1, 1], [], []>} : vector<16x64xbf16>, vector<64x128xbf16>, vector<16x128xf32> -> vector<16x128xf32>
    %129 = arith.truncf %128 : vector<16x128xf32> to vector<16x128xbf16>
    %c7_101 = arith.constant 7 : index
    %c0_102 = arith.constant 0 : index
    %c0_103 = arith.constant 0 : index
    %130 = vector.load %arg7[%c7_101, %c0_102, %c0_103] : memref<9x16x64xbf16, #tpu.memory_space<vmem>>, vector<1x16x64xbf16>
    %131 = vector.shape_cast %130 : vector<1x16x64xbf16> to vector<16x64xbf16>
    %cst_104 = arith.constant dense<0.000000e+00> : vector<16x128xf32>
    %132 = tpu.matmul %131, %101, %cst_104 {dimension_numbers = #tpu.dot_dimension_numbers<[1], [0], [0], [1], [0, 0, 1, 1], [], []>} : vector<16x64xbf16>, vector<64x128xbf16>, vector<16x128xf32> -> vector<16x128xf32>
    %133 = arith.truncf %132 : vector<16x128xf32> to vector<16x128xbf16>
    %c8_105 = arith.constant 8 : index
    %c0_106 = arith.constant 0 : index
    %c0_107 = arith.constant 0 : index
    %134 = vector.load %arg7[%c8_105, %c0_106, %c0_107] : memref<9x16x64xbf16, #tpu.memory_space<vmem>>, vector<1x16x64xbf16>
    %135 = vector.shape_cast %134 : vector<1x16x64xbf16> to vector<16x64xbf16>
    %cst_108 = arith.constant dense<0.000000e+00> : vector<16x128xf32>
    %136 = tpu.matmul %135, %101, %cst_108 {dimension_numbers = #tpu.dot_dimension_numbers<[1], [0], [0], [1], [0, 0, 1, 1], [], []>} : vector<16x64xbf16>, vector<64x128xbf16>, vector<16x128xf32> -> vector<16x128xf32>
    %137 = arith.truncf %136 : vector<16x128xf32> to vector<16x128xbf16>
    %138 = tpu.concatenate %105, %109, %113, %117, %121, %125, %129, %133, %137 in 1 : vector<16x128xbf16>, vector<16x128xbf16>, vector<16x128xbf16>, vector<16x128xbf16>, vector<16x128xbf16>, vector<16x128xbf16>, vector<16x128xbf16>, vector<16x128xbf16>, vector<16x128xbf16> -> vector<16x1152xbf16>
    %c1_109 = arith.constant 1 : index
    %c0_110 = arith.constant 0 : index
    %c0_111 = arith.constant 0 : index
    %139 = vector.load %arg4[%c1_109, %c0_110, %c0_111] : memref<3x1152x128xbf16, #tpu.memory_space<vmem>>, vector<1x1152x128xbf16>
    %140 = vector.shape_cast %139 : vector<1x1152x128xbf16> to vector<1152x128xbf16>
    %cst_112 = arith.constant dense<0.000000e+00> : vector<16x128xf32>
    %141 = tpu.matmul %138, %140, %cst_112 {dimension_numbers = #tpu.dot_dimension_numbers<[1], [0], [0], [1], [0, 0, 1, 1], [], []>} : vector<16x1152xbf16>, vector<1152x128xbf16>, vector<16x128xf32> -> vector<16x128xf32>
    %c1_113 = arith.constant 1 : index
    %c0_114 = arith.constant 0 : index
    %c0_115 = arith.constant 0 : index
    %142 = vector.load %arg5[%c1_113, %c0_114, %c0_115] : memref<3x1x128xf32, #tpu.memory_space<vmem>>, vector<1x1x128xf32>
    %143 = vector.shape_cast %142 : vector<1x1x128xf32> to vector<1x128xf32>
    %144 = vector.broadcast %143 : vector<1x128xf32> to vector<16x128xf32>
    %145 = arith.addf %141, %144 : vector<16x128xf32>
    %cst_116 = arith.constant 0.000000e+00 : f32
    %146 = vector.broadcast %cst_116 : f32 to vector<16x128xf32>
    %147 = arith.maximumf %145, %146 : vector<16x128xf32>
    %cst_117 = arith.constant dense<0.000000e+00> : vector<128xf32>
    %148 = vector.multi_reduction <add>, %147, %cst_117 [0] : vector<16x128xf32> to vector<128xf32>
    %149 = vector.shape_cast %148 : vector<128xf32> to vector<1x128xf32>
    %150 = arith.truncf %149 : vector<1x128xf32> to vector<1x128xbf16>
    %c2_118 = arith.constant 2 : index
    %c0_119 = arith.constant 0 : index
    %c0_120 = arith.constant 0 : index
    %151 = vector.load %arg9[%c2_118, %c0_119, %c0_120] : memref<4x128x4xbf16, #tpu.memory_space<vmem>>, vector<1x128x4xbf16>
    %152 = vector.shape_cast %151 : vector<1x128x4xbf16> to vector<128x4xbf16>
    %cst_121 = arith.constant dense<0.000000e+00> : vector<1x4xf32>
    %153 = tpu.matmul %150, %152, %cst_121 {dimension_numbers = #tpu.dot_dimension_numbers<[1], [0], [0], [1], [0, 0, 1, 1], [], []>} : vector<1x128xbf16>, vector<128x4xbf16>, vector<1x4xf32> -> vector<1x4xf32>
    %c2_122 = arith.constant 2 : index
    %c0_123 = arith.constant 0 : index
    %c0_124 = arith.constant 0 : index
    %154 = vector.load %arg10[%c2_122, %c0_123, %c0_124] : memref<4x1x4xf32, #tpu.memory_space<vmem>>, vector<1x1x4xf32>
    %155 = vector.shape_cast %154 : vector<1x1x4xf32> to vector<1x4xf32>
    %156 = arith.addf %153, %155 : vector<1x4xf32>
    %cst_125 = arith.constant 0.000000e+00 : f32
    %157 = vector.broadcast %cst_125 : f32 to vector<1x4xf32>
    %158 = arith.maximumf %156, %157 : vector<1x4xf32>
    %159 = arith.truncf %158 : vector<1x4xf32> to vector<1x4xbf16>
    %c2_126 = arith.constant 2 : index
    %c0_127 = arith.constant 0 : index
    %c0_128 = arith.constant 0 : index
    %160 = vector.load %arg11[%c2_126, %c0_127, %c0_128] : memref<4x4x128xbf16, #tpu.memory_space<vmem>>, vector<1x4x128xbf16>
    %161 = vector.shape_cast %160 : vector<1x4x128xbf16> to vector<4x128xbf16>
    %cst_129 = arith.constant dense<0.000000e+00> : vector<1x128xf32>
    %162 = tpu.matmul %159, %161, %cst_129 {dimension_numbers = #tpu.dot_dimension_numbers<[1], [0], [0], [1], [0, 0, 1, 1], [], []>} : vector<1x4xbf16>, vector<4x128xbf16>, vector<1x128xf32> -> vector<1x128xf32>
    %c2_130 = arith.constant 2 : index
    %c0_131 = arith.constant 0 : index
    %c0_132 = arith.constant 0 : index
    %163 = vector.load %arg12[%c2_130, %c0_131, %c0_132] : memref<4x1x128xf32, #tpu.memory_space<vmem>>, vector<1x1x128xf32>
    %164 = vector.shape_cast %163 : vector<1x1x128xf32> to vector<1x128xf32>
    %165 = arith.addf %162, %164 : vector<1x128xf32>
    %cst_133 = arith.constant 0.000000e+00 : f32
    %166 = vector.broadcast %cst_133 : f32 to vector<1x128xf32>
    %167 = arith.subf %166, %165 : vector<1x128xf32>
    %168 = math.exp %167 : vector<1x128xf32>
    %cst_134 = arith.constant 1.000000e+00 : f32
    %169 = vector.broadcast %cst_134 : f32 to vector<1x128xf32>
    %170 = arith.addf %169, %168 : vector<1x128xf32>
    %171 = tpu.reciprocal %170 {approx = true} : vector<1x128xf32> -> vector<1x128xf32>
    %172 = vector.broadcast %171 : vector<1x128xf32> to vector<16x128xf32>
    %173 = arith.mulf %147, %172 : vector<16x128xf32>
    %174 = arith.truncf %173 : vector<16x128xf32> to vector<16x128xbf16>
    %c0_135 = arith.constant 0 : index
    %c0_136 = arith.constant 0 : index
    %c0_137 = arith.constant 0 : index
    %175 = vector.load %arg8[%c0_135, %c0_136, %c0_137] : memref<9x4x16xbf16, #tpu.memory_space<vmem>>, vector<1x4x16xbf16>
    %176 = vector.shape_cast %175 : vector<1x4x16xbf16> to vector<4x16xbf16>
    %cst_138 = arith.constant dense<0.000000e+00> : vector<4x128xf32>
    %177 = tpu.matmul %176, %174, %cst_138 {dimension_numbers = #tpu.dot_dimension_numbers<[1], [0], [0], [1], [0, 0, 1, 1], [], []>} : vector<4x16xbf16>, vector<16x128xbf16>, vector<4x128xf32> -> vector<4x128xf32>
    %178 = arith.truncf %177 : vector<4x128xf32> to vector<4x128xbf16>
    %c1_139 = arith.constant 1 : index
    %c0_140 = arith.constant 0 : index
    %c0_141 = arith.constant 0 : index
    %179 = vector.load %arg8[%c1_139, %c0_140, %c0_141] : memref<9x4x16xbf16, #tpu.memory_space<vmem>>, vector<1x4x16xbf16>
    %180 = vector.shape_cast %179 : vector<1x4x16xbf16> to vector<4x16xbf16>
    %cst_142 = arith.constant dense<0.000000e+00> : vector<4x128xf32>
    %181 = tpu.matmul %180, %174, %cst_142 {dimension_numbers = #tpu.dot_dimension_numbers<[1], [0], [0], [1], [0, 0, 1, 1], [], []>} : vector<4x16xbf16>, vector<16x128xbf16>, vector<4x128xf32> -> vector<4x128xf32>
    %182 = arith.truncf %181 : vector<4x128xf32> to vector<4x128xbf16>
    %c2_143 = arith.constant 2 : index
    %c0_144 = arith.constant 0 : index
    %c0_145 = arith.constant 0 : index
    %183 = vector.load %arg8[%c2_143, %c0_144, %c0_145] : memref<9x4x16xbf16, #tpu.memory_space<vmem>>, vector<1x4x16xbf16>
    %184 = vector.shape_cast %183 : vector<1x4x16xbf16> to vector<4x16xbf16>
    %cst_146 = arith.constant dense<0.000000e+00> : vector<4x128xf32>
    %185 = tpu.matmul %184, %174, %cst_146 {dimension_numbers = #tpu.dot_dimension_numbers<[1], [0], [0], [1], [0, 0, 1, 1], [], []>} : vector<4x16xbf16>, vector<16x128xbf16>, vector<4x128xf32> -> vector<4x128xf32>
    %186 = arith.truncf %185 : vector<4x128xf32> to vector<4x128xbf16>
    %c3_147 = arith.constant 3 : index
    %c0_148 = arith.constant 0 : index
    %c0_149 = arith.constant 0 : index
    %187 = vector.load %arg8[%c3_147, %c0_148, %c0_149] : memref<9x4x16xbf16, #tpu.memory_space<vmem>>, vector<1x4x16xbf16>
    %188 = vector.shape_cast %187 : vector<1x4x16xbf16> to vector<4x16xbf16>
    %cst_150 = arith.constant dense<0.000000e+00> : vector<4x128xf32>
    %189 = tpu.matmul %188, %174, %cst_150 {dimension_numbers = #tpu.dot_dimension_numbers<[1], [0], [0], [1], [0, 0, 1, 1], [], []>} : vector<4x16xbf16>, vector<16x128xbf16>, vector<4x128xf32> -> vector<4x128xf32>
    %190 = arith.truncf %189 : vector<4x128xf32> to vector<4x128xbf16>
    %c4_151 = arith.constant 4 : index
    %c0_152 = arith.constant 0 : index
    %c0_153 = arith.constant 0 : index
    %191 = vector.load %arg8[%c4_151, %c0_152, %c0_153] : memref<9x4x16xbf16, #tpu.memory_space<vmem>>, vector<1x4x16xbf16>
    %192 = vector.shape_cast %191 : vector<1x4x16xbf16> to vector<4x16xbf16>
    %cst_154 = arith.constant dense<0.000000e+00> : vector<4x128xf32>
    %193 = tpu.matmul %192, %174, %cst_154 {dimension_numbers = #tpu.dot_dimension_numbers<[1], [0], [0], [1], [0, 0, 1, 1], [], []>} : vector<4x16xbf16>, vector<16x128xbf16>, vector<4x128xf32> -> vector<4x128xf32>
    %194 = arith.truncf %193 : vector<4x128xf32> to vector<4x128xbf16>
    %c5_155 = arith.constant 5 : index
    %c0_156 = arith.constant 0 : index
    %c0_157 = arith.constant 0 : index
    %195 = vector.load %arg8[%c5_155, %c0_156, %c0_157] : memref<9x4x16xbf16, #tpu.memory_space<vmem>>, vector<1x4x16xbf16>
    %196 = vector.shape_cast %195 : vector<1x4x16xbf16> to vector<4x16xbf16>
    %cst_158 = arith.constant dense<0.000000e+00> : vector<4x128xf32>
    %197 = tpu.matmul %196, %174, %cst_158 {dimension_numbers = #tpu.dot_dimension_numbers<[1], [0], [0], [1], [0, 0, 1, 1], [], []>} : vector<4x16xbf16>, vector<16x128xbf16>, vector<4x128xf32> -> vector<4x128xf32>
    %198 = arith.truncf %197 : vector<4x128xf32> to vector<4x128xbf16>
    %c6_159 = arith.constant 6 : index
    %c0_160 = arith.constant 0 : index
    %c0_161 = arith.constant 0 : index
    %199 = vector.load %arg8[%c6_159, %c0_160, %c0_161] : memref<9x4x16xbf16, #tpu.memory_space<vmem>>, vector<1x4x16xbf16>
    %200 = vector.shape_cast %199 : vector<1x4x16xbf16> to vector<4x16xbf16>
    %cst_162 = arith.constant dense<0.000000e+00> : vector<4x128xf32>
    %201 = tpu.matmul %200, %174, %cst_162 {dimension_numbers = #tpu.dot_dimension_numbers<[1], [0], [0], [1], [0, 0, 1, 1], [], []>} : vector<4x16xbf16>, vector<16x128xbf16>, vector<4x128xf32> -> vector<4x128xf32>
    %202 = arith.truncf %201 : vector<4x128xf32> to vector<4x128xbf16>
    %c7_163 = arith.constant 7 : index
    %c0_164 = arith.constant 0 : index
    %c0_165 = arith.constant 0 : index
    %203 = vector.load %arg8[%c7_163, %c0_164, %c0_165] : memref<9x4x16xbf16, #tpu.memory_space<vmem>>, vector<1x4x16xbf16>
    %204 = vector.shape_cast %203 : vector<1x4x16xbf16> to vector<4x16xbf16>
    %cst_166 = arith.constant dense<0.000000e+00> : vector<4x128xf32>
    %205 = tpu.matmul %204, %174, %cst_166 {dimension_numbers = #tpu.dot_dimension_numbers<[1], [0], [0], [1], [0, 0, 1, 1], [], []>} : vector<4x16xbf16>, vector<16x128xbf16>, vector<4x128xf32> -> vector<4x128xf32>
    %206 = arith.truncf %205 : vector<4x128xf32> to vector<4x128xbf16>
    %c8_167 = arith.constant 8 : index
    %c0_168 = arith.constant 0 : index
    %c0_169 = arith.constant 0 : index
    %207 = vector.load %arg8[%c8_167, %c0_168, %c0_169] : memref<9x4x16xbf16, #tpu.memory_space<vmem>>, vector<1x4x16xbf16>
    %208 = vector.shape_cast %207 : vector<1x4x16xbf16> to vector<4x16xbf16>
    %cst_170 = arith.constant dense<0.000000e+00> : vector<4x128xf32>
    %209 = tpu.matmul %208, %174, %cst_170 {dimension_numbers = #tpu.dot_dimension_numbers<[1], [0], [0], [1], [0, 0, 1, 1], [], []>} : vector<4x16xbf16>, vector<16x128xbf16>, vector<4x128xf32> -> vector<4x128xf32>
    %210 = arith.truncf %209 : vector<4x128xf32> to vector<4x128xbf16>
    %211 = tpu.concatenate %178, %182, %186, %190, %194, %198, %202, %206, %210 in 1 : vector<4x128xbf16>, vector<4x128xbf16>, vector<4x128xbf16>, vector<4x128xbf16>, vector<4x128xbf16>, vector<4x128xbf16>, vector<4x128xbf16>, vector<4x128xbf16>, vector<4x128xbf16> -> vector<4x1152xbf16>
    %c2_171 = arith.constant 2 : index
    %c0_172 = arith.constant 0 : index
    %c0_173 = arith.constant 0 : index
    %212 = vector.load %arg4[%c2_171, %c0_172, %c0_173] : memref<3x1152x128xbf16, #tpu.memory_space<vmem>>, vector<1x1152x128xbf16>
    %213 = vector.shape_cast %212 : vector<1x1152x128xbf16> to vector<1152x128xbf16>
    %cst_174 = arith.constant dense<0.000000e+00> : vector<4x128xf32>
    %214 = tpu.matmul %211, %213, %cst_174 {dimension_numbers = #tpu.dot_dimension_numbers<[1], [0], [0], [1], [0, 0, 1, 1], [], []>} : vector<4x1152xbf16>, vector<1152x128xbf16>, vector<4x128xf32> -> vector<4x128xf32>
    %c2_175 = arith.constant 2 : index
    %c0_176 = arith.constant 0 : index
    %c0_177 = arith.constant 0 : index
    %215 = vector.load %arg5[%c2_175, %c0_176, %c0_177] : memref<3x1x128xf32, #tpu.memory_space<vmem>>, vector<1x1x128xf32>
    %216 = vector.shape_cast %215 : vector<1x1x128xf32> to vector<1x128xf32>
    %217 = vector.broadcast %216 : vector<1x128xf32> to vector<4x128xf32>
    %218 = arith.addf %214, %217 : vector<4x128xf32>
    %cst_178 = arith.constant 0.000000e+00 : f32
    %219 = vector.broadcast %cst_178 : f32 to vector<4x128xf32>
    %220 = arith.maximumf %218, %219 : vector<4x128xf32>
    %cst_179 = arith.constant dense<0.000000e+00> : vector<128xf32>
    %221 = vector.multi_reduction <add>, %220, %cst_179 [0] : vector<4x128xf32> to vector<128xf32>
    %222 = vector.shape_cast %221 : vector<128xf32> to vector<1x128xf32>
    %223 = arith.truncf %222 : vector<1x128xf32> to vector<1x128xbf16>
    %c3_180 = arith.constant 3 : index
    %c0_181 = arith.constant 0 : index
    %c0_182 = arith.constant 0 : index
    %224 = vector.load %arg9[%c3_180, %c0_181, %c0_182] : memref<4x128x4xbf16, #tpu.memory_space<vmem>>, vector<1x128x4xbf16>
    %225 = vector.shape_cast %224 : vector<1x128x4xbf16> to vector<128x4xbf16>
    %cst_183 = arith.constant dense<0.000000e+00> : vector<1x4xf32>
    %226 = tpu.matmul %223, %225, %cst_183 {dimension_numbers = #tpu.dot_dimension_numbers<[1], [0], [0], [1], [0, 0, 1, 1], [], []>} : vector<1x128xbf16>, vector<128x4xbf16>, vector<1x4xf32> -> vector<1x4xf32>
    %c3_184 = arith.constant 3 : index
    %c0_185 = arith.constant 0 : index
    %c0_186 = arith.constant 0 : index
    %227 = vector.load %arg10[%c3_184, %c0_185, %c0_186] : memref<4x1x4xf32, #tpu.memory_space<vmem>>, vector<1x1x4xf32>
    %228 = vector.shape_cast %227 : vector<1x1x4xf32> to vector<1x4xf32>
    %229 = arith.addf %226, %228 : vector<1x4xf32>
    %cst_187 = arith.constant 0.000000e+00 : f32
    %230 = vector.broadcast %cst_187 : f32 to vector<1x4xf32>
    %231 = arith.maximumf %229, %230 : vector<1x4xf32>
    %232 = arith.truncf %231 : vector<1x4xf32> to vector<1x4xbf16>
    %c3_188 = arith.constant 3 : index
    %c0_189 = arith.constant 0 : index
    %c0_190 = arith.constant 0 : index
    %233 = vector.load %arg11[%c3_188, %c0_189, %c0_190] : memref<4x4x128xbf16, #tpu.memory_space<vmem>>, vector<1x4x128xbf16>
    %234 = vector.shape_cast %233 : vector<1x4x128xbf16> to vector<4x128xbf16>
    %cst_191 = arith.constant dense<0.000000e+00> : vector<1x128xf32>
    %235 = tpu.matmul %232, %234, %cst_191 {dimension_numbers = #tpu.dot_dimension_numbers<[1], [0], [0], [1], [0, 0, 1, 1], [], []>} : vector<1x4xbf16>, vector<4x128xbf16>, vector<1x128xf32> -> vector<1x128xf32>
    %c3_192 = arith.constant 3 : index
    %c0_193 = arith.constant 0 : index
    %c0_194 = arith.constant 0 : index
    %236 = vector.load %arg12[%c3_192, %c0_193, %c0_194] : memref<4x1x128xf32, #tpu.memory_space<vmem>>, vector<1x1x128xf32>
    %237 = vector.shape_cast %236 : vector<1x1x128xf32> to vector<1x128xf32>
    %238 = arith.addf %235, %237 : vector<1x128xf32>
    %cst_195 = arith.constant 0.000000e+00 : f32
    %239 = vector.broadcast %cst_195 : f32 to vector<1x128xf32>
    %240 = arith.subf %239, %238 : vector<1x128xf32>
    %241 = math.exp %240 : vector<1x128xf32>
    %cst_196 = arith.constant 1.000000e+00 : f32
    %242 = vector.broadcast %cst_196 : f32 to vector<1x128xf32>
    %243 = arith.addf %242, %241 : vector<1x128xf32>
    %244 = tpu.reciprocal %243 {approx = true} : vector<1x128xf32> -> vector<1x128xf32>
    %245 = arith.mulf %222, %244 : vector<1x128xf32>
    %246 = arith.truncf %245 : vector<1x128xf32> to vector<1x128xbf16>
    %c0_197 = arith.constant 0 : index
    %c0_198 = arith.constant 0 : index
    %247 = vector.load %arg13[%c0_197, %c0_198] : memref<128x128xbf16, #tpu.memory_space<vmem>>, vector<128x128xbf16>
    %cst_199 = arith.constant dense<0.000000e+00> : vector<1x128xf32>
    %248 = tpu.matmul %246, %247, %cst_199 {dimension_numbers = #tpu.dot_dimension_numbers<[1], [0], [0], [1], [0, 0, 1, 1], [], []>} : vector<1x128xbf16>, vector<128x128xbf16>, vector<1x128xf32> -> vector<1x128xf32>
    %c0_200 = arith.constant 0 : index
    %c0_201 = arith.constant 0 : index
    %249 = vector.load %arg14[%c0_200, %c0_201] : memref<1x128xf32, #tpu.memory_space<vmem>>, vector<1x128xf32>
    %250 = arith.addf %248, %249 : vector<1x128xf32>
    %c0_202 = arith.constant 0 : index
    %c0_203 = arith.constant 0 : index
    %c0_204 = arith.constant 0 : index
    %251 = vector.load %arg15[%c0_202, %c0_203, %c0_204] : memref<1x1x128xf32, #tpu.memory_space<vmem>>, vector<1x1x128xf32>
    %252 = vector.shape_cast %251 : vector<1x1x128xf32> to vector<1x128xf32>
    %253 = vector.shape_cast %250 : vector<1x128xf32> to vector<1x1x128xf32>
    tpu.vector_store %arg15[%c0_202, %c0_203, %c0_204], %253 {strides = array<i32>} : memref<1x1x128xf32, #tpu.memory_space<vmem>>, vector<1x1x128xf32>,
    return
  }
  func.func @transform_0(%arg0: i32) -> (i32, i32) {
    %c0_i32 = arith.constant 0 : i32
    %c0_i32_0 = arith.constant 0 : i32
    return %arg0, %c0_i32 : i32, i32
  }
  func.func @transform_1(%arg0: i32) -> (i32, i32) {
    %c0_i32 = arith.constant 0 : i32
    %c0_i32_0 = arith.constant 0 : i32
    %c0_i32_1 = arith.constant 0 : i32
    return %c0_i32, %c0_i32_0 : i32, i32
  }
  func.func @transform_2(%arg0: i32) -> (i32, i32) {
    %c0_i32 = arith.constant 0 : i32
    %c0_i32_0 = arith.constant 0 : i32
    %c0_i32_1 = arith.constant 0 : i32
    return %c0_i32, %c0_i32_0 : i32, i32
  }
  func.func @transform_3(%arg0: i32) -> (i32, i32, i32) {
    %c0_i32 = arith.constant 0 : i32
    %c0_i32_0 = arith.constant 0 : i32
    %c0_i32_1 = arith.constant 0 : i32
    %c0_i32_2 = arith.constant 0 : i32
    return %c0_i32, %c0_i32_0, %c0_i32_1 : i32, i32, i32
  }
  func.func @transform_4(%arg0: i32) -> (i32, i32, i32) {
    %c0_i32 = arith.constant 0 : i32
    %c0_i32_0 = arith.constant 0 : i32
    %c0_i32_1 = arith.constant 0 : i32
    %c0_i32_2 = arith.constant 0 : i32
    return %c0_i32, %c0_i32_0, %c0_i32_1 : i32, i32, i32
  }
  func.func @transform_5(%arg0: i32) -> (i32, i32, i32) {
    %c0_i32 = arith.constant 0 : i32
    %c0_i32_0 = arith.constant 0 : i32
    %c0_i32_1 = arith.constant 0 : i32
    %c0_i32_2 = arith.constant 0 : i32
    return %c0_i32, %c0_i32_0, %c0_i32_1 : i32, i32, i32
  }
  func.func @transform_6(%arg0: i32) -> (i32, i32, i32) {
    %c0_i32 = arith.constant 0 : i32
    %c0_i32_0 = arith.constant 0 : i32
    %c0_i32_1 = arith.constant 0 : i32
    %c0_i32_2 = arith.constant 0 : i32
    return %c0_i32, %c0_i32_0, %c0_i32_1 : i32, i32, i32
  }
  func.func @transform_7(%arg0: i32) -> (i32, i32, i32) {
    %c0_i32 = arith.constant 0 : i32
    %c0_i32_0 = arith.constant 0 : i32
    %c0_i32_1 = arith.constant 0 : i32
    %c0_i32_2 = arith.constant 0 : i32
    return %c0_i32, %c0_i32_0, %c0_i32_1 : i32, i32, i32
  }
  func.func @transform_8(%arg0: i32) -> (i32, i32, i32) {
    %c0_i32 = arith.constant 0 : i32
    %c0_i32_0 = arith.constant 0 : i32
    %c0_i32_1 = arith.constant 0 : i32
    %c0_i32_2 = arith.constant 0 : i32
    return %c0_i32, %c0_i32_0, %c0_i32_1 : i32, i32, i32
  }
  func.func @transform_9(%arg0: i32) -> (i32, i32, i32) {
    %c0_i32 = arith.constant 0 : i32
    %c0_i32_0 = arith.constant 0 : i32
    %c0_i32_1 = arith.constant 0 : i32
    %c0_i32_2 = arith.constant 0 : i32
    return %c0_i32, %c0_i32_0, %c0_i32_1 : i32, i32, i32
  }
  func.func @transform_10(%arg0: i32) -> (i32, i32, i32) {
    %c0_i32 = arith.constant 0 : i32
    %c0_i32_0 = arith.constant 0 : i32
    %c0_i32_1 = arith.constant 0 : i32
    %c0_i32_2 = arith.constant 0 : i32
    return %c0_i32, %c0_i32_0, %c0_i32_1 : i32, i32, i32
  }
  func.func @transform_11(%arg0: i32) -> (i32, i32, i32) {
    %c0_i32 = arith.constant 0 : i32
    %c0_i32_0 = arith.constant 0 : i32
    %c0_i32_1 = arith.constant 0 : i32
    %c0_i32_2 = arith.constant 0 : i32
    return %c0_i32, %c0_i32_0, %c0_i32_1 : i32, i32, i32
  }
  func.func @transform_12(%arg0: i32) -> (i32, i32) {
    %c0_i32 = arith.constant 0 : i32
    %c0_i32_0 = arith.constant 0 : i32
    %c0_i32_1 = arith.constant 0 : i32
    return %c0_i32, %c0_i32_0 : i32, i32
  }
  func.func @transform_13(%arg0: i32) -> (i32, i32) {
    %c0_i32 = arith.constant 0 : i32
    %c0_i32_0 = arith.constant 0 : i32
    %c0_i32_1 = arith.constant 0 : i32
    return %c0_i32, %c0_i32_0 : i32, i32
  }
  func.func @transform_14(%arg0: i32) -> (i32, i32, i32) {
    %c0_i32 = arith.constant 0 : i32
    %c0_i32_0 = arith.constant 0 : i32
    %c0_i32_1 = arith.constant 0 : i32
    return %arg0, %c0_i32, %c0_i32_0 : i32, i32, i32
  }
}

</mosaic_0001>

<llo_original>
// kernel: widecnn4_forward.1
$region0: #{widecnn4_forward.1}
  #allocation0 [shape = 'u32[]', space=smem, size = 0x4, offset = 0x4, fixed_abs, tag = 'smem constant byte address 0x4 - core index']
  #allocation1 [shape = 'u32[144,128]{1,0:T(1,128)}', space=vmem, size = 0x12000, scoped, tag = 'internal scratch']
  #allocation2 [shape = 'f32[256,128]{1,0:T(8,128)}', space=vmem, size = 0x20000, scoped, tag = 'scratch operand']
  %s0 = inlined_call_operand.vmem [shape: bf16[512,256], index: 0, kind: input, shape index: {}]
  %s1 = inlined_call_operand.vmem [shape: bf16[256,128], index: 1, kind: input, shape index: {}]
  %s2 = inlined_call_operand.vmem [shape: f32[1,128], index: 2, kind: input, shape index: {}]
  %s3 = inlined_call_operand.vmem [shape: bf16[3,1152,128], index: 3, kind: input, shape index: {}]
  %s4 = inlined_call_operand.vmem [shape: f32[3,1,128], index: 4, kind: input, shape index: {}]
  %s5 = inlined_call_operand.vmem [shape: bf16[9,64,256], index: 5, kind: input, shape index: {}]
  %s6 = inlined_call_operand.vmem [shape: bf16[9,16,64], index: 6, kind: input, shape index: {}]
  %s7 = inlined_call_operand.vmem [shape: bf16[9,4,16], index: 7, kind: input, shape index: {}]
  %s8 = inlined_call_operand.vmem [shape: bf16[4,128,4], index: 8, kind: input, shape index: {}]
  %s9 = inlined_call_operand.vmem [shape: f32[4,1,4], index: 9, kind: input, shape index: {}]
  %s10 = inlined_call_operand.vmem [shape: bf16[4,4,128], index: 10, kind: input, shape index: {}]
  %s11 = inlined_call_operand.vmem [shape: f32[4,1,128], index: 11, kind: input, shape index: {}]
  %s12 = inlined_call_operand.vmem [shape: bf16[128,128], index: 12, kind: input, shape index: {}]
  %s13 = inlined_call_operand.vmem [shape: f32[1,128], index: 13, kind: input, shape index: {}]
  %s14 = inlined_call_operand.hbm [shape: f32[2,1,128], index: 14, kind: output, shape index: {}]
  %s15 = sld [smem:[#allocation0]]
  $region96: #{widecnn4_forward.1} parent=0
    _
  %s17 = ssub.s32 1, %s15
  %s18 = scalar_select 0, %s17, %s15
  $region1: #{widecnn4_forward.1} parent=0
    #allocation3 [shape = 'u8[1024]{0}', space=vmem, size = 0x400, scoped, tag = 'output window, operand 0']
    #allocation4 [shape = 's32[2]{0}', space=sflag, size = 0x8, scoped, tag = 'scoped memory for widecnn4_forward.1']
    %19 = vsyncpa [#allocation4], 0
    %s20 = scalar_lea.sflag [#allocation4], 1
    %21 = vsyncpa %s20, 0
    loop: start=0, step=1, limit=4
    $region2: #{widecnn4_forward.1} parent=1 // loop_pre_header
      _
    $region3: #{widecnn4_forward.1} parent=1 // loop_header
      %s23 = sphi 0, %s27
      %p24 = scmp.ge.s32.totalorder %s23, 4
      %s33 = sphi 0, %s35
      %s36 = sphi 0, %s33
      %s37 = sphi 0, %s36
      %s53 = sphi 0, %s37
      %s57 = sphi 0, %s57
      %s59 = sphi 0, %s57
      %s60 = sphi 0, %s59
      %s74 = sphi 0, %s60
      %s78 = sphi 0, %s78
      %s80 = sphi 0, %s78
      %s81 = sphi 0, %s80
      %s95 = sphi 0, %s81
      %s99 = sphi 0, %s99
      %s101 = sphi 0, %s99
      %s102 = sphi 0, %s101
      %s116 = sphi 0, %s102
      %s120 = sphi 0, %s120
      %s122 = sphi 0, %s120
      %s123 = sphi 0, %s122
      %s137 = sphi 0, %s123
      %s141 = sphi 0, %s141
      %s143 = sphi 0, %s141
      %s144 = sphi 0, %s143
      %s158 = sphi 0, %s144
      %s162 = sphi 0, %s162
      %s164 = sphi 0, %s162
      %s165 = sphi 0, %s164
      %s179 = sphi 0, %s165
      %s183 = sphi 0, %s183
      %s185 = sphi 0, %s183
      %s186 = sphi 0, %s185
      %s200 = sphi 0, %s186
      %s204 = sphi 0, %s204
      %s206 = sphi 0, %s204
      %s207 = sphi 0, %s206
      %s221 = sphi 0, %s207
      %s225 = sphi 0, %s225
      %s227 = sphi 0, %s225
      %s228 = sphi 0, %s227
      %s242 = sphi 0, %s228
      %s246 = sphi 0, %s246
      %s248 = sphi 0, %s246
      %s249 = sphi 0, %s248
      %s263 = sphi 0, %s249
      %s267 = sphi 0, %s267
      %s269 = sphi 0, %s267
      %s270 = sphi 0, %s269
      %s284 = sphi 0, %s270
      %s288 = sphi 0, %s288
      %s290 = sphi 0, %s288
      %s291 = sphi 0, %s290
      %s305 = sphi 0, %s291
      %s309 = sphi 0, %s309
      %s311 = sphi 0, %s309
      %s312 = sphi 0, %s311
      %s326 = sphi 0, %s312
      %s332 = sphi 0, %s334
      %s335 = sphi 0, %s332
      %s336 = sphi 0, %s335
      %s352 = sphi 0, %s336
    $region4: #{widecnn4_forward.1} parent=1 // loop_header_branch
      %26 = sbr.rel (%p24) target = $region8
    $region5: #{widecnn4_forward.1} parent=1 // loop_body
      %s28 = ssub.s32 %s23, 1
      %s29 = ssub.s32 %s23, 2
      %s30 = sadd.s32 %s23, 1
      %s31 = ssub.s32 %s23, %s30
      %p32 = scmp.eq.s32.totalorder %s31, 0
      %s34 = sadd.s32 %s33, 1
      %s35 = scalar_select %p32, %s33, %s34
      %p38 = pneg %p32
      %p39 = scmp.eq.s32.totalorder %s23, 1
      %p40 = por %p38, %p39
      %p41 = scmp.ne.s32.totalorder %s33, %s36
      %p42 = scmp.eq.s32.totalorder %s23, 0
      %p43 = por %p41, %p42
      %p44 = scmp.ne.s32.totalorder %s33, %s36
      %p45 = scmp.eq.s32.totalorder %s28, 1
      %p46 = por %p44, %p45
      %p47 = scmp.ne.s32.totalorder %s36, %s37
      %p48 = scmp.eq.s32.totalorder %s28, 0
      %p49 = por %p47, %p48
      %p50 = scmp.ne.s32.totalorder %s36, %s37
      %p51 = scmp.eq.s32.totalorder %s29, 1
      %p52 = por %p50, %p51
      %p54 = scmp.ne.s32.totalorder %s37, %s53
      %p55 = scmp.eq.s32.totalorder %s29, 0
      %p56 = por %p54, %p55
      %s58 = sadd.s32 %s57, 1
      %p61 = scmp.eq.s32.totalorder %s23, 1
      %p62 = scmp.ne.s32.totalorder %s57, %s59
      %p63 = scmp.eq.s32.totalorder %s23, 0
      %p64 = por %p62, %p63
      %p65 = scmp.ne.s32.totalorder %s57, %s59
      %p66 = scmp.eq.s32.totalorder %s28, 1
      %p67 = por %p65, %p66
      %p68 = scmp.ne.s32.totalorder %s59, %s60
      %p69 = scmp.eq.s32.totalorder %s28, 0
      %p70 = por %p68, %p69
      %p71 = scmp.ne.s32.totalorder %s59, %s60
      %p72 = scmp.eq.s32.totalorder %s29, 1
      %p73 = por %p71, %p72
      %p75 = scmp.ne.s32.totalorder %s60, %s74
      %p76 = scmp.eq.s32.totalorder %s29, 0
      %p77 = por %p75, %p76
      %s79 = sadd.s32 %s78, 1
      %p82 = scmp.eq.s32.totalorder %s23, 1
      %p83 = scmp.ne.s32.totalorder %s78, %s80
      %p84 = scmp.eq.s32.totalorder %s23, 0
      %p85 = por %p83, %p84
      %p86 = scmp.ne.s32.totalorder %s78, %s80
      %p87 = scmp.eq.s32.totalorder %s28, 1
      %p88 = por %p86, %p87
      %p89 = scmp.ne.s32.totalorder %s80, %s81
      %p90 = scmp.eq.s32.totalorder %s28, 0
      %p91 = por %p89, %p90
      %p92 = scmp.ne.s32.totalorder %s80, %s81
      %p93 = scmp.eq.s32.totalorder %s29, 1
      %p94 = por %p92, %p93
      %p96 = scmp.ne.s32.totalorder %s81, %s95
      %p97 = scmp.eq.s32.totalorder %s29, 0
      %p98 = por %p96, %p97
      %s100 = sadd.s32 %s99, 1
      %p103 = scmp.eq.s32.totalorder %s23, 1
      %p104 = scmp.ne.s32.totalorder %s99, %s101
      %p105 = scmp.eq.s32.totalorder %s23, 0
      %p106 = por %p104, %p105
      %p107 = scmp.ne.s32.totalorder %s99, %s101
      %p108 = scmp.eq.s32.totalorder %s28, 1
      %p109 = por %p107, %p108
      %p110 = scmp.ne.s32.totalorder %s101, %s102
      %p111 = scmp.eq.s32.totalorder %s28, 0
      %p112 = por %p110, %p111
      %p113 = scmp.ne.s32.totalorder %s101, %s102
      %p114 = scmp.eq.s32.totalorder %s29, 1
      %p115 = por %p113, %p114
      %p117 = scmp.ne.s32.totalorder %s102, %s116
      %p118 = scmp.eq.s32.totalorder %s29, 0
      %p119 = por %p117, %p118
      %s121 = sadd.s32 %s120, 1
      %p124 = scmp.eq.s32.totalorder %s23, 1
      %p125 = scmp.ne.s32.totalorder %s120, %s122
      %p126 = scmp.eq.s32.totalorder %s23, 0
      %p127 = por %p125, %p126
      %p128 = scmp.ne.s32.totalorder %s120, %s122
      %p129 = scmp.eq.s32.totalorder %s28, 1
      %p130 = por %p128, %p129
      %p131 = scmp.ne.s32.totalorder %s122, %s123
      %p132 = scmp.eq.s32.totalorder %s28, 0
      %p133 = por %p131, %p132
      %p134 = scmp.ne.s32.totalorder %s122, %s123
      %p135 = scmp.eq.s32.totalorder %s29, 1
      %p136 = por %p134, %p135
      %p138 = scmp.ne.s32.totalorder %s123, %s137
      %p139 = scmp.eq.s32.totalorder %s29, 0
      %p140 = por %p138, %p139
      %s142 = sadd.s32 %s141, 1
      %p145 = scmp.eq.s32.totalorder %s23, 1
      %p146 = scmp.ne.s32.totalorder %s141, %s143
      %p147 = scmp.eq.s32.totalorder %s23, 0
      %p148 = por %p146, %p147
      %p149 = scmp.ne.s32.totalorder %s141, %s143
      %p150 = scmp.eq.s32.totalorder %s28, 1
      %p151 = por %p149, %p150
      %p152 = scmp.ne.s32.totalorder %s143, %s144
      %p153 = scmp.eq.s32.totalorder %s28, 0
      %p154 = por %p152, %p153
      %p155 = scmp.ne.s32.totalorder %s143, %s144
      %p156 = scmp.eq.s32.totalorder %s29, 1
      %p157 = por %p155, %p156
      %p159 = scmp.ne.s32.totalorder %s144, %s158
      %p160 = scmp.eq.s32.totalorder %s29, 0
      %p161 = por %p159, %p160
      %s163 = sadd.s32 %s162, 1
      %p166 = scmp.eq.s32.totalorder %s23, 1
      %p167 = scmp.ne.s32.totalorder %s162, %s164
      %p168 = scmp.eq.s32.totalorder %s23, 0
      %p169 = por %p167, %p168
      %p170 = scmp.ne.s32.totalorder %s162, %s164
      %p171 = scmp.eq.s32.totalorder %s28, 1
      %p172 = por %p170, %p171
      %p173 = scmp.ne.s32.totalorder %s164, %s165
      %p174 = scmp.eq.s32.totalorder %s28, 0
      %p175 = por %p173, %p174
      %p176 = scmp.ne.s32.totalorder %s164, %s165
      %p177 = scmp.eq.s32.totalorder %s29, 1
      %p178 = por %p176, %p177
      %p180 = scmp.ne.s32.totalorder %s165, %s179
      %p181 = scmp.eq.s32.totalorder %s29, 0
      %p182 = por %p180, %p181
      %s184 = sadd.s32 %s183, 1
      %p187 = scmp.eq.s32.totalorder %s23, 1
      %p188 = scmp.ne.s32.totalorder %s183, %s185
      %p189 = scmp.eq.s32.totalorder %s23, 0
      %p190 = por %p188, %p189
      %p191 = scmp.ne.s32.totalorder %s183, %s185
      %p192 = scmp.eq.s32.totalorder %s28, 1
      %p193 = por %p191, %p192
      %p194 = scmp.ne.s32.totalorder %s185, %s186
      %p195 = scmp.eq.s32.totalorder %s28, 0
      %p196 = por %p194, %p195
      %p197 = scmp.ne.s32.totalorder %s185, %s186
      %p198 = scmp.eq.s32.totalorder %s29, 1
      %p199 = por %p197, %p198
      %p201 = scmp.ne.s32.totalorder %s186, %s200
      %p202 = scmp.eq.s32.totalorder %s29, 0
      %p203 = por %p201, %p202
      %s205 = sadd.s32 %s204, 1
      %p208 = scmp.eq.s32.totalorder %s23, 1
      %p209 = scmp.ne.s32.totalorder %s204, %s206
      %p210 = scmp.eq.s32.totalorder %s23, 0
      %p211 = por %p209, %p210
      %p212 = scmp.ne.s32.totalorder %s204, %s206
      %p213 = scmp.eq.s32.totalorder %s28, 1
      %p214 = por %p212, %p213
      %p215 = scmp.ne.s32.totalorder %s206, %s207
      %p216 = scmp.eq.s32.totalorder %s28, 0
      %p217 = por %p215, %p216
      %p218 = scmp.ne.s32.totalorder %s206, %s207
      %p219 = scmp.eq.s32.totalorder %s29, 1
      %p220 = por %p218, %p219
      %p222 = scmp.ne.s32.totalorder %s207, %s221
      %p223 = scmp.eq.s32.totalorder %s29, 0
      %p224 = por %p222, %p223
      %s226 = sadd.s32 %s225, 1
      %p229 = scmp.eq.s32.totalorder %s23, 1
      %p230 = scmp.ne.s32.totalorder %s225, %s227
      %p231 = scmp.eq.s32.totalorder %s23, 0
      %p232 = por %p230, %p231
      %p233 = scmp.ne.s32.totalorder %s225, %s227
      %p234 = scmp.eq.s32.totalorder %s28, 1
      %p235 = por %p233, %p234
      %p236 = scmp.ne.s32.totalorder %s227, %s228
      %p237 = scmp.eq.s32.totalorder %s28, 0
      %p238 = por %p236, %p237
      %p239 = scmp.ne.s32.totalorder %s227, %s228
      %p240 = scmp.eq.s32.totalorder %s29, 1
      %p241 = por %p239, %p240
      %p243 = scmp.ne.s32.totalorder %s228, %s242
      %p244 = scmp.eq.s32.totalorder %s29, 0
      %p245 = por %p243, %p244
      %s247 = sadd.s32 %s246, 1
      %p250 = scmp.eq.s32.totalorder %s23, 1
      %p251 = scmp.ne.s32.totalorder %s246, %s248
      %p252 = scmp.eq.s32.totalorder %s23, 0
      %p253 = por %p251, %p252
      %p254 = scmp.ne.s32.totalorder %s246, %s248
      %p255 = scmp.eq.s32.totalorder %s28, 1
      %p256 = por %p254, %p255
      %p257 = scmp.ne.s32.totalorder %s248, %s249
      %p258 = scmp.eq.s32.totalorder %s28, 0
      %p259 = por %p257, %p258
      %p260 = scmp.ne.s32.totalorder %s248, %s249
      %p261 = scmp.eq.s32.totalorder %s29, 1
      %p262 = por %p260, %p261
      %p264 = scmp.ne.s32.totalorder %s249, %s263
      %p265 = scmp.eq.s32.totalorder %s29, 0
      %p266 = por %p264, %p265
      %s268 = sadd.s32 %s267, 1
      %p271 = scmp.eq.s32.totalorder %s23, 1
      %p272 = scmp.ne.s32.totalorder %s267, %s269
      %p273 = scmp.eq.s32.totalorder %s23, 0
      %p274 = por %p272, %p273
      %p275 = scmp.ne.s32.totalorder %s267, %s269
      %p276 = scmp.eq.s32.totalorder %s28, 1
      %p277 = por %p275, %p276
      %p278 = scmp.ne.s32.totalorder %s269, %s270
      %p279 = scmp.eq.s32.totalorder %s28, 0
      %p280 = por %p278, %p279
      %p281 = scmp.ne.s32.totalorder %s269, %s270
      %p282 = scmp.eq.s32.totalorder %s29, 1
      %p283 = por %p281, %p282
      %p285 = scmp.ne.s32.totalorder %s270, %s284
      %p286 = scmp.eq.s32.totalorder %s29, 0
      %p287 = por %p285, %p286
      %s289 = sadd.s32 %s288, 1
      %p292 = scmp.eq.s32.totalorder %s23, 1
      %p293 = scmp.ne.s32.totalorder %s288, %s290
      %p294 = scmp.eq.s32.totalorder %s23, 0
      %p295 = por %p293, %p294
      %p296 = scmp.ne.s32.totalorder %s288, %s290
      %p297 = scmp.eq.s32.totalorder %s28, 1
      %p298 = por %p296, %p297
      %p299 = scmp.ne.s32.totalorder %s290, %s291
      %p300 = scmp.eq.s32.totalorder %s28, 0
      %p301 = por %p299, %p300
      %p302 = scmp.ne.s32.totalorder %s290, %s291
      %p303 = scmp.eq.s32.totalorder %s29, 1
      %p304 = por %p302, %p303
      %p306 = scmp.ne.s32.totalorder %s291, %s305
      %p307 = scmp.eq.s32.totalorder %s29, 0
      %p308 = por %p306, %p307
      %s310 = sadd.s32 %s309, 1
      %p313 = scmp.eq.s32.totalorder %s23, 1
      %p314 = scmp.ne.s32.totalorder %s309, %s311
      %p315 = scmp.eq.s32.totalorder %s23, 0
      %p316 = por %p314, %p315
      %p317 = scmp.ne.s32.totalorder %s309, %s311
      %p318 = scmp.eq.s32.totalorder %s28, 1
      %p319 = por %p317, %p318
      %p320 = scmp.ne.s32.totalorder %s311, %s312
      %p321 = scmp.eq.s32.totalorder %s28, 0
      %p322 = por %p320, %p321
      %p323 = scmp.ne.s32.totalorder %s311, %s312
      %p324 = scmp.eq.s32.totalorder %s29, 1
      %p325 = por %p323, %p324
      %p327 = scmp.ne.s32.totalorder %s312, %s326
      %p328 = scmp.eq.s32.totalorder %s29, 0
      %p329 = por %p327, %p328
      %s330 = ssub.s32 %s23, %s30
      %p331 = scmp.eq.s32.totalorder %s330, 0
      %s333 = sadd.s32 %s332, 1
      %s334 = scalar_select %p331, %s332, %s333
      %p337 = pneg %p331
      %p338 = scmp.eq.s32.totalorder %s23, 1
      %p339 = por %p337, %p338
      %p340 = scmp.ne.s32.totalorder %s332, %s335
      %p341 = scmp.eq.s32.totalorder %s23, 0
      %p342 = por %p340, %p341
      %p343 = scmp.ne.s32.totalorder %s332, %s335
      %p344 = scmp.eq.s32.totalorder %s28, 1
      %p345 = por %p343, %p344
      %p346 = scmp.ne.s32.totalorder %s335, %s336
      %p347 = scmp.eq.s32.totalorder %s28, 0
      %p348 = por %p346, %p347
      %p349 = scmp.ne.s32.totalorder %s335, %s336
      %p350 = scmp.eq.s32.totalorder %s29, 1
      %p351 = por %p349, %p350
      %p353 = scmp.ne.s32.totalorder %s336, %s352
      %p354 = scmp.eq.s32.totalorder %s29, 0
      %p355 = por %p353, %p354
      %p356 = scmp.le.s32.totalorder 1, %s23
      %p357 = scmp.lt.s32.totalorder %s23, 3
      %p358 = pnand %p356, %p357
      %p359 = pneg %p358
      // Predicated region
      $region9: #{widecnn4_forward.1} parent=5 // pred_check
        _
      $region10: #{widecnn4_forward.1} parent=5 // pred_check_branch
        %361 = sbr.rel (%p358) target = $region12
      $region11: #{widecnn4_forward.1} parent=5 // pred_region
        %s362 = ssub.s32 %s23, 1
        // Predicated region
        $region13: #{widecnn4_forward.1} parent=11 // pred_check
          %p363 = pneg %p70
        $region14: #{widecnn4_forward.1} parent=11 // pred_check_branch
          %365 = sbr.rel (%p363) target = $region16
        $region15: #{widecnn4_forward.1} parent=11 // pred_region
          _
        $region16: #{widecnn4_forward.1} parent=11 // pred_fallthru
          _
        // Predicated region
        $region17: #{widecnn4_forward.1} parent=11 // pred_check
          %p366 = pneg %p91
        $region18: #{widecnn4_forward.1} parent=11 // pred_check_branch
          %368 = sbr.rel (%p366) target = $region20
        $region19: #{widecnn4_forward.1} parent=11 // pred_region
          _
        $region20: #{widecnn4_forward.1} parent=11 // pred_fallthru
          _
        // Predicated region
        $region21: #{widecnn4_forward.1} parent=11 // pred_check
          %p369 = pneg %p112
        $region22: #{widecnn4_forward.1} parent=11 // pred_check_branch
          %371 = sbr.rel (%p369) target = $region24
        $region23: #{widecnn4_forward.1} parent=11 // pred_region
          _
        $region24: #{widecnn4_forward.1} parent=11 // pred_fallthru
          _
        // Predicated region
        $region25: #{widecnn4_forward.1} parent=11 // pred_check
          %p372 = pneg %p133
        $region26: #{widecnn4_forward.1} parent=11 // pred_check_branch
          %374 = sbr.rel (%p372) target = $region28
        $region27: #{widecnn4_forward.1} parent=11 // pred_region
          _
        $region28: #{widecnn4_forward.1} parent=11 // pred_fallthru
          _
        // Predicated region
        $region29: #{widecnn4_forward.1} parent=11 // pred_check
          %p375 = pneg %p154
        $region30: #{widecnn4_forward.1} parent=11 // pred_check_branch
          %377 = sbr.rel (%p375) target = $region32
        $region31: #{widecnn4_forward.1} parent=11 // pred_region
          _
        $region32: #{widecnn4_forward.1} parent=11 // pred_fallthru
          _
        // Predicated region
        $region33: #{widecnn4_forward.1} parent=11 // pred_check
          %p378 = pneg %p175
        $region34: #{widecnn4_forward.1} parent=11 // pred_check_branch
          %380 = sbr.rel (%p378) target = $region36
        $region35: #{widecnn4_forward.1} parent=11 // pred_region
          _
        $region36: #{widecnn4_forward.1} parent=11 // pred_fallthru
          _
        // Predicated region
        $region37: #{widecnn4_forward.1} parent=11 // pred_check
          %p381 = pneg %p196
        $region38: #{widecnn4_forward.1} parent=11 // pred_check_branch
          %383 = sbr.rel (%p381) target = $region40
        $region39: #{widecnn4_forward.1} parent=11 // pred_region
          _
        $region40: #{widecnn4_forward.1} parent=11 // pred_fallthru
          _
        // Predicated region
        $region41: #{widecnn4_forward.1} parent=11 // pred_check
          %p384 = pneg %p217
        $region42: #{widecnn4_forward.1} parent=11 // pred_check_branch
          %386 = sbr.rel (%p384) target = $region44
        $region43: #{widecnn4_forward.1} parent=11 // pred_region
          _
        $region44: #{widecnn4_forward.1} parent=11 // pred_fallthru
          _
        // Predicated region
        $region45: #{widecnn4_forward.1} parent=11 // pred_check
          %p387 = pneg %p238
        $region46: #{widecnn4_forward.1} parent=11 // pred_check_branch
          %389 = sbr.rel (%p387) target = $region48
        $region47: #{widecnn4_forward.1} parent=11 // pred_region
          _
        $region48: #{widecnn4_forward.1} parent=11 // pred_fallthru
          _
        // Predicated region
        $region49: #{widecnn4_forward.1} parent=11 // pred_check
          %p390 = pneg %p259
        $region50: #{widecnn4_forward.1} parent=11 // pred_check_branch
          %392 = sbr.rel (%p390) target = $region52
        $region51: #{widecnn4_forward.1} parent=11 // pred_region
          _
        $region52: #{widecnn4_forward.1} parent=11 // pred_fallthru
          _
        // Predicated region
        $region53: #{widecnn4_forward.1} parent=11 // pred_check
          %p393 = pneg %p280
        $region54: #{widecnn4_forward.1} parent=11 // pred_check_branch
          %395 = sbr.rel (%p393) target = $region56
        $region55: #{widecnn4_forward.1} parent=11 // pred_region
          _
        $region56: #{widecnn4_forward.1} parent=11 // pred_fallthru
          _
        // Predicated region
        $region57: #{widecnn4_forward.1} parent=11 // pred_check
          %p396 = pneg %p301
        $region58: #{widecnn4_forward.1} parent=11 // pred_check_branch
          %398 = sbr.rel (%p396) target = $region60
        $region59: #{widecnn4_forward.1} parent=11 // pred_region
          _
        $region60: #{widecnn4_forward.1} parent=11 // pred_fallthru
          _
        // Predicated region
        $region61: #{widecnn4_forward.1} parent=11 // pred_check
          %p399 = pneg %p322
        $region62: #{widecnn4_forward.1} parent=11 // pred_check_branch
          %401 = sbr.rel (%p399) target = $region64
        $region63: #{widecnn4_forward.1} parent=11 // pred_region
          _
        $region64: #{widecnn4_forward.1} parent=11 // pred_fallthru
          _
      $region12: #{widecnn4_forward.1} parent=5 // pred_fallthru
        _
      %p402 = scmp.lt.s32.totalorder %s23, 2
      // Predicated region
      $region65: #{widecnn4_forward.1} parent=5 // pred_check
        %p403 = pneg %p402
      $region66: #{widecnn4_forward.1} parent=5 // pred_check_branch
        %405 = sbr.rel (%p403) target = $region68
      $region67: #{widecnn4_forward.1} parent=5 // pred_region
        // Predicated region
        $region69: #{widecnn4_forward.1} parent=67 // pred_check
          %p406 = pneg %p43
        $region70: #{widecnn4_forward.1} parent=67 // pred_check_branch
          %408 = sbr.rel (%p406) target = $region72
        $region71: #{widecnn4_forward.1} parent=67 // pred_region
          %s409 = smul.u32 32, %s23
          %p410 = scmp.lt.s32.totalorder %s409, 63
          %s411 = scalar_select %p410, %s409, 63
          %s412 = smul.addr %s411, 2
          %s413 = smul.addr %s412, 4
          %s414 = scalar_lea.vmem %s0, %s413
          %s415 = smul.u32 32, %s23
        $region72: #{widecnn4_forward.1} parent=67 // pred_fallthru
          _
      $region68: #{widecnn4_forward.1} parent=5 // pred_fallthru
        _
      %p416 = scmp.le.s32.totalorder 1, %s23
      %p417 = scmp.lt.s32.totalorder %s23, 3
      %p418 = pnand %p416, %p417
      %p419 = pneg %p418
      // Predicated region
      $region73: #{widecnn4_forward.1} parent=5 // pred_check
        _
      $region74: #{widecnn4_forward.1} parent=5 // pred_check_branch
        %421 = sbr.rel (%p418) target = $region76
      $region75: #{widecnn4_forward.1} parent=5 // pred_region
        %s422 = ssub.s32 %s23, 1
        %s423 = smul.u32 32, %s28
        %p424 = scmp.lt.s32.totalorder %s423, 63
        %s425 = scalar_select %p424, %s423, 63
        %s426 = smul.addr %s425, 2
        %s427 = smul.addr %s426, 4
        %s428 = scalar_lea.vmem %s0, %s427
        %p429 = pneg %p49
        %p430 = pneg %p46
        %p431 = pneg %p70
        %p432 = pneg %p67
        %p433 = pneg %p91
        %p434 = pneg %p88
        %p435 = pneg %p112
        %p436 = pneg %p109
        %p437 = pneg %p133
        %p438 = pneg %p130
        %p439 = pneg %p154
        %p440 = pneg %p151
        %p441 = pneg %p175
        %p442 = pneg %p172
        %p443 = pneg %p196
        %p444 = pneg %p193
        %p445 = pneg %p217
        %p446 = pneg %p214
        %p447 = pneg %p238
        %p448 = pneg %p235
        %p449 = pneg %p259
        %p450 = pneg %p256
        %p451 = pneg %p280
        %p452 = pneg %p277
        %p453 = pneg %p301
        %p454 = pneg %p298
        %p455 = pneg %p322
        %p456 = pneg %p319
        %p457 = pneg %p348
        %p458 = pneg %p345
        %s459 = sand.u32 %s335, 1
        %s460 = scalar_lea.sflag [#allocation4], %s459
        %s461 = sand.u32 %s335, 1
        %s462 = scalar_lea.vmem [#allocation3], %s461
        %s463 = smul.u32 32, %s28
        %p464 = scmp.lt.s32.totalorder %s463, 63
        %s465 = scalar_select %p464, %s463, 63
        %s466 = smul.addr %s465, 2
        %s467 = smul.addr %s466, 4
        %s468 = scalar_lea.vmem %s0, %s467
        %s469 = smul.u32 32, %s28
        loop: start=0, step=1, limit=4
        $region77: #{widecnn4_forward.1} parent=75 // loop_pre_header
          _
        $region78: #{widecnn4_forward.1} parent=75 // loop_header
          %s472 = sphi 0, %s476
          %p473 = scmp.ge.s32.totalorder %s472, 4
          %v477 = vphi 0.0, %v762
        $region79: #{widecnn4_forward.1} parent=75 // loop_header_branch
          %475 = sbr.rel (%p473) target = $region83
        $region80: #{widecnn4_forward.1} parent=75 // loop_body
          %s478 = smul.u32 %s472, 64
          %s479 = sshra.s32 %s478, 3
          %s480 = sand.u32 %s478, 7
          %s481 = smul.u32 %s479, 2
          %s482 = smul.addr %s481, 4
          %s483 = scalar_lea.vmem %s468, %s482
          %v484 = vld [vmem:[%s483] sm:$0xff]
          %v485 = vld [vmem:[%s483 + $0x8] sm:$0xff]
          %v486 = vld [vmem:[%s483 + $0x10] sm:$0xff]
          %v487 = vld [vmem:[%s483 + $0x18] sm:$0xff]
          %v488 = vld [vmem:[%s483 + $0x20] sm:$0xff]
          %v489 = vld [vmem:[%s483 + $0x28] sm:$0xff]
          %v490 = vld [vmem:[%s483 + $0x30] sm:$0xff]
          %v491 = vld [vmem:[%s483 + $0x38] sm:$0xff]
          %v492 = vld [vmem:[%s1] sm:$0xf]
          %v493 = vld [vmem:[%s1 + $0x4] sm:$0xf]
          %v494 = vld [vmem:[%s1 + $0x8] sm:$0xf]
          %v495 = vld [vmem:[%s1 + $0xc] sm:$0xf]
          %v496 = vld [vmem:[%s1 + $0x10] sm:$0xf]
          %v497 = vld [vmem:[%s1 + $0x14] sm:$0xf]
          %v498 = vld [vmem:[%s1 + $0x18] sm:$0xf]
          %v499 = vld [vmem:[%s1 + $0x1c] sm:$0xf]
          %v500 = vld [vmem:[%s1 + $0x20] sm:$0xf]
          %v501 = vld [vmem:[%s1 + $0x24] sm:$0xf]
          %v502 = vld [vmem:[%s1 + $0x28] sm:$0xf]
          %v503 = vld [vmem:[%s1 + $0x2c] sm:$0xf]
          %v504 = vld [vmem:[%s1 + $0x30] sm:$0xf]
          %v505 = vld [vmem:[%s1 + $0x34] sm:$0xf]
          %v506 = vld [vmem:[%s1 + $0x38] sm:$0xf]
          %v507 = vld [vmem:[%s1 + $0x3c] sm:$0xf]
          %v508 = vld [vmem:[%s1 + $0x40] sm:$0xf]
          %v509 = vld [vmem:[%s1 + $0x44] sm:$0xf]
          %v510 = vld [vmem:[%s1 + $0x48] sm:$0xf]
          %v511 = vld [vmem:[%s1 + $0x4c] sm:$0xf]
          %v512 = vld [vmem:[%s1 + $0x50] sm:$0xf]
          %v513 = vld [vmem:[%s1 + $0x54] sm:$0xf]
          %v514 = vld [vmem:[%s1 + $0x58] sm:$0xf]
          %v515 = vld [vmem:[%s1 + $0x5c] sm:$0xf]
          %v516 = vld [vmem:[%s1 + $0x60] sm:$0xf]
          %v517 = vld [vmem:[%s1 + $0x64] sm:$0xf]
          %v518 = vld [vmem:[%s1 + $0x68] sm:$0xf]
          %v519 = vld [vmem:[%s1 + $0x6c] sm:$0xf]
          %v520 = vld [vmem:[%s1 + $0x70] sm:$0xf]
          %v521 = vld [vmem:[%s1 + $0x74] sm:$0xf]
          %v522 = vld [vmem:[%s1 + $0x78] sm:$0xf]
          %v523 = vld [vmem:[%s1 + $0x7c] sm:$0xf]
          %v524 = vld [vmem:[%s2] sm:$0x1]
          %v526 = vlaneseq
          %v527 = vshrl.u32 %v526, 7
          %v528 = vsub.s32 0, %v527
          %v529 = vrot.slane %v524, %v528
          %v539 = vunpack.c.l.b16 %v484
          %v540 = vunpack.c.h.b16 %v484
          %v541 = vunpack.c.l.b16 %v485
          %v542 = vunpack.c.h.b16 %v485
          %v543 = vunpack.c.l.b16 %v486
          %v544 = vunpack.c.h.b16 %v486
          %v545 = vunpack.c.l.b16 %v487
          %v546 = vunpack.c.h.b16 %v487
          %v547 = vunpack.c.l.b16 %v488
          %v548 = vunpack.c.h.b16 %v488
          %v549 = vunpack.c.l.b16 %v489
          %v550 = vunpack.c.h.b16 %v489
          %v551 = vunpack.c.l.b16 %v490
          %v552 = vunpack.c.h.b16 %v490
          %v553 = vunpack.c.l.b16 %v491
          %v554 = vunpack.c.h.b16 %v491
          %v555 = vpack.c.b16 %v541, %v539
          %v556 = vpack.c.b16 %v542, %v540
          %v557 = vpack.c.b16 %v545, %v543
          %v558 = vpack.c.b16 %v546, %v544
          %v559 = vpack.c.b16 %v549, %v547
          %v560 = vpack.c.b16 %v550, %v548
          %v561 = vpack.c.b16 %v553, %v551
          %v562 = vpack.c.b16 %v554, %v552
          %v603 = vunpack.c.l.b16 %v492
          %v604 = vunpack.c.l.b16 %v493
          %v605 = vunpack.c.l.b16 %v494
          %v606 = vunpack.c.l.b16 %v495
          %v607 = vunpack.c.l.b16 %v496
          %v608 = vunpack.c.l.b16 %v497
          %v609 = vunpack.c.l.b16 %v498
          %v610 = vunpack.c.l.b16 %v499
          %v611 = vunpack.c.l.b16 %v500
          %v612 = vunpack.c.l.b16 %v501
          %v613 = vunpack.c.l.b16 %v502
          %v614 = vunpack.c.l.b16 %v503
          %v615 = vunpack.c.l.b16 %v504
          %v616 = vunpack.c.l.b16 %v505
          %v617 = vunpack.c.l.b16 %v506
          %v618 = vunpack.c.l.b16 %v507
          %v619 = vunpack.c.l.b16 %v508
          %v620 = vunpack.c.l.b16 %v509
          %v621 = vunpack.c.l.b16 %v510
          %v622 = vunpack.c.l.b16 %v511
          %v623 = vunpack.c.l.b16 %v512
          %v624 = vunpack.c.l.b16 %v513
          %v625 = vunpack.c.l.b16 %v514
          %v626 = vunpack.c.l.b16 %v515
          %v627 = vunpack.c.l.b16 %v516
          %v628 = vunpack.c.l.b16 %v517
          %v629 = vunpack.c.l.b16 %v518
          %v630 = vunpack.c.l.b16 %v519
          %v631 = vunpack.c.l.b16 %v520
          %v632 = vunpack.c.l.b16 %v521
          %v633 = vunpack.c.l.b16 %v522
          %v634 = vunpack.c.l.b16 %v523
          %v635 = vpack.c.b16 %v604, %v603
          %v636 = vpack.c.b16 %v606, %v605
          %v637 = vpack.c.b16 %v608, %v607
          %v638 = vpack.c.b16 %v610, %v609
          %v639 = vpack.c.b16 %v612, %v611
          %v640 = vpack.c.b16 %v614, %v613
          %v641 = vpack.c.b16 %v616, %v615
          %v642 = vpack.c.b16 %v618, %v617
          %v643 = vpack.c.b16 %v620, %v619
          %v644 = vpack.c.b16 %v622, %v621
          %v645 = vpack.c.b16 %v624, %v623
          %v646 = vpack.c.b16 %v626, %v625
          %v647 = vpack.c.b16 %v628, %v627
          %v648 = vpack.c.b16 %v630, %v629
          %v649 = vpack.c.b16 %v632, %v631
          %v650 = vpack.c.b16 %v634, %v633
          %667 = vmatprep.subr.bf16.mxu0 0
          %668 = vmatpush1.bf16.msra.mxu0 %v635
          %669 = vmatprep.subr.bf16.mxu0 0
          %670 = vmatpush1.bf16.msra.mxu0 %v636
          %671 = vmatprep.subr.bf16.mxu0 0
          %672 = vmatpush1.bf16.msra.mxu0 %v637
          %673 = vmatprep.subr.bf16.mxu0 0
          %674 = vmatpush1.bf16.msra.mxu0 %v638
          %675 = vmatprep.subr.bf16.mxu0 0
          %676 = vmatpush1.bf16.msra.mxu0 %v639
          %677 = vmatprep.subr.bf16.mxu0 0
          %678 = vmatpush1.bf16.msra.mxu0 %v640
          %679 = vmatprep.subr.bf16.mxu0 0
          %680 = vmatpush1.bf16.msra.mxu0 %v641
          %681 = vmatprep.subr.bf16.mxu0 0
          %682 = vmatpush1.bf16.msra.mxu0 %v642
          %683 = vmatprep.subr.bf16.mxu0 0
          %684 = vmatpush1.bf16.msra.mxu0 %v643
          %685 = vmatprep.subr.bf16.mxu0 0
          %686 = vmatpush1.bf16.msra.mxu0 %v644
          %687 = vmatprep.subr.bf16.mxu0 0
          %688 = vmatpush1.bf16.msra.mxu0 %v645
          %689 = vmatprep.subr.bf16.mxu0 0
          %690 = vmatpush1.bf16.msra.mxu0 %v646
          %691 = vmatprep.subr.bf16.mxu0 0
          %692 = vmatpush1.bf16.msra.mxu0 %v647
          %693 = vmatprep.subr.bf16.mxu0 0
          %694 = vmatpush1.bf16.msra.mxu0 %v648
          %695 = vmatprep.subr.bf16.mxu0 0
          %696 = vmatpush1.bf16.msra.mxu0 %v649
          %697 = vmatprep.subr.bf16.mxu0 0
          %698 = vmatpush1.bf16.msra.mxu0 %v650
          %699 = vmatprep.mubr.bf16.mxu0 %v556
          %700 = vmatmul.mubr.bf16.gmra.mrb[0].mxu0 %v555
          %v701 = vpop.f32.mrb[0].mxu0
          %v702 = vadd.f32 %v529, %v701
          %v703 = vpop.f32.mrb[0].mxu0
          %v704 = vpop.f32.mrb[0].mxu0
          %v705 = vadd.f32 %v529, %v704
          %v706 = vpop.f32.mrb[0].mxu0
          %707 = vmatprep.mubr.bf16.mxu0 %v558
          %708 = vmatmul.mubr.bf16.gmra.mrb[0].mxu0 %v557
          %v709 = vpop.f32.mrb[0].mxu0
          %v710 = vadd.f32 %v529, %v709
          %v711 = vpop.f32.mrb[0].mxu0
          %v712 = vpop.f32.mrb[0].mxu0
          %v713 = vadd.f32 %v529, %v712
          %v714 = vpop.f32.mrb[0].mxu0
          %715 = vmatprep.mubr.bf16.mxu0 %v560
          %716 = vmatmul.mubr.bf16.gmra.mrb[0].mxu0 %v559
          %v717 = vpop.f32.mrb[0].mxu0
          %v718 = vadd.f32 %v529, %v717
          %v719 = vpop.f32.mrb[0].mxu0
          %v720 = vpop.f32.mrb[0].mxu0
          %v721 = vadd.f32 %v529, %v720
          %v722 = vpop.f32.mrb[0].mxu0
          %723 = vmatprep.mubr.bf16.mxu0 %v562
          %724 = vmatmul.mubr.bf16.gmra.mrb[0].mxu0 %v561
          %v725 = vpop.f32.mrb[0].mxu0
          %v726 = vadd.f32 %v529, %v725
          %v727 = vpop.f32.mrb[0].mxu0
          %v728 = vpop.f32.mrb[0].mxu0
          %v729 = vadd.f32 %v529, %v728
          %v730 = vpop.f32.mrb[0].mxu0
          %731 = vdwg.mxu0
          %v732 = vmax.f32 %v702, 0.0
          %v733 = vmax.f32 %v705, 0.0
          %v734 = vmax.f32 %v710, 0.0
          %v735 = vmax.f32 %v713, 0.0
          %v736 = vmax.f32 %v718, 0.0
          %v737 = vmax.f32 %v721, 0.0
          %v738 = vmax.f32 %v726, 0.0
          %v739 = vmax.f32 %v729, 0.0
          %s740 = scalar_lea.vmem [#allocation2], %s478
          %741 = vst [vmem:[%s740] sm:$0xff] %v732
          %742 = vst [vmem:[%s740 + $0x8] sm:$0xff] %v733
          %743 = vst [vmem:[%s740 + $0x10] sm:$0xff] %v734
          %744 = vst [vmem:[%s740 + $0x18] sm:$0xff] %v735
          %745 = vst [vmem:[%s740 + $0x20] sm:$0xff] %v736
          %746 = vst [vmem:[%s740 + $0x28] sm:$0xff] %v737
          %747 = vst [vmem:[%s740 + $0x30] sm:$0xff] %v738
          %748 = vst [vmem:[%s740 + $0x38] sm:$0xff] %v739
          %v749 = vadd.f32 %v732, %v733
          %v750 = vadd.f32 %v749, %v734
          %v751 = vadd.f32 %v750, %v735
          %v752 = vadd.f32 %v751, %v736
          %v753 = vadd.f32 %v752, %v737
          %v754 = vadd.f32 %v753, %v738
          %v755 = vadd.f32 %v754, %v739
          %v756 = vrot.slane %v755, 4
          %v757 = vadd.f32 %v755, %v756
          %v758 = vrot.slane %v757, 2
          %v759 = vadd.f32 %v757, %v758
          %v760 = vrot.slane %v759, 1
          %v761 = vadd.f32 %v759, %v760
          %v762 = vadd.f32 %v477, %v761
        $region81: #{widecnn4_forward.1} parent=75 // loop_footer
          %s476 = sadd.s32 1, %s472
        $region82: #{widecnn4_forward.1} parent=75 // loop_footer_branch
          %471 = sbr.rel target = $region78
        $region83: #{widecnn4_forward.1} parent=75 // loop_exit
          _
        %v763 = vpack.c.bf16 %v477, %v477
        %v764 = vld [vmem:[%s8] sm:$0xf]
        %v765 = vld [vmem:[%s8 + $0x4] sm:$0xf]
        %v766 = vld [vmem:[%s8 + $0x8] sm:$0xf]
        %v767 = vld [vmem:[%s8 + $0xc] sm:$0xf]
        %v768 = vld [vmem:[%s8 + $0x10] sm:$0xf]
        %v769 = vld [vmem:[%s8 + $0x14] sm:$0xf]
        %v770 = vld [vmem:[%s8 + $0x18] sm:$0xf]
        %v771 = vld [vmem:[%s8 + $0x1c] sm:$0xf]
        %v772 = vld [vmem:[%s8 + $0x20] sm:$0xf]
        %v773 = vld [vmem:[%s8 + $0x24] sm:$0xf]
        %v774 = vld [vmem:[%s8 + $0x28] sm:$0xf]
        %v775 = vld [vmem:[%s8 + $0x2c] sm:$0xf]
        %v776 = vld [vmem:[%s8 + $0x30] sm:$0xf]
        %v777 = vld [vmem:[%s8 + $0x34] sm:$0xf]
        %v778 = vld [vmem:[%s8 + $0x38] sm:$0xf]
        %v779 = vld [vmem:[%s8 + $0x3c] sm:$0xf]
        %v780 = vld [vmem:[%s9] sm:$0x1]
        %v797 = vunpack.c.l.b16 %v764
        %v798 = vunpack.c.l.b16 %v765
        %v799 = vunpack.c.l.b16 %v766
        %v800 = vunpack.c.l.b16 %v767
        %v801 = vunpack.c.l.b16 %v768
        %v802 = vunpack.c.l.b16 %v769
        %v803 = vunpack.c.l.b16 %v770
        %v804 = vunpack.c.l.b16 %v771
        %v805 = vunpack.c.l.b16 %v772
        %v806 = vunpack.c.l.b16 %v773
        %v807 = vunpack.c.l.b16 %v774
        %v808 = vunpack.c.l.b16 %v775
        %v809 = vunpack.c.l.b16 %v776
        %v810 = vunpack.c.l.b16 %v777
        %v811 = vunpack.c.l.b16 %v778
        %v812 = vunpack.c.l.b16 %v779
        %v813 = vpack.c.b16 %v798, %v797
        %v814 = vpack.c.b16 %v800, %v799
        %v815 = vpack.c.b16 %v802, %v801
        %v816 = vpack.c.b16 %v804, %v803
        %v817 = vpack.c.b16 %v806, %v805
        %v818 = vpack.c.b16 %v808, %v807
        %v819 = vpack.c.b16 %v810, %v809
        %v820 = vpack.c.b16 %v812, %v811
        %829 = vmatprep.subr.bf16.mxu0 0
        %830 = vmatpush1.bf16.msra.mxu0 %v813
        %831 = vmatprep.subr.bf16.mxu0 0
        %832 = vmatpush1.bf16.msra.mxu0 %v814
        %833 = vmatprep.subr.bf16.mxu0 0
        %834 = vmatpush1.bf16.msra.mxu0 %v815
        %835 = vmatprep.subr.bf16.mxu0 0
        %836 = vmatpush1.bf16.msra.mxu0 %v816
        %837 = vmatprep.subr.bf16.mxu0 0
        %838 = vmatpush1.bf16.msra.mxu0 %v817
        %839 = vmatprep.subr.bf16.mxu0 0
        %840 = vmatpush1.bf16.msra.mxu0 %v818
        %841 = vmatprep.subr.bf16.mxu0 0
        %842 = vmatpush1.bf16.msra.mxu0 %v819
        %843 = vmatprep.subr.bf16.mxu0 0
        %844 = vmatpush1.bf16.msra.mxu0 %v820
        %845 = vmatprep.subr.bf16.mxu0 0
        %846 = vmatpush1.bf16.msra.mxu0 0
        %847 = vmatprep.subr.bf16.mxu0 0
        %848 = vmatpush1.bf16.msra.mxu0 0
        %849 = vmatprep.subr.bf16.mxu0 0
        %850 = vmatpush1.bf16.msra.mxu0 0
        %851 = vmatprep.subr.bf16.mxu0 0
        %852 = vmatpush1.bf16.msra.mxu0 0
        %853 = vmatprep.subr.bf16.mxu0 0
        %854 = vmatpush1.bf16.msra.mxu0 0
        %855 = vmatprep.subr.bf16.mxu0 0
        %856 = vmatpush1.bf16.msra.mxu0 0
        %857 = vmatprep.subr.bf16.mxu0 0
        %858 = vmatpush1.bf16.msra.mxu0 0
        %859 = vmatprep.subr.bf16.mxu0 0
        %860 = vmatpush1.bf16.msra.mxu0 0
        %861 = vmatprep.mubr.bf16.mxu0 0
        %862 = vmatmul.mubr.bf16.gmra.mrb[0].mxu0 %v763
        %v863 = vpop.f32.mrb[0].mxu0
        %v864 = vadd.f32 %v780, %v863
        %v865 = vpop.f32.mrb[0].mxu0
        %v866 = vpop.f32.mrb[0].mxu0
        %v867 = vpop.f32.mrb[0].mxu0
        %868 = vdwg.mxu0
        %v869 = vmax.f32 %v864, 0.0
        %v870 = vpack.c.bf16 %v869, %v869
        %v871 = vld [vmem:[%s10] sm:$0x3]
        %v872 = vld [vmem:[%s11] sm:$0x1]
        %vm873 = vcmask 31744
        %v875 = vsel %vm873, %v870, 0
        %vm877 = vcmask 1041408
        %v879 = vsel %vm877, %v871, 0
        %881 = vmatprep.subr.bf16.mxu0 0
        %882 = vmatpush1.bf16.msra.mxu0 %v879
        %883 = vmatprep.subr.bf16.mxu0 0
        %884 = vmatpush1.bf16.msra.mxu0 0
        %885 = vmatprep.subr.bf16.mxu0 0
        %886 = vmatpush1.bf16.msra.mxu0 0
        %887 = vmatprep.subr.bf16.mxu0 0
        %888 = vmatpush1.bf16.msra.mxu0 0
        %889 = vmatprep.subr.bf16.mxu0 0
        %890 = vmatpush1.bf16.msra.mxu0 0
        %891 = vmatprep.subr.bf16.mxu0 0
        %892 = vmatpush1.bf16.msra.mxu0 0
        %893 = vmatprep.subr.bf16.mxu0 0
        %894 = vmatpush1.bf16.msra.mxu0 0
        %895 = vmatprep.subr.bf16.mxu0 0
        %896 = vmatpush1.bf16.msra.mxu0 0
        %897 = vmatprep.subr.bf16.mxu0 0
        %898 = vmatpush1.bf16.msra.mxu0 0
        %899 = vmatprep.subr.bf16.mxu0 0
        %900 = vmatpush1.bf16.msra.mxu0 0
        %901 = vmatprep.subr.bf16.mxu0 0
        %902 = vmatpush1.bf16.msra.mxu0 0
        %903 = vmatprep.subr.bf16.mxu0 0
        %904 = vmatpush1.bf16.msra.mxu0 0
        %905 = vmatprep.subr.bf16.mxu0 0
        %906 = vmatpush1.bf16.msra.mxu0 0
        %907 = vmatprep.subr.bf16.mxu0 0
        %908 = vmatpush1.bf16.msra.mxu0 0
        %909 = vmatprep.subr.bf16.mxu0 0
        %910 = vmatpush1.bf16.msra.mxu0 0
        %911 = vmatprep.subr.bf16.mxu0 0
        %912 = vmatpush1.bf16.msra.mxu0 0
        %913 = vmatprep.mubr.bf16.mxu0 0
        %914 = vmatmul.mubr.bf16.gmra.mrb[0].mxu0 %v875
        %v915 = vpop.f32.mrb[0].mxu0
        %v916 = vadd.f32 %v872, %v915
        %v917 = vpop.f32.mrb[0].mxu0
        %v918 = vpop.f32.mrb[0].mxu0
        %v919 = vpop.f32.mrb[0].mxu0
        %920 = vdwg.mxu0
        %v921 = vsub.f32 0.0, %v916
        %v922 = vmul.f32 %v921, 1.442695
        %v923 = vpow.pop %v922
        %v924 = vadd.f32 %v923, 1.0
        %v925 = vrcp.pop %v924
        %v926 = vld [vmem:[#allocation2] sm:$0xff]
        %v927 = vld [vmem:[#allocation2 + $0x8] sm:$0xff]
        %v928 = vld [vmem:[#allocation2 + $0x10] sm:$0xff]
        %v929 = vld [vmem:[#allocation2 + $0x18] sm:$0xff]
        %v930 = vld [vmem:[#allocation2 + $0x20] sm:$0xff]
        %v931 = vld [vmem:[#allocation2 + $0x28] sm:$0xff]
        %v932 = vld [vmem:[#allocation2 + $0x30] sm:$0xff]
        %v933 = vld [vmem:[#allocation2 + $0x38] sm:$0xff]
        %v934 = vld [vmem:[#allocation2 + $0x40] sm:$0xff]
        %v935 = vld [vmem:[#allocation2 + $0x48] sm:$0xff]
        %v936 = vld [vmem:[#allocation2 + $0x50] sm:$0xff]
        %v937 = vld [vmem:[#allocation2 + $0x58] sm:$0xff]
        %v938 = vld [vmem:[#allocation2 + $0x60] sm:$0xff]
        %v939 = vld [vmem:[#allocation2 + $0x68] sm:$0xff]
        %v940 = vld [vmem:[#allocation2 + $0x70] sm:$0xff]
        %v941 = vld [vmem:[#allocation2 + $0x78] sm:$0xff]
        %v942 = vld [vmem:[#allocation2 + $0x80] sm:$0xff]
        %v943 = vld [vmem:[#allocation2 + $0x88] sm:$0xff]
        %v944 = vld [vmem:[#allocation2 + $0x90] sm:$0xff]
        %v945 = vld [vmem:[#allocation2 + $0x98] sm:$0xff]
        %v946 = vld [vmem:[#allocation2 + $0xa0] sm:$0xff]
        %v947 = vld [vmem:[#allocation2 + $0xa8] sm:$0xff]
        %v948 = vld [vmem:[#allocation2 + $0xb0] sm:$0xff]
        %v949 = vld [vmem:[#allocation2 + $0xb8] sm:$0xff]
        %v950 = vld [vmem:[#allocation2 + $0xc0] sm:$0xff]
        %v951 = vld [vmem:[#allocation2 + $0xc8] sm:$0xff]
        %v952 = vld [vmem:[#allocation2 + $0xd0] sm:$0xff]
        %v953 = vld [vmem:[#allocation2 + $0xd8] sm:$0xff]
        %v954 = vld [vmem:[#allocation2 + $0xe0] sm:$0xff]
        %v955 = vld [vmem:[#allocation2 + $0xe8] sm:$0xff]
        %v956 = vld [vmem:[#allocation2 + $0xf0] sm:$0xff]
        %v957 = vld [vmem:[#allocation2 + $0xf8] sm:$0xff]
        %v958 = vlaneseq
        %v959 = vshrl.u32 %v958, 7
        %v960 = vsub.s32 0, %v959
        %v961 = vrot.slane %v925, %v960
        %v962 = vmul.f32 %v926, %v961
        %v963 = vmul.f32 %v927, %v961
        %v964 = vmul.f32 %v928, %v961
        %v965 = vmul.f32 %v929, %v961
        %v966 = vmul.f32 %v930, %v961
        %v967 = vmul.f32 %v931, %v961
        %v968 = vmul.f32 %v932, %v961
        %v969 = vmul.f32 %v933, %v961
        %v970 = vmul.f32 %v934, %v961
        %v971 = vmul.f32 %v935, %v961
        %v972 = vmul.f32 %v936, %v961
        %v973 = vmul.f32 %v937, %v961
        %v974 = vmul.f32 %v938, %v961
        %v975 = vmul.f32 %v939, %v961
        %v976 = vmul.f32 %v940, %v961
        %v977 = vmul.f32 %v941, %v961
        %v978 = vmul.f32 %v942, %v961
        %v979 = vmul.f32 %v943, %v961
        %v980 = vmul.f32 %v944, %v961
        %v981 = vmul.f32 %v945, %v961
        %v982 = vmul.f32 %v946, %v961
        %v983 = vmul.f32 %v947, %v961
        %v984 = vmul.f32 %v948, %v961
        %v985 = vmul.f32 %v949, %v961
        %v986 = vmul.f32 %v950, %v961
        %v987 = vmul.f32 %v951, %v961
        %v988 = vmul.f32 %v952, %v961
        %v989 = vmul.f32 %v953, %v961
        %v990 = vmul.f32 %v954, %v961
        %v991 = vmul.f32 %v955, %v961
        %v992 = vmul.f32 %v956, %v961
        %v993 = vmul.f32 %v957, %v961
        %v994 = vpack.c.bf16 %v963, %v962
        %v995 = vpack.c.bf16 %v965, %v964
        %v996 = vpack.c.bf16 %v967, %v966
        %v997 = vpack.c.bf16 %v969, %v968
        %v998 = vpack.c.bf16 %v971, %v970
        %v999 = vpack.c.bf16 %v973, %v972
        %v1000 = vpack.c.bf16 %v975, %v974
        %v1001 = vpack.c.bf16 %v977, %v976
        %v1002 = vpack.c.bf16 %v979, %v978
        %v1003 = vpack.c.bf16 %v981, %v980
        %v1004 = vpack.c.bf16 %v983, %v982
        %v1005 = vpack.c.bf16 %v985, %v984
        %v1006 = vpack.c.bf16 %v987, %v986
        %v1007 = vpack.c.bf16 %v989, %v988
        %v1008 = vpack.c.bf16 %v991, %v990
        %v1009 = vpack.c.bf16 %v993, %v992
        %v1010 = vld [vmem:[%s5] sm:$0xff]
        %v1011 = vld [vmem:[%s5 + $0x8] sm:$0xff]
        %v1012 = vld [vmem:[%s5 + $0x10] sm:$0xff]
        %v1013 = vld [vmem:[%s5 + $0x18] sm:$0xff]
        %v1014 = vld [vmem:[%s5 + $0x20] sm:$0xff]
        %v1015 = vld [vmem:[%s5 + $0x28] sm:$0xff]
        %v1016 = vld [vmem:[%s5 + $0x30] sm:$0xff]
        %v1017 = vld [vmem:[%s5 + $0x38] sm:$0xff]
        %v1026 = vunpack.c.l.b16 %v1010
        %v1027 = vunpack.c.h.b16 %v1010
        %v1028 = vunpack.c.l.b16 %v1011
        %v1029 = vunpack.c.h.b16 %v1011
        %v1030 = vunpack.c.l.b16 %v1012
        %v1031 = vunpack.c.h.b16 %v1012
        %v1032 = vunpack.c.l.b16 %v1013
        %v1033 = vunpack.c.h.b16 %v1013
        %v1034 = vunpack.c.l.b16 %v1014
        %v1035 = vunpack.c.h.b16 %v1014
        %v1036 = vunpack.c.l.b16 %v1015
        %v1037 = vunpack.c.h.b16 %v1015
        %v1038 = vunpack.c.l.b16 %v1016
        %v1039 = vunpack.c.h.b16 %v1016
        %v1040 = vunpack.c.l.b16 %v1017
        %v1041 = vunpack.c.h.b16 %v1017
        %v1042 = vpack.c.b16 %v1028, %v1026
        %v1043 = vpack.c.b16 %v1029, %v1027
        %v1044 = vpack.c.b16 %v1032, %v1030
        %v1045 = vpack.c.b16 %v1033, %v1031
        %v1046 = vpack.c.b16 %v1036, %v1034
        %v1047 = vpack.c.b16 %v1037, %v1035
        %v1048 = vpack.c.b16 %v1040, %v1038
        %v1049 = vpack.c.b16 %v1041, %v1039
        %1058 = vmatprep.subr.bf16.mxu0 0
        %1059 = vmatpush1.bf16.msra.mxu0 %v994
        %1060 = vmatprep.subr.bf16.mxu0 0
        %1061 = vmatpush1.bf16.msra.mxu0 %v995
        %1062 = vmatprep.subr.bf16.mxu0 0
        %1063 = vmatpush1.bf16.msra.mxu0 %v996
        %1064 = vmatprep.subr.bf16.mxu0 0
        %1065 = vmatpush1.bf16.msra.mxu0 %v997
        %1066 = vmatprep.subr.bf16.mxu0 0
        %1067 = vmatpush1.bf16.msra.mxu0 %v998
        %1068 = vmatprep.subr.bf16.mxu0 0
        %1069 = vmatpush1.bf16.msra.mxu0 %v999
        %1070 = vmatprep.subr.bf16.mxu0 0
        %1071 = vmatpush1.bf16.msra.mxu0 %v1000
        %1072 = vmatprep.subr.bf16.mxu0 0
        %1073 = vmatpush1.bf16.msra.mxu0 %v1001
        %1074 = vmatprep.subr.bf16.mxu0 0
        %1075 = vmatpush1.bf16.msra.mxu0 %v1002
        %1076 = vmatprep.subr.bf16.mxu0 0
        %1077 = vmatpush1.bf16.msra.mxu0 %v1003
        %1078 = vmatprep.subr.bf16.mxu0 0
        %1079 = vmatpush1.bf16.msra.mxu0 %v1004
        %1080 = vmatprep.subr.bf16.mxu0 0
        %1081 = vmatpush1.bf16.msra.mxu0 %v1005
        %1082 = vmatprep.subr.bf16.mxu0 0
        %1083 = vmatpush1.bf16.msra.mxu0 %v1006
        %1084 = vmatprep.subr.bf16.mxu0 0
        %1085 = vmatpush1.bf16.msra.mxu0 %v1007
        %1086 = vmatprep.subr.bf16.mxu0 0
        %1087 = vmatpush1.bf16.msra.mxu0 %v1008
        %1088 = vmatprep.subr.bf16.mxu0 0
        %1089 = vmatpush1.bf16.msra.mxu0 %v1009
        %1090 = vmatprep.mubr.bf16.mxu0 %v1043
        %1091 = vmatmul.mubr.bf16.gmra.mrb[0].mxu0 %v1042
        %v1092 = vpop.f32.mrb[0].mxu0
        %v1093 = vadd.f32 0.0, %v1092
        %v1094 = vpop.f32.mrb[0].mxu0
        %v1095 = vpop.f32.mrb[0].mxu0
        %v1096 = vadd.f32 0.0, %v1095
        %v1097 = vpop.f32.mrb[0].mxu0
        %1098 = vmatprep.mubr.bf16.mxu0 %v1045
        %1099 = vmatmul.mubr.bf16.gmra.mrb[0].mxu0 %v1044
        %v1100 = vpop.f32.mrb[0].mxu0
        %v1101 = vadd.f32 0.0, %v1100
        %v1102 = vpop.f32.mrb[0].mxu0
        %v1103 = vpop.f32.mrb[0].mxu0
        %v1104 = vadd.f32 0.0, %v1103
        %v1105 = vpop.f32.mrb[0].mxu0
        %1106 = vmatprep.mubr.bf16.mxu0 %v1047
        %1107 = vmatmul.mubr.bf16.gmra.mrb[0].mxu0 %v1046
        %v1108 = vpop.f32.mrb[0].mxu0
        %v1109 = vadd.f32 0.0, %v1108
        %v1110 = vpop.f32.mrb[0].mxu0
        %v1111 = vpop.f32.mrb[0].mxu0
        %v1112 = vadd.f32 0.0, %v1111
        %v1113 = vpop.f32.mrb[0].mxu0
        %1114 = vmatprep.mubr.bf16.mxu0 %v1049
        %1115 = vmatmul.mubr.bf16.gmra.mrb[0].mxu0 %v1048
        %v1116 = vpop.f32.mrb[0].mxu0
        %v1117 = vadd.f32 0.0, %v1116
        %v1118 = vpop.f32.mrb[0].mxu0
        %v1119 = vpop.f32.mrb[0].mxu0
        %v1120 = vadd.f32 0.0, %v1119
        %v1121 = vpop.f32.mrb[0].mxu0
        %1122 = vdwg.mxu0
        %v1123 = vpack.c.bf16 %v1096, %v1093
        %v1124 = vpack.c.bf16 %v1104, %v1101
        %v1125 = vpack.c.bf16 %v1112, %v1109
        %v1126 = vpack.c.bf16 %v1120, %v1117
        %s1127 = scalar_lea.vmem %s5, 64
        %v1128 = vld [vmem:[%s1127] sm:$0xff]
        %v1129 = vld [vmem:[%s1127 + $0x8] sm:$0xff]
        %v1130 = vld [vmem:[%s1127 + $0x10] sm:$0xff]
        %v1131 = vld [vmem:[%s1127 + $0x18] sm:$0xff]
        %v1132 = vld [vmem:[%s1127 + $0x20] sm:$0xff]
        %v1133 = vld [vmem:[%s1127 + $0x28] sm:$0xff]
        %v1134 = vld [vmem:[%s1127 + $0x30] sm:$0xff]
        %v1135 = vld [vmem:[%s1127 + $0x38] sm:$0xff]
        %v1144 = vunpack.c.l.b16 %v1128
        %v1145 = vunpack.c.h.b16 %v1128
        %v1146 = vunpack.c.l.b16 %v1129
        %v1147 = vunpack.c.h.b16 %v1129
        %v1148 = vunpack.c.l.b16 %v1130
        %v1149 = vunpack.c.h.b16 %v1130
        %v1150 = vunpack.c.l.b16 %v1131
        %v1151 = vunpack.c.h.b16 %v1131
        %v1152 = vunpack.c.l.b16 %v1132
        %v1153 = vunpack.c.h.b16 %v1132
        %v1154 = vunpack.c.l.b16 %v1133
        %v1155 = vunpack.c.h.b16 %v1133
        %v1156 = vunpack.c.l.b16 %v1134
        %v1157 = vunpack.c.h.b16 %v1134
        %v1158 = vunpack.c.l.b16 %v1135
        %v1159 = vunpack.c.h.b16 %v1135
        %v1160 = vpack.c.b16 %v1146, %v1144
        %v1161 = vpack.c.b16 %v1147, %v1145
        %v1162 = vpack.c.b16 %v1150, %v1148
        %v1163 = vpack.c.b16 %v1151, %v1149
        %v1164 = vpack.c.b16 %v1154, %v1152
        %v1165 = vpack.c.b16 %v1155, %v1153
        %v1166 = vpack.c.b16 %v1158, %v1156
        %v1167 = vpack.c.b16 %v1159, %v1157
        %1176 = vmatprep.subr.bf16.mxu0 0
        %1177 = vmatpush1.bf16.msra.mxu0 %v994
        %1178 = vmatprep.subr.bf16.mxu0 0
        %1179 = vmatpush1.bf16.msra.mxu0 %v995
        %1180 = vmatprep.subr.bf16.mxu0 0
        %1181 = vmatpush1.bf16.msra.mxu0 %v996
        %1182 = vmatprep.subr.bf16.mxu0 0
        %1183 = vmatpush1.bf16.msra.mxu0 %v997
        %1184 = vmatprep.subr.bf16.mxu0 0
        %1185 = vmatpush1.bf16.msra.mxu0 %v998
        %1186 = vmatprep.subr.bf16.mxu0 0
        %1187 = vmatpush1.bf16.msra.mxu0 %v999
        %1188 = vmatprep.subr.bf16.mxu0 0
        %1189 = vmatpush1.bf16.msra.mxu0 %v1000
        %1190 = vmatprep.subr.bf16.mxu0 0
        %1191 = vmatpush1.bf16.msra.mxu0 %v1001
        %1192 = vmatprep.subr.bf16.mxu0 0
        %1193 = vmatpush1.bf16.msra.mxu0 %v1002
        %1194 = vmatprep.subr.bf16.mxu0 0
        %1195 = vmatpush1.bf16.msra.mxu0 %v1003
        %1196 = vmatprep.subr.bf16.mxu0 0
        %1197 = vmatpush1.bf16.msra.mxu0 %v1004
        %1198 = vmatprep.subr.bf16.mxu0 0
        %1199 = vmatpush1.bf16.msra.mxu0 %v1005
        %1200 = vmatprep.subr.bf16.mxu0 0
        %1201 = vmatpush1.bf16.msra.mxu0 %v1006
        %1202 = vmatprep.subr.bf16.mxu0 0
        %1203 = vmatpush1.bf16.msra.mxu0 %v1007
        %1204 = vmatprep.subr.bf16.mxu0 0
        %1205 = vmatpush1.bf16.msra.mxu0 %v1008
        %1206 = vmatprep.subr.bf16.mxu0 0
        %1207 = vmatpush1.bf16.msra.mxu0 %v1009
        %1208 = vmatprep.mubr.bf16.mxu0 %v1161
        %1209 = vmatmul.mubr.bf16.gmra.mrb[0].mxu0 %v1160
        %v1210 = vpop.f32.mrb[0].mxu0
        %v1211 = vadd.f32 0.0, %v1210
        %v1212 = vpop.f32.mrb[0].mxu0
        %v1213 = vpop.f32.mrb[0].mxu0
        %v1214 = vadd.f32 0.0, %v1213
        %v1215 = vpop.f32.mrb[0].mxu0
        %1216 = vmatprep.mubr.bf16.mxu0 %v1163
        %1217 = vmatmul.mubr.bf16.gmra.mrb[0].mxu0 %v1162
        %v1218 = vpop.f32.mrb[0].mxu0
        %v1219 = vadd.f32 0.0, %v1218
        %v1220 = vpop.f32.mrb[0].mxu0
        %v1221 = vpop.f32.mrb[0].mxu0
        %v1222 = vadd.f32 0.0, %v1221
        %v1223 = vpop.f32.mrb[0].mxu0
        %1224 = vmatprep.mubr.bf16.mxu0 %v1165
        %1225 = vmatmul.mubr.bf16.gmra.mrb[0].mxu0 %v1164
        %v1226 = vpop.f32.mrb[0].mxu0
        %v1227 = vadd.f32 0.0, %v1226
        %v1228 = vpop.f32.mrb[0].mxu0
        %v1229 = vpop.f32.mrb[0].mxu0
        %v1230 = vadd.f32 0.0, %v1229
        %v1231 = vpop.f32.mrb[0].mxu0
        %1232 = vmatprep.mubr.bf16.mxu0 %v1167
        %1233 = vmatmul.mubr.bf16.gmra.mrb[0].mxu0 %v1166
        %v1234 = vpop.f32.mrb[0].mxu0
        %v1235 = vadd.f32 0.0, %v1234
        %v1236 = vpop.f32.mrb[0].mxu0
        %v1237 = vpop.f32.mrb[0].mxu0
        %v1238 = vadd.f32 0.0, %v1237
        %v1239 = vpop.f32.mrb[0].mxu0
        %1240 = vdwg.mxu0
        %v1241 = vpack.c.bf16 %v1214, %v1211
        %v1242 = vpack.c.bf16 %v1222, %v1219
        %v1243 = vpack.c.bf16 %v1230, %v1227
        %v1244 = vpack.c.bf16 %v1238, %v1235
        %s1245 = scalar_lea.vmem %s5, 128
        %v1246 = vld [vmem:[%s1245] sm:$0xff]
        %v1247 = vld [vmem:[%s1245 + $0x8] sm:$0xff]
        %v1248 = vld [vmem:[%s1245 + $0x10] sm:$0xff]
        %v1249 = vld [vmem:[%s1245 + $0x18] sm:$0xff]
        %v1250 = vld [vmem:[%s1245 + $0x20] sm:$0xff]
        %v1251 = vld [vmem:[%s1245 + $0x28] sm:$0xff]
        %v1252 = vld [vmem:[%s1245 + $0x30] sm:$0xff]
        %v1253 = vld [vmem:[%s1245 + $0x38] sm:$0xff]
        %v1262 = vunpack.c.l.b16 %v1246
        %v1263 = vunpack.c.h.b16 %v1246
        %v1264 = vunpack.c.l.b16 %v1247
        %v1265 = vunpack.c.h.b16 %v1247
        %v1266 = vunpack.c.l.b16 %v1248
        %v1267 = vunpack.c.h.b16 %v1248
        %v1268 = vunpack.c.l.b16 %v1249
        %v1269 = vunpack.c.h.b16 %v1249
        %v1270 = vunpack.c.l.b16 %v1250
        %v1271 = vunpack.c.h.b16 %v1250
        %v1272 = vunpack.c.l.b16 %v1251
        %v1273 = vunpack.c.h.b16 %v1251
        %v1274 = vunpack.c.l.b16 %v1252
        %v1275 = vunpack.c.h.b16 %v1252
        %v1276 = vunpack.c.l.b16 %v1253
        %v1277 = vunpack.c.h.b16 %v1253
        %v1278 = vpack.c.b16 %v1264, %v1262
        %v1279 = vpack.c.b16 %v1265, %v1263
        %v1280 = vpack.c.b16 %v1268, %v1266
        %v1281 = vpack.c.b16 %v1269, %v1267
        %v1282 = vpack.c.b16 %v1272, %v1270
        %v1283 = vpack.c.b16 %v1273, %v1271
        %v1284 = vpack.c.b16 %v1276, %v1274
        %v1285 = vpack.c.b16 %v1277, %v1275
        %1294 = vmatprep.subr.bf16.mxu0 0
        %1295 = vmatpush1.bf16.msra.mxu0 %v994
        %1296 = vmatprep.subr.bf16.mxu0 0
        %1297 = vmatpush1.bf16.msra.mxu0 %v995
        %1298 = vmatprep.subr.bf16.mxu0 0
        %1299 = vmatpush1.bf16.msra.mxu0 %v996
        %1300 = vmatprep.subr.bf16.mxu0 0
        %1301 = vmatpush1.bf16.msra.mxu0 %v997
        %1302 = vmatprep.subr.bf16.mxu0 0
        %1303 = vmatpush1.bf16.msra.mxu0 %v998
        %1304 = vmatprep.subr.bf16.mxu0 0
        %1305 = vmatpush1.bf16.msra.mxu0 %v999
        %1306 = vmatprep.subr.bf16.mxu0 0
        %1307 = vmatpush1.bf16.msra.mxu0 %v1000
        %1308 = vmatprep.subr.bf16.mxu0 0
        %1309 = vmatpush1.bf16.msra.mxu0 %v1001
        %1310 = vmatprep.subr.bf16.mxu0 0
        %1311 = vmatpush1.bf16.msra.mxu0 %v1002
        %1312 = vmatprep.subr.bf16.mxu0 0
        %1313 = vmatpush1.bf16.msra.mxu0 %v1003
        %1314 = vmatprep.subr.bf16.mxu0 0
        %1315 = vmatpush1.bf16.msra.mxu0 %v1004
        %1316 = vmatprep.subr.bf16.mxu0 0
        %1317 = vmatpush1.bf16.msra.mxu0 %v1005
        %1318 = vmatprep.subr.bf16.mxu0 0
        %1319 = vmatpush1.bf16.msra.mxu0 %v1006
        %1320 = vmatprep.subr.bf16.mxu0 0
        %1321 = vmatpush1.bf16.msra.mxu0 %v1007
        %1322 = vmatprep.subr.bf16.mxu0 0
        %1323 = vmatpush1.bf16.msra.mxu0 %v1008
        %1324 = vmatprep.subr.bf16.mxu0 0
        %1325 = vmatpush1.bf16.msra.mxu0 %v1009
        %1326 = vmatprep.mubr.bf16.mxu0 %v1279
        %1327 = vmatmul.mubr.bf16.gmra.mrb[0].mxu0 %v1278
        %v1328 = vpop.f32.mrb[0].mxu0
        %v1329 = vadd.f32 0.0, %v1328
        %v1330 = vpop.f32.mrb[0].mxu0
        %v1331 = vpop.f32.mrb[0].mxu0
        %v1332 = vadd.f32 0.0, %v1331
        %v1333 = vpop.f32.mrb[0].mxu0
        %1334 = vmatprep.mubr.bf16.mxu0 %v1281
        %1335 = vmatmul.mubr.bf16.gmra.mrb[0].mxu0 %v1280
        %v1336 = vpop.f32.mrb[0].mxu0
        %v1337 = vadd.f32 0.0, %v1336
        %v1338 = vpop.f32.mrb[0].mxu0
        %v1339 = vpop.f32.mrb[0].mxu0
        %v1340 = vadd.f32 0.0, %v1339
        %v1341 = vpop.f32.mrb[0].mxu0
        %1342 = vmatprep.mubr.bf16.mxu0 %v1283
        %1343 = vmatmul.mubr.bf16.gmra.mrb[0].mxu0 %v1282
        %v1344 = vpop.f32.mrb[0].mxu0
        %v1345 = vadd.f32 0.0, %v1344
        %v1346 = vpop.f32.mrb[0].mxu0
        %v1347 = vpop.f32.mrb[0].mxu0
        %v1348 = vadd.f32 0.0, %v1347
        %v1349 = vpop.f32.mrb[0].mxu0
        %1350 = vmatprep.mubr.bf16.mxu0 %v1285
        %1351 = vmatmul.mubr.bf16.gmra.mrb[0].mxu0 %v1284
        %v1352 = vpop.f32.mrb[0].mxu0
        %v1353 = vadd.f32 0.0, %v1352
        %v1354 = vpop.f32.mrb[0].mxu0
        %v1355 = vpop.f32.mrb[0].mxu0
        %v1356 = vadd.f32 0.0, %v1355
        %v1357 = vpop.f32.mrb[0].mxu0
        %1358 = vdwg.mxu0
        %v1359 = vpack.c.bf16 %v1332, %v1329
        %v1360 = vpack.c.bf16 %v1340, %v1337
        %v1361 = vpack.c.bf16 %v1348, %v1345
        %v1362 = vpack.c.bf16 %v1356, %v1353
        %s1363 = scalar_lea.vmem %s5, 192
        %v1364 = vld [vmem:[%s1363] sm:$0xff]
        %v1365 = vld [vmem:[%s1363 + $0x8] sm:$0xff]
        %v1366 = vld [vmem:[%s1363 + $0x10] sm:$0xff]
        %v1367 = vld [vmem:[%s1363 + $0x18] sm:$0xff]
        %v1368 = vld [vmem:[%s1363 + $0x20] sm:$0xff]
        %v1369 = vld [vmem:[%s1363 + $0x28] sm:$0xff]
        %v1370 = vld [vmem:[%s1363 + $0x30] sm:$0xff]
        %v1371 = vld [vmem:[%s1363 + $0x38] sm:$0xff]
        %v1380 = vunpack.c.l.b16 %v1364
        %v1381 = vunpack.c.h.b16 %v1364
        %v1382 = vunpack.c.l.b16 %v1365
        %v1383 = vunpack.c.h.b16 %v1365
        %v1384 = vunpack.c.l.b16 %v1366
        %v1385 = vunpack.c.h.b16 %v1366
        %v1386 = vunpack.c.l.b16 %v1367
        %v1387 = vunpack.c.h.b16 %v1367
        %v1388 = vunpack.c.l.b16 %v1368
        %v1389 = vunpack.c.h.b16 %v1368
        %v1390 = vunpack.c.l.b16 %v1369
        %v1391 = vunpack.c.h.b16 %v1369
        %v1392 = vunpack.c.l.b16 %v1370
        %v1393 = vunpack.c.h.b16 %v1370
        %v1394 = vunpack.c.l.b16 %v1371
        %v1395 = vunpack.c.h.b16 %v1371
        %v1396 = vpack.c.b16 %v1382, %v1380
        %v1397 = vpack.c.b16 %v1383, %v1381
        %v1398 = vpack.c.b16 %v1386, %v1384
        %v1399 = vpack.c.b16 %v1387, %v1385
        %v1400 = vpack.c.b16 %v1390, %v1388
        %v1401 = vpack.c.b16 %v1391, %v1389
        %v1402 = vpack.c.b16 %v1394, %v1392
        %v1403 = vpack.c.b16 %v1395, %v1393
        %1412 = vmatprep.subr.bf16.mxu0 0
        %1413 = vmatpush1.bf16.msra.mxu0 %v994
        %1414 = vmatprep.subr.bf16.mxu0 0
        %1415 = vmatpush1.bf16.msra.mxu0 %v995
        %1416 = vmatprep.subr.bf16.mxu0 0
        %1417 = vmatpush1.bf16.msra.mxu0 %v996
        %1418 = vmatprep.subr.bf16.mxu0 0
        %1419 = vmatpush1.bf16.msra.mxu0 %v997
        %1420 = vmatprep.subr.bf16.mxu0 0
        %1421 = vmatpush1.bf16.msra.mxu0 %v998
        %1422 = vmatprep.subr.bf16.mxu0 0
        %1423 = vmatpush1.bf16.msra.mxu0 %v999
        %1424 = vmatprep.subr.bf16.mxu0 0
        %1425 = vmatpush1.bf16.msra.mxu0 %v1000
        %1426 = vmatprep.subr.bf16.mxu0 0
        %1427 = vmatpush1.bf16.msra.mxu0 %v1001
        %1428 = vmatprep.subr.bf16.mxu0 0
        %1429 = vmatpush1.bf16.msra.mxu0 %v1002
        %1430 = vmatprep.subr.bf16.mxu0 0
        %1431 = vmatpush1.bf16.msra.mxu0 %v1003
        %1432 = vmatprep.subr.bf16.mxu0 0
        %1433 = vmatpush1.bf16.msra.mxu0 %v1004
        %1434 = vmatprep.subr.bf16.mxu0 0
        %1435 = vmatpush1.bf16.msra.mxu0 %v1005
        %1436 = vmatprep.subr.bf16.mxu0 0
        %1437 = vmatpush1.bf16.msra.mxu0 %v1006
        %1438 = vmatprep.subr.bf16.mxu0 0
        %1439 = vmatpush1.bf16.msra.mxu0 %v1007
        %1440 = vmatprep.subr.bf16.mxu0 0
        %1441 = vmatpush1.bf16.msra.mxu0 %v1008
        %1442 = vmatprep.subr.bf16.mxu0 0
        %1443 = vmatpush1.bf16.msra.mxu0 %v1009
        %1444 = vmatprep.mubr.bf16.mxu0 %v1397
        %1445 = vmatmul.mubr.bf16.gmra.mrb[0].mxu0 %v1396
        %v1446 = vpop.f32.mrb[0].mxu0
        %v1447 = vadd.f32 0.0, %v1446
        %v1448 = vpop.f32.mrb[0].mxu0
        %v1449 = vpop.f32.mrb[0].mxu0
        %v1450 = vadd.f32 0.0, %v1449
        %v1451 = vpop.f32.mrb[0].mxu0
        %1452 = vmatprep.mubr.bf16.mxu0 %v1399
        %1453 = vmatmul.mubr.bf16.gmra.mrb[0].mxu0 %v1398
        %v1454 = vpop.f32.mrb[0].mxu0
        %v1455 = vadd.f32 0.0, %v1454
        %v1456 = vpop.f32.mrb[0].mxu0
        %v1457 = vpop.f32.mrb[0].mxu0
        %v1458 = vadd.f32 0.0, %v1457
        %v1459 = vpop.f32.mrb[0].mxu0
        %1460 = vmatprep.mubr.bf16.mxu0 %v1401
        %1461 = vmatmul.mubr.bf16.gmra.mrb[0].mxu0 %v1400
        %v1462 = vpop.f32.mrb[0].mxu0
        %v1463 = vadd.f32 0.0, %v1462
        %v1464 = vpop.f32.mrb[0].mxu0
        %v1465 = vpop.f32.mrb[0].mxu0
        %v1466 = vadd.f32 0.0, %v1465
        %v1467 = vpop.f32.mrb[0].mxu0
        %1468 = vmatprep.mubr.bf16.mxu0 %v1403
        %1469 = vmatmul.mubr.bf16.gmra.mrb[0].mxu0 %v1402
        %v1470 = vpop.f32.mrb[0].mxu0
        %v1471 = vadd.f32 0.0, %v1470
        %v1472 = vpop.f32.mrb[0].mxu0
        %v1473 = vpop.f32.mrb[0].mxu0
        %v1474 = vadd.f32 0.0, %v1473
        %v1475 = vpop.f32.mrb[0].mxu0
        %1476 = vdwg.mxu0
        %v1477 = vpack.c.bf16 %v1450, %v1447
        %v1478 = vpack.c.bf16 %v1458, %v1455
        %v1479 = vpack.c.bf16 %v1466, %v1463
        %v1480 = vpack.c.bf16 %v1474, %v1471
        %s1481 = scalar_lea.vmem %s5, 256
        %v1482 = vld [vmem:[%s1481] sm:$0xff]
        %v1483 = vld [vmem:[%s1481 + $0x8] sm:$0xff]
        %v1484 = vld [vmem:[%s1481 + $0x10] sm:$0xff]
        %v1485 = vld [vmem:[%s1481 + $0x18] sm:$0xff]
        %v1486 = vld [vmem:[%s1481 + $0x20] sm:$0xff]
        %v1487 = vld [vmem:[%s1481 + $0x28] sm:$0xff]
        %v1488 = vld [vmem:[%s1481 + $0x30] sm:$0xff]
        %v1489 = vld [vmem:[%s1481 + $0x38] sm:$0xff]
        %v1498 = vunpack.c.l.b16 %v1482
        %v1499 = vunpack.c.h.b16 %v1482
        %v1500 = vunpack.c.l.b16 %v1483
        %v1501 = vunpack.c.h.b16 %v1483
        %v1502 = vunpack.c.l.b16 %v1484
        %v1503 = vunpack.c.h.b16 %v1484
        %v1504 = vunpack.c.l.b16 %v1485
        %v1505 = vunpack.c.h.b16 %v1485
        %v1506 = vunpack.c.l.b16 %v1486
        %v1507 = vunpack.c.h.b16 %v1486
        %v1508 = vunpack.c.l.b16 %v1487
        %v1509 = vunpack.c.h.b16 %v1487
        %v1510 = vunpack.c.l.b16 %v1488
        %v1511 = vunpack.c.h.b16 %v1488
        %v1512 = vunpack.c.l.b16 %v1489
        %v1513 = vunpack.c.h.b16 %v1489
        %v1514 = vpack.c.b16 %v1500, %v1498
        %v1515 = vpack.c.b16 %v1501, %v1499
        %v1516 = vpack.c.b16 %v1504, %v1502
        %v1517 = vpack.c.b16 %v1505, %v1503
        %v1518 = vpack.c.b16 %v1508, %v1506
        %v1519 = vpack.c.b16 %v1509, %v1507
        %v1520 = vpack.c.b16 %v1512, %v1510
        %v1521 = vpack.c.b16 %v1513, %v1511
        %1530 = vmatprep.subr.bf16.mxu0 0
        %1531 = vmatpush1.bf16.msra.mxu0 %v994
        %1532 = vmatprep.subr.bf16.mxu0 0
        %1533 = vmatpush1.bf16.msra.mxu0 %v995
        %1534 = vmatprep.subr.bf16.mxu0 0
        %1535 = vmatpush1.bf16.msra.mxu0 %v996
        %1536 = vmatprep.subr.bf16.mxu0 0
        %1537 = vmatpush1.bf16.msra.mxu0 %v997
        %1538 = vmatprep.subr.bf16.mxu0 0
        %1539 = vmatpush1.bf16.msra.mxu0 %v998
        %1540 = vmatprep.subr.bf16.mxu0 0
        %1541 = vmatpush1.bf16.msra.mxu0 %v999
        %1542 = vmatprep.subr.bf16.mxu0 0
        %1543 = vmatpush1.bf16.msra.mxu0 %v1000
        %1544 = vmatprep.subr.bf16.mxu0 0
        %1545 = vmatpush1.bf16.msra.mxu0 %v1001
        %1546 = vmatprep.subr.bf16.mxu0 0
        %1547 = vmatpush1.bf16.msra.mxu0 %v1002
        %1548 = vmatprep.subr.bf16.mxu0 0
        %1549 = vmatpush1.bf16.msra.mxu0 %v1003
        %1550 = vmatprep.subr.bf16.mxu0 0
        %1551 = vmatpush1.bf16.msra.mxu0 %v1004
        %1552 = vmatprep.subr.bf16.mxu0 0
        %1553 = vmatpush1.bf16.msra.mxu0 %v1005
        %1554 = vmatprep.subr.bf16.mxu0 0
        %1555 = vmatpush1.bf16.msra.mxu0 %v1006
        %1556 = vmatprep.subr.bf16.mxu0 0
        %1557 = vmatpush1.bf16.msra.mxu0 %v1007
        %1558 = vmatprep.subr.bf16.mxu0 0
        %1559 = vmatpush1.bf16.msra.mxu0 %v1008
        %1560 = vmatprep.subr.bf16.mxu0 0
        %1561 = vmatpush1.bf16.msra.mxu0 %v1009
        %1562 = vmatprep.mubr.bf16.mxu0 %v1515
        %1563 = vmatmul.mubr.bf16.gmra.mrb[0].mxu0 %v1514
        %v1564 = vpop.f32.mrb[0].mxu0
        %v1565 = vadd.f32 0.0, %v1564
        %v1566 = vpop.f32.mrb[0].mxu0
        %v1567 = vpop.f32.mrb[0].mxu0
        %v1568 = vadd.f32 0.0, %v1567
        %v1569 = vpop.f32.mrb[0].mxu0
        %1570 = vmatprep.mubr.bf16.mxu0 %v1517
        %1571 = vmatmul.mubr.bf16.gmra.mrb[0].mxu0 %v1516
        %v1572 = vpop.f32.mrb[0].mxu0
        %v1573 = vadd.f32 0.0, %v1572
        %v1574 = vpop.f32.mrb[0].mxu0
        %v1575 = vpop.f32.mrb[0].mxu0
        %v1576 = vadd.f32 0.0, %v1575
        %v1577 = vpop.f32.mrb[0].mxu0
        %1578 = vmatprep.mubr.bf16.mxu0 %v1519
        %1579 = vmatmul.mubr.bf16.gmra.mrb[0].mxu0 %v1518
        %v1580 = vpop.f32.mrb[0].mxu0
        %v1581 = vadd.f32 0.0, %v1580
        %v1582 = vpop.f32.mrb[0].mxu0
        %v1583 = vpop.f32.mrb[0].mxu0
        %v1584 = vadd.f32 0.0, %v1583
        %v1585 = vpop.f32.mrb[0].mxu0
        %1586 = vmatprep.mubr.bf16.mxu0 %v1521
        %1587 = vmatmul.mubr.bf16.gmra.mrb[0].mxu0 %v1520
        %v1588 = vpop.f32.mrb[0].mxu0
        %v1589 = vadd.f32 0.0, %v1588
        %v1590 = vpop.f32.mrb[0].mxu0
        %v1591 = vpop.f32.mrb[0].mxu0
        %v1592 = vadd.f32 0.0, %v1591
        %v1593 = vpop.f32.mrb[0].mxu0
        %1594 = vdwg.mxu0
        %v1595 = vpack.c.bf16 %v1568, %v1565
        %v1596 = vpack.c.bf16 %v1576, %v1573
        %v1597 = vpack.c.bf16 %v1584, %v1581
        %v1598 = vpack.c.bf16 %v1592, %v1589
        %s1599 = scalar_lea.vmem %s5, 320
        %v1600 = vld [vmem:[%s1599] sm:$0xff]
        %v1601 = vld [vmem:[%s1599 + $0x8] sm:$0xff]
        %v1602 = vld [vmem:[%s1599 + $0x10] sm:$0xff]
        %v1603 = vld [vmem:[%s1599 + $0x18] sm:$0xff]
        %v1604 = vld [vmem:[%s1599 + $0x20] sm:$0xff]
        %v1605 = vld [vmem:[%s1599 + $0x28] sm:$0xff]
        %v1606 = vld [vmem:[%s1599 + $0x30] sm:$0xff]
        %v1607 = vld [vmem:[%s1599 + $0x38] sm:$0xff]
        %v1616 = vunpack.c.l.b16 %v1600
        %v1617 = vunpack.c.h.b16 %v1600
        %v1618 = vunpack.c.l.b16 %v1601
        %v1619 = vunpack.c.h.b16 %v1601
        %v1620 = vunpack.c.l.b16 %v1602
        %v1621 = vunpack.c.h.b16 %v1602
        %v1622 = vunpack.c.l.b16 %v1603
        %v1623 = vunpack.c.h.b16 %v1603
        %v1624 = vunpack.c.l.b16 %v1604
        %v1625 = vunpack.c.h.b16 %v1604
        %v1626 = vunpack.c.l.b16 %v1605
        %v1627 = vunpack.c.h.b16 %v1605
        %v1628 = vunpack.c.l.b16 %v1606
        %v1629 = vunpack.c.h.b16 %v1606
        %v1630 = vunpack.c.l.b16 %v1607
        %v1631 = vunpack.c.h.b16 %v1607
        %v1632 = vpack.c.b16 %v1618, %v1616
        %v1633 = vpack.c.b16 %v1619, %v1617
        %v1634 = vpack.c.b16 %v1622, %v1620
        %v1635 = vpack.c.b16 %v1623, %v1621
        %v1636 = vpack.c.b16 %v1626, %v1624
        %v1637 = vpack.c.b16 %v1627, %v1625
        %v1638 = vpack.c.b16 %v1630, %v1628
        %v1639 = vpack.c.b16 %v1631, %v1629
        %1648 = vmatprep.subr.bf16.mxu0 0
        %1649 = vmatpush1.bf16.msra.mxu0 %v994
        %1650 = vmatprep.subr.bf16.mxu0 0
        %1651 = vmatpush1.bf16.msra.mxu0 %v995
        %1652 = vmatprep.subr.bf16.mxu0 0
        %1653 = vmatpush1.bf16.msra.mxu0 %v996
        %1654 = vmatprep.subr.bf16.mxu0 0
        %1655 = vmatpush1.bf16.msra.mxu0 %v997
        %1656 = vmatprep.subr.bf16.mxu0 0
        %1657 = vmatpush1.bf16.msra.mxu0 %v998
        %1658 = vmatprep.subr.bf16.mxu0 0
        %1659 = vmatpush1.bf16.msra.mxu0 %v999
        %1660 = vmatprep.subr.bf16.mxu0 0
        %1661 = vmatpush1.bf16.msra.mxu0 %v1000
        %1662 = vmatprep.subr.bf16.mxu0 0
        %1663 = vmatpush1.bf16.msra.mxu0 %v1001
        %1664 = vmatprep.subr.bf16.mxu0 0
        %1665 = vmatpush1.bf16.msra.mxu0 %v1002
        %1666 = vmatprep.subr.bf16.mxu0 0
        %1667 = vmatpush1.bf16.msra.mxu0 %v1003
        %1668 = vmatprep.subr.bf16.mxu0 0
        %1669 = vmatpush1.bf16.msra.mxu0 %v1004
        %1670 = vmatprep.subr.bf16.mxu0 0
        %1671 = vmatpush1.bf16.msra.mxu0 %v1005
        %1672 = vmatprep.subr.bf16.mxu0 0
        %1673 = vmatpush1.bf16.msra.mxu0 %v1006
        %1674 = vmatprep.subr.bf16.mxu0 0
        %1675 = vmatpush1.bf16.msra.mxu0 %v1007
        %1676 = vmatprep.subr.bf16.mxu0 0
        %1677 = vmatpush1.bf16.msra.mxu0 %v1008
        %1678 = vmatprep.subr.bf16.mxu0 0
        %1679 = vmatpush1.bf16.msra.mxu0 %v1009
        %1680 = vmatprep.mubr.bf16.mxu0 %v1633
        %1681 = vmatmul.mubr.bf16.gmra.mrb[0].mxu0 %v1632
        %v1682 = vpop.f32.mrb[0].mxu0
        %v1683 = vadd.f32 0.0, %v1682
        %v1684 = vpop.f32.mrb[0].mxu0
        %v1685 = vpop.f32.mrb[0].mxu0
        %v1686 = vadd.f32 0.0, %v1685
        %v1687 = vpop.f32.mrb[0].mxu0
        %1688 = vmatprep.mubr.bf16.mxu0 %v1635
        %1689 = vmatmul.mubr.bf16.gmra.mrb[0].mxu0 %v1634
        %v1690 = vpop.f32.mrb[0].mxu0
        %v1691 = vadd.f32 0.0, %v1690
        %v1692 = vpop.f32.mrb[0].mxu0
        %v1693 = vpop.f32.mrb[0].mxu0
        %v1694 = vadd.f32 0.0, %v1693
        %v1695 = vpop.f32.mrb[0].mxu0
        %1696 = vmatprep.mubr.bf16.mxu0 %v1637
        %1697 = vmatmul.mubr.bf16.gmra.mrb[0].mxu0 %v1636
        %v1698 = vpop.f32.mrb[0].mxu0
        %v1699 = vadd.f32 0.0, %v1698
        %v1700 = vpop.f32.mrb[0].mxu0
        %v1701 = vpop.f32.mrb[0].mxu0
        %v1702 = vadd.f32 0.0, %v1701
        %v1703 = vpop.f32.mrb[0].mxu0
        %1704 = vmatprep.mubr.bf16.mxu0 %v1639
        %1705 = vmatmul.mubr.bf16.gmra.mrb[0].mxu0 %v1638
        %v1706 = vpop.f32.mrb[0].mxu0
        %v1707 = vadd.f32 0.0, %v1706
        %v1708 = vpop.f32.mrb[0].mxu0
        %v1709 = vpop.f32.mrb[0].mxu0
        %v1710 = vadd.f32 0.0, %v1709
        %v1711 = vpop.f32.mrb[0].mxu0
        %1712 = vdwg.mxu0
        %v1713 = vpack.c.bf16 %v1686, %v1683
        %v1714 = vpack.c.bf16 %v1694, %v1691
        %v1715 = vpack.c.bf16 %v1702, %v1699
        %v1716 = vpack.c.bf16 %v1710, %v1707
        %s1717 = scalar_lea.vmem %s5, 384
        %v1718 = vld [vmem:[%s1717] sm:$0xff]
        %v1719 = vld [vmem:[%s1717 + $0x8] sm:$0xff]
        %v1720 = vld [vmem:[%s1717 + $0x10] sm:$0xff]
        %v1721 = vld [vmem:[%s1717 + $0x18] sm:$0xff]
        %v1722 = vld [vmem:[%s1717 + $0x20] sm:$0xff]
        %v1723 = vld [vmem:[%s1717 + $0x28] sm:$0xff]
        %v1724 = vld [vmem:[%s1717 + $0x30] sm:$0xff]
        %v1725 = vld [vmem:[%s1717 + $0x38] sm:$0xff]
        %v1734 = vunpack.c.l.b16 %v1718
        %v1735 = vunpack.c.h.b16 %v1718
        %v1736 = vunpack.c.l.b16 %v1719
        %v1737 = vunpack.c.h.b16 %v1719
        %v1738 = vunpack.c.l.b16 %v1720
        %v1739 = vunpack.c.h.b16 %v1720
        %v1740 = vunpack.c.l.b16 %v1721
        %v1741 = vunpack.c.h.b16 %v1721
        %v1742 = vunpack.c.l.b16 %v1722
        %v1743 = vunpack.c.h.b16 %v1722
        %v1744 = vunpack.c.l.b16 %v1723
        %v1745 = vunpack.c.h.b16 %v1723
        %v1746 = vunpack.c.l.b16 %v1724
        %v1747 = vunpack.c.h.b16 %v1724
        %v1748 = vunpack.c.l.b16 %v1725
        %v1749 = vunpack.c.h.b16 %v1725
        %v1750 = vpack.c.b16 %v1736, %v1734
        %v1751 = vpack.c.b16 %v1737, %v1735
        %v1752 = vpack.c.b16 %v1740, %v1738
        %v1753 = vpack.c.b16 %v1741, %v1739
        %v1754 = vpack.c.b16 %v1744, %v1742
        %v1755 = vpack.c.b16 %v1745, %v1743
        %v1756 = vpack.c.b16 %v1748, %v1746
        %v1757 = vpack.c.b16 %v1749, %v1747
        %1766 = vmatprep.subr.bf16.mxu0 0
        %1767 = vmatpush1.bf16.msra.mxu0 %v994
        %1768 = vmatprep.subr.bf16.mxu0 0
        %1769 = vmatpush1.bf16.msra.mxu0 %v995
        %1770 = vmatprep.subr.bf16.mxu0 0
        %1771 = vmatpush1.bf16.msra.mxu0 %v996
        %1772 = vmatprep.subr.bf16.mxu0 0
        %1773 = vmatpush1.bf16.msra.mxu0 %v997
        %1774 = vmatprep.subr.bf16.mxu0 0
        %1775 = vmatpush1.bf16.msra.mxu0 %v998
        %1776 = vmatprep.subr.bf16.mxu0 0
        %1777 = vmatpush1.bf16.msra.mxu0 %v999
        %1778 = vmatprep.subr.bf16.mxu0 0
        %1779 = vmatpush1.bf16.msra.mxu0 %v1000
        %1780 = vmatprep.subr.bf16.mxu0 0
        %1781 = vmatpush1.bf16.msra.mxu0 %v1001
        %1782 = vmatprep.subr.bf16.mxu0 0
        %1783 = vmatpush1.bf16.msra.mxu0 %v1002
        %1784 = vmatprep.subr.bf16.mxu0 0
        %1785 = vmatpush1.bf16.msra.mxu0 %v1003
        %1786 = vmatprep.subr.bf16.mxu0 0
        %1787 = vmatpush1.bf16.msra.mxu0 %v1004
        %1788 = vmatprep.subr.bf16.mxu0 0
        %1789 = vmatpush1.bf16.msra.mxu0 %v1005
        %1790 = vmatprep.subr.bf16.mxu0 0
        %1791 = vmatpush1.bf16.msra.mxu0 %v1006
        %1792 = vmatprep.subr.bf16.mxu0 0
        %1793 = vmatpush1.bf16.msra.mxu0 %v1007
        %1794 = vmatprep.subr.bf16.mxu0 0
        %1795 = vmatpush1.bf16.msra.mxu0 %v1008
        %1796 = vmatprep.subr.bf16.mxu0 0
        %1797 = vmatpush1.bf16.msra.mxu0 %v1009
        %1798 = vmatprep.mubr.bf16.mxu0 %v1751
        %1799 = vmatmul.mubr.bf16.gmra.mrb[0].mxu0 %v1750
        %v1800 = vpop.f32.mrb[0].mxu0
        %v1801 = vadd.f32 0.0, %v1800
        %v1802 = vpop.f32.mrb[0].mxu0
        %v1803 = vpop.f32.mrb[0].mxu0
        %v1804 = vadd.f32 0.0, %v1803
        %v1805 = vpop.f32.mrb[0].mxu0
        %1806 = vmatprep.mubr.bf16.mxu0 %v1753
        %1807 = vmatmul.mubr.bf16.gmra.mrb[0].mxu0 %v1752
        %v1808 = vpop.f32.mrb[0].mxu0
        %v1809 = vadd.f32 0.0, %v1808
        %v1810 = vpop.f32.mrb[0].mxu0
        %v1811 = vpop.f32.mrb[0].mxu0
        %v1812 = vadd.f32 0.0, %v1811
        %v1813 = vpop.f32.mrb[0].mxu0
        %1814 = vmatprep.mubr.bf16.mxu0 %v1755
        %1815 = vmatmul.mubr.bf16.gmra.mrb[0].mxu0 %v1754
        %v1816 = vpop.f32.mrb[0].mxu0
        %v1817 = vadd.f32 0.0, %v1816
        %v1818 = vpop.f32.mrb[0].mxu0
        %v1819 = vpop.f32.mrb[0].mxu0
        %v1820 = vadd.f32 0.0, %v1819
        %v1821 = vpop.f32.mrb[0].mxu0
        %1822 = vmatprep.mubr.bf16.mxu0 %v1757
        %1823 = vmatmul.mubr.bf16.gmra.mrb[0].mxu0 %v1756
        %v1824 = vpop.f32.mrb[0].mxu0
        %v1825 = vadd.f32 0.0, %v1824
        %v1826 = vpop.f32.mrb[0].mxu0
        %v1827 = vpop.f32.mrb[0].mxu0
        %v1828 = vadd.f32 0.0, %v1827
        %v1829 = vpop.f32.mrb[0].mxu0
        %1830 = vdwg.mxu0
        %v1831 = vpack.c.bf16 %v1804, %v1801
        %v1832 = vpack.c.bf16 %v1812, %v1809
        %v1833 = vpack.c.bf16 %v1820, %v1817
        %v1834 = vpack.c.bf16 %v1828, %v1825
        %s1835 = scalar_lea.vmem %s5, 448
        %v1836 = vld [vmem:[%s1835] sm:$0xff]
        %v1837 = vld [vmem:[%s1835 + $0x8] sm:$0xff]
        %v1838 = vld [vmem:[%s1835 + $0x10] sm:$0xff]
        %v1839 = vld [vmem:[%s1835 + $0x18] sm:$0xff]
        %v1840 = vld [vmem:[%s1835 + $0x20] sm:$0xff]
        %v1841 = vld [vmem:[%s1835 + $0x28] sm:$0xff]
        %v1842 = vld [vmem:[%s1835 + $0x30] sm:$0xff]
        %v1843 = vld [vmem:[%s1835 + $0x38] sm:$0xff]
        %v1852 = vunpack.c.l.b16 %v1836
        %v1853 = vunpack.c.h.b16 %v1836
        %v1854 = vunpack.c.l.b16 %v1837
        %v1855 = vunpack.c.h.b16 %v1837
        %v1856 = vunpack.c.l.b16 %v1838
        %v1857 = vunpack.c.h.b16 %v1838
        %v1858 = vunpack.c.l.b16 %v1839
        %v1859 = vunpack.c.h.b16 %v1839
        %v1860 = vunpack.c.l.b16 %v1840
        %v1861 = vunpack.c.h.b16 %v1840
        %v1862 = vunpack.c.l.b16 %v1841
        %v1863 = vunpack.c.h.b16 %v1841
        %v1864 = vunpack.c.l.b16 %v1842
        %v1865 = vunpack.c.h.b16 %v1842
        %v1866 = vunpack.c.l.b16 %v1843
        %v1867 = vunpack.c.h.b16 %v1843
        %v1868 = vpack.c.b16 %v1854, %v1852
        %v1869 = vpack.c.b16 %v1855, %v1853
        %v1870 = vpack.c.b16 %v1858, %v1856
        %v1871 = vpack.c.b16 %v1859, %v1857
        %v1872 = vpack.c.b16 %v1862, %v1860
        %v1873 = vpack.c.b16 %v1863, %v1861
        %v1874 = vpack.c.b16 %v1866, %v1864
        %v1875 = vpack.c.b16 %v1867, %v1865
        %1884 = vmatprep.subr.bf16.mxu0 0
        %1885 = vmatpush1.bf16.msra.mxu0 %v994
        %1886 = vmatprep.subr.bf16.mxu0 0
        %1887 = vmatpush1.bf16.msra.mxu0 %v995
        %1888 = vmatprep.subr.bf16.mxu0 0
        %1889 = vmatpush1.bf16.msra.mxu0 %v996
        %1890 = vmatprep.subr.bf16.mxu0 0
        %1891 = vmatpush1.bf16.msra.mxu0 %v997
        %1892 = vmatprep.subr.bf16.mxu0 0
        %1893 = vmatpush1.bf16.msra.mxu0 %v998
        %1894 = vmatprep.subr.bf16.mxu0 0
        %1895 = vmatpush1.bf16.msra.mxu0 %v999
        %1896 = vmatprep.subr.bf16.mxu0 0
        %1897 = vmatpush1.bf16.msra.mxu0 %v1000
        %1898 = vmatprep.subr.bf16.mxu0 0
        %1899 = vmatpush1.bf16.msra.mxu0 %v1001
        %1900 = vmatprep.subr.bf16.mxu0 0
        %1901 = vmatpush1.bf16.msra.mxu0 %v1002
        %1902 = vmatprep.subr.bf16.mxu0 0
        %1903 = vmatpush1.bf16.msra.mxu0 %v1003
        %1904 = vmatprep.subr.bf16.mxu0 0
        %1905 = vmatpush1.bf16.msra.mxu0 %v1004
        %1906 = vmatprep.subr.bf16.mxu0 0
        %1907 = vmatpush1.bf16.msra.mxu0 %v1005
        %1908 = vmatprep.subr.bf16.mxu0 0
        %1909 = vmatpush1.bf16.msra.mxu0 %v1006
        %1910 = vmatprep.subr.bf16.mxu0 0
        %1911 = vmatpush1.bf16.msra.mxu0 %v1007
        %1912 = vmatprep.subr.bf16.mxu0 0
        %1913 = vmatpush1.bf16.msra.mxu0 %v1008
        %1914 = vmatprep.subr.bf16.mxu0 0
        %1915 = vmatpush1.bf16.msra.mxu0 %v1009
        %1916 = vmatprep.mubr.bf16.mxu0 %v1869
        %1917 = vmatmul.mubr.bf16.gmra.mrb[0].mxu0 %v1868
        %v1918 = vpop.f32.mrb[0].mxu0
        %v1919 = vadd.f32 0.0, %v1918
        %v1920 = vpop.f32.mrb[0].mxu0
        %v1921 = vpop.f32.mrb[0].mxu0
        %v1922 = vadd.f32 0.0, %v1921
        %v1923 = vpop.f32.mrb[0].mxu0
        %1924 = vmatprep.mubr.bf16.mxu0 %v1871
        %1925 = vmatmul.mubr.bf16.gmra.mrb[0].mxu0 %v1870
        %v1926 = vpop.f32.mrb[0].mxu0
        %v1927 = vadd.f32 0.0, %v1926
        %v1928 = vpop.f32.mrb[0].mxu0
        %v1929 = vpop.f32.mrb[0].mxu0
        %v1930 = vadd.f32 0.0, %v1929
        %v1931 = vpop.f32.mrb[0].mxu0
        %1932 = vmatprep.mubr.bf16.mxu0 %v1873
        %1933 = vmatmul.mubr.bf16.gmra.mrb[0].mxu0 %v1872
        %v1934 = vpop.f32.mrb[0].mxu0
        %v1935 = vadd.f32 0.0, %v1934
        %v1936 = vpop.f32.mrb[0].mxu0
        %v1937 = vpop.f32.mrb[0].mxu0
        %v1938 = vadd.f32 0.0, %v1937
        %v1939 = vpop.f32.mrb[0].mxu0
        %1940 = vmatprep.mubr.bf16.mxu0 %v1875
        %1941 = vmatmul.mubr.bf16.gmra.mrb[0].mxu0 %v1874
        %v1942 = vpop.f32.mrb[0].mxu0
        %v1943 = vadd.f32 0.0, %v1942
        %v1944 = vpop.f32.mrb[0].mxu0
        %v1945 = vpop.f32.mrb[0].mxu0
        %v1946 = vadd.f32 0.0, %v1945
        %v1947 = vpop.f32.mrb[0].mxu0
        %1948 = vdwg.mxu0
        %v1949 = vpack.c.bf16 %v1922, %v1919
        %v1950 = vpack.c.bf16 %v1930, %v1927
        %v1951 = vpack.c.bf16 %v1938, %v1935
        %v1952 = vpack.c.bf16 %v1946, %v1943
        %s1953 = scalar_lea.vmem %s5, 512
        %v1954 = vld [vmem:[%s1953] sm:$0xff]
        %v1955 = vld [vmem:[%s1953 + $0x8] sm:$0xff]
        %v1956 = vld [vmem:[%s1953 + $0x10] sm:$0xff]
        %v1957 = vld [vmem:[%s1953 + $0x18] sm:$0xff]
        %v1958 = vld [vmem:[%s1953 + $0x20] sm:$0xff]
        %v1959 = vld [vmem:[%s1953 + $0x28] sm:$0xff]
        %v1960 = vld [vmem:[%s1953 + $0x30] sm:$0xff]
        %v1961 = vld [vmem:[%s1953 + $0x38] sm:$0xff]
        %v1970 = vunpack.c.l.b16 %v1954
        %v1971 = vunpack.c.h.b16 %v1954
        %v1972 = vunpack.c.l.b16 %v1955
        %v1973 = vunpack.c.h.b16 %v1955
        %v1974 = vunpack.c.l.b16 %v1956
        %v1975 = vunpack.c.h.b16 %v1956
        %v1976 = vunpack.c.l.b16 %v1957
        %v1977 = vunpack.c.h.b16 %v1957
        %v1978 = vunpack.c.l.b16 %v1958
        %v1979 = vunpack.c.h.b16 %v1958
        %v1980 = vunpack.c.l.b16 %v1959
        %v1981 = vunpack.c.h.b16 %v1959
        %v1982 = vunpack.c.l.b16 %v1960
        %v1983 = vunpack.c.h.b16 %v1960
        %v1984 = vunpack.c.l.b16 %v1961
        %v1985 = vunpack.c.h.b16 %v1961
        %v1986 = vpack.c.b16 %v1972, %v1970
        %v1987 = vpack.c.b16 %v1973, %v1971
        %v1988 = vpack.c.b16 %v1976, %v1974
        %v1989 = vpack.c.b16 %v1977, %v1975
        %v1990 = vpack.c.b16 %v1980, %v1978
        %v1991 = vpack.c.b16 %v1981, %v1979
        %v1992 = vpack.c.b16 %v1984, %v1982
        %v1993 = vpack.c.b16 %v1985, %v1983
        %2002 = vmatprep.subr.bf16.mxu0 0
        %2003 = vmatpush1.bf16.msra.mxu0 %v994
        %2004 = vmatprep.subr.bf16.mxu0 0
        %2005 = vmatpush1.bf16.msra.mxu0 %v995
        %2006 = vmatprep.subr.bf16.mxu0 0
        %2007 = vmatpush1.bf16.msra.mxu0 %v996
        %2008 = vmatprep.subr.bf16.mxu0 0
        %2009 = vmatpush1.bf16.msra.mxu0 %v997
        %2010 = vmatprep.subr.bf16.mxu0 0
        %2011 = vmatpush1.bf16.msra.mxu0 %v998
        %2012 = vmatprep.subr.bf16.mxu0 0
        %2013 = vmatpush1.bf16.msra.mxu0 %v999
        %2014 = vmatprep.subr.bf16.mxu0 0
        %2015 = vmatpush1.bf16.msra.mxu0 %v1000
        %2016 = vmatprep.subr.bf16.mxu0 0
        %2017 = vmatpush1.bf16.msra.mxu0 %v1001
        %2018 = vmatprep.subr.bf16.mxu0 0
        %2019 = vmatpush1.bf16.msra.mxu0 %v1002
        %2020 = vmatprep.subr.bf16.mxu0 0
        %2021 = vmatpush1.bf16.msra.mxu0 %v1003
        %2022 = vmatprep.subr.bf16.mxu0 0
        %2023 = vmatpush1.bf16.msra.mxu0 %v1004
        %2024 = vmatprep.subr.bf16.mxu0 0
        %2025 = vmatpush1.bf16.msra.mxu0 %v1005
        %2026 = vmatprep.subr.bf16.mxu0 0
        %2027 = vmatpush1.bf16.msra.mxu0 %v1006
        %2028 = vmatprep.subr.bf16.mxu0 0
        %2029 = vmatpush1.bf16.msra.mxu0 %v1007
        %2030 = vmatprep.subr.bf16.mxu0 0
        %2031 = vmatpush1.bf16.msra.mxu0 %v1008
        %2032 = vmatprep.subr.bf16.mxu0 0
        %2033 = vmatpush1.bf16.msra.mxu0 %v1009
        %2034 = vmatprep.mubr.bf16.mxu0 %v1987
        %2035 = vmatmul.mubr.bf16.gmra.mrb[0].mxu0 %v1986
        %v2036 = vpop.f32.mrb[0].mxu0
        %v2037 = vadd.f32 0.0, %v2036
        %v2038 = vpop.f32.mrb[0].mxu0
        %v2039 = vpop.f32.mrb[0].mxu0
        %v2040 = vadd.f32 0.0, %v2039
        %v2041 = vpop.f32.mrb[0].mxu0
        %2042 = vmatprep.mubr.bf16.mxu0 %v1989
        %2043 = vmatmul.mubr.bf16.gmra.mrb[0].mxu0 %v1988
        %v2044 = vpop.f32.mrb[0].mxu0
        %v2045 = vadd.f32 0.0, %v2044
        %v2046 = vpop.f32.mrb[0].mxu0
        %v2047 = vpop.f32.mrb[0].mxu0
        %v2048 = vadd.f32 0.0, %v2047
        %v2049 = vpop.f32.mrb[0].mxu0
        %2050 = vmatprep.mubr.bf16.mxu0 %v1991
        %2051 = vmatmul.mubr.bf16.gmra.mrb[0].mxu0 %v1990
        %v2052 = vpop.f32.mrb[0].mxu0
        %v2053 = vadd.f32 0.0, %v2052
        %v2054 = vpop.f32.mrb[0].mxu0
        %v2055 = vpop.f32.mrb[0].mxu0
        %v2056 = vadd.f32 0.0, %v2055
        %v2057 = vpop.f32.mrb[0].mxu0
        %2058 = vmatprep.mubr.bf16.mxu0 %v1993
        %2059 = vmatmul.mubr.bf16.gmra.mrb[0].mxu0 %v1992
        %v2060 = vpop.f32.mrb[0].mxu0
        %v2061 = vadd.f32 0.0, %v2060
        %v2062 = vpop.f32.mrb[0].mxu0
        %v2063 = vpop.f32.mrb[0].mxu0
        %v2064 = vadd.f32 0.0, %v2063
        %v2065 = vpop.f32.mrb[0].mxu0
        %2066 = vdwg.mxu0
        %v2067 = vpack.c.bf16 %v2040, %v2037
        %v2068 = vpack.c.bf16 %v2048, %v2045
        %v2069 = vpack.c.bf16 %v2056, %v2053
        %v2070 = vpack.c.bf16 %v2064, %v2061
        %v2071 = vld [vmem:[%s3] sm:$0xf]
        %v2072 = vld [vmem:[%s3 + $0x4] sm:$0xf]
        %v2073 = vld [vmem:[%s3 + $0x8] sm:$0xf]
        %v2074 = vld [vmem:[%s3 + $0xc] sm:$0xf]
        %v2075 = vld [vmem:[%s3 + $0x10] sm:$0xf]
        %v2076 = vld [vmem:[%s3 + $0x14] sm:$0xf]
        %v2077 = vld [vmem:[%s3 + $0x18] sm:$0xf]
        %v2078 = vld [vmem:[%s3 + $0x1c] sm:$0xf]
        %v2079 = vld [vmem:[%s3 + $0x20] sm:$0xf]
        %v2080 = vld [vmem:[%s3 + $0x24] sm:$0xf]
        %v2081 = vld [vmem:[%s3 + $0x28] sm:$0xf]
        %v2082 = vld [vmem:[%s3 + $0x2c] sm:$0xf]
        %v2083 = vld [vmem:[%s3 + $0x30] sm:$0xf]
        %v2084 = vld [vmem:[%s3 + $0x34] sm:$0xf]
        %v2085 = vld [vmem:[%s3 + $0x38] sm:$0xf]
        %v2086 = vld [vmem:[%s3 + $0x3c] sm:$0xf]
        %v2087 = vld [vmem:[%s3 + $0x40] sm:$0xf]
        %v2088 = vld [vmem:[%s3 + $0x44] sm:$0xf]
        %v2089 = vld [vmem:[%s3 + $0x48] sm:$0xf]
        %v2090 = vld [vmem:[%s3 + $0x4c] sm:$0xf]
        %v2091 = vld [vmem:[%s3 + $0x50] sm:$0xf]
        %v2092 = vld [vmem:[%s3 + $0x54] sm:$0xf]
        %v2093 = vld [vmem:[%s3 + $0x58] sm:$0xf]
        %v2094 = vld [vmem:[%s3 + $0x5c] sm:$0xf]
        %v2095 = vld [vmem:[%s3 + $0x60] sm:$0xf]
        %v2096 = vld [vmem:[%s3 + $0x64] sm:$0xf]
        %v2097 = vld [vmem:[%s3 + $0x68] sm:$0xf]
        %v2098 = vld [vmem:[%s3 + $0x6c] sm:$0xf]
        %v2099 = vld [vmem:[%s3 + $0x70] sm:$0xf]
        %v2100 = vld [vmem:[%s3 + $0x74] sm:$0xf]
        %v2101 = vld [vmem:[%s3 + $0x78] sm:$0xf]
        %v2102 = vld [vmem:[%s3 + $0x7c] sm:$0xf]
        %v2103 = vld [vmem:[%s3 + $0x80] sm:$0xf]
        %v2104 = vld [vmem:[%s3 + $0x84] sm:$0xf]
        %v2105 = vld [vmem:[%s3 + $0x88] sm:$0xf]
        %v2106 = vld [vmem:[%s3 + $0x8c] sm:$0xf]
        %v2107 = vld [vmem:[%s3 + $0x90] sm:$0xf]
        %v2108 = vld [vmem:[%s3 + $0x94] sm:$0xf]
        %v2109 = vld [vmem:[%s3 + $0x98] sm:$0xf]
        %v2110 = vld [vmem:[%s3 + $0x9c] sm:$0xf]
        %v2111 = vld [vmem:[%s3 + $0xa0] sm:$0xf]
        %v2112 = vld [vmem:[%s3 + $0xa4] sm:$0xf]
        %v2113 = vld [vmem:[%s3 + $0xa8] sm:$0xf]
        %v2114 = vld [vmem:[%s3 + $0xac] sm:$0xf]
        %v2115 = vld [vmem:[%s3 + $0xb0] sm:$0xf]
        %v2116 = vld [vmem:[%s3 + $0xb4] sm:$0xf]
        %v2117 = vld [vmem:[%s3 + $0xb8] sm:$0xf]
        %v2118 = vld [vmem:[%s3 + $0xbc] sm:$0xf]
        %v2119 = vld [vmem:[%s3 + $0xc0] sm:$0xf]
        %v2120 = vld [vmem:[%s3 + $0xc4] sm:$0xf]
        %v2121 = vld [vmem:[%s3 + $0xc8] sm:$0xf]
        %v2122 = vld [vmem:[%s3 + $0xcc] sm:$0xf]
        %v2123 = vld [vmem:[%s3 + $0xd0] sm:$0xf]
        %v2124 = vld [vmem:[%s3 + $0xd4] sm:$0xf]
        %v2125 = vld [vmem:[%s3 + $0xd8] sm:$0xf]
        %v2126 = vld [vmem:[%s3 + $0xdc] sm:$0xf]
        %v2127 = vld [vmem:[%s3 + $0xe0] sm:$0xf]
        %v2128 = vld [vmem:[%s3 + $0xe4] sm:$0xf]
        %v2129 = vld [vmem:[%s3 + $0xe8] sm:$0xf]
        %v2130 = vld [vmem:[%s3 + $0xec] sm:$0xf]
        %v2131 = vld [vmem:[%s3 + $0xf0] sm:$0xf]
        %v2132 = vld [vmem:[%s3 + $0xf4] sm:$0xf]
        %v2133 = vld [vmem:[%s3 + $0xf8] sm:$0xf]
        %v2134 = vld [vmem:[%s3 + $0xfc] sm:$0xf]
        %v2135 = vld [vmem:[%s3 + $0x100] sm:$0xf]
        %v2136 = vld [vmem:[%s3 + $0x104] sm:$0xf]
        %v2137 = vld [vmem:[%s3 + $0x108] sm:$0xf]
        %v2138 = vld [vmem:[%s3 + $0x10c] sm:$0xf]
        %v2139 = vld [vmem:[%s3 + $0x110] sm:$0xf]
        %v2140 = vld [vmem:[%s3 + $0x114] sm:$0xf]
        %v2141 = vld [vmem:[%s3 + $0x118] sm:$0xf]
        %v2142 = vld [vmem:[%s3 + $0x11c] sm:$0xf]
        %v2143 = vld [vmem:[%s3 + $0x120] sm:$0xf]
        %v2144 = vld [vmem:[%s3 + $0x124] sm:$0xf]
        %v2145 = vld [vmem:[%s3 + $0x128] sm:$0xf]
        %v2146 = vld [vmem:[%s3 + $0x12c] sm:$0xf]
        %v2147 = vld [vmem:[%s3 + $0x130] sm:$0xf]
        %v2148 = vld [vmem:[%s3 + $0x134] sm:$0xf]
        %v2149 = vld [vmem:[%s3 + $0x138] sm:$0xf]
        %v2150 = vld [vmem:[%s3 + $0x13c] sm:$0xf]
        %v2151 = vld [vmem:[%s3 + $0x140] sm:$0xf]
        %v2152 = vld [vmem:[%s3 + $0x144] sm:$0xf]
        %v2153 = vld [vmem:[%s3 + $0x148] sm:$0xf]
        %v2154 = vld [vmem:[%s3 + $0x14c] sm:$0xf]
        %v2155 = vld [vmem:[%s3 + $0x150] sm:$0xf]
        %v2156 = vld [vmem:[%s3 + $0x154] sm:$0xf]
        %v2157 = vld [vmem:[%s3 + $0x158] sm:$0xf]
        %v2158 = vld [vmem:[%s3 + $0x15c] sm:$0xf]
        %v2159 = vld [vmem:[%s3 + $0x160] sm:$0xf]
        %v2160 = vld [vmem:[%s3 + $0x164] sm:$0xf]
        %v2161 = vld [vmem:[%s3 + $0x168] sm:$0xf]
        %v2162 = vld [vmem:[%s3 + $0x16c] sm:$0xf]
        %v2163 = vld [vmem:[%s3 + $0x170] sm:$0xf]
        %v2164 = vld [vmem:[%s3 + $0x174] sm:$0xf]
        %v2165 = vld [vmem:[%s3 + $0x178] sm:$0xf]
        %v2166 = vld [vmem:[%s3 + $0x17c] sm:$0xf]
        %v2167 = vld [vmem:[%s3 + $0x180] sm:$0xf]
        %v2168 = vld [vmem:[%s3 + $0x184] sm:$0xf]
        %v2169 = vld [vmem:[%s3 + $0x188] sm:$0xf]
        %v2170 = vld [vmem:[%s3 + $0x18c] sm:$0xf]
        %v2171 = vld [vmem:[%s3 + $0x190] sm:$0xf]
        %v2172 = vld [vmem:[%s3 + $0x194] sm:$0xf]
        %v2173 = vld [vmem:[%s3 + $0x198] sm:$0xf]
        %v2174 = vld [vmem:[%s3 + $0x19c] sm:$0xf]
        %v2175 = vld [vmem:[%s3 + $0x1a0] sm:$0xf]
        %v2176 = vld [vmem:[%s3 + $0x1a4] sm:$0xf]
        %v2177 = vld [vmem:[%s3 + $0x1a8] sm:$0xf]
        %v2178 = vld [vmem:[%s3 + $0x1ac] sm:$0xf]
        %v2179 = vld [vmem:[%s3 + $0x1b0] sm:$0xf]
        %v2180 = vld [vmem:[%s3 + $0x1b4] sm:$0xf]
        %v2181 = vld [vmem:[%s3 + $0x1b8] sm:$0xf]
        %v2182 = vld [vmem:[%s3 + $0x1bc] sm:$0xf]
        %v2183 = vld [vmem:[%s3 + $0x1c0] sm:$0xf]
        %v2184 = vld [vmem:[%s3 + $0x1c4] sm:$0xf]
        %v2185 = vld [vmem:[%s3 + $0x1c8] sm:$0xf]
        %v2186 = vld [vmem:[%s3 + $0x1cc] sm:$0xf]
        %v2187 = vld [vmem:[%s3 + $0x1d0] sm:$0xf]
        %v2188 = vld [vmem:[%s3 + $0x1d4] sm:$0xf]
        %v2189 = vld [vmem:[%s3 + $0x1d8] sm:$0xf]
        %v2190 = vld [vmem:[%s3 + $0x1dc] sm:$0xf]
        %v2191 = vld [vmem:[%s3 + $0x1e0] sm:$0xf]
        %v2192 = vld [vmem:[%s3 + $0x1e4] sm:$0xf]
        %v2193 = vld [vmem:[%s3 + $0x1e8] sm:$0xf]
        %v2194 = vld [vmem:[%s3 + $0x1ec] sm:$0xf]
        %v2195 = vld [vmem:[%s3 + $0x1f0] sm:$0xf]
        %v2196 = vld [vmem:[%s3 + $0x1f4] sm:$0xf]
        %v2197 = vld [vmem:[%s3 + $0x1f8] sm:$0xf]
        %v2198 = vld [vmem:[%s3 + $0x1fc] sm:$0xf]
        %v2199 = vld [vmem:[%s3 + $0x200] sm:$0xf]
        %v2200 = vld [vmem:[%s3 + $0x204] sm:$0xf]
        %v2201 = vld [vmem:[%s3 + $0x208] sm:$0xf]
        %v2202 = vld [vmem:[%s3 + $0x20c] sm:$0xf]
        %v2203 = vld [vmem:[%s3 + $0x210] sm:$0xf]
        %v2204 = vld [vmem:[%s3 + $0x214] sm:$0xf]
        %v2205 = vld [vmem:[%s3 + $0x218] sm:$0xf]
        %v2206 = vld [vmem:[%s3 + $0x21c] sm:$0xf]
        %v2207 = vld [vmem:[%s3 + $0x220] sm:$0xf]
        %v2208 = vld [vmem:[%s3 + $0x224] sm:$0xf]
        %v2209 = vld [vmem:[%s3 + $0x228] sm:$0xf]
        %v2210 = vld [vmem:[%s3 + $0x22c] sm:$0xf]
        %v2211 = vld [vmem:[%s3 + $0x230] sm:$0xf]
        %v2212 = vld [vmem:[%s3 + $0x234] sm:$0xf]
        %v2213 = vld [vmem:[%s3 + $0x238] sm:$0xf]
        %v2214 = vld [vmem:[%s3 + $0x23c] sm:$0xf]
        %v2215 = vld [vmem:[%s4] sm:$0x1]
        %v2217 = vlaneseq
        %v2218 = vshrl.u32 %v2217, 7
        %v2219 = vsub.s32 0, %v2218
        %v2220 = vrot.slane %v2215, %v2219
        %v2366 = vunpack.c.l.b16 %v2071
        %v2367 = vunpack.c.l.b16 %v2072
        %v2368 = vunpack.c.l.b16 %v2073
        %v2369 = vunpack.c.l.b16 %v2074
        %v2370 = vunpack.c.l.b16 %v2075
        %v2371 = vunpack.c.l.b16 %v2076
        %v2372 = vunpack.c.l.b16 %v2077
        %v2373 = vunpack.c.l.b16 %v2078
        %v2374 = vunpack.c.l.b16 %v2079
        %v2375 = vunpack.c.l.b16 %v2080
        %v2376 = vunpack.c.l.b16 %v2081
        %v2377 = vunpack.c.l.b16 %v2082
        %v2378 = vunpack.c.l.b16 %v2083
        %v2379 = vunpack.c.l.b16 %v2084
        %v2380 = vunpack.c.l.b16 %v2085
        %v2381 = vunpack.c.l.b16 %v2086
        %v2382 = vunpack.c.l.b16 %v2087
        %v2383 = vunpack.c.l.b16 %v2088
        %v2384 = vunpack.c.l.b16 %v2089
        %v2385 = vunpack.c.l.b16 %v2090
        %v2386 = vunpack.c.l.b16 %v2091
        %v2387 = vunpack.c.l.b16 %v2092
        %v2388 = vunpack.c.l.b16 %v2093
        %v2389 = vunpack.c.l.b16 %v2094
        %v2390 = vunpack.c.l.b16 %v2095
        %v2391 = vunpack.c.l.b16 %v2096
        %v2392 = vunpack.c.l.b16 %v2097
        %v2393 = vunpack.c.l.b16 %v2098
        %v2394 = vunpack.c.l.b16 %v2099
        %v2395 = vunpack.c.l.b16 %v2100
        %v2396 = vunpack.c.l.b16 %v2101
        %v2397 = vunpack.c.l.b16 %v2102
        %v2398 = vunpack.c.l.b16 %v2103
        %v2399 = vunpack.c.l.b16 %v2104
        %v2400 = vunpack.c.l.b16 %v2105
        %v2401 = vunpack.c.l.b16 %v2106
        %v2402 = vunpack.c.l.b16 %v2107
        %v2403 = vunpack.c.l.b16 %v2108
        %v2404 = vunpack.c.l.b16 %v2109
        %v2405 = vunpack.c.l.b16 %v2110
        %v2406 = vunpack.c.l.b16 %v2111
        %v2407 = vunpack.c.l.b16 %v2112
        %v2408 = vunpack.c.l.b16 %v2113
        %v2409 = vunpack.c.l.b16 %v2114
        %v2410 = vunpack.c.l.b16 %v2115
        %v2411 = vunpack.c.l.b16 %v2116
        %v2412 = vunpack.c.l.b16 %v2117
        %v2413 = vunpack.c.l.b16 %v2118
        %v2414 = vunpack.c.l.b16 %v2119
        %v2415 = vunpack.c.l.b16 %v2120
        %v2416 = vunpack.c.l.b16 %v2121
        %v2417 = vunpack.c.l.b16 %v2122
        %v2418 = vunpack.c.l.b16 %v2123
        %v2419 = vunpack.c.l.b16 %v2124
        %v2420 = vunpack.c.l.b16 %v2125
        %v2421 = vunpack.c.l.b16 %v2126
        %v2422 = vunpack.c.l.b16 %v2127
        %v2423 = vunpack.c.l.b16 %v2128
        %v2424 = vunpack.c.l.b16 %v2129
        %v2425 = vunpack.c.l.b16 %v2130
        %v2426 = vunpack.c.l.b16 %v2131
        %v2427 = vunpack.c.l.b16 %v2132
        %v2428 = vunpack.c.l.b16 %v2133
        %v2429 = vunpack.c.l.b16 %v2134
        %v2430 = vunpack.c.l.b16 %v2135
        %v2431 = vunpack.c.l.b16 %v2136
        %v2432 = vunpack.c.l.b16 %v2137
        %v2433 = vunpack.c.l.b16 %v2138
        %v2434 = vunpack.c.l.b16 %v2139
        %v2435 = vunpack.c.l.b16 %v2140
        %v2436 = vunpack.c.l.b16 %v2141
        %v2437 = vunpack.c.l.b16 %v2142
        %v2438 = vunpack.c.l.b16 %v2143
        %v2439 = vunpack.c.l.b16 %v2144
        %v2440 = vunpack.c.l.b16 %v2145
        %v2441 = vunpack.c.l.b16 %v2146
        %v2442 = vunpack.c.l.b16 %v2147
        %v2443 = vunpack.c.l.b16 %v2148
        %v2444 = vunpack.c.l.b16 %v2149
        %v2445 = vunpack.c.l.b16 %v2150
        %v2446 = vunpack.c.l.b16 %v2151
        %v2447 = vunpack.c.l.b16 %v2152
        %v2448 = vunpack.c.l.b16 %v2153
        %v2449 = vunpack.c.l.b16 %v2154
        %v2450 = vunpack.c.l.b16 %v2155
        %v2451 = vunpack.c.l.b16 %v2156
        %v2452 = vunpack.c.l.b16 %v2157
        %v2453 = vunpack.c.l.b16 %v2158
        %v2454 = vunpack.c.l.b16 %v2159
        %v2455 = vunpack.c.l.b16 %v2160
        %v2456 = vunpack.c.l.b16 %v2161
        %v2457 = vunpack.c.l.b16 %v2162
        %v2458 = vunpack.c.l.b16 %v2163
        %v2459 = vunpack.c.l.b16 %v2164
        %v2460 = vunpack.c.l.b16 %v2165
        %v2461 = vunpack.c.l.b16 %v2166
        %v2462 = vunpack.c.l.b16 %v2167
        %v2463 = vunpack.c.l.b16 %v2168
        %v2464 = vunpack.c.l.b16 %v2169
        %v2465 = vunpack.c.l.b16 %v2170
        %v2466 = vunpack.c.l.b16 %v2171
        %v2467 = vunpack.c.l.b16 %v2172
        %v2468 = vunpack.c.l.b16 %v2173
        %v2469 = vunpack.c.l.b16 %v2174
        %v2470 = vunpack.c.l.b16 %v2175
        %v2471 = vunpack.c.l.b16 %v2176
        %v2472 = vunpack.c.l.b16 %v2177
        %v2473 = vunpack.c.l.b16 %v2178
        %v2474 = vunpack.c.l.b16 %v2179
        %v2475 = vunpack.c.l.b16 %v2180
        %v2476 = vunpack.c.l.b16 %v2181
        %v2477 = vunpack.c.l.b16 %v2182
        %v2478 = vunpack.c.l.b16 %v2183
        %v2479 = vunpack.c.l.b16 %v2184
        %v2480 = vunpack.c.l.b16 %v2185
        %v2481 = vunpack.c.l.b16 %v2186
        %v2482 = vunpack.c.l.b16 %v2187
        %v2483 = vunpack.c.l.b16 %v2188
        %v2484 = vunpack.c.l.b16 %v2189
        %v2485 = vunpack.c.l.b16 %v2190
        %v2486 = vunpack.c.l.b16 %v2191
        %v2487 = vunpack.c.l.b16 %v2192
        %v2488 = vunpack.c.l.b16 %v2193
        %v2489 = vunpack.c.l.b16 %v2194
        %v2490 = vunpack.c.l.b16 %v2195
        %v2491 = vunpack.c.l.b16 %v2196
        %v2492 = vunpack.c.l.b16 %v2197
        %v2493 = vunpack.c.l.b16 %v2198
        %v2494 = vunpack.c.l.b16 %v2199
        %v2495 = vunpack.c.l.b16 %v2200
        %v2496 = vunpack.c.l.b16 %v2201
        %v2497 = vunpack.c.l.b16 %v2202
        %v2498 = vunpack.c.l.b16 %v2203
        %v2499 = vunpack.c.l.b16 %v2204
        %v2500 = vunpack.c.l.b16 %v2205
        %v2501 = vunpack.c.l.b16 %v2206
        %v2502 = vunpack.c.l.b16 %v2207
        %v2503 = vunpack.c.l.b16 %v2208
        %v2504 = vunpack.c.l.b16 %v2209
        %v2505 = vunpack.c.l.b16 %v2210
        %v2506 = vunpack.c.l.b16 %v2211
        %v2507 = vunpack.c.l.b16 %v2212
        %v2508 = vunpack.c.l.b16 %v2213
        %v2509 = vunpack.c.l.b16 %v2214
        %v2510 = vpack.c.b16 %v2367, %v2366
        %v2511 = vpack.c.b16 %v2369, %v2368
        %v2512 = vpack.c.b16 %v2371, %v2370
        %v2513 = vpack.c.b16 %v2373, %v2372
        %v2514 = vpack.c.b16 %v2375, %v2374
        %v2515 = vpack.c.b16 %v2377, %v2376
        %v2516 = vpack.c.b16 %v2379, %v2378
        %v2517 = vpack.c.b16 %v2381, %v2380
        %v2518 = vpack.c.b16 %v2383, %v2382
        %v2519 = vpack.c.b16 %v2385, %v2384
        %v2520 = vpack.c.b16 %v2387, %v2386
        %v2521 = vpack.c.b16 %v2389, %v2388
        %v2522 = vpack.c.b16 %v2391, %v2390
        %v2523 = vpack.c.b16 %v2393, %v2392
        %v2524 = vpack.c.b16 %v2395, %v2394
        %v2525 = vpack.c.b16 %v2397, %v2396
        %v2526 = vpack.c.b16 %v2399, %v2398
        %v2527 = vpack.c.b16 %v2401, %v2400
        %v2528 = vpack.c.b16 %v2403, %v2402
        %v2529 = vpack.c.b16 %v2405, %v2404
        %v2530 = vpack.c.b16 %v2407, %v2406
        %v2531 = vpack.c.b16 %v2409, %v2408
        %v2532 = vpack.c.b16 %v2411, %v2410
        %v2533 = vpack.c.b16 %v2413, %v2412
        %v2534 = vpack.c.b16 %v2415, %v2414
        %v2535 = vpack.c.b16 %v2417, %v2416
        %v2536 = vpack.c.b16 %v2419, %v2418
        %v2537 = vpack.c.b16 %v2421, %v2420
        %v2538 = vpack.c.b16 %v2423, %v2422
        %v2539 = vpack.c.b16 %v2425, %v2424
        %v2540 = vpack.c.b16 %v2427, %v2426
        %v2541 = vpack.c.b16 %v2429, %v2428
        %v2542 = vpack.c.b16 %v2431, %v2430
        %v2543 = vpack.c.b16 %v2433, %v2432
        %v2544 = vpack.c.b16 %v2435, %v2434
        %v2545 = vpack.c.b16 %v2437, %v2436
        %v2546 = vpack.c.b16 %v2439, %v2438
        %v2547 = vpack.c.b16 %v2441, %v2440
        %v2548 = vpack.c.b16 %v2443, %v2442
        %v2549 = vpack.c.b16 %v2445, %v2444
        %v2550 = vpack.c.b16 %v2447, %v2446
        %v2551 = vpack.c.b16 %v2449, %v2448
        %v2552 = vpack.c.b16 %v2451, %v2450
        %v2553 = vpack.c.b16 %v2453, %v2452
        %v2554 = vpack.c.b16 %v2455, %v2454
        %v2555 = vpack.c.b16 %v2457, %v2456
        %v2556 = vpack.c.b16 %v2459, %v2458
        %v2557 = vpack.c.b16 %v2461, %v2460
        %v2558 = vpack.c.b16 %v2463, %v2462
        %v2559 = vpack.c.b16 %v2465, %v2464
        %v2560 = vpack.c.b16 %v2467, %v2466
        %v2561 = vpack.c.b16 %v2469, %v2468
        %v2562 = vpack.c.b16 %v2471, %v2470
        %v2563 = vpack.c.b16 %v2473, %v2472
        %v2564 = vpack.c.b16 %v2475, %v2474
        %v2565 = vpack.c.b16 %v2477, %v2476
        %v2566 = vpack.c.b16 %v2479, %v2478
        %v2567 = vpack.c.b16 %v2481, %v2480
        %v2568 = vpack.c.b16 %v2483, %v2482
        %v2569 = vpack.c.b16 %v2485, %v2484
        %v2570 = vpack.c.b16 %v2487, %v2486
        %v2571 = vpack.c.b16 %v2489, %v2488
        %v2572 = vpack.c.b16 %v2491, %v2490
        %v2573 = vpack.c.b16 %v2493, %v2492
        %v2574 = vpack.c.b16 %v2495, %v2494
        %v2575 = vpack.c.b16 %v2497, %v2496
        %v2576 = vpack.c.b16 %v2499, %v2498
        %v2577 = vpack.c.b16 %v2501, %v2500
        %v2578 = vpack.c.b16 %v2503, %v2502
        %v2579 = vpack.c.b16 %v2505, %v2504
        %v2580 = vpack.c.b16 %v2507, %v2506
        %v2581 = vpack.c.b16 %v2509, %v2508
        %2654 = vmatprep.subr.bf16.mxu0 0
        %2655 = vmatpush1.bf16.msra.mxu0 %v2510
        %2656 = vmatprep.subr.bf16.mxu0 0
        %2657 = vmatpush1.bf16.msra.mxu0 %v2511
        %2658 = vmatprep.subr.bf16.mxu0 0
        %2659 = vmatpush1.bf16.msra.mxu0 %v2512
        %2660 = vmatprep.subr.bf16.mxu0 0
        %2661 = vmatpush1.bf16.msra.mxu0 %v2513
        %2662 = vmatprep.subr.bf16.mxu0 0
        %2663 = vmatpush1.bf16.msra.mxu0 %v2514
        %2664 = vmatprep.subr.bf16.mxu0 0
        %2665 = vmatpush1.bf16.msra.mxu0 %v2515
        %2666 = vmatprep.subr.bf16.mxu0 0
        %2667 = vmatpush1.bf16.msra.mxu0 %v2516
        %2668 = vmatprep.subr.bf16.mxu0 0
        %2669 = vmatpush1.bf16.msra.mxu0 %v2517
        %2670 = vmatprep.subr.bf16.mxu0 0
        %2671 = vmatpush1.bf16.msra.mxu0 %v2518
        %2672 = vmatprep.subr.bf16.mxu0 0
        %2673 = vmatpush1.bf16.msra.mxu0 %v2519
        %2674 = vmatprep.subr.bf16.mxu0 0
        %2675 = vmatpush1.bf16.msra.mxu0 %v2520
        %2676 = vmatprep.subr.bf16.mxu0 0
        %2677 = vmatpush1.bf16.msra.mxu0 %v2521
        %2678 = vmatprep.subr.bf16.mxu0 0
        %2679 = vmatpush1.bf16.msra.mxu0 %v2522
        %2680 = vmatprep.subr.bf16.mxu0 0
        %2681 = vmatpush1.bf16.msra.mxu0 %v2523
        %2682 = vmatprep.subr.bf16.mxu0 0
        %2683 = vmatpush1.bf16.msra.mxu0 %v2524
        %2684 = vmatprep.subr.bf16.mxu0 0
        %2685 = vmatpush1.bf16.msra.mxu0 %v2525
        %2686 = vmatprep.mubr.bf16.mxu0 %v1241
        %2687 = vmatmul.mubr.bf16.gmra.mrb[0].mxu0 %v1123
        %v2688 = vpop.f32.mrb[0].mxu0
        %v2689 = vadd.f32 %v2220, %v2688
        %v2690 = vpop.f32.mrb[0].mxu0
        %v2691 = vpop.f32.mrb[0].mxu0
        %v2692 = vadd.f32 %v2220, %v2691
        %v2693 = vpop.f32.mrb[0].mxu0
        %2694 = vmatprep.mubr.bf16.mxu0 %v1242
        %2695 = vmatmul.mubr.bf16.gmra.mrb[0].mxu0 %v1124
        %v2696 = vpop.f32.mrb[0].mxu0
        %v2697 = vadd.f32 %v2220, %v2696
        %v2698 = vpop.f32.mrb[0].mxu0
        %v2699 = vpop.f32.mrb[0].mxu0
        %v2700 = vadd.f32 %v2220, %v2699
        %v2701 = vpop.f32.mrb[0].mxu0
        %2702 = vmatprep.mubr.bf16.mxu0 %v1243
        %2703 = vmatmul.mubr.bf16.gmra.mrb[0].mxu0 %v1125
        %v2704 = vpop.f32.mrb[0].mxu0
        %v2705 = vadd.f32 %v2220, %v2704
        %v2706 = vpop.f32.mrb[0].mxu0
        %v2707 = vpop.f32.mrb[0].mxu0
        %v2708 = vadd.f32 %v2220, %v2707
        %v2709 = vpop.f32.mrb[0].mxu0
        %2710 = vmatprep.mubr.bf16.mxu0 %v1244
        %2711 = vmatmul.mubr.bf16.gmra.mrb[0].mxu0 %v1126
        %v2712 = vpop.f32.mrb[0].mxu0
        %v2713 = vadd.f32 %v2220, %v2712
        %v2714 = vpop.f32.mrb[0].mxu0
        %v2715 = vpop.f32.mrb[0].mxu0
        %v2716 = vadd.f32 %v2220, %v2715
        %v2717 = vpop.f32.mrb[0].mxu0
        %2718 = vdwg.mxu0
        %2719 = vmatprep.subr.bf16.mxu0 0
        %2720 = vmatpush1.bf16.msra.mxu0 %v2526
        %2721 = vmatprep.subr.bf16.mxu0 0
        %2722 = vmatpush1.bf16.msra.mxu0 %v2527
        %2723 = vmatprep.subr.bf16.mxu0 0
        %2724 = vmatpush1.bf16.msra.mxu0 %v2528
        %2725 = vmatprep.subr.bf16.mxu0 0
        %2726 = vmatpush1.bf16.msra.mxu0 %v2529
        %2727 = vmatprep.subr.bf16.mxu0 0
        %2728 = vmatpush1.bf16.msra.mxu0 %v2530
        %2729 = vmatprep.subr.bf16.mxu0 0
        %2730 = vmatpush1.bf16.msra.mxu0 %v2531
        %2731 = vmatprep.subr.bf16.mxu0 0
        %2732 = vmatpush1.bf16.msra.mxu0 %v2532
        %2733 = vmatprep.subr.bf16.mxu0 0
        %2734 = vmatpush1.bf16.msra.mxu0 %v2533
        %2735 = vmatprep.subr.bf16.mxu0 0
        %2736 = vmatpush1.bf16.msra.mxu0 %v2534
        %2737 = vmatprep.subr.bf16.mxu0 0
        %2738 = vmatpush1.bf16.msra.mxu0 %v2535
        %2739 = vmatprep.subr.bf16.mxu0 0
        %2740 = vmatpush1.bf16.msra.mxu0 %v2536
        %2741 = vmatprep.subr.bf16.mxu0 0
        %2742 = vmatpush1.bf16.msra.mxu0 %v2537
        %2743 = vmatprep.subr.bf16.mxu0 0
        %2744 = vmatpush1.bf16.msra.mxu0 %v2538
        %2745 = vmatprep.subr.bf16.mxu0 0
        %2746 = vmatpush1.bf16.msra.mxu0 %v2539
        %2747 = vmatprep.subr.bf16.mxu0 0
        %2748 = vmatpush1.bf16.msra.mxu0 %v2540
        %2749 = vmatprep.subr.bf16.mxu0 0
        %2750 = vmatpush1.bf16.msra.mxu0 %v2541
        %2751 = vmatprep.mubr.bf16.mxu0 %v1477
        %2752 = vmatmul.mubr.bf16.gmra.mrb[0].mxu0 %v1359
        %v2753 = vpop.f32.mrb[0].mxu0
        %v2754 = vadd.f32 %v2689, %v2753
        %v2755 = vpop.f32.mrb[0].mxu0
        %v2756 = vpop.f32.mrb[0].mxu0
        %v2757 = vadd.f32 %v2692, %v2756
        %v2758 = vpop.f32.mrb[0].mxu0
        %2759 = vmatprep.mubr.bf16.mxu0 %v1478
        %2760 = vmatmul.mubr.bf16.gmra.mrb[0].mxu0 %v1360
        %v2761 = vpop.f32.mrb[0].mxu0
        %v2762 = vadd.f32 %v2697, %v2761
        %v2763 = vpop.f32.mrb[0].mxu0
        %v2764 = vpop.f32.mrb[0].mxu0
        %v2765 = vadd.f32 %v2700, %v2764
        %v2766 = vpop.f32.mrb[0].mxu0
        %2767 = vmatprep.mubr.bf16.mxu0 %v1479
        %2768 = vmatmul.mubr.bf16.gmra.mrb[0].mxu0 %v1361
        %v2769 = vpop.f32.mrb[0].mxu0
        %v2770 = vadd.f32 %v2705, %v2769
        %v2771 = vpop.f32.mrb[0].mxu0
        %v2772 = vpop.f32.mrb[0].mxu0
        %v2773 = vadd.f32 %v2708, %v2772
        %v2774 = vpop.f32.mrb[0].mxu0
        %2775 = vmatprep.mubr.bf16.mxu0 %v1480
        %2776 = vmatmul.mubr.bf16.gmra.mrb[0].mxu0 %v1362
        %v2777 = vpop.f32.mrb[0].mxu0
        %v2778 = vadd.f32 %v2713, %v2777
        %v2779 = vpop.f32.mrb[0].mxu0
        %v2780 = vpop.f32.mrb[0].mxu0
        %v2781 = vadd.f32 %v2716, %v2780
        %v2782 = vpop.f32.mrb[0].mxu0
        %2783 = vdwg.mxu0
        %2784 = vmatprep.subr.bf16.mxu0 0
        %2785 = vmatpush1.bf16.msra.mxu0 %v2542
        %2786 = vmatprep.subr.bf16.mxu0 0
        %2787 = vmatpush1.bf16.msra.mxu0 %v2543
        %2788 = vmatprep.subr.bf16.mxu0 0
        %2789 = vmatpush1.bf16.msra.mxu0 %v2544
        %2790 = vmatprep.subr.bf16.mxu0 0
        %2791 = vmatpush1.bf16.msra.mxu0 %v2545
        %2792 = vmatprep.subr.bf16.mxu0 0
        %2793 = vmatpush1.bf16.msra.mxu0 %v2546
        %2794 = vmatprep.subr.bf16.mxu0 0
        %2795 = vmatpush1.bf16.msra.mxu0 %v2547
        %2796 = vmatprep.subr.bf16.mxu0 0
        %2797 = vmatpush1.bf16.msra.mxu0 %v2548
        %2798 = vmatprep.subr.bf16.mxu0 0
        %2799 = vmatpush1.bf16.msra.mxu0 %v2549
        %2800 = vmatprep.subr.bf16.mxu0 0
        %2801 = vmatpush1.bf16.msra.mxu0 %v2550
        %2802 = vmatprep.subr.bf16.mxu0 0
        %2803 = vmatpush1.bf16.msra.mxu0 %v2551
        %2804 = vmatprep.subr.bf16.mxu0 0
        %2805 = vmatpush1.bf16.msra.mxu0 %v2552
        %2806 = vmatprep.subr.bf16.mxu0 0
        %2807 = vmatpush1.bf16.msra.mxu0 %v2553
        %2808 = vmatprep.subr.bf16.mxu0 0
        %2809 = vmatpush1.bf16.msra.mxu0 %v2554
        %2810 = vmatprep.subr.bf16.mxu0 0
        %2811 = vmatpush1.bf16.msra.mxu0 %v2555
        %2812 = vmatprep.subr.bf16.mxu0 0
        %2813 = vmatpush1.bf16.msra.mxu0 %v2556
        %2814 = vmatprep.subr.bf16.mxu0 0
        %2815 = vmatpush1.bf16.msra.mxu0 %v2557
        %2816 = vmatprep.mubr.bf16.mxu0 %v1713
        %2817 = vmatmul.mubr.bf16.gmra.mrb[0].mxu0 %v1595
        %v2818 = vpop.f32.mrb[0].mxu0
        %v2819 = vadd.f32 %v2754, %v2818
        %v2820 = vpop.f32.mrb[0].mxu0
        %v2821 = vpop.f32.mrb[0].mxu0
        %v2822 = vadd.f32 %v2757, %v2821
        %v2823 = vpop.f32.mrb[0].mxu0
        %2824 = vmatprep.mubr.bf16.mxu0 %v1714
        %2825 = vmatmul.mubr.bf16.gmra.mrb[0].mxu0 %v1596
        %v2826 = vpop.f32.mrb[0].mxu0
        %v2827 = vadd.f32 %v2762, %v2826
        %v2828 = vpop.f32.mrb[0].mxu0
        %v2829 = vpop.f32.mrb[0].mxu0
        %v2830 = vadd.f32 %v2765, %v2829
        %v2831 = vpop.f32.mrb[0].mxu0
        %2832 = vmatprep.mubr.bf16.mxu0 %v1715
        %2833 = vmatmul.mubr.bf16.gmra.mrb[0].mxu0 %v1597
        %v2834 = vpop.f32.mrb[0].mxu0
        %v2835 = vadd.f32 %v2770, %v2834
        %v2836 = vpop.f32.mrb[0].mxu0
        %v2837 = vpop.f32.mrb[0].mxu0
        %v2838 = vadd.f32 %v2773, %v2837
        %v2839 = vpop.f32.mrb[0].mxu0
        %2840 = vmatprep.mubr.bf16.mxu0 %v1716
        %2841 = vmatmul.mubr.bf16.gmra.mrb[0].mxu0 %v1598
        %v2842 = vpop.f32.mrb[0].mxu0
        %v2843 = vadd.f32 %v2778, %v2842
        %v2844 = vpop.f32.mrb[0].mxu0
        %v2845 = vpop.f32.mrb[0].mxu0
        %v2846 = vadd.f32 %v2781, %v2845
        %v2847 = vpop.f32.mrb[0].mxu0
        %2848 = vdwg.mxu0
        %2849 = vmatprep.subr.bf16.mxu0 0
        %2850 = vmatpush1.bf16.msra.mxu0 %v2558
        %2851 = vmatprep.subr.bf16.mxu0 0
        %2852 = vmatpush1.bf16.msra.mxu0 %v2559
        %2853 = vmatprep.subr.bf16.mxu0 0
        %2854 = vmatpush1.bf16.msra.mxu0 %v2560
        %2855 = vmatprep.subr.bf16.mxu0 0
        %2856 = vmatpush1.bf16.msra.mxu0 %v2561
        %2857 = vmatprep.subr.bf16.mxu0 0
        %2858 = vmatpush1.bf16.msra.mxu0 %v2562
        %2859 = vmatprep.subr.bf16.mxu0 0
        %2860 = vmatpush1.bf16.msra.mxu0 %v2563
        %2861 = vmatprep.subr.bf16.mxu0 0
        %2862 = vmatpush1.bf16.msra.mxu0 %v2564
        %2863 = vmatprep.subr.bf16.mxu0 0
        %2864 = vmatpush1.bf16.msra.mxu0 %v2565
        %2865 = vmatprep.subr.bf16.mxu0 0
        %2866 = vmatpush1.bf16.msra.mxu0 %v2566
        %2867 = vmatprep.subr.bf16.mxu0 0
        %2868 = vmatpush1.bf16.msra.mxu0 %v2567
        %2869 = vmatprep.subr.bf16.mxu0 0
        %2870 = vmatpush1.bf16.msra.mxu0 %v2568
        %2871 = vmatprep.subr.bf16.mxu0 0
        %2872 = vmatpush1.bf16.msra.mxu0 %v2569
        %2873 = vmatprep.subr.bf16.mxu0 0
        %2874 = vmatpush1.bf16.msra.mxu0 %v2570
        %2875 = vmatprep.subr.bf16.mxu0 0
        %2876 = vmatpush1.bf16.msra.mxu0 %v2571
        %2877 = vmatprep.subr.bf16.mxu0 0
        %2878 = vmatpush1.bf16.msra.mxu0 %v2572
        %2879 = vmatprep.subr.bf16.mxu0 0
        %2880 = vmatpush1.bf16.msra.mxu0 %v2573
        %2881 = vmatprep.mubr.bf16.mxu0 %v1949
        %2882 = vmatmul.mubr.bf16.gmra.mrb[0].mxu0 %v1831
        %v2883 = vpop.f32.mrb[0].mxu0
        %v2884 = vadd.f32 %v2819, %v2883
        %v2885 = vpop.f32.mrb[0].mxu0
        %v2886 = vpop.f32.mrb[0].mxu0
        %v2887 = vadd.f32 %v2822, %v2886
        %v2888 = vpop.f32.mrb[0].mxu0
        %2889 = vmatprep.mubr.bf16.mxu0 %v1950
        %2890 = vmatmul.mubr.bf16.gmra.mrb[0].mxu0 %v1832
        %v2891 = vpop.f32.mrb[0].mxu0
        %v2892 = vadd.f32 %v2827, %v2891
        %v2893 = vpop.f32.mrb[0].mxu0
        %v2894 = vpop.f32.mrb[0].mxu0
        %v2895 = vadd.f32 %v2830, %v2894
        %v2896 = vpop.f32.mrb[0].mxu0
        %2897 = vmatprep.mubr.bf16.mxu0 %v1951
        %2898 = vmatmul.mubr.bf16.gmra.mrb[0].mxu0 %v1833
        %v2899 = vpop.f32.mrb[0].mxu0
        %v2900 = vadd.f32 %v2835, %v2899
        %v2901 = vpop.f32.mrb[0].mxu0
        %v2902 = vpop.f32.mrb[0].mxu0
        %v2903 = vadd.f32 %v2838, %v2902
        %v2904 = vpop.f32.mrb[0].mxu0
        %2905 = vmatprep.mubr.bf16.mxu0 %v1952
        %2906 = vmatmul.mubr.bf16.gmra.mrb[0].mxu0 %v1834
        %v2907 = vpop.f32.mrb[0].mxu0
        %v2908 = vadd.f32 %v2843, %v2907
        %v2909 = vpop.f32.mrb[0].mxu0
        %v2910 = vpop.f32.mrb[0].mxu0
        %v2911 = vadd.f32 %v2846, %v2910
        %v2912 = vpop.f32.mrb[0].mxu0
        %2913 = vdwg.mxu0
        %2914 = vmatprep.subr.bf16.mxu0 0
        %2915 = vmatpush1.bf16.msra.mxu0 %v2574
        %2916 = vmatprep.subr.bf16.mxu0 0
        %2917 = vmatpush1.bf16.msra.mxu0 %v2575
        %2918 = vmatprep.subr.bf16.mxu0 0
        %2919 = vmatpush1.bf16.msra.mxu0 %v2576
        %2920 = vmatprep.subr.bf16.mxu0 0
        %2921 = vmatpush1.bf16.msra.mxu0 %v2577
        %2922 = vmatprep.subr.bf16.mxu0 0
        %2923 = vmatpush1.bf16.msra.mxu0 %v2578
        %2924 = vmatprep.subr.bf16.mxu0 0
        %2925 = vmatpush1.bf16.msra.mxu0 %v2579
        %2926 = vmatprep.subr.bf16.mxu0 0
        %2927 = vmatpush1.bf16.msra.mxu0 %v2580
        %2928 = vmatprep.subr.bf16.mxu0 0
        %2929 = vmatpush1.bf16.msra.mxu0 %v2581
        %2930 = vmatprep.subr.bf16.mxu0 0
        %2931 = vmatpush1.bf16.msra.mxu0 0
        %2932 = vmatprep.subr.bf16.mxu0 0
        %2933 = vmatpush1.bf16.msra.mxu0 0
        %2934 = vmatprep.subr.bf16.mxu0 0
        %2935 = vmatpush1.bf16.msra.mxu0 0
        %2936 = vmatprep.subr.bf16.mxu0 0
        %2937 = vmatpush1.bf16.msra.mxu0 0
        %2938 = vmatprep.subr.bf16.mxu0 0
        %2939 = vmatpush1.bf16.msra.mxu0 0
        %2940 = vmatprep.subr.bf16.mxu0 0
        %2941 = vmatpush1.bf16.msra.mxu0 0
        %2942 = vmatprep.subr.bf16.mxu0 0
        %2943 = vmatpush1.bf16.msra.mxu0 0
        %2944 = vmatprep.subr.bf16.mxu0 0
        %2945 = vmatpush1.bf16.msra.mxu0 0
        %2946 = vmatprep.mubr.bf16.mxu0 0
        %2947 = vmatmul.mubr.bf16.gmra.mrb[0].mxu0 %v2067
        %v2948 = vpop.f32.mrb[0].mxu0
        %v2949 = vadd.f32 %v2884, %v2948
        %v2950 = vpop.f32.mrb[0].mxu0
        %v2951 = vpop.f32.mrb[0].mxu0
        %v2952 = vadd.f32 %v2887, %v2951
        %v2953 = vpop.f32.mrb[0].mxu0
        %2954 = vmatprep.mubr.bf16.mxu0 0
        %2955 = vmatmul.mubr.bf16.gmra.mrb[0].mxu0 %v2068
        %v2956 = vpop.f32.mrb[0].mxu0
        %v2957 = vadd.f32 %v2892, %v2956
        %v2958 = vpop.f32.mrb[0].mxu0
        %v2959 = vpop.f32.mrb[0].mxu0
        %v2960 = vadd.f32 %v2895, %v2959
        %v2961 = vpop.f32.mrb[0].mxu0
        %2962 = vmatprep.mubr.bf16.mxu0 0
        %2963 = vmatmul.mubr.bf16.gmra.mrb[0].mxu0 %v2069
        %v2964 = vpop.f32.mrb[0].mxu0
        %v2965 = vadd.f32 %v2900, %v2964
        %v2966 = vpop.f32.mrb[0].mxu0
        %v2967 = vpop.f32.mrb[0].mxu0
        %v2968 = vadd.f32 %v2903, %v2967
        %v2969 = vpop.f32.mrb[0].mxu0
        %2970 = vmatprep.mubr.bf16.mxu0 0
        %2971 = vmatmul.mubr.bf16.gmra.mrb[0].mxu0 %v2070
        %v2972 = vpop.f32.mrb[0].mxu0
        %v2973 = vadd.f32 %v2908, %v2972
        %v2974 = vpop.f32.mrb[0].mxu0
        %v2975 = vpop.f32.mrb[0].mxu0
        %v2976 = vadd.f32 %v2911, %v2975
        %v2977 = vpop.f32.mrb[0].mxu0
        %2978 = vdwg.mxu0
        %v2979 = vmax.f32 %v2949, 0.0
        %v2980 = vmax.f32 %v2952, 0.0
        %v2981 = vmax.f32 %v2957, 0.0
        %v2982 = vmax.f32 %v2960, 0.0
        %v2983 = vmax.f32 %v2965, 0.0
        %v2984 = vmax.f32 %v2968, 0.0
        %v2985 = vmax.f32 %v2973, 0.0
        %v2986 = vmax.f32 %v2976, 0.0
        %v2987 = vadd.f32 %v2979, %v2980
        %v2988 = vadd.f32 %v2987, %v2981
        %v2989 = vadd.f32 %v2988, %v2982
        %v2990 = vadd.f32 %v2989, %v2983
        %v2991 = vadd.f32 %v2990, %v2984
        %v2992 = vadd.f32 %v2991, %v2985
        %v2993 = vadd.f32 %v2992, %v2986
        %v2994 = vrot.slane %v2993, 4
        %v2995 = vadd.f32 %v2993, %v2994
        %v2996 = vrot.slane %v2995, 2
        %v2997 = vadd.f32 %v2995, %v2996
        %v2998 = vrot.slane %v2997, 1
        %v2999 = vadd.f32 %v2997, %v2998
        %v3000 = vpack.c.bf16 %v2999, %v2999
        %s3001 = scalar_lea.vmem %s8, 64
        %v3002 = vld [vmem:[%s3001] sm:$0xf]
        %v3003 = vld [vmem:[%s3001 + $0x4] sm:$0xf]
        %v3004 = vld [vmem:[%s3001 + $0x8] sm:$0xf]
        %v3005 = vld [vmem:[%s3001 + $0xc] sm:$0xf]
        %v3006 = vld [vmem:[%s3001 + $0x10] sm:$0xf]
        %v3007 = vld [vmem:[%s3001 + $0x14] sm:$0xf]
        %v3008 = vld [vmem:[%s3001 + $0x18] sm:$0xf]
        %v3009 = vld [vmem:[%s3001 + $0x1c] sm:$0xf]
        %v3010 = vld [vmem:[%s3001 + $0x20] sm:$0xf]
        %v3011 = vld [vmem:[%s3001 + $0x24] sm:$0xf]
        %v3012 = vld [vmem:[%s3001 + $0x28] sm:$0xf]
        %v3013 = vld [vmem:[%s3001 + $0x2c] sm:$0xf]
        %v3014 = vld [vmem:[%s3001 + $0x30] sm:$0xf]
        %v3015 = vld [vmem:[%s3001 + $0x34] sm:$0xf]
        %v3016 = vld [vmem:[%s3001 + $0x38] sm:$0xf]
        %v3017 = vld [vmem:[%s3001 + $0x3c] sm:$0xf]
        %s3018 = scalar_lea.vmem %s9, 1
        %v3019 = vld [vmem:[%s3018] sm:$0x1]
        %v3036 = vunpack.c.l.b16 %v3002
        %v3037 = vunpack.c.l.b16 %v3003
        %v3038 = vunpack.c.l.b16 %v3004
        %v3039 = vunpack.c.l.b16 %v3005
        %v3040 = vunpack.c.l.b16 %v3006
        %v3041 = vunpack.c.l.b16 %v3007
        %v3042 = vunpack.c.l.b16 %v3008
        %v3043 = vunpack.c.l.b16 %v3009
        %v3044 = vunpack.c.l.b16 %v3010
        %v3045 = vunpack.c.l.b16 %v3011
        %v3046 = vunpack.c.l.b16 %v3012
        %v3047 = vunpack.c.l.b16 %v3013
        %v3048 = vunpack.c.l.b16 %v3014
        %v3049 = vunpack.c.l.b16 %v3015
        %v3050 = vunpack.c.l.b16 %v3016
        %v3051 = vunpack.c.l.b16 %v3017
        %v3052 = vpack.c.b16 %v3037, %v3036
        %v3053 = vpack.c.b16 %v3039, %v3038
        %v3054 = vpack.c.b16 %v3041, %v3040
        %v3055 = vpack.c.b16 %v3043, %v3042
        %v3056 = vpack.c.b16 %v3045, %v3044
        %v3057 = vpack.c.b16 %v3047, %v3046
        %v3058 = vpack.c.b16 %v3049, %v3048
        %v3059 = vpack.c.b16 %v3051, %v3050
        %3068 = vmatprep.subr.bf16.mxu0 0
        %3069 = vmatpush1.bf16.msra.mxu0 %v3052
        %3070 = vmatprep.subr.bf16.mxu0 0
        %3071 = vmatpush1.bf16.msra.mxu0 %v3053
        %3072 = vmatprep.subr.bf16.mxu0 0
        %3073 = vmatpush1.bf16.msra.mxu0 %v3054
        %3074 = vmatprep.subr.bf16.mxu0 0
        %3075 = vmatpush1.bf16.msra.mxu0 %v3055
        %3076 = vmatprep.subr.bf16.mxu0 0
        %3077 = vmatpush1.bf16.msra.mxu0 %v3056
        %3078 = vmatprep.subr.bf16.mxu0 0
        %3079 = vmatpush1.bf16.msra.mxu0 %v3057
        %3080 = vmatprep.subr.bf16.mxu0 0
        %3081 = vmatpush1.bf16.msra.mxu0 %v3058
        %3082 = vmatprep.subr.bf16.mxu0 0
        %3083 = vmatpush1.bf16.msra.mxu0 %v3059
        %3084 = vmatprep.subr.bf16.mxu0 0
        %3085 = vmatpush1.bf16.msra.mxu0 0
        %3086 = vmatprep.subr.bf16.mxu0 0
        %3087 = vmatpush1.bf16.msra.mxu0 0
        %3088 = vmatprep.subr.bf16.mxu0 0
        %3089 = vmatpush1.bf16.msra.mxu0 0
        %3090 = vmatprep.subr.bf16.mxu0 0
        %3091 = vmatpush1.bf16.msra.mxu0 0
        %3092 = vmatprep.subr.bf16.mxu0 0
        %3093 = vmatpush1.bf16.msra.mxu0 0
        %3094 = vmatprep.subr.bf16.mxu0 0
        %3095 = vmatpush1.bf16.msra.mxu0 0
        %3096 = vmatprep.subr.bf16.mxu0 0
        %3097 = vmatpush1.bf16.msra.mxu0 0
        %3098 = vmatprep.subr.bf16.mxu0 0
        %3099 = vmatpush1.bf16.msra.mxu0 0
        %3100 = vmatprep.mubr.bf16.mxu0 0
        %3101 = vmatmul.mubr.bf16.gmra.mrb[0].mxu0 %v3000
        %v3102 = vpop.f32.mrb[0].mxu0
        %v3103 = vadd.f32 %v3019, %v3102
        %v3104 = vpop.f32.mrb[0].mxu0
        %v3105 = vpop.f32.mrb[0].mxu0
        %v3106 = vpop.f32.mrb[0].mxu0
        %3107 = vdwg.mxu0
        %v3108 = vmax.f32 %v3103, 0.0
        %v3109 = vpack.c.bf16 %v3108, %v3108
        %s3110 = scalar_lea.vmem %s10, 2
        %v3111 = vld [vmem:[%s3110] sm:$0x3]
        %s3112 = scalar_lea.vmem %s11, 1
        %v3113 = vld [vmem:[%s3112] sm:$0x1]
        %v3115 = vsel %vm873, %v3109, 0
        %v3118 = vsel %vm877, %v3111, 0
        %3120 = vmatprep.subr.bf16.mxu0 0
        %3121 = vmatpush1.bf16.msra.mxu0 %v3118
        %3122 = vmatprep.subr.bf16.mxu0 0
        %3123 = vmatpush1.bf16.msra.mxu0 0
        %3124 = vmatprep.subr.bf16.mxu0 0
        %3125 = vmatpush1.bf16.msra.mxu0 0
        %3126 = vmatprep.subr.bf16.mxu0 0
        %3127 = vmatpush1.bf16.msra.mxu0 0
        %3128 = vmatprep.subr.bf16.mxu0 0
        %3129 = vmatpush1.bf16.msra.mxu0 0
        %3130 = vmatprep.subr.bf16.mxu0 0
        %3131 = vmatpush1.bf16.msra.mxu0 0
        %3132 = vmatprep.subr.bf16.mxu0 0
        %3133 = vmatpush1.bf16.msra.mxu0 0
        %3134 = vmatprep.subr.bf16.mxu0 0
        %3135 = vmatpush1.bf16.msra.mxu0 0
        %3136 = vmatprep.subr.bf16.mxu0 0
        %3137 = vmatpush1.bf16.msra.mxu0 0
        %3138 = vmatprep.subr.bf16.mxu0 0
        %3139 = vmatpush1.bf16.msra.mxu0 0
        %3140 = vmatprep.subr.bf16.mxu0 0
        %3141 = vmatpush1.bf16.msra.mxu0 0
        %3142 = vmatprep.subr.bf16.mxu0 0
        %3143 = vmatpush1.bf16.msra.mxu0 0
        %3144 = vmatprep.subr.bf16.mxu0 0
        %3145 = vmatpush1.bf16.msra.mxu0 0
        %3146 = vmatprep.subr.bf16.mxu0 0
        %3147 = vmatpush1.bf16.msra.mxu0 0
        %3148 = vmatprep.subr.bf16.mxu0 0
        %3149 = vmatpush1.bf16.msra.mxu0 0
        %3150 = vmatprep.subr.bf16.mxu0 0
        %3151 = vmatpush1.bf16.msra.mxu0 0
        %3152 = vmatprep.mubr.bf16.mxu0 0
        %3153 = vmatmul.mubr.bf16.gmra.mrb[0].mxu0 %v3115
        %v3154 = vpop.f32.mrb[0].mxu0
        %v3155 = vadd.f32 %v3113, %v3154
        %v3156 = vpop.f32.mrb[0].mxu0
        %v3157 = vpop.f32.mrb[0].mxu0
        %v3158 = vpop.f32.mrb[0].mxu0
        %3159 = vdwg.mxu0
        %v3160 = vsub.f32 0.0, %v3155
        %v3161 = vmul.f32 %v3160, 1.442695
        %v3162 = vpow.pop %v3161
        %v3163 = vadd.f32 %v3162, 1.0
        %v3164 = vrcp.pop %v3163
        %v3165 = vlaneseq
        %v3166 = vshrl.u32 %v3165, 7
        %v3167 = vsub.s32 0, %v3166
        %v3168 = vrot.slane %v3164, %v3167
        %v3169 = vmul.f32 %v2979, %v3168
        %v3170 = vmul.f32 %v2980, %v3168
        %v3171 = vmul.f32 %v2981, %v3168
        %v3172 = vmul.f32 %v2982, %v3168
        %v3173 = vmul.f32 %v2983, %v3168
        %v3174 = vmul.f32 %v2984, %v3168
        %v3175 = vmul.f32 %v2985, %v3168
        %v3176 = vmul.f32 %v2986, %v3168
        %v3177 = vpack.c.bf16 %v3170, %v3169
        %v3178 = vpack.c.bf16 %v3172, %v3171
        %v3179 = vpack.c.bf16 %v3174, %v3173
        %v3180 = vpack.c.bf16 %v3176, %v3175
        %v3181 = vld [vmem:[%s6] sm:$0xf]
        %v3182 = vld [vmem:[%s6 + $0x4] sm:$0xf]
        %v3185 = vunpack.c.l.b16 %v3181
        %v3186 = vunpack.c.l.b16 %v3182
        %v3187 = vpack.c.b16 %v3186, %v3185
        %vm3188 = vcmask 523264
        %v3190 = vsel %vm3188, %v3187, 0
        %3192 = vmatprep.subr.bf16.mxu0 0
        %3193 = vmatpush1.bf16.msra.mxu0 %v3177
        %3194 = vmatprep.subr.bf16.mxu0 0
        %3195 = vmatpush1.bf16.msra.mxu0 %v3178
        %3196 = vmatprep.subr.bf16.mxu0 0
        %3197 = vmatpush1.bf16.msra.mxu0 %v3179
        %3198 = vmatprep.subr.bf16.mxu0 0
        %3199 = vmatpush1.bf16.msra.mxu0 %v3180
        %3200 = vmatprep.subr.bf16.mxu0 0
        %3201 = vmatpush1.bf16.msra.mxu0 0
        %3202 = vmatprep.subr.bf16.mxu0 0
        %3203 = vmatpush1.bf16.msra.mxu0 0
        %3204 = vmatprep.subr.bf16.mxu0 0
        %3205 = vmatpush1.bf16.msra.mxu0 0
        %3206 = vmatprep.subr.bf16.mxu0 0
        %3207 = vmatpush1.bf16.msra.mxu0 0
        %3208 = vmatprep.subr.bf16.mxu0 0
        %3209 = vmatpush1.bf16.msra.mxu0 0
        %3210 = vmatprep.subr.bf16.mxu0 0
        %3211 = vmatpush1.bf16.msra.mxu0 0
        %3212 = vmatprep.subr.bf16.mxu0 0
        %3213 = vmatpush1.bf16.msra.mxu0 0
        %3214 = vmatprep.subr.bf16.mxu0 0
        %3215 = vmatpush1.bf16.msra.mxu0 0
        %3216 = vmatprep.subr.bf16.mxu0 0
        %3217 = vmatpush1.bf16.msra.mxu0 0
        %3218 = vmatprep.subr.bf16.mxu0 0
        %3219 = vmatpush1.bf16.msra.mxu0 0
        %3220 = vmatprep.subr.bf16.mxu0 0
        %3221 = vmatpush1.bf16.msra.mxu0 0
        %3222 = vmatprep.subr.bf16.mxu0 0
        %3223 = vmatpush1.bf16.msra.mxu0 0
        %3224 = vmatprep.mubr.bf16.mxu0 0
        %3225 = vmatmul.mubr.bf16.gmra.mrb[0].mxu0 %v3190
        %v3226 = vpop.f32.mrb[0].mxu0
        %v3227 = vadd.f32 0.0, %v3226
        %v3228 = vpop.f32.mrb[0].mxu0
        %v3229 = vpop.f32.mrb[0].mxu0
        %v3230 = vadd.f32 0.0, %v3229
        %v3231 = vpop.f32.mrb[0].mxu0
        %3232 = vdwg.mxu0
        %v3233 = vpack.c.bf16 %v3230, %v3227
        %s3234 = scalar_lea.vmem %s6, 8
        %v3235 = vld [vmem:[%s3234] sm:$0xf]
        %v3236 = vld [vmem:[%s3234 + $0x4] sm:$0xf]
        %v3239 = vunpack.c.l.b16 %v3235
        %v3240 = vunpack.c.l.b16 %v3236
        %v3241 = vpack.c.b16 %v3240, %v3239
        %v3243 = vsel %vm3188, %v3241, 0
        %3245 = vmatprep.subr.bf16.mxu0 0
        %3246 = vmatpush1.bf16.msra.mxu0 %v3177
        %3247 = vmatprep.subr.bf16.mxu0 0
        %3248 = vmatpush1.bf16.msra.mxu0 %v3178
        %3249 = vmatprep.subr.bf16.mxu0 0
        %3250 = vmatpush1.bf16.msra.mxu0 %v3179
        %3251 = vmatprep.subr.bf16.mxu0 0
        %3252 = vmatpush1.bf16.msra.mxu0 %v3180
        %3253 = vmatprep.subr.bf16.mxu0 0
        %3254 = vmatpush1.bf16.msra.mxu0 0
        %3255 = vmatprep.subr.bf16.mxu0 0
        %3256 = vmatpush1.bf16.msra.mxu0 0
        %3257 = vmatprep.subr.bf16.mxu0 0
        %3258 = vmatpush1.bf16.msra.mxu0 0
        %3259 = vmatprep.subr.bf16.mxu0 0
        %3260 = vmatpush1.bf16.msra.mxu0 0
        %3261 = vmatprep.subr.bf16.mxu0 0
        %3262 = vmatpush1.bf16.msra.mxu0 0
        %3263 = vmatprep.subr.bf16.mxu0 0
        %3264 = vmatpush1.bf16.msra.mxu0 0
        %3265 = vmatprep.subr.bf16.mxu0 0
        %3266 = vmatpush1.bf16.msra.mxu0 0
        %3267 = vmatprep.subr.bf16.mxu0 0
        %3268 = vmatpush1.bf16.msra.mxu0 0
        %3269 = vmatprep.subr.bf16.mxu0 0
        %3270 = vmatpush1.bf16.msra.mxu0 0
        %3271 = vmatprep.subr.bf16.mxu0 0
        %3272 = vmatpush1.bf16.msra.mxu0 0
        %3273 = vmatprep.subr.bf16.mxu0 0
        %3274 = vmatpush1.bf16.msra.mxu0 0
        %3275 = vmatprep.subr.bf16.mxu0 0
        %3276 = vmatpush1.bf16.msra.mxu0 0
        %3277 = vmatprep.mubr.bf16.mxu0 0
        %3278 = vmatmul.mubr.bf16.gmra.mrb[0].mxu0 %v3243
        %v3279 = vpop.f32.mrb[0].mxu0
        %v3280 = vadd.f32 0.0, %v3279
        %v3281 = vpop.f32.mrb[0].mxu0
        %v3282 = vpop.f32.mrb[0].mxu0
        %v3283 = vadd.f32 0.0, %v3282
        %v3284 = vpop.f32.mrb[0].mxu0
        %3285 = vdwg.mxu0
        %v3286 = vpack.c.bf16 %v3283, %v3280
        %s3287 = scalar_lea.vmem %s6, 16
        %v3288 = vld [vmem:[%s3287] sm:$0xf]
        %v3289 = vld [vmem:[%s3287 + $0x4] sm:$0xf]
        %v3292 = vunpack.c.l.b16 %v3288
        %v3293 = vunpack.c.l.b16 %v3289
        %v3294 = vpack.c.b16 %v3293, %v3292
        %v3296 = vsel %vm3188, %v3294, 0
        %3298 = vmatprep.subr.bf16.mxu0 0
        %3299 = vmatpush1.bf16.msra.mxu0 %v3177
        %3300 = vmatprep.subr.bf16.mxu0 0
        %3301 = vmatpush1.bf16.msra.mxu0 %v3178
        %3302 = vmatprep.subr.bf16.mxu0 0
        %3303 = vmatpush1.bf16.msra.mxu0 %v3179
        %3304 = vmatprep.subr.bf16.mxu0 0
        %3305 = vmatpush1.bf16.msra.mxu0 %v3180
        %3306 = vmatprep.subr.bf16.mxu0 0
        %3307 = vmatpush1.bf16.msra.mxu0 0
        %3308 = vmatprep.subr.bf16.mxu0 0
        %3309 = vmatpush1.bf16.msra.mxu0 0
        %3310 = vmatprep.subr.bf16.mxu0 0
        %3311 = vmatpush1.bf16.msra.mxu0 0
        %3312 = vmatprep.subr.bf16.mxu0 0
        %3313 = vmatpush1.bf16.msra.mxu0 0
        %3314 = vmatprep.subr.bf16.mxu0 0
        %3315 = vmatpush1.bf16.msra.mxu0 0
        %3316 = vmatprep.subr.bf16.mxu0 0
        %3317 = vmatpush1.bf16.msra.mxu0 0
        %3318 = vmatprep.subr.bf16.mxu0 0
        %3319 = vmatpush1.bf16.msra.mxu0 0
        %3320 = vmatprep.subr.bf16.mxu0 0
        %3321 = vmatpush1.bf16.msra.mxu0 0
        %3322 = vmatprep.subr.bf16.mxu0 0
        %3323 = vmatpush1.bf16.msra.mxu0 0
        %3324 = vmatprep.subr.bf16.mxu0 0
        %3325 = vmatpush1.bf16.msra.mxu0 0
        %3326 = vmatprep.subr.bf16.mxu0 0
        %3327 = vmatpush1.bf16.msra.mxu0 0
        %3328 = vmatprep.subr.bf16.mxu0 0
        %3329 = vmatpush1.bf16.msra.mxu0 0
        %3330 = vmatprep.mubr.bf16.mxu0 0
        %3331 = vmatmul.mubr.bf16.gmra.mrb[0].mxu0 %v3296
        %v3332 = vpop.f32.mrb[0].mxu0
        %v3333 = vadd.f32 0.0, %v3332
        %v3334 = vpop.f32.mrb[0].mxu0
        %v3335 = vpop.f32.mrb[0].mxu0
        %v3336 = vadd.f32 0.0, %v3335
        %v3337 = vpop.f32.mrb[0].mxu0
        %3338 = vdwg.mxu0
        %v3339 = vpack.c.bf16 %v3336, %v3333
        %s3340 = scalar_lea.vmem %s6, 24
        %v3341 = vld [vmem:[%s3340] sm:$0xf]
        %v3342 = vld [vmem:[%s3340 + $0x4] sm:$0xf]
        %v3345 = vunpack.c.l.b16 %v3341
        %v3346 = vunpack.c.l.b16 %v3342
        %v3347 = vpack.c.b16 %v3346, %v3345
        %v3349 = vsel %vm3188, %v3347, 0
        %3351 = vmatprep.subr.bf16.mxu0 0
        %3352 = vmatpush1.bf16.msra.mxu0 %v3177
        %3353 = vmatprep.subr.bf16.mxu0 0
        %3354 = vmatpush1.bf16.msra.mxu0 %v3178
        %3355 = vmatprep.subr.bf16.mxu0 0
        %3356 = vmatpush1.bf16.msra.mxu0 %v3179
        %3357 = vmatprep.subr.bf16.mxu0 0
        %3358 = vmatpush1.bf16.msra.mxu0 %v3180
        %3359 = vmatprep.subr.bf16.mxu0 0
        %3360 = vmatpush1.bf16.msra.mxu0 0
        %3361 = vmatprep.subr.bf16.mxu0 0
        %3362 = vmatpush1.bf16.msra.mxu0 0
        %3363 = vmatprep.subr.bf16.mxu0 0
        %3364 = vmatpush1.bf16.msra.mxu0 0
        %3365 = vmatprep.subr.bf16.mxu0 0
        %3366 = vmatpush1.bf16.msra.mxu0 0
        %3367 = vmatprep.subr.bf16.mxu0 0
        %3368 = vmatpush1.bf16.msra.mxu0 0
        %3369 = vmatprep.subr.bf16.mxu0 0
        %3370 = vmatpush1.bf16.msra.mxu0 0
        %3371 = vmatprep.subr.bf16.mxu0 0
        %3372 = vmatpush1.bf16.msra.mxu0 0
        %3373 = vmatprep.subr.bf16.mxu0 0
        %3374 = vmatpush1.bf16.msra.mxu0 0
        %3375 = vmatprep.subr.bf16.mxu0 0
        %3376 = vmatpush1.bf16.msra.mxu0 0
        %3377 = vmatprep.subr.bf16.mxu0 0
        %3378 = vmatpush1.bf16.msra.mxu0 0
        %3379 = vmatprep.subr.bf16.mxu0 0
        %3380 = vmatpush1.bf16.msra.mxu0 0
        %3381 = vmatprep.subr.bf16.mxu0 0
        %3382 = vmatpush1.bf16.msra.mxu0 0
        %3383 = vmatprep.mubr.bf16.mxu0 0
        %3384 = vmatmul.mubr.bf16.gmra.mrb[0].mxu0 %v3349
        %v3385 = vpop.f32.mrb[0].mxu0
        %v3386 = vadd.f32 0.0, %v3385
        %v3387 = vpop.f32.mrb[0].mxu0
        %v3388 = vpop.f32.mrb[0].mxu0
        %v3389 = vadd.f32 0.0, %v3388
        %v3390 = vpop.f32.mrb[0].mxu0
        %3391 = vdwg.mxu0
        %v3392 = vpack.c.bf16 %v3389, %v3386
        %s3393 = scalar_lea.vmem %s6, 32
        %v3394 = vld [vmem:[%s3393] sm:$0xf]
        %v3395 = vld [vmem:[%s3393 + $0x4] sm:$0xf]
        %v3398 = vunpack.c.l.b16 %v3394
        %v3399 = vunpack.c.l.b16 %v3395
        %v3400 = vpack.c.b16 %v3399, %v3398
        %v3402 = vsel %vm3188, %v3400, 0
        %3404 = vmatprep.subr.bf16.mxu0 0
        %3405 = vmatpush1.bf16.msra.mxu0 %v3177
        %3406 = vmatprep.subr.bf16.mxu0 0
        %3407 = vmatpush1.bf16.msra.mxu0 %v3178
        %3408 = vmatprep.subr.bf16.mxu0 0
        %3409 = vmatpush1.bf16.msra.mxu0 %v3179
        %3410 = vmatprep.subr.bf16.mxu0 0
        %3411 = vmatpush1.bf16.msra.mxu0 %v3180
        %3412 = vmatprep.subr.bf16.mxu0 0
        %3413 = vmatpush1.bf16.msra.mxu0 0
        %3414 = vmatprep.subr.bf16.mxu0 0
        %3415 = vmatpush1.bf16.msra.mxu0 0
        %3416 = vmatprep.subr.bf16.mxu0 0
        %3417 = vmatpush1.bf16.msra.mxu0 0
        %3418 = vmatprep.subr.bf16.mxu0 0
        %3419 = vmatpush1.bf16.msra.mxu0 0
        %3420 = vmatprep.subr.bf16.mxu0 0
        %3421 = vmatpush1.bf16.msra.mxu0 0
        %3422 = vmatprep.subr.bf16.mxu0 0
        %3423 = vmatpush1.bf16.msra.mxu0 0
        %3424 = vmatprep.subr.bf16.mxu0 0
        %3425 = vmatpush1.bf16.msra.mxu0 0
        %3426 = vmatprep.subr.bf16.mxu0 0
        %3427 = vmatpush1.bf16.msra.mxu0 0
        %3428 = vmatprep.subr.bf16.mxu0 0
        %3429 = vmatpush1.bf16.msra.mxu0 0
        %3430 = vmatprep.subr.bf16.mxu0 0
        %3431 = vmatpush1.bf16.msra.mxu0 0
        %3432 = vmatprep.subr.bf16.mxu0 0
        %3433 = vmatpush1.bf16.msra.mxu0 0
        %3434 = vmatprep.subr.bf16.mxu0 0
        %3435 = vmatpush1.bf16.msra.mxu0 0
        %3436 = vmatprep.mubr.bf16.mxu0 0
        %3437 = vmatmul.mubr.bf16.gmra.mrb[0].mxu0 %v3402
        %v3438 = vpop.f32.mrb[0].mxu0
        %v3439 = vadd.f32 0.0, %v3438
        %v3440 = vpop.f32.mrb[0].mxu0
        %v3441 = vpop.f32.mrb[0].mxu0
        %v3442 = vadd.f32 0.0, %v3441
        %v3443 = vpop.f32.mrb[0].mxu0
        %3444 = vdwg.mxu0
        %v3445 = vpack.c.bf16 %v3442, %v3439
        %s3446 = scalar_lea.vmem %s6, 40
        %v3447 = vld [vmem:[%s3446] sm:$0xf]
        %v3448 = vld [vmem:[%s3446 + $0x4] sm:$0xf]
        %v3451 = vunpack.c.l.b16 %v3447
        %v3452 = vunpack.c.l.b16 %v3448
        %v3453 = vpack.c.b16 %v3452, %v3451
        %v3455 = vsel %vm3188, %v3453, 0
        %3457 = vmatprep.subr.bf16.mxu0 0
        %3458 = vmatpush1.bf16.msra.mxu0 %v3177
        %3459 = vmatprep.subr.bf16.mxu0 0
        %3460 = vmatpush1.bf16.msra.mxu0 %v3178
        %3461 = vmatprep.subr.bf16.mxu0 0
        %3462 = vmatpush1.bf16.msra.mxu0 %v3179
        %3463 = vmatprep.subr.bf16.mxu0 0
        %3464 = vmatpush1.bf16.msra.mxu0 %v3180
        %3465 = vmatprep.subr.bf16.mxu0 0
        %3466 = vmatpush1.bf16.msra.mxu0 0
        %3467 = vmatprep.subr.bf16.mxu0 0
        %3468 = vmatpush1.bf16.msra.mxu0 0
        %3469 = vmatprep.subr.bf16.mxu0 0
        %3470 = vmatpush1.bf16.msra.mxu0 0
        %3471 = vmatprep.subr.bf16.mxu0 0
        %3472 = vmatpush1.bf16.msra.mxu0 0
        %3473 = vmatprep.subr.bf16.mxu0 0
        %3474 = vmatpush1.bf16.msra.mxu0 0
        %3475 = vmatprep.subr.bf16.mxu0 0
        %3476 = vmatpush1.bf16.msra.mxu0 0
        %3477 = vmatprep.subr.bf16.mxu0 0
        %3478 = vmatpush1.bf16.msra.mxu0 0
        %3479 = vmatprep.subr.bf16.mxu0 0
        %3480 = vmatpush1.bf16.msra.mxu0 0
        %3481 = vmatprep.subr.bf16.mxu0 0
        %3482 = vmatpush1.bf16.msra.mxu0 0
        %3483 = vmatprep.subr.bf16.mxu0 0
        %3484 = vmatpush1.bf16.msra.mxu0 0
        %3485 = vmatprep.subr.bf16.mxu0 0
        %3486 = vmatpush1.bf16.msra.mxu0 0
        %3487 = vmatprep.subr.bf16.mxu0 0
        %3488 = vmatpush1.bf16.msra.mxu0 0
        %3489 = vmatprep.mubr.bf16.mxu0 0
        %3490 = vmatmul.mubr.bf16.gmra.mrb[0].mxu0 %v3455
        %v3491 = vpop.f32.mrb[0].mxu0
        %v3492 = vadd.f32 0.0, %v3491
        %v3493 = vpop.f32.mrb[0].mxu0
        %v3494 = vpop.f32.mrb[0].mxu0
        %v3495 = vadd.f32 0.0, %v3494
        %v3496 = vpop.f32.mrb[0].mxu0
        %3497 = vdwg.mxu0
        %v3498 = vpack.c.bf16 %v3495, %v3492
        %s3499 = scalar_lea.vmem %s6, 48
        %v3500 = vld [vmem:[%s3499] sm:$0xf]
        %v3501 = vld [vmem:[%s3499 + $0x4] sm:$0xf]
        %v3504 = vunpack.c.l.b16 %v3500
        %v3505 = vunpack.c.l.b16 %v3501
        %v3506 = vpack.c.b16 %v3505, %v3504
        %v3508 = vsel %vm3188, %v3506, 0
        %3510 = vmatprep.subr.bf16.mxu0 0
        %3511 = vmatpush1.bf16.msra.mxu0 %v3177
        %3512 = vmatprep.subr.bf16.mxu0 0
        %3513 = vmatpush1.bf16.msra.mxu0 %v3178
        %3514 = vmatprep.subr.bf16.mxu0 0
        %3515 = vmatpush1.bf16.msra.mxu0 %v3179
        %3516 = vmatprep.subr.bf16.mxu0 0
        %3517 = vmatpush1.bf16.msra.mxu0 %v3180
        %3518 = vmatprep.subr.bf16.mxu0 0
        %3519 = vmatpush1.bf16.msra.mxu0 0
        %3520 = vmatprep.subr.bf16.mxu0 0
        %3521 = vmatpush1.bf16.msra.mxu0 0
        %3522 = vmatprep.subr.bf16.mxu0 0
        %3523 = vmatpush1.bf16.msra.mxu0 0
        %3524 = vmatprep.subr.bf16.mxu0 0
        %3525 = vmatpush1.bf16.msra.mxu0 0
        %3526 = vmatprep.subr.bf16.mxu0 0
        %3527 = vmatpush1.bf16.msra.mxu0 0
        %3528 = vmatprep.subr.bf16.mxu0 0
        %3529 = vmatpush1.bf16.msra.mxu0 0
        %3530 = vmatprep.subr.bf16.mxu0 0
        %3531 = vmatpush1.bf16.msra.mxu0 0
        %3532 = vmatprep.subr.bf16.mxu0 0
        %3533 = vmatpush1.bf16.msra.mxu0 0
        %3534 = vmatprep.subr.bf16.mxu0 0
        %3535 = vmatpush1.bf16.msra.mxu0 0
        %3536 = vmatprep.subr.bf16.mxu0 0
        %3537 = vmatpush1.bf16.msra.mxu0 0
        %3538 = vmatprep.subr.bf16.mxu0 0
        %3539 = vmatpush1.bf16.msra.mxu0 0
        %3540 = vmatprep.subr.bf16.mxu0 0
        %3541 = vmatpush1.bf16.msra.mxu0 0
        %3542 = vmatprep.mubr.bf16.mxu0 0
        %3543 = vmatmul.mubr.bf16.gmra.mrb[0].mxu0 %v3508
        %v3544 = vpop.f32.mrb[0].mxu0
        %v3545 = vadd.f32 0.0, %v3544
        %v3546 = vpop.f32.mrb[0].mxu0
        %v3547 = vpop.f32.mrb[0].mxu0
        %v3548 = vadd.f32 0.0, %v3547
        %v3549 = vpop.f32.mrb[0].mxu0
        %3550 = vdwg.mxu0
        %v3551 = vpack.c.bf16 %v3548, %v3545
        %s3552 = scalar_lea.vmem %s6, 56
        %v3553 = vld [vmem:[%s3552] sm:$0xf]
        %v3554 = vld [vmem:[%s3552 + $0x4] sm:$0xf]
        %v3557 = vunpack.c.l.b16 %v3553
        %v3558 = vunpack.c.l.b16 %v3554
        %v3559 = vpack.c.b16 %v3558, %v3557
        %v3561 = vsel %vm3188, %v3559, 0
        %3563 = vmatprep.subr.bf16.mxu0 0
        %3564 = vmatpush1.bf16.msra.mxu0 %v3177
        %3565 = vmatprep.subr.bf16.mxu0 0
        %3566 = vmatpush1.bf16.msra.mxu0 %v3178
        %3567 = vmatprep.subr.bf16.mxu0 0
        %3568 = vmatpush1.bf16.msra.mxu0 %v3179
        %3569 = vmatprep.subr.bf16.mxu0 0
        %3570 = vmatpush1.bf16.msra.mxu0 %v3180
        %3571 = vmatprep.subr.bf16.mxu0 0
        %3572 = vmatpush1.bf16.msra.mxu0 0
        %3573 = vmatprep.subr.bf16.mxu0 0
        %3574 = vmatpush1.bf16.msra.mxu0 0
        %3575 = vmatprep.subr.bf16.mxu0 0
        %3576 = vmatpush1.bf16.msra.mxu0 0
        %3577 = vmatprep.subr.bf16.mxu0 0
        %3578 = vmatpush1.bf16.msra.mxu0 0
        %3579 = vmatprep.subr.bf16.mxu0 0
        %3580 = vmatpush1.bf16.msra.mxu0 0
        %3581 = vmatprep.subr.bf16.mxu0 0
        %3582 = vmatpush1.bf16.msra.mxu0 0
        %3583 = vmatprep.subr.bf16.mxu0 0
        %3584 = vmatpush1.bf16.msra.mxu0 0
        %3585 = vmatprep.subr.bf16.mxu0 0
        %3586 = vmatpush1.bf16.msra.mxu0 0
        %3587 = vmatprep.subr.bf16.mxu0 0
        %3588 = vmatpush1.bf16.msra.mxu0 0
        %3589 = vmatprep.subr.bf16.mxu0 0
        %3590 = vmatpush1.bf16.msra.mxu0 0
        %3591 = vmatprep.subr.bf16.mxu0 0
        %3592 = vmatpush1.bf16.msra.mxu0 0
        %3593 = vmatprep.subr.bf16.mxu0 0
        %3594 = vmatpush1.bf16.msra.mxu0 0
        %3595 = vmatprep.mubr.bf16.mxu0 0
        %3596 = vmatmul.mubr.bf16.gmra.mrb[0].mxu0 %v3561
        %v3597 = vpop.f32.mrb[0].mxu0
        %v3598 = vadd.f32 0.0, %v3597
        %v3599 = vpop.f32.mrb[0].mxu0
        %v3600 = vpop.f32.mrb[0].mxu0
        %v3601 = vadd.f32 0.0, %v3600
        %v3602 = vpop.f32.mrb[0].mxu0
        %3603 = vdwg.mxu0
        %v3604 = vpack.c.bf16 %v3601, %v3598
        %s3605 = scalar_lea.vmem %s6, 64
        %v3606 = vld [vmem:[%s3605] sm:$0xf]
        %v3607 = vld [vmem:[%s3605 + $0x4] sm:$0xf]
        %v3610 = vunpack.c.l.b16 %v3606
        %v3611 = vunpack.c.l.b16 %v3607
        %v3612 = vpack.c.b16 %v3611, %v3610
        %v3614 = vsel %vm3188, %v3612, 0
        %3616 = vmatprep.subr.bf16.mxu0 0
        %3617 = vmatpush1.bf16.msra.mxu0 %v3177
        %3618 = vmatprep.subr.bf16.mxu0 0
        %3619 = vmatpush1.bf16.msra.mxu0 %v3178
        %3620 = vmatprep.subr.bf16.mxu0 0
        %3621 = vmatpush1.bf16.msra.mxu0 %v3179
        %3622 = vmatprep.subr.bf16.mxu0 0
        %3623 = vmatpush1.bf16.msra.mxu0 %v3180
        %3624 = vmatprep.subr.bf16.mxu0 0
        %3625 = vmatpush1.bf16.msra.mxu0 0
        %3626 = vmatprep.subr.bf16.mxu0 0
        %3627 = vmatpush1.bf16.msra.mxu0 0
        %3628 = vmatprep.subr.bf16.mxu0 0
        %3629 = vmatpush1.bf16.msra.mxu0 0
        %3630 = vmatprep.subr.bf16.mxu0 0
        %3631 = vmatpush1.bf16.msra.mxu0 0
        %3632 = vmatprep.subr.bf16.mxu0 0
        %3633 = vmatpush1.bf16.msra.mxu0 0
        %3634 = vmatprep.subr.bf16.mxu0 0
        %3635 = vmatpush1.bf16.msra.mxu0 0
        %3636 = vmatprep.subr.bf16.mxu0 0
        %3637 = vmatpush1.bf16.msra.mxu0 0
        %3638 = vmatprep.subr.bf16.mxu0 0
        %3639 = vmatpush1.bf16.msra.mxu0 0
        %3640 = vmatprep.subr.bf16.mxu0 0
        %3641 = vmatpush1.bf16.msra.mxu0 0
        %3642 = vmatprep.subr.bf16.mxu0 0
        %3643 = vmatpush1.bf16.msra.mxu0 0
        %3644 = vmatprep.subr.bf16.mxu0 0
        %3645 = vmatpush1.bf16.msra.mxu0 0
        %3646 = vmatprep.subr.bf16.mxu0 0
        %3647 = vmatpush1.bf16.msra.mxu0 0
        %3648 = vmatprep.mubr.bf16.mxu0 0
        %3649 = vmatmul.mubr.bf16.gmra.mrb[0].mxu0 %v3614
        %v3650 = vpop.f32.mrb[0].mxu0
        %v3651 = vadd.f32 0.0, %v3650
        %v3652 = vpop.f32.mrb[0].mxu0
        %v3653 = vpop.f32.mrb[0].mxu0
        %v3654 = vadd.f32 0.0, %v3653
        %v3655 = vpop.f32.mrb[0].mxu0
        %3656 = vdwg.mxu0
        %v3657 = vpack.c.bf16 %v3654, %v3651
        %s3658 = scalar_lea.vmem %s3, 576
        %v3659 = vld [vmem:[%s3658] sm:$0xf]
        %v3660 = vld [vmem:[%s3658 + $0x4] sm:$0xf]
        %v3661 = vld [vmem:[%s3658 + $0x8] sm:$0xf]
        %v3662 = vld [vmem:[%s3658 + $0xc] sm:$0xf]
        %v3663 = vld [vmem:[%s3658 + $0x10] sm:$0xf]
        %v3664 = vld [vmem:[%s3658 + $0x14] sm:$0xf]
        %v3665 = vld [vmem:[%s3658 + $0x18] sm:$0xf]
        %v3666 = vld [vmem:[%s3658 + $0x1c] sm:$0xf]
        %v3667 = vld [vmem:[%s3658 + $0x20] sm:$0xf]
        %v3668 = vld [vmem:[%s3658 + $0x24] sm:$0xf]
        %v3669 = vld [vmem:[%s3658 + $0x28] sm:$0xf]
        %v3670 = vld [vmem:[%s3658 + $0x2c] sm:$0xf]
        %v3671 = vld [vmem:[%s3658 + $0x30] sm:$0xf]
        %v3672 = vld [vmem:[%s3658 + $0x34] sm:$0xf]
        %v3673 = vld [vmem:[%s3658 + $0x38] sm:$0xf]
        %v3674 = vld [vmem:[%s3658 + $0x3c] sm:$0xf]
        %v3675 = vld [vmem:[%s3658 + $0x40] sm:$0xf]
        %v3676 = vld [vmem:[%s3658 + $0x44] sm:$0xf]
        %v3677 = vld [vmem:[%s3658 + $0x48] sm:$0xf]
        %v3678 = vld [vmem:[%s3658 + $0x4c] sm:$0xf]
        %v3679 = vld [vmem:[%s3658 + $0x50] sm:$0xf]
        %v3680 = vld [vmem:[%s3658 + $0x54] sm:$0xf]
        %v3681 = vld [vmem:[%s3658 + $0x58] sm:$0xf]
        %v3682 = vld [vmem:[%s3658 + $0x5c] sm:$0xf]
        %v3683 = vld [vmem:[%s3658 + $0x60] sm:$0xf]
        %v3684 = vld [vmem:[%s3658 + $0x64] sm:$0xf]
        %v3685 = vld [vmem:[%s3658 + $0x68] sm:$0xf]
        %v3686 = vld [vmem:[%s3658 + $0x6c] sm:$0xf]
        %v3687 = vld [vmem:[%s3658 + $0x70] sm:$0xf]
        %v3688 = vld [vmem:[%s3658 + $0x74] sm:$0xf]
        %v3689 = vld [vmem:[%s3658 + $0x78] sm:$0xf]
        %v3690 = vld [vmem:[%s3658 + $0x7c] sm:$0xf]
        %v3691 = vld [vmem:[%s3658 + $0x80] sm:$0xf]
        %v3692 = vld [vmem:[%s3658 + $0x84] sm:$0xf]
        %v3693 = vld [vmem:[%s3658 + $0x88] sm:$0xf]
        %v3694 = vld [vmem:[%s3658 + $0x8c] sm:$0xf]
        %v3695 = vld [vmem:[%s3658 + $0x90] sm:$0xf]
        %v3696 = vld [vmem:[%s3658 + $0x94] sm:$0xf]
        %v3697 = vld [vmem:[%s3658 + $0x98] sm:$0xf]
        %v3698 = vld [vmem:[%s3658 + $0x9c] sm:$0xf]
        %v3699 = vld [vmem:[%s3658 + $0xa0] sm:$0xf]
        %v3700 = vld [vmem:[%s3658 + $0xa4] sm:$0xf]
        %v3701 = vld [vmem:[%s3658 + $0xa8] sm:$0xf]
        %v3702 = vld [vmem:[%s3658 + $0xac] sm:$0xf]
        %v3703 = vld [vmem:[%s3658 + $0xb0] sm:$0xf]
        %v3704 = vld [vmem:[%s3658 + $0xb4] sm:$0xf]
        %v3705 = vld [vmem:[%s3658 + $0xb8] sm:$0xf]
        %v3706 = vld [vmem:[%s3658 + $0xbc] sm:$0xf]
        %v3707 = vld [vmem:[%s3658 + $0xc0] sm:$0xf]
        %v3708 = vld [vmem:[%s3658 + $0xc4] sm:$0xf]
        %v3709 = vld [vmem:[%s3658 + $0xc8] sm:$0xf]
        %v3710 = vld [vmem:[%s3658 + $0xcc] sm:$0xf]
        %v3711 = vld [vmem:[%s3658 + $0xd0] sm:$0xf]
        %v3712 = vld [vmem:[%s3658 + $0xd4] sm:$0xf]
        %v3713 = vld [vmem:[%s3658 + $0xd8] sm:$0xf]
        %v3714 = vld [vmem:[%s3658 + $0xdc] sm:$0xf]
        %v3715 = vld [vmem:[%s3658 + $0xe0] sm:$0xf]
        %v3716 = vld [vmem:[%s3658 + $0xe4] sm:$0xf]
        %v3717 = vld [vmem:[%s3658 + $0xe8] sm:$0xf]
        %v3718 = vld [vmem:[%s3658 + $0xec] sm:$0xf]
        %v3719 = vld [vmem:[%s3658 + $0xf0] sm:$0xf]
        %v3720 = vld [vmem:[%s3658 + $0xf4] sm:$0xf]
        %v3721 = vld [vmem:[%s3658 + $0xf8] sm:$0xf]
        %v3722 = vld [vmem:[%s3658 + $0xfc] sm:$0xf]
        %v3723 = vld [vmem:[%s3658 + $0x100] sm:$0xf]
        %v3724 = vld [vmem:[%s3658 + $0x104] sm:$0xf]
        %v3725 = vld [vmem:[%s3658 + $0x108] sm:$0xf]
        %v3726 = vld [vmem:[%s3658 + $0x10c] sm:$0xf]
        %v3727 = vld [vmem:[%s3658 + $0x110] sm:$0xf]
        %v3728 = vld [vmem:[%s3658 + $0x114] sm:$0xf]
        %v3729 = vld [vmem:[%s3658 + $0x118] sm:$0xf]
        %v3730 = vld [vmem:[%s3658 + $0x11c] sm:$0xf]
        %v3731 = vld [vmem:[%s3658 + $0x120] sm:$0xf]
        %v3732 = vld [vmem:[%s3658 + $0x124] sm:$0xf]
        %v3733 = vld [vmem:[%s3658 + $0x128] sm:$0xf]
        %v3734 = vld [vmem:[%s3658 + $0x12c] sm:$0xf]
        %v3735 = vld [vmem:[%s3658 + $0x130] sm:$0xf]
        %v3736 = vld [vmem:[%s3658 + $0x134] sm:$0xf]
        %v3737 = vld [vmem:[%s3658 + $0x138] sm:$0xf]
        %v3738 = vld [vmem:[%s3658 + $0x13c] sm:$0xf]
        %v3739 = vld [vmem:[%s3658 + $0x140] sm:$0xf]
        %v3740 = vld [vmem:[%s3658 + $0x144] sm:$0xf]
        %v3741 = vld [vmem:[%s3658 + $0x148] sm:$0xf]
        %v3742 = vld [vmem:[%s3658 + $0x14c] sm:$0xf]
        %v3743 = vld [vmem:[%s3658 + $0x150] sm:$0xf]
        %v3744 = vld [vmem:[%s3658 + $0x154] sm:$0xf]
        %v3745 = vld [vmem:[%s3658 + $0x158] sm:$0xf]
        %v3746 = vld [vmem:[%s3658 + $0x15c] sm:$0xf]
        %v3747 = vld [vmem:[%s3658 + $0x160] sm:$0xf]
        %v3748 = vld [vmem:[%s3658 + $0x164] sm:$0xf]
        %v3749 = vld [vmem:[%s3658 + $0x168] sm:$0xf]
        %v3750 = vld [vmem:[%s3658 + $0x16c] sm:$0xf]
        %v3751 = vld [vmem:[%s3658 + $0x170] sm:$0xf]
        %v3752 = vld [vmem:[%s3658 + $0x174] sm:$0xf]
        %v3753 = vld [vmem:[%s3658 + $0x178] sm:$0xf]
        %v3754 = vld [vmem:[%s3658 + $0x17c] sm:$0xf]
        %v3755 = vld [vmem:[%s3658 + $0x180] sm:$0xf]
        %v3756 = vld [vmem:[%s3658 + $0x184] sm:$0xf]
        %v3757 = vld [vmem:[%s3658 + $0x188] sm:$0xf]
        %v3758 = vld [vmem:[%s3658 + $0x18c] sm:$0xf]
        %v3759 = vld [vmem:[%s3658 + $0x190] sm:$0xf]
        %v3760 = vld [vmem:[%s3658 + $0x194] sm:$0xf]
        %v3761 = vld [vmem:[%s3658 + $0x198] sm:$0xf]
        %v3762 = vld [vmem:[%s3658 + $0x19c] sm:$0xf]
        %v3763 = vld [vmem:[%s3658 + $0x1a0] sm:$0xf]
        %v3764 = vld [vmem:[%s3658 + $0x1a4] sm:$0xf]
        %v3765 = vld [vmem:[%s3658 + $0x1a8] sm:$0xf]
        %v3766 = vld [vmem:[%s3658 + $0x1ac] sm:$0xf]
        %v3767 = vld [vmem:[%s3658 + $0x1b0] sm:$0xf]
        %v3768 = vld [vmem:[%s3658 + $0x1b4] sm:$0xf]
        %v3769 = vld [vmem:[%s3658 + $0x1b8] sm:$0xf]
        %v3770 = vld [vmem:[%s3658 + $0x1bc] sm:$0xf]
        %v3771 = vld [vmem:[%s3658 + $0x1c0] sm:$0xf]
        %v3772 = vld [vmem:[%s3658 + $0x1c4] sm:$0xf]
        %v3773 = vld [vmem:[%s3658 + $0x1c8] sm:$0xf]
        %v3774 = vld [vmem:[%s3658 + $0x1cc] sm:$0xf]
        %v3775 = vld [vmem:[%s3658 + $0x1d0] sm:$0xf]
        %v3776 = vld [vmem:[%s3658 + $0x1d4] sm:$0xf]
        %v3777 = vld [vmem:[%s3658 + $0x1d8] sm:$0xf]
        %v3778 = vld [vmem:[%s3658 + $0x1dc] sm:$0xf]
        %v3779 = vld [vmem:[%s3658 + $0x1e0] sm:$0xf]
        %v3780 = vld [vmem:[%s3658 + $0x1e4] sm:$0xf]
        %v3781 = vld [vmem:[%s3658 + $0x1e8] sm:$0xf]
        %v3782 = vld [vmem:[%s3658 + $0x1ec] sm:$0xf]
        %v3783 = vld [vmem:[%s3658 + $0x1f0] sm:$0xf]
        %v3784 = vld [vmem:[%s3658 + $0x1f4] sm:$0xf]
        %v3785 = vld [vmem:[%s3658 + $0x1f8] sm:$0xf]
        %v3786 = vld [vmem:[%s3658 + $0x1fc] sm:$0xf]
        %v3787 = vld [vmem:[%s3658 + $0x200] sm:$0xf]
        %v3788 = vld [vmem:[%s3658 + $0x204] sm:$0xf]
        %v3789 = vld [vmem:[%s3658 + $0x208] sm:$0xf]
        %v3790 = vld [vmem:[%s3658 + $0x20c] sm:$0xf]
        %v3791 = vld [vmem:[%s3658 + $0x210] sm:$0xf]
        %v3792 = vld [vmem:[%s3658 + $0x214] sm:$0xf]
        %v3793 = vld [vmem:[%s3658 + $0x218] sm:$0xf]
        %v3794 = vld [vmem:[%s3658 + $0x21c] sm:$0xf]
        %v3795 = vld [vmem:[%s3658 + $0x220] sm:$0xf]
        %v3796 = vld [vmem:[%s3658 + $0x224] sm:$0xf]
        %v3797 = vld [vmem:[%s3658 + $0x228] sm:$0xf]
        %v3798 = vld [vmem:[%s3658 + $0x22c] sm:$0xf]
        %v3799 = vld [vmem:[%s3658 + $0x230] sm:$0xf]
        %v3800 = vld [vmem:[%s3658 + $0x234] sm:$0xf]
        %v3801 = vld [vmem:[%s3658 + $0x238] sm:$0xf]
        %v3802 = vld [vmem:[%s3658 + $0x23c] sm:$0xf]
        %s3803 = scalar_lea.vmem %s4, 1
        %v3804 = vld [vmem:[%s3803] sm:$0x1]
        %v3806 = vlaneseq
        %v3807 = vshrl.u32 %v3806, 7
        %v3808 = vsub.s32 0, %v3807
        %v3809 = vrot.slane %v3804, %v3808
        %v3955 = vunpack.c.l.b16 %v3659
        %v3956 = vunpack.c.l.b16 %v3660
        %v3957 = vunpack.c.l.b16 %v3661
        %v3958 = vunpack.c.l.b16 %v3662
        %v3959 = vunpack.c.l.b16 %v3663
        %v3960 = vunpack.c.l.b16 %v3664
        %v3961 = vunpack.c.l.b16 %v3665
        %v3962 = vunpack.c.l.b16 %v3666
        %v3963 = vunpack.c.l.b16 %v3667
        %v3964 = vunpack.c.l.b16 %v3668
        %v3965 = vunpack.c.l.b16 %v3669
        %v3966 = vunpack.c.l.b16 %v3670
        %v3967 = vunpack.c.l.b16 %v3671
        %v3968 = vunpack.c.l.b16 %v3672
        %v3969 = vunpack.c.l.b16 %v3673
        %v3970 = vunpack.c.l.b16 %v3674
        %v3971 = vunpack.c.l.b16 %v3675
        %v3972 = vunpack.c.l.b16 %v3676
        %v3973 = vunpack.c.l.b16 %v3677
        %v3974 = vunpack.c.l.b16 %v3678
        %v3975 = vunpack.c.l.b16 %v3679
        %v3976 = vunpack.c.l.b16 %v3680
        %v3977 = vunpack.c.l.b16 %v3681
        %v3978 = vunpack.c.l.b16 %v3682
        %v3979 = vunpack.c.l.b16 %v3683
        %v3980 = vunpack.c.l.b16 %v3684
        %v3981 = vunpack.c.l.b16 %v3685
        %v3982 = vunpack.c.l.b16 %v3686
        %v3983 = vunpack.c.l.b16 %v3687
        %v3984 = vunpack.c.l.b16 %v3688
        %v3985 = vunpack.c.l.b16 %v3689
        %v3986 = vunpack.c.l.b16 %v3690
        %v3987 = vunpack.c.l.b16 %v3691
        %v3988 = vunpack.c.l.b16 %v3692
        %v3989 = vunpack.c.l.b16 %v3693
        %v3990 = vunpack.c.l.b16 %v3694
        %v3991 = vunpack.c.l.b16 %v3695
        %v3992 = vunpack.c.l.b16 %v3696
        %v3993 = vunpack.c.l.b16 %v3697
        %v3994 = vunpack.c.l.b16 %v3698
        %v3995 = vunpack.c.l.b16 %v3699
        %v3996 = vunpack.c.l.b16 %v3700
        %v3997 = vunpack.c.l.b16 %v3701
        %v3998 = vunpack.c.l.b16 %v3702
        %v3999 = vunpack.c.l.b16 %v3703
        %v4000 = vunpack.c.l.b16 %v3704
        %v4001 = vunpack.c.l.b16 %v3705
        %v4002 = vunpack.c.l.b16 %v3706
        %v4003 = vunpack.c.l.b16 %v3707
        %v4004 = vunpack.c.l.b16 %v3708
        %v4005 = vunpack.c.l.b16 %v3709
        %v4006 = vunpack.c.l.b16 %v3710
        %v4007 = vunpack.c.l.b16 %v3711
        %v4008 = vunpack.c.l.b16 %v3712
        %v4009 = vunpack.c.l.b16 %v3713
        %v4010 = vunpack.c.l.b16 %v3714
        %v4011 = vunpack.c.l.b16 %v3715
        %v4012 = vunpack.c.l.b16 %v3716
        %v4013 = vunpack.c.l.b16 %v3717
        %v4014 = vunpack.c.l.b16 %v3718
        %v4015 = vunpack.c.l.b16 %v3719
        %v4016 = vunpack.c.l.b16 %v3720
        %v4017 = vunpack.c.l.b16 %v3721
        %v4018 = vunpack.c.l.b16 %v3722
        %v4019 = vunpack.c.l.b16 %v3723
        %v4020 = vunpack.c.l.b16 %v3724
        %v4021 = vunpack.c.l.b16 %v3725
        %v4022 = vunpack.c.l.b16 %v3726
        %v4023 = vunpack.c.l.b16 %v3727
        %v4024 = vunpack.c.l.b16 %v3728
        %v4025 = vunpack.c.l.b16 %v3729
        %v4026 = vunpack.c.l.b16 %v3730
        %v4027 = vunpack.c.l.b16 %v3731
        %v4028 = vunpack.c.l.b16 %v3732
        %v4029 = vunpack.c.l.b16 %v3733
        %v4030 = vunpack.c.l.b16 %v3734
        %v4031 = vunpack.c.l.b16 %v3735
        %v4032 = vunpack.c.l.b16 %v3736
        %v4033 = vunpack.c.l.b16 %v3737
        %v4034 = vunpack.c.l.b16 %v3738
        %v4035 = vunpack.c.l.b16 %v3739
        %v4036 = vunpack.c.l.b16 %v3740
        %v4037 = vunpack.c.l.b16 %v3741
        %v4038 = vunpack.c.l.b16 %v3742
        %v4039 = vunpack.c.l.b16 %v3743
        %v4040 = vunpack.c.l.b16 %v3744
        %v4041 = vunpack.c.l.b16 %v3745
        %v4042 = vunpack.c.l.b16 %v3746
        %v4043 = vunpack.c.l.b16 %v3747
        %v4044 = vunpack.c.l.b16 %v3748
        %v4045 = vunpack.c.l.b16 %v3749
        %v4046 = vunpack.c.l.b16 %v3750
        %v4047 = vunpack.c.l.b16 %v3751
        %v4048 = vunpack.c.l.b16 %v3752
        %v4049 = vunpack.c.l.b16 %v3753
        %v4050 = vunpack.c.l.b16 %v3754
        %v4051 = vunpack.c.l.b16 %v3755
        %v4052 = vunpack.c.l.b16 %v3756
        %v4053 = vunpack.c.l.b16 %v3757
        %v4054 = vunpack.c.l.b16 %v3758
        %v4055 = vunpack.c.l.b16 %v3759
        %v4056 = vunpack.c.l.b16 %v3760
        %v4057 = vunpack.c.l.b16 %v3761
        %v4058 = vunpack.c.l.b16 %v3762
        %v4059 = vunpack.c.l.b16 %v3763
        %v4060 = vunpack.c.l.b16 %v3764
        %v4061 = vunpack.c.l.b16 %v3765
        %v4062 = vunpack.c.l.b16 %v3766
        %v4063 = vunpack.c.l.b16 %v3767
        %v4064 = vunpack.c.l.b16 %v3768
        %v4065 = vunpack.c.l.b16 %v3769
        %v4066 = vunpack.c.l.b16 %v3770
        %v4067 = vunpack.c.l.b16 %v3771
        %v4068 = vunpack.c.l.b16 %v3772
        %v4069 = vunpack.c.l.b16 %v3773
        %v4070 = vunpack.c.l.b16 %v3774
        %v4071 = vunpack.c.l.b16 %v3775
        %v4072 = vunpack.c.l.b16 %v3776
        %v4073 = vunpack.c.l.b16 %v3777
        %v4074 = vunpack.c.l.b16 %v3778
        %v4075 = vunpack.c.l.b16 %v3779
        %v4076 = vunpack.c.l.b16 %v3780
        %v4077 = vunpack.c.l.b16 %v3781
        %v4078 = vunpack.c.l.b16 %v3782
        %v4079 = vunpack.c.l.b16 %v3783
        %v4080 = vunpack.c.l.b16 %v3784
        %v4081 = vunpack.c.l.b16 %v3785
        %v4082 = vunpack.c.l.b16 %v3786
        %v4083 = vunpack.c.l.b16 %v3787
        %v4084 = vunpack.c.l.b16 %v3788
        %v4085 = vunpack.c.l.b16 %v3789
        %v4086 = vunpack.c.l.b16 %v3790
        %v4087 = vunpack.c.l.b16 %v3791
        %v4088 = vunpack.c.l.b16 %v3792
        %v4089 = vunpack.c.l.b16 %v3793
        %v4090 = vunpack.c.l.b16 %v3794
        %v4091 = vunpack.c.l.b16 %v3795
        %v4092 = vunpack.c.l.b16 %v3796
        %v4093 = vunpack.c.l.b16 %v3797
        %v4094 = vunpack.c.l.b16 %v3798
        %v4095 = vunpack.c.l.b16 %v3799
        %v4096 = vunpack.c.l.b16 %v3800
        %v4097 = vunpack.c.l.b16 %v3801
        %v4098 = vunpack.c.l.b16 %v3802
        %v4099 = vpack.c.b16 %v3956, %v3955
        %v4100 = vpack.c.b16 %v3958, %v3957
        %v4101 = vpack.c.b16 %v3960, %v3959
        %v4102 = vpack.c.b16 %v3962, %v3961
        %v4103 = vpack.c.b16 %v3964, %v3963
        %v4104 = vpack.c.b16 %v3966, %v3965
        %v4105 = vpack.c.b16 %v3968, %v3967
        %v4106 = vpack.c.b16 %v3970, %v3969
        %v4107 = vpack.c.b16 %v3972, %v3971
        %v4108 = vpack.c.b16 %v3974, %v3973
        %v4109 = vpack.c.b16 %v3976, %v3975
        %v4110 = vpack.c.b16 %v3978, %v3977
        %v4111 = vpack.c.b16 %v3980, %v3979
        %v4112 = vpack.c.b16 %v3982, %v3981
        %v4113 = vpack.c.b16 %v3984, %v3983
        %v4114 = vpack.c.b16 %v3986, %v3985
        %v4115 = vpack.c.b16 %v3988, %v3987
        %v4116 = vpack.c.b16 %v3990, %v3989
        %v4117 = vpack.c.b16 %v3992, %v3991
        %v4118 = vpack.c.b16 %v3994, %v3993
        %v4119 = vpack.c.b16 %v3996, %v3995
        %v4120 = vpack.c.b16 %v3998, %v3997
        %v4121 = vpack.c.b16 %v4000, %v3999
        %v4122 = vpack.c.b16 %v4002, %v4001
        %v4123 = vpack.c.b16 %v4004, %v4003
        %v4124 = vpack.c.b16 %v4006, %v4005
        %v4125 = vpack.c.b16 %v4008, %v4007
        %v4126 = vpack.c.b16 %v4010, %v4009
        %v4127 = vpack.c.b16 %v4012, %v4011
        %v4128 = vpack.c.b16 %v4014, %v4013
        %v4129 = vpack.c.b16 %v4016, %v4015
        %v4130 = vpack.c.b16 %v4018, %v4017
        %v4131 = vpack.c.b16 %v4020, %v4019
        %v4132 = vpack.c.b16 %v4022, %v4021
        %v4133 = vpack.c.b16 %v4024, %v4023
        %v4134 = vpack.c.b16 %v4026, %v4025
        %v4135 = vpack.c.b16 %v4028, %v4027
        %v4136 = vpack.c.b16 %v4030, %v4029
        %v4137 = vpack.c.b16 %v4032, %v4031
        %v4138 = vpack.c.b16 %v4034, %v4033
        %v4139 = vpack.c.b16 %v4036, %v4035
        %v4140 = vpack.c.b16 %v4038, %v4037
        %v4141 = vpack.c.b16 %v4040, %v4039
        %v4142 = vpack.c.b16 %v4042, %v4041
        %v4143 = vpack.c.b16 %v4044, %v4043
        %v4144 = vpack.c.b16 %v4046, %v4045
        %v4145 = vpack.c.b16 %v4048, %v4047
        %v4146 = vpack.c.b16 %v4050, %v4049
        %v4147 = vpack.c.b16 %v4052, %v4051
        %v4148 = vpack.c.b16 %v4054, %v4053
        %v4149 = vpack.c.b16 %v4056, %v4055
        %v4150 = vpack.c.b16 %v4058, %v4057
        %v4151 = vpack.c.b16 %v4060, %v4059
        %v4152 = vpack.c.b16 %v4062, %v4061
        %v4153 = vpack.c.b16 %v4064, %v4063
        %v4154 = vpack.c.b16 %v4066, %v4065
        %v4155 = vpack.c.b16 %v4068, %v4067
        %v4156 = vpack.c.b16 %v4070, %v4069
        %v4157 = vpack.c.b16 %v4072, %v4071
        %v4158 = vpack.c.b16 %v4074, %v4073
        %v4159 = vpack.c.b16 %v4076, %v4075
        %v4160 = vpack.c.b16 %v4078, %v4077
        %v4161 = vpack.c.b16 %v4080, %v4079
        %v4162 = vpack.c.b16 %v4082, %v4081
        %v4163 = vpack.c.b16 %v4084, %v4083
        %v4164 = vpack.c.b16 %v4086, %v4085
        %v4165 = vpack.c.b16 %v4088, %v4087
        %v4166 = vpack.c.b16 %v4090, %v4089
        %v4167 = vpack.c.b16 %v4092, %v4091
        %v4168 = vpack.c.b16 %v4094, %v4093
        %v4169 = vpack.c.b16 %v4096, %v4095
        %v4170 = vpack.c.b16 %v4098, %v4097
        %4243 = vmatprep.subr.bf16.mxu0 0
        %4244 = vmatpush1.bf16.msra.mxu0 %v4099
        %4245 = vmatprep.subr.bf16.mxu0 0
        %4246 = vmatpush1.bf16.msra.mxu0 %v4100
        %4247 = vmatprep.subr.bf16.mxu0 0
        %4248 = vmatpush1.bf16.msra.mxu0 %v4101
        %4249 = vmatprep.subr.bf16.mxu0 0
        %4250 = vmatpush1.bf16.msra.mxu0 %v4102
        %4251 = vmatprep.subr.bf16.mxu0 0
        %4252 = vmatpush1.bf16.msra.mxu0 %v4103
        %4253 = vmatprep.subr.bf16.mxu0 0
        %4254 = vmatpush1.bf16.msra.mxu0 %v4104
        %4255 = vmatprep.subr.bf16.mxu0 0
        %4256 = vmatpush1.bf16.msra.mxu0 %v4105
        %4257 = vmatprep.subr.bf16.mxu0 0
        %4258 = vmatpush1.bf16.msra.mxu0 %v4106
        %4259 = vmatprep.subr.bf16.mxu0 0
        %4260 = vmatpush1.bf16.msra.mxu0 %v4107
        %4261 = vmatprep.subr.bf16.mxu0 0
        %4262 = vmatpush1.bf16.msra.mxu0 %v4108
        %4263 = vmatprep.subr.bf16.mxu0 0
        %4264 = vmatpush1.bf16.msra.mxu0 %v4109
        %4265 = vmatprep.subr.bf16.mxu0 0
        %4266 = vmatpush1.bf16.msra.mxu0 %v4110
        %4267 = vmatprep.subr.bf16.mxu0 0
        %4268 = vmatpush1.bf16.msra.mxu0 %v4111
        %4269 = vmatprep.subr.bf16.mxu0 0
        %4270 = vmatpush1.bf16.msra.mxu0 %v4112
        %4271 = vmatprep.subr.bf16.mxu0 0
        %4272 = vmatpush1.bf16.msra.mxu0 %v4113
        %4273 = vmatprep.subr.bf16.mxu0 0
        %4274 = vmatpush1.bf16.msra.mxu0 %v4114
        %4275 = vmatprep.mubr.bf16.mxu0 %v3286
        %4276 = vmatmul.mubr.bf16.gmra.mrb[0].mxu0 %v3233
        %v4277 = vpop.f32.mrb[0].mxu0
        %v4278 = vadd.f32 %v3809, %v4277
        %v4279 = vpop.f32.mrb[0].mxu0
        %v4280 = vpop.f32.mrb[0].mxu0
        %v4281 = vadd.f32 %v3809, %v4280
        %v4282 = vpop.f32.mrb[0].mxu0
        %4283 = vdwg.mxu0
        %4284 = vmatprep.subr.bf16.mxu0 0
        %4285 = vmatpush1.bf16.msra.mxu0 %v4115
        %4286 = vmatprep.subr.bf16.mxu0 0
        %4287 = vmatpush1.bf16.msra.mxu0 %v4116
        %4288 = vmatprep.subr.bf16.mxu0 0
        %4289 = vmatpush1.bf16.msra.mxu0 %v4117
        %4290 = vmatprep.subr.bf16.mxu0 0
        %4291 = vmatpush1.bf16.msra.mxu0 %v4118
        %4292 = vmatprep.subr.bf16.mxu0 0
        %4293 = vmatpush1.bf16.msra.mxu0 %v4119
        %4294 = vmatprep.subr.bf16.mxu0 0
        %4295 = vmatpush1.bf16.msra.mxu0 %v4120
        %4296 = vmatprep.subr.bf16.mxu0 0
        %4297 = vmatpush1.bf16.msra.mxu0 %v4121
        %4298 = vmatprep.subr.bf16.mxu0 0
        %4299 = vmatpush1.bf16.msra.mxu0 %v4122
        %4300 = vmatprep.subr.bf16.mxu0 0
        %4301 = vmatpush1.bf16.msra.mxu0 %v4123
        %4302 = vmatprep.subr.bf16.mxu0 0
        %4303 = vmatpush1.bf16.msra.mxu0 %v4124
        %4304 = vmatprep.subr.bf16.mxu0 0
        %4305 = vmatpush1.bf16.msra.mxu0 %v4125
        %4306 = vmatprep.subr.bf16.mxu0 0
        %4307 = vmatpush1.bf16.msra.mxu0 %v4126
        %4308 = vmatprep.subr.bf16.mxu0 0
        %4309 = vmatpush1.bf16.msra.mxu0 %v4127
        %4310 = vmatprep.subr.bf16.mxu0 0
        %4311 = vmatpush1.bf16.msra.mxu0 %v4128
        %4312 = vmatprep.subr.bf16.mxu0 0
        %4313 = vmatpush1.bf16.msra.mxu0 %v4129
        %4314 = vmatprep.subr.bf16.mxu0 0
        %4315 = vmatpush1.bf16.msra.mxu0 %v4130
        %4316 = vmatprep.mubr.bf16.mxu0 %v3392
        %4317 = vmatmul.mubr.bf16.gmra.mrb[0].mxu0 %v3339
        %v4318 = vpop.f32.mrb[0].mxu0
        %v4319 = vadd.f32 %v4278, %v4318
        %v4320 = vpop.f32.mrb[0].mxu0
        %v4321 = vpop.f32.mrb[0].mxu0
        %v4322 = vadd.f32 %v4281, %v4321
        %v4323 = vpop.f32.mrb[0].mxu0
        %4324 = vdwg.mxu0
        %4325 = vmatprep.subr.bf16.mxu0 0
        %4326 = vmatpush1.bf16.msra.mxu0 %v4131
        %4327 = vmatprep.subr.bf16.mxu0 0
        %4328 = vmatpush1.bf16.msra.mxu0 %v4132
        %4329 = vmatprep.subr.bf16.mxu0 0
        %4330 = vmatpush1.bf16.msra.mxu0 %v4133
        %4331 = vmatprep.subr.bf16.mxu0 0
        %4332 = vmatpush1.bf16.msra.mxu0 %v4134
        %4333 = vmatprep.subr.bf16.mxu0 0
        %4334 = vmatpush1.bf16.msra.mxu0 %v4135
        %4335 = vmatprep.subr.bf16.mxu0 0
        %4336 = vmatpush1.bf16.msra.mxu0 %v4136
        %4337 = vmatprep.subr.bf16.mxu0 0
        %4338 = vmatpush1.bf16.msra.mxu0 %v4137
        %4339 = vmatprep.subr.bf16.mxu0 0
        %4340 = vmatpush1.bf16.msra.mxu0 %v4138
        %4341 = vmatprep.subr.bf16.mxu0 0
        %4342 = vmatpush1.bf16.msra.mxu0 %v4139
        %4343 = vmatprep.subr.bf16.mxu0 0
        %4344 = vmatpush1.bf16.msra.mxu0 %v4140
        %4345 = vmatprep.subr.bf16.mxu0 0
        %4346 = vmatpush1.bf16.msra.mxu0 %v4141
        %4347 = vmatprep.subr.bf16.mxu0 0
        %4348 = vmatpush1.bf16.msra.mxu0 %v4142
        %4349 = vmatprep.subr.bf16.mxu0 0
        %4350 = vmatpush1.bf16.msra.mxu0 %v4143
        %4351 = vmatprep.subr.bf16.mxu0 0
        %4352 = vmatpush1.bf16.msra.mxu0 %v4144
        %4353 = vmatprep.subr.bf16.mxu0 0
        %4354 = vmatpush1.bf16.msra.mxu0 %v4145
        %4355 = vmatprep.subr.bf16.mxu0 0
        %4356 = vmatpush1.bf16.msra.mxu0 %v4146
        %4357 = vmatprep.mubr.bf16.mxu0 %v3498
        %4358 = vmatmul.mubr.bf16.gmra.mrb[0].mxu0 %v3445
        %v4359 = vpop.f32.mrb[0].mxu0
        %v4360 = vadd.f32 %v4319, %v4359
        %v4361 = vpop.f32.mrb[0].mxu0
        %v4362 = vpop.f32.mrb[0].mxu0
        %v4363 = vadd.f32 %v4322, %v4362
        %v4364 = vpop.f32.mrb[0].mxu0
        %4365 = vdwg.mxu0
        %4366 = vmatprep.subr.bf16.mxu0 0
        %4367 = vmatpush1.bf16.msra.mxu0 %v4147
        %4368 = vmatprep.subr.bf16.mxu0 0
        %4369 = vmatpush1.bf16.msra.mxu0 %v4148
        %4370 = vmatprep.subr.bf16.mxu0 0
        %4371 = vmatpush1.bf16.msra.mxu0 %v4149
        %4372 = vmatprep.subr.bf16.mxu0 0
        %4373 = vmatpush1.bf16.msra.mxu0 %v4150
        %4374 = vmatprep.subr.bf16.mxu0 0
        %4375 = vmatpush1.bf16.msra.mxu0 %v4151
        %4376 = vmatprep.subr.bf16.mxu0 0
        %4377 = vmatpush1.bf16.msra.mxu0 %v4152
        %4378 = vmatprep.subr.bf16.mxu0 0
        %4379 = vmatpush1.bf16.msra.mxu0 %v4153
        %4380 = vmatprep.subr.bf16.mxu0 0
        %4381 = vmatpush1.bf16.msra.mxu0 %v4154
        %4382 = vmatprep.subr.bf16.mxu0 0
        %4383 = vmatpush1.bf16.msra.mxu0 %v4155
        %4384 = vmatprep.subr.bf16.mxu0 0
        %4385 = vmatpush1.bf16.msra.mxu0 %v4156
        %4386 = vmatprep.subr.bf16.mxu0 0
        %4387 = vmatpush1.bf16.msra.mxu0 %v4157
        %4388 = vmatprep.subr.bf16.mxu0 0
        %4389 = vmatpush1.bf16.msra.mxu0 %v4158
        %4390 = vmatprep.subr.bf16.mxu0 0
        %4391 = vmatpush1.bf16.msra.mxu0 %v4159
        %4392 = vmatprep.subr.bf16.mxu0 0
        %4393 = vmatpush1.bf16.msra.mxu0 %v4160
        %4394 = vmatprep.subr.bf16.mxu0 0
        %4395 = vmatpush1.bf16.msra.mxu0 %v4161
        %4396 = vmatprep.subr.bf16.mxu0 0
        %4397 = vmatpush1.bf16.msra.mxu0 %v4162
        %4398 = vmatprep.mubr.bf16.mxu0 %v3604
        %4399 = vmatmul.mubr.bf16.gmra.mrb[0].mxu0 %v3551
        %v4400 = vpop.f32.mrb[0].mxu0
        %v4401 = vadd.f32 %v4360, %v4400
        %v4402 = vpop.f32.mrb[0].mxu0
        %v4403 = vpop.f32.mrb[0].mxu0
        %v4404 = vadd.f32 %v4363, %v4403
        %v4405 = vpop.f32.mrb[0].mxu0
        %4406 = vdwg.mxu0
        %4407 = vmatprep.subr.bf16.mxu0 0
        %4408 = vmatpush1.bf16.msra.mxu0 %v4163
        %4409 = vmatprep.subr.bf16.mxu0 0
        %4410 = vmatpush1.bf16.msra.mxu0 %v4164
        %4411 = vmatprep.subr.bf16.mxu0 0
        %4412 = vmatpush1.bf16.msra.mxu0 %v4165
        %4413 = vmatprep.subr.bf16.mxu0 0
        %4414 = vmatpush1.bf16.msra.mxu0 %v4166
        %4415 = vmatprep.subr.bf16.mxu0 0
        %4416 = vmatpush1.bf16.msra.mxu0 %v4167
        %4417 = vmatprep.subr.bf16.mxu0 0
        %4418 = vmatpush1.bf16.msra.mxu0 %v4168
        %4419 = vmatprep.subr.bf16.mxu0 0
        %4420 = vmatpush1.bf16.msra.mxu0 %v4169
        %4421 = vmatprep.subr.bf16.mxu0 0
        %4422 = vmatpush1.bf16.msra.mxu0 %v4170
        %4423 = vmatprep.subr.bf16.mxu0 0
        %4424 = vmatpush1.bf16.msra.mxu0 0
        %4425 = vmatprep.subr.bf16.mxu0 0
        %4426 = vmatpush1.bf16.msra.mxu0 0
        %4427 = vmatprep.subr.bf16.mxu0 0
        %4428 = vmatpush1.bf16.msra.mxu0 0
        %4429 = vmatprep.subr.bf16.mxu0 0
        %4430 = vmatpush1.bf16.msra.mxu0 0
        %4431 = vmatprep.subr.bf16.mxu0 0
        %4432 = vmatpush1.bf16.msra.mxu0 0
        %4433 = vmatprep.subr.bf16.mxu0 0
        %4434 = vmatpush1.bf16.msra.mxu0 0
        %4435 = vmatprep.subr.bf16.mxu0 0
        %4436 = vmatpush1.bf16.msra.mxu0 0
        %4437 = vmatprep.subr.bf16.mxu0 0
        %4438 = vmatpush1.bf16.msra.mxu0 0
        %4439 = vmatprep.mubr.bf16.mxu0 0
        %4440 = vmatmul.mubr.bf16.gmra.mrb[0].mxu0 %v3657
        %v4441 = vpop.f32.mrb[0].mxu0
        %v4442 = vadd.f32 %v4401, %v4441
        %v4443 = vpop.f32.mrb[0].mxu0
        %v4444 = vpop.f32.mrb[0].mxu0
        %v4445 = vadd.f32 %v4404, %v4444
        %v4446 = vpop.f32.mrb[0].mxu0
        %4447 = vdwg.mxu0
        %v4448 = vmax.f32 %v4442, 0.0
        %v4449 = vmax.f32 %v4445, 0.0
        %v4450 = vadd.f32 %v4448, %v4449
        %v4451 = vrot.slane %v4450, 4
        %v4452 = vadd.f32 %v4450, %v4451
        %v4453 = vrot.slane %v4452, 2
        %v4454 = vadd.f32 %v4452, %v4453
        %v4455 = vrot.slane %v4454, 1
        %v4456 = vadd.f32 %v4454, %v4455
        %v4457 = vpack.c.bf16 %v4456, %v4456
        %s4458 = scalar_lea.vmem %s8, 128
        %v4459 = vld [vmem:[%s4458] sm:$0xf]
        %v4460 = vld [vmem:[%s4458 + $0x4] sm:$0xf]
        %v4461 = vld [vmem:[%s4458 + $0x8] sm:$0xf]
        %v4462 = vld [vmem:[%s4458 + $0xc] sm:$0xf]
        %v4463 = vld [vmem:[%s4458 + $0x10] sm:$0xf]
        %v4464 = vld [vmem:[%s4458 + $0x14] sm:$0xf]
        %v4465 = vld [vmem:[%s4458 + $0x18] sm:$0xf]
        %v4466 = vld [vmem:[%s4458 + $0x1c] sm:$0xf]
        %v4467 = vld [vmem:[%s4458 + $0x20] sm:$0xf]
        %v4468 = vld [vmem:[%s4458 + $0x24] sm:$0xf]
        %v4469 = vld [vmem:[%s4458 + $0x28] sm:$0xf]
        %v4470 = vld [vmem:[%s4458 + $0x2c] sm:$0xf]
        %v4471 = vld [vmem:[%s4458 + $0x30] sm:$0xf]
        %v4472 = vld [vmem:[%s4458 + $0x34] sm:$0xf]
        %v4473 = vld [vmem:[%s4458 + $0x38] sm:$0xf]
        %v4474 = vld [vmem:[%s4458 + $0x3c] sm:$0xf]
        %s4475 = scalar_lea.vmem %s9, 2
        %v4476 = vld [vmem:[%s4475] sm:$0x1]
        %v4493 = vunpack.c.l.b16 %v4459
        %v4494 = vunpack.c.l.b16 %v4460
        %v4495 = vunpack.c.l.b16 %v4461
        %v4496 = vunpack.c.l.b16 %v4462
        %v4497 = vunpack.c.l.b16 %v4463
        %v4498 = vunpack.c.l.b16 %v4464
        %v4499 = vunpack.c.l.b16 %v4465
        %v4500 = vunpack.c.l.b16 %v4466
        %v4501 = vunpack.c.l.b16 %v4467
        %v4502 = vunpack.c.l.b16 %v4468
        %v4503 = vunpack.c.l.b16 %v4469
        %v4504 = vunpack.c.l.b16 %v4470
        %v4505 = vunpack.c.l.b16 %v4471
        %v4506 = vunpack.c.l.b16 %v4472
        %v4507 = vunpack.c.l.b16 %v4473
        %v4508 = vunpack.c.l.b16 %v4474
        %v4509 = vpack.c.b16 %v4494, %v4493
        %v4510 = vpack.c.b16 %v4496, %v4495
        %v4511 = vpack.c.b16 %v4498, %v4497
        %v4512 = vpack.c.b16 %v4500, %v4499
        %v4513 = vpack.c.b16 %v4502, %v4501
        %v4514 = vpack.c.b16 %v4504, %v4503
        %v4515 = vpack.c.b16 %v4506, %v4505
        %v4516 = vpack.c.b16 %v4508, %v4507
        %4525 = vmatprep.subr.bf16.mxu0 0
        %4526 = vmatpush1.bf16.msra.mxu0 %v4509
        %4527 = vmatprep.subr.bf16.mxu0 0
        %4528 = vmatpush1.bf16.msra.mxu0 %v4510
        %4529 = vmatprep.subr.bf16.mxu0 0
        %4530 = vmatpush1.bf16.msra.mxu0 %v4511
        %4531 = vmatprep.subr.bf16.mxu0 0
        %4532 = vmatpush1.bf16.msra.mxu0 %v4512
        %4533 = vmatprep.subr.bf16.mxu0 0
        %4534 = vmatpush1.bf16.msra.mxu0 %v4513
        %4535 = vmatprep.subr.bf16.mxu0 0
        %4536 = vmatpush1.bf16.msra.mxu0 %v4514
        %4537 = vmatprep.subr.bf16.mxu0 0
        %4538 = vmatpush1.bf16.msra.mxu0 %v4515
        %4539 = vmatprep.subr.bf16.mxu0 0
        %4540 = vmatpush1.bf16.msra.mxu0 %v4516
        %4541 = vmatprep.subr.bf16.mxu0 0
        %4542 = vmatpush1.bf16.msra.mxu0 0
        %4543 = vmatprep.subr.bf16.mxu0 0
        %4544 = vmatpush1.bf16.msra.mxu0 0
        %4545 = vmatprep.subr.bf16.mxu0 0
        %4546 = vmatpush1.bf16.msra.mxu0 0
        %4547 = vmatprep.subr.bf16.mxu0 0
        %4548 = vmatpush1.bf16.msra.mxu0 0
        %4549 = vmatprep.subr.bf16.mxu0 0
        %4550 = vmatpush1.bf16.msra.mxu0 0
        %4551 = vmatprep.subr.bf16.mxu0 0
        %4552 = vmatpush1.bf16.msra.mxu0 0
        %4553 = vmatprep.subr.bf16.mxu0 0
        %4554 = vmatpush1.bf16.msra.mxu0 0
        %4555 = vmatprep.subr.bf16.mxu0 0
        %4556 = vmatpush1.bf16.msra.mxu0 0
        %4557 = vmatprep.mubr.bf16.mxu0 0
        %4558 = vmatmul.mubr.bf16.gmra.mrb[0].mxu0 %v4457
        %v4559 = vpop.f32.mrb[0].mxu0
        %v4560 = vadd.f32 %v4476, %v4559
        %v4561 = vpop.f32.mrb[0].mxu0
        %v4562 = vpop.f32.mrb[0].mxu0
        %v4563 = vpop.f32.mrb[0].mxu0
        %4564 = vdwg.mxu0
        %v4565 = vmax.f32 %v4560, 0.0
        %v4566 = vpack.c.bf16 %v4565, %v4565
        %s4567 = scalar_lea.vmem %s10, 4
        %v4568 = vld [vmem:[%s4567] sm:$0x3]
        %s4569 = scalar_lea.vmem %s11, 2
        %v4570 = vld [vmem:[%s4569] sm:$0x1]
        %v4572 = vsel %vm873, %v4566, 0
        %v4575 = vsel %vm877, %v4568, 0
        %4577 = vmatprep.subr.bf16.mxu0 0
        %4578 = vmatpush1.bf16.msra.mxu0 %v4575
        %4579 = vmatprep.subr.bf16.mxu0 0
        %4580 = vmatpush1.bf16.msra.mxu0 0
        %4581 = vmatprep.subr.bf16.mxu0 0
        %4582 = vmatpush1.bf16.msra.mxu0 0
        %4583 = vmatprep.subr.bf16.mxu0 0
        %4584 = vmatpush1.bf16.msra.mxu0 0
        %4585 = vmatprep.subr.bf16.mxu0 0
        %4586 = vmatpush1.bf16.msra.mxu0 0
        %4587 = vmatprep.subr.bf16.mxu0 0
        %4588 = vmatpush1.bf16.msra.mxu0 0
        %4589 = vmatprep.subr.bf16.mxu0 0
        %4590 = vmatpush1.bf16.msra.mxu0 0
        %4591 = vmatprep.subr.bf16.mxu0 0
        %4592 = vmatpush1.bf16.msra.mxu0 0
        %4593 = vmatprep.subr.bf16.mxu0 0
        %4594 = vmatpush1.bf16.msra.mxu0 0
        %4595 = vmatprep.subr.bf16.mxu0 0
        %4596 = vmatpush1.bf16.msra.mxu0 0
        %4597 = vmatprep.subr.bf16.mxu0 0
        %4598 = vmatpush1.bf16.msra.mxu0 0
        %4599 = vmatprep.subr.bf16.mxu0 0
        %4600 = vmatpush1.bf16.msra.mxu0 0
        %4601 = vmatprep.subr.bf16.mxu0 0
        %4602 = vmatpush1.bf16.msra.mxu0 0
        %4603 = vmatprep.subr.bf16.mxu0 0
        %4604 = vmatpush1.bf16.msra.mxu0 0
        %4605 = vmatprep.subr.bf16.mxu0 0
        %4606 = vmatpush1.bf16.msra.mxu0 0
        %4607 = vmatprep.subr.bf16.mxu0 0
        %4608 = vmatpush1.bf16.msra.mxu0 0
        %4609 = vmatprep.mubr.bf16.mxu0 0
        %4610 = vmatmul.mubr.bf16.gmra.mrb[0].mxu0 %v4572
        %v4611 = vpop.f32.mrb[0].mxu0
        %v4612 = vadd.f32 %v4570, %v4611
        %v4613 = vpop.f32.mrb[0].mxu0
        %v4614 = vpop.f32.mrb[0].mxu0
        %v4615 = vpop.f32.mrb[0].mxu0
        %4616 = vdwg.mxu0
        %v4617 = vsub.f32 0.0, %v4612
        %v4618 = vmul.f32 %v4617, 1.442695
        %v4619 = vpow.pop %v4618
        %v4620 = vadd.f32 %v4619, 1.0
        %v4621 = vrcp.pop %v4620
        %v4622 = vlaneseq
        %v4623 = vshrl.u32 %v4622, 7
        %v4624 = vsub.s32 0, %v4623
        %v4625 = vrot.slane %v4621, %v4624
        %v4626 = vmul.f32 %v4448, %v4625
        %v4627 = vmul.f32 %v4449, %v4625
        %v4628 = vpack.c.bf16 %v4627, %v4626
        %v4629 = vld [vmem:[%s7] sm:$0x3]
        %vm4630 = vcmask 130048
        %v4632 = vsel %vm4630, %v4629, 0
        %4634 = vmatprep.subr.bf16.mxu0 0
        %4635 = vmatpush1.bf16.msra.mxu0 %v4628
        %4636 = vmatprep.subr.bf16.mxu0 0
        %4637 = vmatpush1.bf16.msra.mxu0 0
        %4638 = vmatprep.subr.bf16.mxu0 0
        %4639 = vmatpush1.bf16.msra.mxu0 0
        %4640 = vmatprep.subr.bf16.mxu0 0
        %4641 = vmatpush1.bf16.msra.mxu0 0
        %4642 = vmatprep.subr.bf16.mxu0 0
        %4643 = vmatpush1.bf16.msra.mxu0 0
        %4644 = vmatprep.subr.bf16.mxu0 0
        %4645 = vmatpush1.bf16.msra.mxu0 0
        %4646 = vmatprep.subr.bf16.mxu0 0
        %4647 = vmatpush1.bf16.msra.mxu0 0
        %4648 = vmatprep.subr.bf16.mxu0 0
        %4649 = vmatpush1.bf16.msra.mxu0 0
        %4650 = vmatprep.subr.bf16.mxu0 0
        %4651 = vmatpush1.bf16.msra.mxu0 0
        %4652 = vmatprep.subr.bf16.mxu0 0
        %4653 = vmatpush1.bf16.msra.mxu0 0
        %4654 = vmatprep.subr.bf16.mxu0 0
        %4655 = vmatpush1.bf16.msra.mxu0 0
        %4656 = vmatprep.subr.bf16.mxu0 0
        %4657 = vmatpush1.bf16.msra.mxu0 0
        %4658 = vmatprep.subr.bf16.mxu0 0
        %4659 = vmatpush1.bf16.msra.mxu0 0
        %4660 = vmatprep.subr.bf16.mxu0 0
        %4661 = vmatpush1.bf16.msra.mxu0 0
        %4662 = vmatprep.subr.bf16.mxu0 0
        %4663 = vmatpush1.bf16.msra.mxu0 0
        %4664 = vmatprep.subr.bf16.mxu0 0
        %4665 = vmatpush1.bf16.msra.mxu0 0
        %4666 = vmatprep.mubr.bf16.mxu0 0
        %4667 = vmatmul.mubr.bf16.gmra.mrb[0].mxu0 %v4632
        %v4668 = vpop.f32.mrb[0].mxu0
        %v4669 = vadd.f32 0.0, %v4668
        %v4670 = vpop.f32.mrb[0].mxu0
        %v4671 = vpop.f32.mrb[0].mxu0
        %v4672 = vpop.f32.mrb[0].mxu0
        %4673 = vdwg.mxu0
        %v4674 = vpack.c.bf16 %v4669, %v4669
        %s4675 = scalar_lea.vmem %s7, 2
        %v4676 = vld [vmem:[%s4675] sm:$0x3]
        %v4678 = vsel %vm4630, %v4676, 0
        %4680 = vmatprep.subr.bf16.mxu0 0
        %4681 = vmatpush1.bf16.msra.mxu0 %v4628
        %4682 = vmatprep.subr.bf16.mxu0 0
        %4683 = vmatpush1.bf16.msra.mxu0 0
        %4684 = vmatprep.subr.bf16.mxu0 0
        %4685 = vmatpush1.bf16.msra.mxu0 0
        %4686 = vmatprep.subr.bf16.mxu0 0
        %4687 = vmatpush1.bf16.msra.mxu0 0
        %4688 = vmatprep.subr.bf16.mxu0 0
        %4689 = vmatpush1.bf16.msra.mxu0 0
        %4690 = vmatprep.subr.bf16.mxu0 0
        %4691 = vmatpush1.bf16.msra.mxu0 0
        %4692 = vmatprep.subr.bf16.mxu0 0
        %4693 = vmatpush1.bf16.msra.mxu0 0
        %4694 = vmatprep.subr.bf16.mxu0 0
        %4695 = vmatpush1.bf16.msra.mxu0 0
        %4696 = vmatprep.subr.bf16.mxu0 0
        %4697 = vmatpush1.bf16.msra.mxu0 0
        %4698 = vmatprep.subr.bf16.mxu0 0
        %4699 = vmatpush1.bf16.msra.mxu0 0
        %4700 = vmatprep.subr.bf16.mxu0 0
        %4701 = vmatpush1.bf16.msra.mxu0 0
        %4702 = vmatprep.subr.bf16.mxu0 0
        %4703 = vmatpush1.bf16.msra.mxu0 0
        %4704 = vmatprep.subr.bf16.mxu0 0
        %4705 = vmatpush1.bf16.msra.mxu0 0
        %4706 = vmatprep.subr.bf16.mxu0 0
        %4707 = vmatpush1.bf16.msra.mxu0 0
        %4708 = vmatprep.subr.bf16.mxu0 0
        %4709 = vmatpush1.bf16.msra.mxu0 0
        %4710 = vmatprep.subr.bf16.mxu0 0
        %4711 = vmatpush1.bf16.msra.mxu0 0
        %4712 = vmatprep.mubr.bf16.mxu0 0
        %4713 = vmatmul.mubr.bf16.gmra.mrb[0].mxu0 %v4678
        %v4714 = vpop.f32.mrb[0].mxu0
        %v4715 = vadd.f32 0.0, %v4714
        %v4716 = vpop.f32.mrb[0].mxu0
        %v4717 = vpop.f32.mrb[0].mxu0
        %v4718 = vpop.f32.mrb[0].mxu0
        %4719 = vdwg.mxu0
        %v4720 = vpack.c.bf16 %v4715, %v4715
        %s4721 = scalar_lea.vmem %s7, 4
        %v4722 = vld [vmem:[%s4721] sm:$0x3]
        %v4724 = vsel %vm4630, %v4722, 0
        %4726 = vmatprep.subr.bf16.mxu0 0
        %4727 = vmatpush1.bf16.msra.mxu0 %v4628
        %4728 = vmatprep.subr.bf16.mxu0 0
        %4729 = vmatpush1.bf16.msra.mxu0 0
        %4730 = vmatprep.subr.bf16.mxu0 0
        %4731 = vmatpush1.bf16.msra.mxu0 0
        %4732 = vmatprep.subr.bf16.mxu0 0
        %4733 = vmatpush1.bf16.msra.mxu0 0
        %4734 = vmatprep.subr.bf16.mxu0 0
        %4735 = vmatpush1.bf16.msra.mxu0 0
        %4736 = vmatprep.subr.bf16.mxu0 0
        %4737 = vmatpush1.bf16.msra.mxu0 0
        %4738 = vmatprep.subr.bf16.mxu0 0
        %4739 = vmatpush1.bf16.msra.mxu0 0
        %4740 = vmatprep.subr.bf16.mxu0 0
        %4741 = vmatpush1.bf16.msra.mxu0 0
        %4742 = vmatprep.subr.bf16.mxu0 0
        %4743 = vmatpush1.bf16.msra.mxu0 0
        %4744 = vmatprep.subr.bf16.mxu0 0
        %4745 = vmatpush1.bf16.msra.mxu0 0
        %4746 = vmatprep.subr.bf16.mxu0 0
        %4747 = vmatpush1.bf16.msra.mxu0 0
        %4748 = vmatprep.subr.bf16.mxu0 0
        %4749 = vmatpush1.bf16.msra.mxu0 0
        %4750 = vmatprep.subr.bf16.mxu0 0
        %4751 = vmatpush1.bf16.msra.mxu0 0
        %4752 = vmatprep.subr.bf16.mxu0 0
        %4753 = vmatpush1.bf16.msra.mxu0 0
        %4754 = vmatprep.subr.bf16.mxu0 0
        %4755 = vmatpush1.bf16.msra.mxu0 0
        %4756 = vmatprep.subr.bf16.mxu0 0
        %4757 = vmatpush1.bf16.msra.mxu0 0
        %4758 = vmatprep.mubr.bf16.mxu0 0
        %4759 = vmatmul.mubr.bf16.gmra.mrb[0].mxu0 %v4724
        %v4760 = vpop.f32.mrb[0].mxu0
        %v4761 = vadd.f32 0.0, %v4760
        %v4762 = vpop.f32.mrb[0].mxu0
        %v4763 = vpop.f32.mrb[0].mxu0
        %v4764 = vpop.f32.mrb[0].mxu0
        %4765 = vdwg.mxu0
        %v4766 = vpack.c.bf16 %v4761, %v4761
        %s4767 = scalar_lea.vmem %s7, 6
        %v4768 = vld [vmem:[%s4767] sm:$0x3]
        %v4770 = vsel %vm4630, %v4768, 0
        %4772 = vmatprep.subr.bf16.mxu0 0
        %4773 = vmatpush1.bf16.msra.mxu0 %v4628
        %4774 = vmatprep.subr.bf16.mxu0 0
        %4775 = vmatpush1.bf16.msra.mxu0 0
        %4776 = vmatprep.subr.bf16.mxu0 0
        %4777 = vmatpush1.bf16.msra.mxu0 0
        %4778 = vmatprep.subr.bf16.mxu0 0
        %4779 = vmatpush1.bf16.msra.mxu0 0
        %4780 = vmatprep.subr.bf16.mxu0 0
        %4781 = vmatpush1.bf16.msra.mxu0 0
        %4782 = vmatprep.subr.bf16.mxu0 0
        %4783 = vmatpush1.bf16.msra.mxu0 0
        %4784 = vmatprep.subr.bf16.mxu0 0
        %4785 = vmatpush1.bf16.msra.mxu0 0
        %4786 = vmatprep.subr.bf16.mxu0 0
        %4787 = vmatpush1.bf16.msra.mxu0 0
        %4788 = vmatprep.subr.bf16.mxu0 0
        %4789 = vmatpush1.bf16.msra.mxu0 0
        %4790 = vmatprep.subr.bf16.mxu0 0
        %4791 = vmatpush1.bf16.msra.mxu0 0
        %4792 = vmatprep.subr.bf16.mxu0 0
        %4793 = vmatpush1.bf16.msra.mxu0 0
        %4794 = vmatprep.subr.bf16.mxu0 0
        %4795 = vmatpush1.bf16.msra.mxu0 0
        %4796 = vmatprep.subr.bf16.mxu0 0
        %4797 = vmatpush1.bf16.msra.mxu0 0
        %4798 = vmatprep.subr.bf16.mxu0 0
        %4799 = vmatpush1.bf16.msra.mxu0 0
        %4800 = vmatprep.subr.bf16.mxu0 0
        %4801 = vmatpush1.bf16.msra.mxu0 0
        %4802 = vmatprep.subr.bf16.mxu0 0
        %4803 = vmatpush1.bf16.msra.mxu0 0
        %4804 = vmatprep.mubr.bf16.mxu0 0
        %4805 = vmatmul.mubr.bf16.gmra.mrb[0].mxu0 %v4770
        %v4806 = vpop.f32.mrb[0].mxu0
        %v4807 = vadd.f32 0.0, %v4806
        %v4808 = vpop.f32.mrb[0].mxu0
        %v4809 = vpop.f32.mrb[0].mxu0
        %v4810 = vpop.f32.mrb[0].mxu0
        %4811 = vdwg.mxu0
        %v4812 = vpack.c.bf16 %v4807, %v4807
        %s4813 = scalar_lea.vmem %s7, 8
        %v4814 = vld [vmem:[%s4813] sm:$0x3]
        %v4816 = vsel %vm4630, %v4814, 0
        %4818 = vmatprep.subr.bf16.mxu0 0
        %4819 = vmatpush1.bf16.msra.mxu0 %v4628
        %4820 = vmatprep.subr.bf16.mxu0 0
        %4821 = vmatpush1.bf16.msra.mxu0 0
        %4822 = vmatprep.subr.bf16.mxu0 0
        %4823 = vmatpush1.bf16.msra.mxu0 0
        %4824 = vmatprep.subr.bf16.mxu0 0
        %4825 = vmatpush1.bf16.msra.mxu0 0
        %4826 = vmatprep.subr.bf16.mxu0 0
        %4827 = vmatpush1.bf16.msra.mxu0 0
        %4828 = vmatprep.subr.bf16.mxu0 0
        %4829 = vmatpush1.bf16.msra.mxu0 0
        %4830 = vmatprep.subr.bf16.mxu0 0
        %4831 = vmatpush1.bf16.msra.mxu0 0
        %4832 = vmatprep.subr.bf16.mxu0 0
        %4833 = vmatpush1.bf16.msra.mxu0 0
        %4834 = vmatprep.subr.bf16.mxu0 0
        %4835 = vmatpush1.bf16.msra.mxu0 0
        %4836 = vmatprep.subr.bf16.mxu0 0
        %4837 = vmatpush1.bf16.msra.mxu0 0
        %4838 = vmatprep.subr.bf16.mxu0 0
        %4839 = vmatpush1.bf16.msra.mxu0 0
        %4840 = vmatprep.subr.bf16.mxu0 0
        %4841 = vmatpush1.bf16.msra.mxu0 0
        %4842 = vmatprep.subr.bf16.mxu0 0
        %4843 = vmatpush1.bf16.msra.mxu0 0
        %4844 = vmatprep.subr.bf16.mxu0 0
        %4845 = vmatpush1.bf16.msra.mxu0 0
        %4846 = vmatprep.subr.bf16.mxu0 0
        %4847 = vmatpush1.bf16.msra.mxu0 0
        %4848 = vmatprep.subr.bf16.mxu0 0
        %4849 = vmatpush1.bf16.msra.mxu0 0
        %4850 = vmatprep.mubr.bf16.mxu0 0
        %4851 = vmatmul.mubr.bf16.gmra.mrb[0].mxu0 %v4816
        %v4852 = vpop.f32.mrb[0].mxu0
        %v4853 = vadd.f32 0.0, %v4852
        %v4854 = vpop.f32.mrb[0].mxu0
        %v4855 = vpop.f32.mrb[0].mxu0
        %v4856 = vpop.f32.mrb[0].mxu0
        %4857 = vdwg.mxu0
        %v4858 = vpack.c.bf16 %v4853, %v4853
        %s4859 = scalar_lea.vmem %s7, 10
        %v4860 = vld [vmem:[%s4859] sm:$0x3]
        %v4862 = vsel %vm4630, %v4860, 0
        %4864 = vmatprep.subr.bf16.mxu0 0
        %4865 = vmatpush1.bf16.msra.mxu0 %v4628
        %4866 = vmatprep.subr.bf16.mxu0 0
        %4867 = vmatpush1.bf16.msra.mxu0 0
        %4868 = vmatprep.subr.bf16.mxu0 0
        %4869 = vmatpush1.bf16.msra.mxu0 0
        %4870 = vmatprep.subr.bf16.mxu0 0
        %4871 = vmatpush1.bf16.msra.mxu0 0
        %4872 = vmatprep.subr.bf16.mxu0 0
        %4873 = vmatpush1.bf16.msra.mxu0 0
        %4874 = vmatprep.subr.bf16.mxu0 0
        %4875 = vmatpush1.bf16.msra.mxu0 0
        %4876 = vmatprep.subr.bf16.mxu0 0
        %4877 = vmatpush1.bf16.msra.mxu0 0
        %4878 = vmatprep.subr.bf16.mxu0 0
        %4879 = vmatpush1.bf16.msra.mxu0 0
        %4880 = vmatprep.subr.bf16.mxu0 0
        %4881 = vmatpush1.bf16.msra.mxu0 0
        %4882 = vmatprep.subr.bf16.mxu0 0
        %4883 = vmatpush1.bf16.msra.mxu0 0
        %4884 = vmatprep.subr.bf16.mxu0 0
        %4885 = vmatpush1.bf16.msra.mxu0 0
        %4886 = vmatprep.subr.bf16.mxu0 0
        %4887 = vmatpush1.bf16.msra.mxu0 0
        %4888 = vmatprep.subr.bf16.mxu0 0
        %4889 = vmatpush1.bf16.msra.mxu0 0
        %4890 = vmatprep.subr.bf16.mxu0 0
        %4891 = vmatpush1.bf16.msra.mxu0 0
        %4892 = vmatprep.subr.bf16.mxu0 0
        %4893 = vmatpush1.bf16.msra.mxu0 0
        %4894 = vmatprep.subr.bf16.mxu0 0
        %4895 = vmatpush1.bf16.msra.mxu0 0
        %4896 = vmatprep.mubr.bf16.mxu0 0
        %4897 = vmatmul.mubr.bf16.gmra.mrb[0].mxu0 %v4862
        %v4898 = vpop.f32.mrb[0].mxu0
        %v4899 = vadd.f32 0.0, %v4898
        %v4900 = vpop.f32.mrb[0].mxu0
        %v4901 = vpop.f32.mrb[0].mxu0
        %v4902 = vpop.f32.mrb[0].mxu0
        %4903 = vdwg.mxu0
        %v4904 = vpack.c.bf16 %v4899, %v4899
        %s4905 = scalar_lea.vmem %s7, 12
        %v4906 = vld [vmem:[%s4905] sm:$0x3]
        %v4908 = vsel %vm4630, %v4906, 0
        %4910 = vmatprep.subr.bf16.mxu0 0
        %4911 = vmatpush1.bf16.msra.mxu0 %v4628
        %4912 = vmatprep.subr.bf16.mxu0 0
        %4913 = vmatpush1.bf16.msra.mxu0 0
        %4914 = vmatprep.subr.bf16.mxu0 0
        %4915 = vmatpush1.bf16.msra.mxu0 0
        %4916 = vmatprep.subr.bf16.mxu0 0
        %4917 = vmatpush1.bf16.msra.mxu0 0
        %4918 = vmatprep.subr.bf16.mxu0 0
        %4919 = vmatpush1.bf16.msra.mxu0 0
        %4920 = vmatprep.subr.bf16.mxu0 0
        %4921 = vmatpush1.bf16.msra.mxu0 0
        %4922 = vmatprep.subr.bf16.mxu0 0
        %4923 = vmatpush1.bf16.msra.mxu0 0
        %4924 = vmatprep.subr.bf16.mxu0 0
        %4925 = vmatpush1.bf16.msra.mxu0 0
        %4926 = vmatprep.subr.bf16.mxu0 0
        %4927 = vmatpush1.bf16.msra.mxu0 0
        %4928 = vmatprep.subr.bf16.mxu0 0
        %4929 = vmatpush1.bf16.msra.mxu0 0
        %4930 = vmatprep.subr.bf16.mxu0 0
        %4931 = vmatpush1.bf16.msra.mxu0 0
        %4932 = vmatprep.subr.bf16.mxu0 0
        %4933 = vmatpush1.bf16.msra.mxu0 0
        %4934 = vmatprep.subr.bf16.mxu0 0
        %4935 = vmatpush1.bf16.msra.mxu0 0
        %4936 = vmatprep.subr.bf16.mxu0 0
        %4937 = vmatpush1.bf16.msra.mxu0 0
        %4938 = vmatprep.subr.bf16.mxu0 0
        %4939 = vmatpush1.bf16.msra.mxu0 0
        %4940 = vmatprep.subr.bf16.mxu0 0
        %4941 = vmatpush1.bf16.msra.mxu0 0
        %4942 = vmatprep.mubr.bf16.mxu0 0
        %4943 = vmatmul.mubr.bf16.gmra.mrb[0].mxu0 %v4908
        %v4944 = vpop.f32.mrb[0].mxu0
        %v4945 = vadd.f32 0.0, %v4944
        %v4946 = vpop.f32.mrb[0].mxu0
        %v4947 = vpop.f32.mrb[0].mxu0
        %v4948 = vpop.f32.mrb[0].mxu0
        %4949 = vdwg.mxu0
        %v4950 = vpack.c.bf16 %v4945, %v4945
        %s4951 = scalar_lea.vmem %s7, 14
        %v4952 = vld [vmem:[%s4951] sm:$0x3]
        %v4954 = vsel %vm4630, %v4952, 0
        %4956 = vmatprep.subr.bf16.mxu0 0
        %4957 = vmatpush1.bf16.msra.mxu0 %v4628
        %4958 = vmatprep.subr.bf16.mxu0 0
        %4959 = vmatpush1.bf16.msra.mxu0 0
        %4960 = vmatprep.subr.bf16.mxu0 0
        %4961 = vmatpush1.bf16.msra.mxu0 0
        %4962 = vmatprep.subr.bf16.mxu0 0
        %4963 = vmatpush1.bf16.msra.mxu0 0
        %4964 = vmatprep.subr.bf16.mxu0 0
        %4965 = vmatpush1.bf16.msra.mxu0 0
        %4966 = vmatprep.subr.bf16.mxu0 0
        %4967 = vmatpush1.bf16.msra.mxu0 0
        %4968 = vmatprep.subr.bf16.mxu0 0
        %4969 = vmatpush1.bf16.msra.mxu0 0
        %4970 = vmatprep.subr.bf16.mxu0 0
        %4971 = vmatpush1.bf16.msra.mxu0 0
        %4972 = vmatprep.subr.bf16.mxu0 0
        %4973 = vmatpush1.bf16.msra.mxu0 0
        %4974 = vmatprep.subr.bf16.mxu0 0
        %4975 = vmatpush1.bf16.msra.mxu0 0
        %4976 = vmatprep.subr.bf16.mxu0 0
        %4977 = vmatpush1.bf16.msra.mxu0 0
        %4978 = vmatprep.subr.bf16.mxu0 0
        %4979 = vmatpush1.bf16.msra.mxu0 0
        %4980 = vmatprep.subr.bf16.mxu0 0
        %4981 = vmatpush1.bf16.msra.mxu0 0
        %4982 = vmatprep.subr.bf16.mxu0 0
        %4983 = vmatpush1.bf16.msra.mxu0 0
        %4984 = vmatprep.subr.bf16.mxu0 0
        %4985 = vmatpush1.bf16.msra.mxu0 0
        %4986 = vmatprep.subr.bf16.mxu0 0
        %4987 = vmatpush1.bf16.msra.mxu0 0
        %4988 = vmatprep.mubr.bf16.mxu0 0
        %4989 = vmatmul.mubr.bf16.gmra.mrb[0].mxu0 %v4954
        %v4990 = vpop.f32.mrb[0].mxu0
        %v4991 = vadd.f32 0.0, %v4990
        %v4992 = vpop.f32.mrb[0].mxu0
        %v4993 = vpop.f32.mrb[0].mxu0
        %v4994 = vpop.f32.mrb[0].mxu0
        %4995 = vdwg.mxu0
        %v4996 = vpack.c.bf16 %v4991, %v4991
        %s4997 = scalar_lea.vmem %s7, 16
        %v4998 = vld [vmem:[%s4997] sm:$0x3]
        %v5000 = vsel %vm4630, %v4998, 0
        %5002 = vmatprep.subr.bf16.mxu0 0
        %5003 = vmatpush1.bf16.msra.mxu0 %v4628
        %5004 = vmatprep.subr.bf16.mxu0 0
        %5005 = vmatpush1.bf16.msra.mxu0 0
        %5006 = vmatprep.subr.bf16.mxu0 0
        %5007 = vmatpush1.bf16.msra.mxu0 0
        %5008 = vmatprep.subr.bf16.mxu0 0
        %5009 = vmatpush1.bf16.msra.mxu0 0
        %5010 = vmatprep.subr.bf16.mxu0 0
        %5011 = vmatpush1.bf16.msra.mxu0 0
        %5012 = vmatprep.subr.bf16.mxu0 0
        %5013 = vmatpush1.bf16.msra.mxu0 0
        %5014 = vmatprep.subr.bf16.mxu0 0
        %5015 = vmatpush1.bf16.msra.mxu0 0
        %5016 = vmatprep.subr.bf16.mxu0 0
        %5017 = vmatpush1.bf16.msra.mxu0 0
        %5018 = vmatprep.subr.bf16.mxu0 0
        %5019 = vmatpush1.bf16.msra.mxu0 0
        %5020 = vmatprep.subr.bf16.mxu0 0
        %5021 = vmatpush1.bf16.msra.mxu0 0
        %5022 = vmatprep.subr.bf16.mxu0 0
        %5023 = vmatpush1.bf16.msra.mxu0 0
        %5024 = vmatprep.subr.bf16.mxu0 0
        %5025 = vmatpush1.bf16.msra.mxu0 0
        %5026 = vmatprep.subr.bf16.mxu0 0
        %5027 = vmatpush1.bf16.msra.mxu0 0
        %5028 = vmatprep.subr.bf16.mxu0 0
        %5029 = vmatpush1.bf16.msra.mxu0 0
        %5030 = vmatprep.subr.bf16.mxu0 0
        %5031 = vmatpush1.bf16.msra.mxu0 0
        %5032 = vmatprep.subr.bf16.mxu0 0
        %5033 = vmatpush1.bf16.msra.mxu0 0
        %5034 = vmatprep.mubr.bf16.mxu0 0
        %5035 = vmatmul.mubr.bf16.gmra.mrb[0].mxu0 %v5000
        %v5036 = vpop.f32.mrb[0].mxu0
        %v5037 = vadd.f32 0.0, %v5036
        %v5038 = vpop.f32.mrb[0].mxu0
        %v5039 = vpop.f32.mrb[0].mxu0
        %v5040 = vpop.f32.mrb[0].mxu0
        %5041 = vdwg.mxu0
        %v5042 = vpack.c.bf16 %v5037, %v5037
        %s5043 = scalar_lea.vmem %s3, 1152
        %v5044 = vld [vmem:[%s5043] sm:$0xf]
        %v5045 = vld [vmem:[%s5043 + $0x4] sm:$0xf]
        %v5046 = vld [vmem:[%s5043 + $0x8] sm:$0xf]
        %v5047 = vld [vmem:[%s5043 + $0xc] sm:$0xf]
        %v5048 = vld [vmem:[%s5043 + $0x10] sm:$0xf]
        %v5049 = vld [vmem:[%s5043 + $0x14] sm:$0xf]
        %v5050 = vld [vmem:[%s5043 + $0x18] sm:$0xf]
        %v5051 = vld [vmem:[%s5043 + $0x1c] sm:$0xf]
        %v5052 = vld [vmem:[%s5043 + $0x20] sm:$0xf]
        %v5053 = vld [vmem:[%s5043 + $0x24] sm:$0xf]
        %v5054 = vld [vmem:[%s5043 + $0x28] sm:$0xf]
        %v5055 = vld [vmem:[%s5043 + $0x2c] sm:$0xf]
        %v5056 = vld [vmem:[%s5043 + $0x30] sm:$0xf]
        %v5057 = vld [vmem:[%s5043 + $0x34] sm:$0xf]
        %v5058 = vld [vmem:[%s5043 + $0x38] sm:$0xf]
        %v5059 = vld [vmem:[%s5043 + $0x3c] sm:$0xf]
        %v5060 = vld [vmem:[%s5043 + $0x40] sm:$0xf]
        %v5061 = vld [vmem:[%s5043 + $0x44] sm:$0xf]
        %v5062 = vld [vmem:[%s5043 + $0x48] sm:$0xf]
        %v5063 = vld [vmem:[%s5043 + $0x4c] sm:$0xf]
        %v5064 = vld [vmem:[%s5043 + $0x50] sm:$0xf]
        %v5065 = vld [vmem:[%s5043 + $0x54] sm:$0xf]
        %v5066 = vld [vmem:[%s5043 + $0x58] sm:$0xf]
        %v5067 = vld [vmem:[%s5043 + $0x5c] sm:$0xf]
        %v5068 = vld [vmem:[%s5043 + $0x60] sm:$0xf]
        %v5069 = vld [vmem:[%s5043 + $0x64] sm:$0xf]
        %v5070 = vld [vmem:[%s5043 + $0x68] sm:$0xf]
        %v5071 = vld [vmem:[%s5043 + $0x6c] sm:$0xf]
        %v5072 = vld [vmem:[%s5043 + $0x70] sm:$0xf]
        %v5073 = vld [vmem:[%s5043 + $0x74] sm:$0xf]
        %v5074 = vld [vmem:[%s5043 + $0x78] sm:$0xf]
        %v5075 = vld [vmem:[%s5043 + $0x7c] sm:$0xf]
        %v5076 = vld [vmem:[%s5043 + $0x80] sm:$0xf]
        %v5077 = vld [vmem:[%s5043 + $0x84] sm:$0xf]
        %v5078 = vld [vmem:[%s5043 + $0x88] sm:$0xf]
        %v5079 = vld [vmem:[%s5043 + $0x8c] sm:$0xf]
        %v5080 = vld [vmem:[%s5043 + $0x90] sm:$0xf]
        %v5081 = vld [vmem:[%s5043 + $0x94] sm:$0xf]
        %v5082 = vld [vmem:[%s5043 + $0x98] sm:$0xf]
        %v5083 = vld [vmem:[%s5043 + $0x9c] sm:$0xf]
        %v5084 = vld [vmem:[%s5043 + $0xa0] sm:$0xf]
        %v5085 = vld [vmem:[%s5043 + $0xa4] sm:$0xf]
        %v5086 = vld [vmem:[%s5043 + $0xa8] sm:$0xf]
        %v5087 = vld [vmem:[%s5043 + $0xac] sm:$0xf]
        %v5088 = vld [vmem:[%s5043 + $0xb0] sm:$0xf]
        %v5089 = vld [vmem:[%s5043 + $0xb4] sm:$0xf]
        %v5090 = vld [vmem:[%s5043 + $0xb8] sm:$0xf]
        %v5091 = vld [vmem:[%s5043 + $0xbc] sm:$0xf]
        %v5092 = vld [vmem:[%s5043 + $0xc0] sm:$0xf]
        %v5093 = vld [vmem:[%s5043 + $0xc4] sm:$0xf]
        %v5094 = vld [vmem:[%s5043 + $0xc8] sm:$0xf]
        %v5095 = vld [vmem:[%s5043 + $0xcc] sm:$0xf]
        %v5096 = vld [vmem:[%s5043 + $0xd0] sm:$0xf]
        %v5097 = vld [vmem:[%s5043 + $0xd4] sm:$0xf]
        %v5098 = vld [vmem:[%s5043 + $0xd8] sm:$0xf]
        %v5099 = vld [vmem:[%s5043 + $0xdc] sm:$0xf]
        %v5100 = vld [vmem:[%s5043 + $0xe0] sm:$0xf]
        %v5101 = vld [vmem:[%s5043 + $0xe4] sm:$0xf]
        %v5102 = vld [vmem:[%s5043 + $0xe8] sm:$0xf]
        %v5103 = vld [vmem:[%s5043 + $0xec] sm:$0xf]
        %v5104 = vld [vmem:[%s5043 + $0xf0] sm:$0xf]
        %v5105 = vld [vmem:[%s5043 + $0xf4] sm:$0xf]
        %v5106 = vld [vmem:[%s5043 + $0xf8] sm:$0xf]
        %v5107 = vld [vmem:[%s5043 + $0xfc] sm:$0xf]
        %v5108 = vld [vmem:[%s5043 + $0x100] sm:$0xf]
        %v5109 = vld [vmem:[%s5043 + $0x104] sm:$0xf]
        %v5110 = vld [vmem:[%s5043 + $0x108] sm:$0xf]
        %v5111 = vld [vmem:[%s5043 + $0x10c] sm:$0xf]
        %v5112 = vld [vmem:[%s5043 + $0x110] sm:$0xf]
        %v5113 = vld [vmem:[%s5043 + $0x114] sm:$0xf]
        %v5114 = vld [vmem:[%s5043 + $0x118] sm:$0xf]
        %v5115 = vld [vmem:[%s5043 + $0x11c] sm:$0xf]
        %v5116 = vld [vmem:[%s5043 + $0x120] sm:$0xf]
        %v5117 = vld [vmem:[%s5043 + $0x124] sm:$0xf]
        %v5118 = vld [vmem:[%s5043 + $0x128] sm:$0xf]
        %v5119 = vld [vmem:[%s5043 + $0x12c] sm:$0xf]
        %v5120 = vld [vmem:[%s5043 + $0x130] sm:$0xf]
        %v5121 = vld [vmem:[%s5043 + $0x134] sm:$0xf]
        %v5122 = vld [vmem:[%s5043 + $0x138] sm:$0xf]
        %v5123 = vld [vmem:[%s5043 + $0x13c] sm:$0xf]
        %v5124 = vld [vmem:[%s5043 + $0x140] sm:$0xf]
        %v5125 = vld [vmem:[%s5043 + $0x144] sm:$0xf]
        %v5126 = vld [vmem:[%s5043 + $0x148] sm:$0xf]
        %v5127 = vld [vmem:[%s5043 + $0x14c] sm:$0xf]
        %v5128 = vld [vmem:[%s5043 + $0x150] sm:$0xf]
        %v5129 = vld [vmem:[%s5043 + $0x154] sm:$0xf]
        %v5130 = vld [vmem:[%s5043 + $0x158] sm:$0xf]
        %v5131 = vld [vmem:[%s5043 + $0x15c] sm:$0xf]
        %v5132 = vld [vmem:[%s5043 + $0x160] sm:$0xf]
        %v5133 = vld [vmem:[%s5043 + $0x164] sm:$0xf]
        %v5134 = vld [vmem:[%s5043 + $0x168] sm:$0xf]
        %v5135 = vld [vmem:[%s5043 + $0x16c] sm:$0xf]
        %v5136 = vld [vmem:[%s5043 + $0x170] sm:$0xf]
        %v5137 = vld [vmem:[%s5043 + $0x174] sm:$0xf]
        %v5138 = vld [vmem:[%s5043 + $0x178] sm:$0xf]
        %v5139 = vld [vmem:[%s5043 + $0x17c] sm:$0xf]
        %v5140 = vld [vmem:[%s5043 + $0x180] sm:$0xf]
        %v5141 = vld [vmem:[%s5043 + $0x184] sm:$0xf]
        %v5142 = vld [vmem:[%s5043 + $0x188] sm:$0xf]
        %v5143 = vld [vmem:[%s5043 + $0x18c] sm:$0xf]
        %v5144 = vld [vmem:[%s5043 + $0x190] sm:$0xf]
        %v5145 = vld [vmem:[%s5043 + $0x194] sm:$0xf]
        %v5146 = vld [vmem:[%s5043 + $0x198] sm:$0xf]
        %v5147 = vld [vmem:[%s5043 + $0x19c] sm:$0xf]
        %v5148 = vld [vmem:[%s5043 + $0x1a0] sm:$0xf]
        %v5149 = vld [vmem:[%s5043 + $0x1a4] sm:$0xf]
        %v5150 = vld [vmem:[%s5043 + $0x1a8] sm:$0xf]
        %v5151 = vld [vmem:[%s5043 + $0x1ac] sm:$0xf]
        %v5152 = vld [vmem:[%s5043 + $0x1b0] sm:$0xf]
        %v5153 = vld [vmem:[%s5043 + $0x1b4] sm:$0xf]
        %v5154 = vld [vmem:[%s5043 + $0x1b8] sm:$0xf]
        %v5155 = vld [vmem:[%s5043 + $0x1bc] sm:$0xf]
        %v5156 = vld [vmem:[%s5043 + $0x1c0] sm:$0xf]
        %v5157 = vld [vmem:[%s5043 + $0x1c4] sm:$0xf]
        %v5158 = vld [vmem:[%s5043 + $0x1c8] sm:$0xf]
        %v5159 = vld [vmem:[%s5043 + $0x1cc] sm:$0xf]
        %v5160 = vld [vmem:[%s5043 + $0x1d0] sm:$0xf]
        %v5161 = vld [vmem:[%s5043 + $0x1d4] sm:$0xf]
        %v5162 = vld [vmem:[%s5043 + $0x1d8] sm:$0xf]
        %v5163 = vld [vmem:[%s5043 + $0x1dc] sm:$0xf]
        %v5164 = vld [vmem:[%s5043 + $0x1e0] sm:$0xf]
        %v5165 = vld [vmem:[%s5043 + $0x1e4] sm:$0xf]
        %v5166 = vld [vmem:[%s5043 + $0x1e8] sm:$0xf]
        %v5167 = vld [vmem:[%s5043 + $0x1ec] sm:$0xf]
        %v5168 = vld [vmem:[%s5043 + $0x1f0] sm:$0xf]
        %v5169 = vld [vmem:[%s5043 + $0x1f4] sm:$0xf]
        %v5170 = vld [vmem:[%s5043 + $0x1f8] sm:$0xf]
        %v5171 = vld [vmem:[%s5043 + $0x1fc] sm:$0xf]
        %v5172 = vld [vmem:[%s5043 + $0x200] sm:$0xf]
        %v5173 = vld [vmem:[%s5043 + $0x204] sm:$0xf]
        %v5174 = vld [vmem:[%s5043 + $0x208] sm:$0xf]
        %v5175 = vld [vmem:[%s5043 + $0x20c] sm:$0xf]
        %v5176 = vld [vmem:[%s5043 + $0x210] sm:$0xf]
        %v5177 = vld [vmem:[%s5043 + $0x214] sm:$0xf]
        %v5178 = vld [vmem:[%s5043 + $0x218] sm:$0xf]
        %v5179 = vld [vmem:[%s5043 + $0x21c] sm:$0xf]
        %v5180 = vld [vmem:[%s5043 + $0x220] sm:$0xf]
        %v5181 = vld [vmem:[%s5043 + $0x224] sm:$0xf]
        %v5182 = vld [vmem:[%s5043 + $0x228] sm:$0xf]
        %v5183 = vld [vmem:[%s5043 + $0x22c] sm:$0xf]
        %v5184 = vld [vmem:[%s5043 + $0x230] sm:$0xf]
        %v5185 = vld [vmem:[%s5043 + $0x234] sm:$0xf]
        %v5186 = vld [vmem:[%s5043 + $0x238] sm:$0xf]
        %v5187 = vld [vmem:[%s5043 + $0x23c] sm:$0xf]
        %s5188 = scalar_lea.vmem %s4, 2
        %v5189 = vld [vmem:[%s5188] sm:$0x1]
        %v5191 = vlaneseq
        %v5192 = vshrl.u32 %v5191, 7
        %v5193 = vsub.s32 0, %v5192
        %v5194 = vrot.slane %v5189, %v5193
        %v5340 = vunpack.c.l.b16 %v5044
        %v5341 = vunpack.c.l.b16 %v5045
        %v5342 = vunpack.c.l.b16 %v5046
        %v5343 = vunpack.c.l.b16 %v5047
        %v5344 = vunpack.c.l.b16 %v5048
        %v5345 = vunpack.c.l.b16 %v5049
        %v5346 = vunpack.c.l.b16 %v5050
        %v5347 = vunpack.c.l.b16 %v5051
        %v5348 = vunpack.c.l.b16 %v5052
        %v5349 = vunpack.c.l.b16 %v5053
        %v5350 = vunpack.c.l.b16 %v5054
        %v5351 = vunpack.c.l.b16 %v5055
        %v5352 = vunpack.c.l.b16 %v5056
        %v5353 = vunpack.c.l.b16 %v5057
        %v5354 = vunpack.c.l.b16 %v5058
        %v5355 = vunpack.c.l.b16 %v5059
        %v5356 = vunpack.c.l.b16 %v5060
        %v5357 = vunpack.c.l.b16 %v5061
        %v5358 = vunpack.c.l.b16 %v5062
        %v5359 = vunpack.c.l.b16 %v5063
        %v5360 = vunpack.c.l.b16 %v5064
        %v5361 = vunpack.c.l.b16 %v5065
        %v5362 = vunpack.c.l.b16 %v5066
        %v5363 = vunpack.c.l.b16 %v5067
        %v5364 = vunpack.c.l.b16 %v5068
        %v5365 = vunpack.c.l.b16 %v5069
        %v5366 = vunpack.c.l.b16 %v5070
        %v5367 = vunpack.c.l.b16 %v5071
        %v5368 = vunpack.c.l.b16 %v5072
        %v5369 = vunpack.c.l.b16 %v5073
        %v5370 = vunpack.c.l.b16 %v5074
        %v5371 = vunpack.c.l.b16 %v5075
        %v5372 = vunpack.c.l.b16 %v5076
        %v5373 = vunpack.c.l.b16 %v5077
        %v5374 = vunpack.c.l.b16 %v5078
        %v5375 = vunpack.c.l.b16 %v5079
        %v5376 = vunpack.c.l.b16 %v5080
        %v5377 = vunpack.c.l.b16 %v5081
        %v5378 = vunpack.c.l.b16 %v5082
        %v5379 = vunpack.c.l.b16 %v5083
        %v5380 = vunpack.c.l.b16 %v5084
        %v5381 = vunpack.c.l.b16 %v5085
        %v5382 = vunpack.c.l.b16 %v5086
        %v5383 = vunpack.c.l.b16 %v5087
        %v5384 = vunpack.c.l.b16 %v5088
        %v5385 = vunpack.c.l.b16 %v5089
        %v5386 = vunpack.c.l.b16 %v5090
        %v5387 = vunpack.c.l.b16 %v5091
        %v5388 = vunpack.c.l.b16 %v5092
        %v5389 = vunpack.c.l.b16 %v5093
        %v5390 = vunpack.c.l.b16 %v5094
        %v5391 = vunpack.c.l.b16 %v5095
        %v5392 = vunpack.c.l.b16 %v5096
        %v5393 = vunpack.c.l.b16 %v5097
        %v5394 = vunpack.c.l.b16 %v5098
        %v5395 = vunpack.c.l.b16 %v5099
        %v5396 = vunpack.c.l.b16 %v5100
        %v5397 = vunpack.c.l.b16 %v5101
        %v5398 = vunpack.c.l.b16 %v5102
        %v5399 = vunpack.c.l.b16 %v5103
        %v5400 = vunpack.c.l.b16 %v5104
        %v5401 = vunpack.c.l.b16 %v5105
        %v5402 = vunpack.c.l.b16 %v5106
        %v5403 = vunpack.c.l.b16 %v5107
        %v5404 = vunpack.c.l.b16 %v5108
        %v5405 = vunpack.c.l.b16 %v5109
        %v5406 = vunpack.c.l.b16 %v5110
        %v5407 = vunpack.c.l.b16 %v5111
        %v5408 = vunpack.c.l.b16 %v5112
        %v5409 = vunpack.c.l.b16 %v5113
        %v5410 = vunpack.c.l.b16 %v5114
        %v5411 = vunpack.c.l.b16 %v5115
        %v5412 = vunpack.c.l.b16 %v5116
        %v5413 = vunpack.c.l.b16 %v5117
        %v5414 = vunpack.c.l.b16 %v5118
        %v5415 = vunpack.c.l.b16 %v5119
        %v5416 = vunpack.c.l.b16 %v5120
        %v5417 = vunpack.c.l.b16 %v5121
        %v5418 = vunpack.c.l.b16 %v5122
        %v5419 = vunpack.c.l.b16 %v5123
        %v5420 = vunpack.c.l.b16 %v5124
        %v5421 = vunpack.c.l.b16 %v5125
        %v5422 = vunpack.c.l.b16 %v5126
        %v5423 = vunpack.c.l.b16 %v5127
        %v5424 = vunpack.c.l.b16 %v5128
        %v5425 = vunpack.c.l.b16 %v5129
        %v5426 = vunpack.c.l.b16 %v5130
        %v5427 = vunpack.c.l.b16 %v5131
        %v5428 = vunpack.c.l.b16 %v5132
        %v5429 = vunpack.c.l.b16 %v5133
        %v5430 = vunpack.c.l.b16 %v5134
        %v5431 = vunpack.c.l.b16 %v5135
        %v5432 = vunpack.c.l.b16 %v5136
        %v5433 = vunpack.c.l.b16 %v5137
        %v5434 = vunpack.c.l.b16 %v5138
        %v5435 = vunpack.c.l.b16 %v5139
        %v5436 = vunpack.c.l.b16 %v5140
        %v5437 = vunpack.c.l.b16 %v5141
        %v5438 = vunpack.c.l.b16 %v5142
        %v5439 = vunpack.c.l.b16 %v5143
        %v5440 = vunpack.c.l.b16 %v5144
        %v5441 = vunpack.c.l.b16 %v5145
        %v5442 = vunpack.c.l.b16 %v5146
        %v5443 = vunpack.c.l.b16 %v5147
        %v5444 = vunpack.c.l.b16 %v5148
        %v5445 = vunpack.c.l.b16 %v5149
        %v5446 = vunpack.c.l.b16 %v5150
        %v5447 = vunpack.c.l.b16 %v5151
        %v5448 = vunpack.c.l.b16 %v5152
        %v5449 = vunpack.c.l.b16 %v5153
        %v5450 = vunpack.c.l.b16 %v5154
        %v5451 = vunpack.c.l.b16 %v5155
        %v5452 = vunpack.c.l.b16 %v5156
        %v5453 = vunpack.c.l.b16 %v5157
        %v5454 = vunpack.c.l.b16 %v5158
        %v5455 = vunpack.c.l.b16 %v5159
        %v5456 = vunpack.c.l.b16 %v5160
        %v5457 = vunpack.c.l.b16 %v5161
        %v5458 = vunpack.c.l.b16 %v5162
        %v5459 = vunpack.c.l.b16 %v5163
        %v5460 = vunpack.c.l.b16 %v5164
        %v5461 = vunpack.c.l.b16 %v5165
        %v5462 = vunpack.c.l.b16 %v5166
        %v5463 = vunpack.c.l.b16 %v5167
        %v5464 = vunpack.c.l.b16 %v5168
        %v5465 = vunpack.c.l.b16 %v5169
        %v5466 = vunpack.c.l.b16 %v5170
        %v5467 = vunpack.c.l.b16 %v5171
        %v5468 = vunpack.c.l.b16 %v5172
        %v5469 = vunpack.c.l.b16 %v5173
        %v5470 = vunpack.c.l.b16 %v5174
        %v5471 = vunpack.c.l.b16 %v5175
        %v5472 = vunpack.c.l.b16 %v5176
        %v5473 = vunpack.c.l.b16 %v5177
        %v5474 = vunpack.c.l.b16 %v5178
        %v5475 = vunpack.c.l.b16 %v5179
        %v5476 = vunpack.c.l.b16 %v5180
        %v5477 = vunpack.c.l.b16 %v5181
        %v5478 = vunpack.c.l.b16 %v5182
        %v5479 = vunpack.c.l.b16 %v5183
        %v5480 = vunpack.c.l.b16 %v5184
        %v5481 = vunpack.c.l.b16 %v5185
        %v5482 = vunpack.c.l.b16 %v5186
        %v5483 = vunpack.c.l.b16 %v5187
        %v5484 = vpack.c.b16 %v5341, %v5340
        %v5485 = vpack.c.b16 %v5343, %v5342
        %v5486 = vpack.c.b16 %v5345, %v5344
        %v5487 = vpack.c.b16 %v5347, %v5346
        %v5488 = vpack.c.b16 %v5349, %v5348
        %v5489 = vpack.c.b16 %v5351, %v5350
        %v5490 = vpack.c.b16 %v5353, %v5352
        %v5491 = vpack.c.b16 %v5355, %v5354
        %v5492 = vpack.c.b16 %v5357, %v5356
        %v5493 = vpack.c.b16 %v5359, %v5358
        %v5494 = vpack.c.b16 %v5361, %v5360
        %v5495 = vpack.c.b16 %v5363, %v5362
        %v5496 = vpack.c.b16 %v5365, %v5364
        %v5497 = vpack.c.b16 %v5367, %v5366
        %v5498 = vpack.c.b16 %v5369, %v5368
        %v5499 = vpack.c.b16 %v5371, %v5370
        %v5500 = vpack.c.b16 %v5373, %v5372
        %v5501 = vpack.c.b16 %v5375, %v5374
        %v5502 = vpack.c.b16 %v5377, %v5376
        %v5503 = vpack.c.b16 %v5379, %v5378
        %v5504 = vpack.c.b16 %v5381, %v5380
        %v5505 = vpack.c.b16 %v5383, %v5382
        %v5506 = vpack.c.b16 %v5385, %v5384
        %v5507 = vpack.c.b16 %v5387, %v5386
        %v5508 = vpack.c.b16 %v5389, %v5388
        %v5509 = vpack.c.b16 %v5391, %v5390
        %v5510 = vpack.c.b16 %v5393, %v5392
        %v5511 = vpack.c.b16 %v5395, %v5394
        %v5512 = vpack.c.b16 %v5397, %v5396
        %v5513 = vpack.c.b16 %v5399, %v5398
        %v5514 = vpack.c.b16 %v5401, %v5400
        %v5515 = vpack.c.b16 %v5403, %v5402
        %v5516 = vpack.c.b16 %v5405, %v5404
        %v5517 = vpack.c.b16 %v5407, %v5406
        %v5518 = vpack.c.b16 %v5409, %v5408
        %v5519 = vpack.c.b16 %v5411, %v5410
        %v5520 = vpack.c.b16 %v5413, %v5412
        %v5521 = vpack.c.b16 %v5415, %v5414
        %v5522 = vpack.c.b16 %v5417, %v5416
        %v5523 = vpack.c.b16 %v5419, %v5418
        %v5524 = vpack.c.b16 %v5421, %v5420
        %v5525 = vpack.c.b16 %v5423, %v5422
        %v5526 = vpack.c.b16 %v5425, %v5424
        %v5527 = vpack.c.b16 %v5427, %v5426
        %v5528 = vpack.c.b16 %v5429, %v5428
        %v5529 = vpack.c.b16 %v5431, %v5430
        %v5530 = vpack.c.b16 %v5433, %v5432
        %v5531 = vpack.c.b16 %v5435, %v5434
        %v5532 = vpack.c.b16 %v5437, %v5436
        %v5533 = vpack.c.b16 %v5439, %v5438
        %v5534 = vpack.c.b16 %v5441, %v5440
        %v5535 = vpack.c.b16 %v5443, %v5442
        %v5536 = vpack.c.b16 %v5445, %v5444
        %v5537 = vpack.c.b16 %v5447, %v5446
        %v5538 = vpack.c.b16 %v5449, %v5448
        %v5539 = vpack.c.b16 %v5451, %v5450
        %v5540 = vpack.c.b16 %v5453, %v5452
        %v5541 = vpack.c.b16 %v5455, %v5454
        %v5542 = vpack.c.b16 %v5457, %v5456
        %v5543 = vpack.c.b16 %v5459, %v5458
        %v5544 = vpack.c.b16 %v5461, %v5460
        %v5545 = vpack.c.b16 %v5463, %v5462
        %v5546 = vpack.c.b16 %v5465, %v5464
        %v5547 = vpack.c.b16 %v5467, %v5466
        %v5548 = vpack.c.b16 %v5469, %v5468
        %v5549 = vpack.c.b16 %v5471, %v5470
        %v5550 = vpack.c.b16 %v5473, %v5472
        %v5551 = vpack.c.b16 %v5475, %v5474
        %v5552 = vpack.c.b16 %v5477, %v5476
        %v5553 = vpack.c.b16 %v5479, %v5478
        %v5554 = vpack.c.b16 %v5481, %v5480
        %v5555 = vpack.c.b16 %v5483, %v5482
        %5628 = vmatprep.subr.bf16.mxu0 0
        %5629 = vmatpush1.bf16.msra.mxu0 %v5484
        %5630 = vmatprep.subr.bf16.mxu0 0
        %5631 = vmatpush1.bf16.msra.mxu0 %v5485
        %5632 = vmatprep.subr.bf16.mxu0 0
        %5633 = vmatpush1.bf16.msra.mxu0 %v5486
        %5634 = vmatprep.subr.bf16.mxu0 0
        %5635 = vmatpush1.bf16.msra.mxu0 %v5487
        %5636 = vmatprep.subr.bf16.mxu0 0
        %5637 = vmatpush1.bf16.msra.mxu0 %v5488
        %5638 = vmatprep.subr.bf16.mxu0 0
        %5639 = vmatpush1.bf16.msra.mxu0 %v5489
        %5640 = vmatprep.subr.bf16.mxu0 0
        %5641 = vmatpush1.bf16.msra.mxu0 %v5490
        %5642 = vmatprep.subr.bf16.mxu0 0
        %5643 = vmatpush1.bf16.msra.mxu0 %v5491
        %5644 = vmatprep.subr.bf16.mxu0 0
        %5645 = vmatpush1.bf16.msra.mxu0 %v5492
        %5646 = vmatprep.subr.bf16.mxu0 0
        %5647 = vmatpush1.bf16.msra.mxu0 %v5493
        %5648 = vmatprep.subr.bf16.mxu0 0
        %5649 = vmatpush1.bf16.msra.mxu0 %v5494
        %5650 = vmatprep.subr.bf16.mxu0 0
        %5651 = vmatpush1.bf16.msra.mxu0 %v5495
        %5652 = vmatprep.subr.bf16.mxu0 0
        %5653 = vmatpush1.bf16.msra.mxu0 %v5496
        %5654 = vmatprep.subr.bf16.mxu0 0
        %5655 = vmatpush1.bf16.msra.mxu0 %v5497
        %5656 = vmatprep.subr.bf16.mxu0 0
        %5657 = vmatpush1.bf16.msra.mxu0 %v5498
        %5658 = vmatprep.subr.bf16.mxu0 0
        %5659 = vmatpush1.bf16.msra.mxu0 %v5499
        %5660 = vmatprep.mubr.bf16.mxu0 %v4720
        %5661 = vmatmul.mubr.bf16.gmra.mrb[0].mxu0 %v4674
        %v5662 = vpop.f32.mrb[0].mxu0
        %v5663 = vadd.f32 %v5194, %v5662
        %v5664 = vpop.f32.mrb[0].mxu0
        %v5665 = vpop.f32.mrb[0].mxu0
        %v5666 = vpop.f32.mrb[0].mxu0
        %5667 = vdwg.mxu0
        %5668 = vmatprep.subr.bf16.mxu0 0
        %5669 = vmatpush1.bf16.msra.mxu0 %v5500
        %5670 = vmatprep.subr.bf16.mxu0 0
        %5671 = vmatpush1.bf16.msra.mxu0 %v5501
        %5672 = vmatprep.subr.bf16.mxu0 0
        %5673 = vmatpush1.bf16.msra.mxu0 %v5502
        %5674 = vmatprep.subr.bf16.mxu0 0
        %5675 = vmatpush1.bf16.msra.mxu0 %v5503
        %5676 = vmatprep.subr.bf16.mxu0 0
        %5677 = vmatpush1.bf16.msra.mxu0 %v5504
        %5678 = vmatprep.subr.bf16.mxu0 0
        %5679 = vmatpush1.bf16.msra.mxu0 %v5505
        %5680 = vmatprep.subr.bf16.mxu0 0
        %5681 = vmatpush1.bf16.msra.mxu0 %v5506
        %5682 = vmatprep.subr.bf16.mxu0 0
        %5683 = vmatpush1.bf16.msra.mxu0 %v5507
        %5684 = vmatprep.subr.bf16.mxu0 0
        %5685 = vmatpush1.bf16.msra.mxu0 %v5508
        %5686 = vmatprep.subr.bf16.mxu0 0
        %5687 = vmatpush1.bf16.msra.mxu0 %v5509
        %5688 = vmatprep.subr.bf16.mxu0 0
        %5689 = vmatpush1.bf16.msra.mxu0 %v5510
        %5690 = vmatprep.subr.bf16.mxu0 0
        %5691 = vmatpush1.bf16.msra.mxu0 %v5511
        %5692 = vmatprep.subr.bf16.mxu0 0
        %5693 = vmatpush1.bf16.msra.mxu0 %v5512
        %5694 = vmatprep.subr.bf16.mxu0 0
        %5695 = vmatpush1.bf16.msra.mxu0 %v5513
        %5696 = vmatprep.subr.bf16.mxu0 0
        %5697 = vmatpush1.bf16.msra.mxu0 %v5514
        %5698 = vmatprep.subr.bf16.mxu0 0
        %5699 = vmatpush1.bf16.msra.mxu0 %v5515
        %5700 = vmatprep.mubr.bf16.mxu0 %v4812
        %5701 = vmatmul.mubr.bf16.gmra.mrb[0].mxu0 %v4766
        %v5702 = vpop.f32.mrb[0].mxu0
        %v5703 = vadd.f32 %v5663, %v5702
        %v5704 = vpop.f32.mrb[0].mxu0
        %v5705 = vpop.f32.mrb[0].mxu0
        %v5706 = vpop.f32.mrb[0].mxu0
        %5707 = vdwg.mxu0
        %5708 = vmatprep.subr.bf16.mxu0 0
        %5709 = vmatpush1.bf16.msra.mxu0 %v5516
        %5710 = vmatprep.subr.bf16.mxu0 0
        %5711 = vmatpush1.bf16.msra.mxu0 %v5517
        %5712 = vmatprep.subr.bf16.mxu0 0
        %5713 = vmatpush1.bf16.msra.mxu0 %v5518
        %5714 = vmatprep.subr.bf16.mxu0 0
        %5715 = vmatpush1.bf16.msra.mxu0 %v5519
        %5716 = vmatprep.subr.bf16.mxu0 0
        %5717 = vmatpush1.bf16.msra.mxu0 %v5520
        %5718 = vmatprep.subr.bf16.mxu0 0
        %5719 = vmatpush1.bf16.msra.mxu0 %v5521
        %5720 = vmatprep.subr.bf16.mxu0 0
        %5721 = vmatpush1.bf16.msra.mxu0 %v5522
        %5722 = vmatprep.subr.bf16.mxu0 0
        %5723 = vmatpush1.bf16.msra.mxu0 %v5523
        %5724 = vmatprep.subr.bf16.mxu0 0
        %5725 = vmatpush1.bf16.msra.mxu0 %v5524
        %5726 = vmatprep.subr.bf16.mxu0 0
        %5727 = vmatpush1.bf16.msra.mxu0 %v5525
        %5728 = vmatprep.subr.bf16.mxu0 0
        %5729 = vmatpush1.bf16.msra.mxu0 %v5526
        %5730 = vmatprep.subr.bf16.mxu0 0
        %5731 = vmatpush1.bf16.msra.mxu0 %v5527
        %5732 = vmatprep.subr.bf16.mxu0 0
        %5733 = vmatpush1.bf16.msra.mxu0 %v5528
        %5734 = vmatprep.subr.bf16.mxu0 0
        %5735 = vmatpush1.bf16.msra.mxu0 %v5529
        %5736 = vmatprep.subr.bf16.mxu0 0
        %5737 = vmatpush1.bf16.msra.mxu0 %v5530
        %5738 = vmatprep.subr.bf16.mxu0 0
        %5739 = vmatpush1.bf16.msra.mxu0 %v5531
        %5740 = vmatprep.mubr.bf16.mxu0 %v4904
        %5741 = vmatmul.mubr.bf16.gmra.mrb[0].mxu0 %v4858
        %v5742 = vpop.f32.mrb[0].mxu0
        %v5743 = vadd.f32 %v5703, %v5742
        %v5744 = vpop.f32.mrb[0].mxu0
        %v5745 = vpop.f32.mrb[0].mxu0
        %v5746 = vpop.f32.mrb[0].mxu0
        %5747 = vdwg.mxu0
        %5748 = vmatprep.subr.bf16.mxu0 0
        %5749 = vmatpush1.bf16.msra.mxu0 %v5532
        %5750 = vmatprep.subr.bf16.mxu0 0
        %5751 = vmatpush1.bf16.msra.mxu0 %v5533
        %5752 = vmatprep.subr.bf16.mxu0 0
        %5753 = vmatpush1.bf16.msra.mxu0 %v5534
        %5754 = vmatprep.subr.bf16.mxu0 0
        %5755 = vmatpush1.bf16.msra.mxu0 %v5535
        %5756 = vmatprep.subr.bf16.mxu0 0
        %5757 = vmatpush1.bf16.msra.mxu0 %v5536
        %5758 = vmatprep.subr.bf16.mxu0 0
        %5759 = vmatpush1.bf16.msra.mxu0 %v5537
        %5760 = vmatprep.subr.bf16.mxu0 0
        %5761 = vmatpush1.bf16.msra.mxu0 %v5538
        %5762 = vmatprep.subr.bf16.mxu0 0
        %5763 = vmatpush1.bf16.msra.mxu0 %v5539
        %5764 = vmatprep.subr.bf16.mxu0 0
        %5765 = vmatpush1.bf16.msra.mxu0 %v5540
        %5766 = vmatprep.subr.bf16.mxu0 0
        %5767 = vmatpush1.bf16.msra.mxu0 %v5541
        %5768 = vmatprep.subr.bf16.mxu0 0
        %5769 = vmatpush1.bf16.msra.mxu0 %v5542
        %5770 = vmatprep.subr.bf16.mxu0 0
        %5771 = vmatpush1.bf16.msra.mxu0 %v5543
        %5772 = vmatprep.subr.bf16.mxu0 0
        %5773 = vmatpush1.bf16.msra.mxu0 %v5544
        %5774 = vmatprep.subr.bf16.mxu0 0
        %5775 = vmatpush1.bf16.msra.mxu0 %v5545
        %5776 = vmatprep.subr.bf16.mxu0 0
        %5777 = vmatpush1.bf16.msra.mxu0 %v5546
        %5778 = vmatprep.subr.bf16.mxu0 0
        %5779 = vmatpush1.bf16.msra.mxu0 %v5547
        %5780 = vmatprep.mubr.bf16.mxu0 %v4996
        %5781 = vmatmul.mubr.bf16.gmra.mrb[0].mxu0 %v4950
        %v5782 = vpop.f32.mrb[0].mxu0
        %v5783 = vadd.f32 %v5743, %v5782
        %v5784 = vpop.f32.mrb[0].mxu0
        %v5785 = vpop.f32.mrb[0].mxu0
        %v5786 = vpop.f32.mrb[0].mxu0
        %5787 = vdwg.mxu0
        %5788 = vmatprep.subr.bf16.mxu0 0
        %5789 = vmatpush1.bf16.msra.mxu0 %v5548
        %5790 = vmatprep.subr.bf16.mxu0 0
        %5791 = vmatpush1.bf16.msra.mxu0 %v5549
        %5792 = vmatprep.subr.bf16.mxu0 0
        %5793 = vmatpush1.bf16.msra.mxu0 %v5550
        %5794 = vmatprep.subr.bf16.mxu0 0
        %5795 = vmatpush1.bf16.msra.mxu0 %v5551
        %5796 = vmatprep.subr.bf16.mxu0 0
        %5797 = vmatpush1.bf16.msra.mxu0 %v5552
        %5798 = vmatprep.subr.bf16.mxu0 0
        %5799 = vmatpush1.bf16.msra.mxu0 %v5553
        %5800 = vmatprep.subr.bf16.mxu0 0
        %5801 = vmatpush1.bf16.msra.mxu0 %v5554
        %5802 = vmatprep.subr.bf16.mxu0 0
        %5803 = vmatpush1.bf16.msra.mxu0 %v5555
        %5804 = vmatprep.subr.bf16.mxu0 0
        %5805 = vmatpush1.bf16.msra.mxu0 0
        %5806 = vmatprep.subr.bf16.mxu0 0
        %5807 = vmatpush1.bf16.msra.mxu0 0
        %5808 = vmatprep.subr.bf16.mxu0 0
        %5809 = vmatpush1.bf16.msra.mxu0 0
        %5810 = vmatprep.subr.bf16.mxu0 0
        %5811 = vmatpush1.bf16.msra.mxu0 0
        %5812 = vmatprep.subr.bf16.mxu0 0
        %5813 = vmatpush1.bf16.msra.mxu0 0
        %5814 = vmatprep.subr.bf16.mxu0 0
        %5815 = vmatpush1.bf16.msra.mxu0 0
        %5816 = vmatprep.subr.bf16.mxu0 0
        %5817 = vmatpush1.bf16.msra.mxu0 0
        %5818 = vmatprep.subr.bf16.mxu0 0
        %5819 = vmatpush1.bf16.msra.mxu0 0
        %5820 = vmatprep.mubr.bf16.mxu0 0
        %5821 = vmatmul.mubr.bf16.gmra.mrb[0].mxu0 %v5042
        %v5822 = vpop.f32.mrb[0].mxu0
        %v5823 = vadd.f32 %v5783, %v5822
        %v5824 = vpop.f32.mrb[0].mxu0
        %v5825 = vpop.f32.mrb[0].mxu0
        %v5826 = vpop.f32.mrb[0].mxu0
        %5827 = vdwg.mxu0
        %v5828 = vmax.f32 %v5823, 0.0
        %vm5829 = vcmask 1043456
        %v5830 = vsel %vm5829, %v5828, 0.0
        %v5831 = vrot.slane %v5830, 4
        %v5832 = vadd.f32 %v5830, %v5831
        %v5833 = vrot.slane %v5832, 2
        %v5834 = vadd.f32 %v5832, %v5833
        %v5835 = vrot.slane %v5834, 1
        %v5836 = vadd.f32 %v5834, %v5835
        %v5837 = vpack.c.bf16 %v5836, %v5836
        %s5838 = scalar_lea.vmem %s8, 192
        %v5839 = vld [vmem:[%s5838] sm:$0xf]
        %v5840 = vld [vmem:[%s5838 + $0x4] sm:$0xf]
        %v5841 = vld [vmem:[%s5838 + $0x8] sm:$0xf]
        %v5842 = vld [vmem:[%s5838 + $0xc] sm:$0xf]
        %v5843 = vld [vmem:[%s5838 + $0x10] sm:$0xf]
        %v5844 = vld [vmem:[%s5838 + $0x14] sm:$0xf]
        %v5845 = vld [vmem:[%s5838 + $0x18] sm:$0xf]
        %v5846 = vld [vmem:[%s5838 + $0x1c] sm:$0xf]
        %v5847 = vld [vmem:[%s5838 + $0x20] sm:$0xf]
        %v5848 = vld [vmem:[%s5838 + $0x24] sm:$0xf]
        %v5849 = vld [vmem:[%s5838 + $0x28] sm:$0xf]
        %v5850 = vld [vmem:[%s5838 + $0x2c] sm:$0xf]
        %v5851 = vld [vmem:[%s5838 + $0x30] sm:$0xf]
        %v5852 = vld [vmem:[%s5838 + $0x34] sm:$0xf]
        %v5853 = vld [vmem:[%s5838 + $0x38] sm:$0xf]
        %v5854 = vld [vmem:[%s5838 + $0x3c] sm:$0xf]
        %s5855 = scalar_lea.vmem %s9, 3
        %v5856 = vld [vmem:[%s5855] sm:$0x1]
        %v5873 = vunpack.c.l.b16 %v5839
        %v5874 = vunpack.c.l.b16 %v5840
        %v5875 = vunpack.c.l.b16 %v5841
        %v5876 = vunpack.c.l.b16 %v5842
        %v5877 = vunpack.c.l.b16 %v5843
        %v5878 = vunpack.c.l.b16 %v5844
        %v5879 = vunpack.c.l.b16 %v5845
        %v5880 = vunpack.c.l.b16 %v5846
        %v5881 = vunpack.c.l.b16 %v5847
        %v5882 = vunpack.c.l.b16 %v5848
        %v5883 = vunpack.c.l.b16 %v5849
        %v5884 = vunpack.c.l.b16 %v5850
        %v5885 = vunpack.c.l.b16 %v5851
        %v5886 = vunpack.c.l.b16 %v5852
        %v5887 = vunpack.c.l.b16 %v5853
        %v5888 = vunpack.c.l.b16 %v5854
        %v5889 = vpack.c.b16 %v5874, %v5873
        %v5890 = vpack.c.b16 %v5876, %v5875
        %v5891 = vpack.c.b16 %v5878, %v5877
        %v5892 = vpack.c.b16 %v5880, %v5879
        %v5893 = vpack.c.b16 %v5882, %v5881
        %v5894 = vpack.c.b16 %v5884, %v5883
        %v5895 = vpack.c.b16 %v5886, %v5885
        %v5896 = vpack.c.b16 %v5888, %v5887
        %5905 = vmatprep.subr.bf16.mxu0 0
        %5906 = vmatpush1.bf16.msra.mxu0 %v5889
        %5907 = vmatprep.subr.bf16.mxu0 0
        %5908 = vmatpush1.bf16.msra.mxu0 %v5890
        %5909 = vmatprep.subr.bf16.mxu0 0
        %5910 = vmatpush1.bf16.msra.mxu0 %v5891
        %5911 = vmatprep.subr.bf16.mxu0 0
        %5912 = vmatpush1.bf16.msra.mxu0 %v5892
        %5913 = vmatprep.subr.bf16.mxu0 0
        %5914 = vmatpush1.bf16.msra.mxu0 %v5893
        %5915 = vmatprep.subr.bf16.mxu0 0
        %5916 = vmatpush1.bf16.msra.mxu0 %v5894
        %5917 = vmatprep.subr.bf16.mxu0 0
        %5918 = vmatpush1.bf16.msra.mxu0 %v5895
        %5919 = vmatprep.subr.bf16.mxu0 0
        %5920 = vmatpush1.bf16.msra.mxu0 %v5896
        %5921 = vmatprep.subr.bf16.mxu0 0
        %5922 = vmatpush1.bf16.msra.mxu0 0
        %5923 = vmatprep.subr.bf16.mxu0 0
        %5924 = vmatpush1.bf16.msra.mxu0 0
        %5925 = vmatprep.subr.bf16.mxu0 0
        %5926 = vmatpush1.bf16.msra.mxu0 0
        %5927 = vmatprep.subr.bf16.mxu0 0
        %5928 = vmatpush1.bf16.msra.mxu0 0
        %5929 = vmatprep.subr.bf16.mxu0 0
        %5930 = vmatpush1.bf16.msra.mxu0 0
        %5931 = vmatprep.subr.bf16.mxu0 0
        %5932 = vmatpush1.bf16.msra.mxu0 0
        %5933 = vmatprep.subr.bf16.mxu0 0
        %5934 = vmatpush1.bf16.msra.mxu0 0
        %5935 = vmatprep.subr.bf16.mxu0 0
        %5936 = vmatpush1.bf16.msra.mxu0 0
        %5937 = vmatprep.mubr.bf16.mxu0 0
        %5938 = vmatmul.mubr.bf16.gmra.mrb[0].mxu0 %v5837
        %v5939 = vpop.f32.mrb[0].mxu0
        %v5940 = vadd.f32 %v5856, %v5939
        %v5941 = vpop.f32.mrb[0].mxu0
        %v5942 = vpop.f32.mrb[0].mxu0
        %v5943 = vpop.f32.mrb[0].mxu0
        %5944 = vdwg.mxu0
        %v5945 = vmax.f32 %v5940, 0.0
        %v5946 = vpack.c.bf16 %v5945, %v5945
        %s5947 = scalar_lea.vmem %s10, 6
        %v5948 = vld [vmem:[%s5947] sm:$0x3]
        %s5949 = scalar_lea.vmem %s11, 3
        %v5950 = vld [vmem:[%s5949] sm:$0x1]
        %v5952 = vsel %vm873, %v5946, 0
        %v5955 = vsel %vm877, %v5948, 0
        %5957 = vmatprep.subr.bf16.mxu0 0
        %5958 = vmatpush1.bf16.msra.mxu0 %v5955
        %5959 = vmatprep.subr.bf16.mxu0 0
        %5960 = vmatpush1.bf16.msra.mxu0 0
        %5961 = vmatprep.subr.bf16.mxu0 0
        %5962 = vmatpush1.bf16.msra.mxu0 0
        %5963 = vmatprep.subr.bf16.mxu0 0
        %5964 = vmatpush1.bf16.msra.mxu0 0
        %5965 = vmatprep.subr.bf16.mxu0 0
        %5966 = vmatpush1.bf16.msra.mxu0 0
        %5967 = vmatprep.subr.bf16.mxu0 0
        %5968 = vmatpush1.bf16.msra.mxu0 0
        %5969 = vmatprep.subr.bf16.mxu0 0
        %5970 = vmatpush1.bf16.msra.mxu0 0
        %5971 = vmatprep.subr.bf16.mxu0 0
        %5972 = vmatpush1.bf16.msra.mxu0 0
        %5973 = vmatprep.subr.bf16.mxu0 0
        %5974 = vmatpush1.bf16.msra.mxu0 0
        %5975 = vmatprep.subr.bf16.mxu0 0
        %5976 = vmatpush1.bf16.msra.mxu0 0
        %5977 = vmatprep.subr.bf16.mxu0 0
        %5978 = vmatpush1.bf16.msra.mxu0 0
        %5979 = vmatprep.subr.bf16.mxu0 0
        %5980 = vmatpush1.bf16.msra.mxu0 0
        %5981 = vmatprep.subr.bf16.mxu0 0
        %5982 = vmatpush1.bf16.msra.mxu0 0
        %5983 = vmatprep.subr.bf16.mxu0 0
        %5984 = vmatpush1.bf16.msra.mxu0 0
        %5985 = vmatprep.subr.bf16.mxu0 0
        %5986 = vmatpush1.bf16.msra.mxu0 0
        %5987 = vmatprep.subr.bf16.mxu0 0
        %5988 = vmatpush1.bf16.msra.mxu0 0
        %5989 = vmatprep.mubr.bf16.mxu0 0
        %5990 = vmatmul.mubr.bf16.gmra.mrb[0].mxu0 %v5952
        %v5991 = vpop.f32.mrb[0].mxu0
        %v5992 = vadd.f32 %v5950, %v5991
        %v5993 = vpop.f32.mrb[0].mxu0
        %v5994 = vpop.f32.mrb[0].mxu0
        %v5995 = vpop.f32.mrb[0].mxu0
        %5996 = vdwg.mxu0
        %v5997 = vsub.f32 0.0, %v5992
        %v5998 = vmul.f32 %v5997, 1.442695
        %v5999 = vpow.pop %v5998
        %v6000 = vadd.f32 %v5999, 1.0
        %v6001 = vrcp.pop %v6000
        %v6002 = vmul.f32 %v5836, %v6001
        %v6003 = vpack.c.bf16 %v6002, %v6002
        %v6004 = vld [vmem:[%s12] sm:$0xf]
        %v6005 = vld [vmem:[%s12 + $0x4] sm:$0xf]
        %v6006 = vld [vmem:[%s12 + $0x8] sm:$0xf]
        %v6007 = vld [vmem:[%s12 + $0xc] sm:$0xf]
        %v6008 = vld [vmem:[%s12 + $0x10] sm:$0xf]
        %v6009 = vld [vmem:[%s12 + $0x14] sm:$0xf]
        %v6010 = vld [vmem:[%s12 + $0x18] sm:$0xf]
        %v6011 = vld [vmem:[%s12 + $0x1c] sm:$0xf]
        %v6012 = vld [vmem:[%s12 + $0x20] sm:$0xf]
        %v6013 = vld [vmem:[%s12 + $0x24] sm:$0xf]
        %v6014 = vld [vmem:[%s12 + $0x28] sm:$0xf]
        %v6015 = vld [vmem:[%s12 + $0x2c] sm:$0xf]
        %v6016 = vld [vmem:[%s12 + $0x30] sm:$0xf]
        %v6017 = vld [vmem:[%s12 + $0x34] sm:$0xf]
        %v6018 = vld [vmem:[%s12 + $0x38] sm:$0xf]
        %v6019 = vld [vmem:[%s12 + $0x3c] sm:$0xf]
        %v6020 = vld [vmem:[%s13] sm:$0x1]
        %v6037 = vunpack.c.l.b16 %v6004
        %v6038 = vunpack.c.l.b16 %v6005
        %v6039 = vunpack.c.l.b16 %v6006
        %v6040 = vunpack.c.l.b16 %v6007
        %v6041 = vunpack.c.l.b16 %v6008
        %v6042 = vunpack.c.l.b16 %v6009
        %v6043 = vunpack.c.l.b16 %v6010
        %v6044 = vunpack.c.l.b16 %v6011
        %v6045 = vunpack.c.l.b16 %v6012
        %v6046 = vunpack.c.l.b16 %v6013
        %v6047 = vunpack.c.l.b16 %v6014
        %v6048 = vunpack.c.l.b16 %v6015
        %v6049 = vunpack.c.l.b16 %v6016
        %v6050 = vunpack.c.l.b16 %v6017
        %v6051 = vunpack.c.l.b16 %v6018
        %v6052 = vunpack.c.l.b16 %v6019
        %v6053 = vpack.c.b16 %v6038, %v6037
        %v6054 = vpack.c.b16 %v6040, %v6039
        %v6055 = vpack.c.b16 %v6042, %v6041
        %v6056 = vpack.c.b16 %v6044, %v6043
        %v6057 = vpack.c.b16 %v6046, %v6045
        %v6058 = vpack.c.b16 %v6048, %v6047
        %v6059 = vpack.c.b16 %v6050, %v6049
        %v6060 = vpack.c.b16 %v6052, %v6051
        %6069 = vmatprep.subr.bf16.mxu0 0
        %6070 = vmatpush1.bf16.msra.mxu0 %v6053
        %6071 = vmatprep.subr.bf16.mxu0 0
        %6072 = vmatpush1.bf16.msra.mxu0 %v6054
        %6073 = vmatprep.subr.bf16.mxu0 0
        %6074 = vmatpush1.bf16.msra.mxu0 %v6055
        %6075 = vmatprep.subr.bf16.mxu0 0
        %6076 = vmatpush1.bf16.msra.mxu0 %v6056
        %6077 = vmatprep.subr.bf16.mxu0 0
        %6078 = vmatpush1.bf16.msra.mxu0 %v6057
        %6079 = vmatprep.subr.bf16.mxu0 0
        %6080 = vmatpush1.bf16.msra.mxu0 %v6058
        %6081 = vmatprep.subr.bf16.mxu0 0
        %6082 = vmatpush1.bf16.msra.mxu0 %v6059
        %6083 = vmatprep.subr.bf16.mxu0 0
        %6084 = vmatpush1.bf16.msra.mxu0 %v6060
        %6085 = vmatprep.subr.bf16.mxu0 0
        %6086 = vmatpush1.bf16.msra.mxu0 0
        %6087 = vmatprep.subr.bf16.mxu0 0
        %6088 = vmatpush1.bf16.msra.mxu0 0
        %6089 = vmatprep.subr.bf16.mxu0 0
        %6090 = vmatpush1.bf16.msra.mxu0 0
        %6091 = vmatprep.subr.bf16.mxu0 0
        %6092 = vmatpush1.bf16.msra.mxu0 0
        %6093 = vmatprep.subr.bf16.mxu0 0
        %6094 = vmatpush1.bf16.msra.mxu0 0
        %6095 = vmatprep.subr.bf16.mxu0 0
        %6096 = vmatpush1.bf16.msra.mxu0 0
        %6097 = vmatprep.subr.bf16.mxu0 0
        %6098 = vmatpush1.bf16.msra.mxu0 0
        %6099 = vmatprep.subr.bf16.mxu0 0
        %6100 = vmatpush1.bf16.msra.mxu0 0
        %6101 = vmatprep.mubr.bf16.mxu0 0
        %6102 = vmatmul.mubr.bf16.gmra.mrb[0].mxu0 %v6003
        %v6103 = vpop.f32.mrb[0].mxu0
        %v6104 = vadd.f32 %v6020, %v6103
        %v6105 = vpop.f32.mrb[0].mxu0
        %v6106 = vpop.f32.mrb[0].mxu0
        %v6107 = vpop.f32.mrb[0].mxu0
        %6108 = vdwg.mxu0
        %6109 = vst [vmem:[%s462] sm:$0x1] %v6104
        %s6110 = sand.u32 %s335, 1
        %s6111 = scalar_lea.sflag [#allocation4], %s6110
        %s6112 = sand.u32 %s335, 1
        %s6113 = scalar_lea.vmem [#allocation3], %s6112
        // Predicated region
        $region84: #{widecnn4_forward.1} parent=75 // pred_check
          %p6114 = pneg %p345
        $region85: #{widecnn4_forward.1} parent=75 // pred_check_branch
          %6116 = sbr.rel (%p6114) target = $region87
        $region86: #{widecnn4_forward.1} parent=75 // pred_region
          %s6118 = ssub.s32 16, 16
          %6119 = vsyncadd %s6111, %s6118
          %s6120 = smul.addr %s28, 16
          %s6121 = scalar_lea.hbm %s14, %s6120
          %s6123 = sshll.u32 %s6113, 4
          %s6124 = int_to_ptr.vmem [resolvable:$true] %s6123
          %6126 = dma.vmem_to_hbm [thread:$0]  %s6124, 16, %s6121, %s6111
        $region87: #{widecnn4_forward.1} parent=75 // pred_fallthru
          _
      $region76: #{widecnn4_forward.1} parent=5 // pred_fallthru
        _
      %p6127 = scmp.le.s32.totalorder 2, %s23
      // Predicated region
      $region88: #{widecnn4_forward.1} parent=5 // pred_check
        %p6128 = pneg %p6127
      $region89: #{widecnn4_forward.1} parent=5 // pred_check_branch
        %6130 = sbr.rel (%p6128) target = $region91
      $region90: #{widecnn4_forward.1} parent=5 // pred_region
        %s6131 = ssub.s32 %s23, 2
        // Predicated region
        $region92: #{widecnn4_forward.1} parent=90 // pred_check
          %p6132 = pneg %p351
        $region93: #{widecnn4_forward.1} parent=90 // pred_check_branch
          %6134 = sbr.rel (%p6132) target = $region95
        $region94: #{widecnn4_forward.1} parent=90 // pred_region
          %s6135 = sand.u32 %s336, 1
          %s6136 = scalar_lea.sflag [#allocation4], %s6135
          %s6137 = sand.u32 %s336, 1
          %s6138 = scalar_lea.vmem [#allocation3], %s6137
          %6139 = dma.done %s6136, 16
        $region95: #{widecnn4_forward.1} parent=90 // pred_fallthru
          _
      $region91: #{widecnn4_forward.1} parent=5 // pred_fallthru
        _
    $region6: #{widecnn4_forward.1} parent=1 // loop_footer
      %s27 = sadd.s32 1, %s23
    $region7: #{widecnn4_forward.1} parent=1 // loop_footer_branch
      %22 = sbr.rel target = $region3
    $region8: #{widecnn4_forward.1} parent=1 // loop_exit
      _
    %6140 = vsyncpa [#allocation4], 1
    %s6141 = scalar_lea.sflag [#allocation4], 1
    %6142 = vsyncpa %s6141, 1

</llo_original>
